<compile_context>
chip_gen: v5e
topology: v5e:2x2
jax: 0.10.0
libtpu: 0.0.40
codegen_flags: <defaults>
</compile_context>

<pallas_src>
import jax
import jax.numpy as jnp
from jax.experimental import pallas as pl
from jax.experimental.pallas import tpu as pltpu

# ---------------- small T5 config (synthetic, deterministic init) ----------------
D_MODEL = 32
D_FF = 64
N_HEADS = 4
D_KV = 8            # inner_dim = N_HEADS * D_KV = 32 = D_MODEL
N_LAYERS = 2
VOCAB = 64
N_BUCKETS = 8
MAX_DIST = 16
EPS = 1e-6
NEG_INF = -1e9

# ---------------- in-kernel helpers (traced inside the fused kernel) ----------------

def _rms(x, w):
    """T5LayerNorm (RMS, no mean subtraction, no bias). x: (S, D), w: (1, D)."""
    var = jnp.mean(x * x, axis=-1, keepdims=True)
    return x * jax.lax.rsqrt(var + EPS) * w


def _ffn_body(x, wi, wo):
    h = jnp.maximum(jnp.dot(x, wi, preferred_element_type=jnp.float32), 0.0)  # ReLU
    return jnp.dot(h, wo, preferred_element_type=jnp.float32)


def _mha(q_in, kv_in, bias_ref, qkv_ref, o_ref, l, k_out=None, v_out=None):
    """T5 multi-head attention (no 1/sqrt(d_kv) scaling, eval mode).

    q_in:  (Sq, D)  hidden states for queries (already layer-normed)
    kv_in: (Sk, D)  hidden states for keys/values
    bias_ref: (H, Sq, Sk) additive bias ref, or None (cross attention)
    qkv_ref:  (L, 3*H, D, D_KV) stacked per-head Q/K/V weights (proj-major, head-minor)
    o_ref:    (L, H, D_KV, D)   stacked per-head output-projection weights
    k_out/v_out: optional (L*H, 1, Sk, D_KV) output refs for the KV cache.
    Returns (Sq, D).
    """
    out = None
    for hh in range(N_HEADS):
        q = jnp.dot(q_in, qkv_ref[l, 0 * N_HEADS + hh], preferred_element_type=jnp.float32)
        k = jnp.dot(kv_in, qkv_ref[l, 1 * N_HEADS + hh], preferred_element_type=jnp.float32)
        v = jnp.dot(kv_in, qkv_ref[l, 2 * N_HEADS + hh], preferred_element_type=jnp.float32)
        if k_out is not None:
            k_out[l * N_HEADS + hh, 0] = k
            v_out[l * N_HEADS + hh, 0] = v
        s = jax.lax.dot_general(q, k, (((1,), (1,)), ((), ())),
                                preferred_element_type=jnp.float32)   # (Sq, Sk)
        if bias_ref is not None:
            s = s + bias_ref[hh]
        m = jnp.max(s, axis=-1, keepdims=True)
        p = jnp.exp(s - m)
        denom = jnp.sum(p, axis=-1, keepdims=True)
        p = p * pl.reciprocal(denom, approx=True)
        oh = jnp.dot(p, v, preferred_element_type=jnp.float32)        # (Sq, D_KV)
        proj = jnp.dot(oh, o_ref[l, hh], preferred_element_type=jnp.float32)  # (Sq, D)
        out = proj if out is None else out + proj
    return out


# ---------------- single fused Pallas kernel (encoder + decoder), grid over batch ----------------

def _t5_kernel(x_ref, ebias_ref, dbias_ref,
               eln_ref, eqkv_ref, eo_ref, ewi_ref, ewo_ref, efln_ref,
               dln_ref, sqkv_ref, so_ref, cqkv_ref, co_ref, dwi_ref, dwo_ref, dfln_ref,
               hs_ref, sk_ref, sv_ref, ck_ref, cv_ref):
    emb = x_ref[0]                                # (S, D), shared for encoder + decoder inputs

    # ----------------------------- encoder stack -----------------------------
    h = emb
    for l in range(N_LAYERS):
        normed = _rms(h, eln_ref[l, 0])
        h = h + _mha(normed, normed, ebias_ref, eqkv_ref, eo_ref, l)
        normed = _rms(h, eln_ref[l, 1])
        h = h + _ffn_body(normed, ewi_ref[l], ewo_ref[l])
    enc = _rms(h, efln_ref[...])                  # encoder output stays in VMEM/vregs

    # ----------------------------- decoder stack -----------------------------
    h = emb
    for l in range(N_LAYERS):
        hs_ref[l, 0] = h                          # HF collects hidden state at layer top
        # self attention (relative-position bias + causal mask baked into dbias_ref)
        normed = _rms(h, dln_ref[l, 0])
        h = h + _mha(normed, normed, dbias_ref, sqkv_ref, so_ref, l, sk_ref, sv_ref)
        # cross attention (no position bias in T5 -> bias add skipped entirely)
        normed = _rms(h, dln_ref[l, 1])
        h = h + _mha(normed, enc, None, cqkv_ref, co_ref, l, ck_ref, cv_ref)
        # feed-forward
        normed = _rms(h, dln_ref[l, 2])
        h = h + _ffn_body(normed, dwi_ref[l], dwo_ref[l])
    hs_ref[N_LAYERS, 0] = _rms(h, dfln_ref[...])  # final layernorm == last_hidden_state


def t5_fused_forward(emb, enc_bias, dec_bias, enc_w, dec_w):
    B, S, D = emb.shape
    L, H = N_LAYERS, N_HEADS

    full = lambda *shape: pl.BlockSpec(shape, lambda b: (0,) * len(shape))
    in_specs = [
        pl.BlockSpec((1, S, D), lambda b: (b, 0, 0)),     # shared embeddings (enc + dec input)
        full(H, S, S),                                    # encoder rel-pos bias
        full(H, S, S),                                    # decoder rel-pos + causal bias
        # encoder weights
        full(L, 2, 1, D),                                 # layernorms
        full(L, 3 * H, D, D_KV),                          # per-head Q/K/V
        full(L, H, D_KV, D),                              # per-head O
        full(L, D, D_FF),                                 # FFN wi
        full(L, D_FF, D),                                 # FFN wo
        full(1, D),                                       # final layernorm
        # decoder weights
        full(L, 3, 1, D),                                 # layernorms
        full(L, 3 * H, D, D_KV),                          # self Q/K/V
        full(L, H, D_KV, D),                              # self O
        full(L, 3 * H, D, D_KV),                          # cross Q/K/V
        full(L, H, D_KV, D),                              # cross O
        full(L, D, D_FF),                                 # FFN wi
        full(L, D_FF, D),                                 # FFN wo
        full(1, D),                                       # final layernorm
    ]
    out_shape = (
        jax.ShapeDtypeStruct((L + 1, B, S, D), jnp.float32),      # decoder hidden states stack
        jax.ShapeDtypeStruct((L * H, B, S, D_KV), jnp.float32),   # self-attn K cache
        jax.ShapeDtypeStruct((L * H, B, S, D_KV), jnp.float32),   # self-attn V cache
        jax.ShapeDtypeStruct((L * H, B, S, D_KV), jnp.float32),   # cross-attn K cache
        jax.ShapeDtypeStruct((L * H, B, S, D_KV), jnp.float32),   # cross-attn V cache
    )
    out_specs = [
        pl.BlockSpec((L + 1, 1, S, D), lambda b: (0, b, 0, 0)),
        pl.BlockSpec((L * H, 1, S, D_KV), lambda b: (0, b, 0, 0)),
        pl.BlockSpec((L * H, 1, S, D_KV), lambda b: (0, b, 0, 0)),
        pl.BlockSpec((L * H, 1, S, D_KV), lambda b: (0, b, 0, 0)),
        pl.BlockSpec((L * H, 1, S, D_KV), lambda b: (0, b, 0, 0)),
    ]
    return pl.pallas_call(
        _t5_kernel,
        grid=(B,),
        in_specs=in_specs,
        out_specs=out_specs,
        out_shape=out_shape,
        compiler_params=pltpu.CompilerParams(dimension_semantics=("parallel",)),
    )(emb, enc_bias, dec_bias,
      enc_w["ln"], enc_w["qkv"], enc_w["o"], enc_w["wi"], enc_w["wo"], enc_w["fln"],
      dec_w["ln"], dec_w["sqkv"], dec_w["so"], dec_w["cqkv"], dec_w["co"],
      dec_w["wi"], dec_w["wo"], dec_w["fln"])


# ---------------- T5 glue (plain JAX) ----------------

def _relative_position_bucket(relative_position, bidirectional, num_buckets, max_distance):
    relative_buckets = jnp.zeros_like(relative_position)
    if bidirectional:
        num_buckets //= 2
        relative_buckets = relative_buckets + (relative_position > 0).astype(jnp.int32) * num_buckets
        relative_position = jnp.abs(relative_position)
    else:
        relative_position = -jnp.minimum(relative_position, 0)
    max_exact = num_buckets // 2
    is_small = relative_position < max_exact
    rp_safe = jnp.maximum(relative_position, 1).astype(jnp.float32)
    rel_if_large = max_exact + (
        jnp.log(rp_safe / max_exact) / jnp.log(max_distance / max_exact) * (num_buckets - max_exact)
    ).astype(jnp.int32)
    rel_if_large = jnp.minimum(rel_if_large, num_buckets - 1)
    relative_buckets = relative_buckets + jnp.where(is_small, relative_position, rel_if_large)
    return relative_buckets


def compute_bias(rel_bias_table, q_len, k_len, bidirectional):
    context_position = jnp.arange(q_len, dtype=jnp.int32)[:, None]
    memory_position = jnp.arange(k_len, dtype=jnp.int32)[None, :]
    relative_position = memory_position - context_position
    buckets = _relative_position_bucket(relative_position, bidirectional, N_BUCKETS, MAX_DIST)
    values = rel_bias_table[buckets]              # (q, k, H)
    return values.transpose(2, 0, 1)              # (H, q, k)


def wrap_t5_forward(params, input_ids):
    B, S = input_ids.shape
    emb = params["shared"][input_ids]             # embedding gather (glue), (B, S, D)

    # additive biases (computed once; shared across layers, as in T5)
    enc_bias = compute_bias(params["enc_rel_bias"], S, S, bidirectional=True)     # (H, S, S)
    dec_bias = compute_bias(params["dec_rel_bias"], S, S, bidirectional=False)
    causal = jnp.tril(jnp.ones((S, S), jnp.float32))
    dec_bias = dec_bias + (1.0 - causal)[None] * NEG_INF                          # (H, S, S)

    # one fused Pallas kernel: encoder stack -> decoder stack (decoder_input_ids = input_ids)
    hs, sk, sv, ck, cv = t5_fused_forward(emb, enc_bias, dec_bias,
                                          params["enc"], params["dec"])

    last = hs[N_LAYERS]                                                           # (B, S, D)
    decoder_hidden_states = tuple(hs[i] for i in range(N_LAYERS + 1))

    def to_bhsd(x):   # (L*H, B, S, D_KV) -> (L, B, H, S, D_KV)  (HF cache layout)
        return jnp.transpose(x.reshape(N_LAYERS, N_HEADS, B, S, D_KV), (0, 2, 1, 3, 4))

    sk, sv, ck, cv = to_bhsd(sk), to_bhsd(sv), to_bhsd(ck), to_bhsd(cv)
    past_key_values = tuple((sk[l], sv[l], ck[l], cv[l]) for l in range(N_LAYERS))

    # results[:3] of HF Seq2SeqModelOutput(output_hidden_states=True, use_cache=True)
    return last, past_key_values, decoder_hidden_states


# ---------------- deterministic parameter init (T5-style scales, packed layout) ----------------

def init_params(key):
    keys = iter(jax.random.split(key, 128))

    def dense(shape, scale):
        return jax.random.normal(next(keys), shape, jnp.float32) * scale

    def attn_packed():
        q = dense((N_HEADS, D_MODEL, D_KV), (D_MODEL * D_KV) ** -0.5)
        k = dense((N_HEADS, D_MODEL, D_KV), D_MODEL ** -0.5)
        v = dense((N_HEADS, D_MODEL, D_KV), D_MODEL ** -0.5)
        o = dense((N_HEADS, D_KV, D_MODEL), (N_HEADS * D_KV) ** -0.5)
        return jnp.concatenate([q, k, v], axis=0), o    # (3H, D, D_KV), (H, D_KV, D)

    enc_qkv, enc_o, enc_wi, enc_wo = [], [], [], []
    for _ in range(N_LAYERS):
        qkv, o = attn_packed()
        enc_qkv.append(qkv); enc_o.append(o)
        enc_wi.append(dense((D_MODEL, D_FF), D_MODEL ** -0.5))
        enc_wo.append(dense((D_FF, D_MODEL), D_FF ** -0.5))

    dec_sqkv, dec_so, dec_cqkv, dec_co, dec_wi, dec_wo = [], [], [], [], [], []
    for _ in range(N_LAYERS):
        qkv, o = attn_packed(); dec_sqkv.append(qkv); dec_so.append(o)
        qkv, o = attn_packed(); dec_cqkv.append(qkv); dec_co.append(o)
        dec_wi.append(dense((D_MODEL, D_FF), D_MODEL ** -0.5))
        dec_wo.append(dense((D_FF, D_MODEL), D_FF ** -0.5))

    params = {
        "shared": jax.random.normal(next(keys), (VOCAB, D_MODEL), jnp.float32),
        "enc_rel_bias": dense((N_BUCKETS, N_HEADS), D_MODEL ** -0.5),
        "dec_rel_bias": dense((N_BUCKETS, N_HEADS), D_MODEL ** -0.5),
        "enc": {
            "ln": jnp.ones((N_LAYERS, 2, 1, D_MODEL), jnp.float32),
            "qkv": jnp.stack(enc_qkv), "o": jnp.stack(enc_o),
            "wi": jnp.stack(enc_wi), "wo": jnp.stack(enc_wo),
            "fln": jnp.ones((1, D_MODEL), jnp.float32),
        },
        "dec": {
            "ln": jnp.ones((N_LAYERS, 3, 1, D_MODEL), jnp.float32),
            "sqkv": jnp.stack(dec_sqkv), "so": jnp.stack(dec_so),
            "cqkv": jnp.stack(dec_cqkv), "co": jnp.stack(dec_co),
            "wi": jnp.stack(dec_wi), "wo": jnp.stack(dec_wo),
            "fln": jnp.ones((1, D_MODEL), jnp.float32),
        },
    }
    # TODO(synk): dropout layers omitted (module is evaluated in eval mode).
    return params


if __name__ == "__main__":
    root = jax.random.PRNGKey(0)
    k_params, k_ids = jax.random.split(root)
    params = init_params(k_params)
    input_ids = jax.random.randint(k_ids, (2, 8), 0, VOCAB, dtype=jnp.int32)

    fwd = jax.jit(wrap_t5_forward)
    out = fwd(params, input_ids)
    jax.block_until_ready(out)

    last, pkv, dec_hs = out
    assert last.shape == (2, 8, D_MODEL)
    assert len(pkv) == N_LAYERS and pkv[0][0].shape == (2, N_HEADS, 8, D_KV)
    assert len(dec_hs) == N_LAYERS + 1
    print("KERNEL_OK")
</pallas_src>

<mosaic_0001>
module attributes {stable_mosaic.version = 11 : i64} {
  func.func @_t5_kernel(%arg0: i32, %arg1: memref<1x8x32xf32, #tpu.memory_space<vmem>>, %arg2: memref<4x8x8xf32, #tpu.memory_space<vmem>>, %arg3: memref<4x8x8xf32, #tpu.memory_space<vmem>>, %arg4: memref<2x2x1x32xf32, #tpu.memory_space<vmem>>, %arg5: memref<2x12x32x8xf32, #tpu.memory_space<vmem>>, %arg6: memref<2x4x8x32xf32, #tpu.memory_space<vmem>>, %arg7: memref<2x32x64xf32, #tpu.memory_space<vmem>>, %arg8: memref<2x64x32xf32, #tpu.memory_space<vmem>>, %arg9: memref<1x32xf32, #tpu.memory_space<vmem>>, %arg10: memref<2x3x1x32xf32, #tpu.memory_space<vmem>>, %arg11: memref<2x12x32x8xf32, #tpu.memory_space<vmem>>, %arg12: memref<2x4x8x32xf32, #tpu.memory_space<vmem>>, %arg13: memref<2x12x32x8xf32, #tpu.memory_space<vmem>>, %arg14: memref<2x4x8x32xf32, #tpu.memory_space<vmem>>, %arg15: memref<2x32x64xf32, #tpu.memory_space<vmem>>, %arg16: memref<2x64x32xf32, #tpu.memory_space<vmem>>, %arg17: memref<1x32xf32, #tpu.memory_space<vmem>>, %arg18: memref<3x1x8x32xf32, #tpu.memory_space<vmem>>, %arg19: memref<8x1x8x8xf32, #tpu.memory_space<vmem>>, %arg20: memref<8x1x8x8xf32, #tpu.memory_space<vmem>>, %arg21: memref<8x1x8x8xf32, #tpu.memory_space<vmem>>, %arg22: memref<8x1x8x8xf32, #tpu.memory_space<vmem>>) attributes {dimension_semantics = [#tpu.dimension_semantics<parallel>], iteration_bounds = array<i64: 2>, scalar_prefetch = 0 : i64, scratch_operands = 0 : i64, tpu.core_type = #tpu.core_type<tc>, window_params = [{transform_indices = @transform_0, window_bounds = array<i64: 1, 8, 32>}, {pipeline_mode = #tpu.pipeline_mode<synchronous>, transform_indices = @transform_1, window_bounds = array<i64: 4, 8, 8>}, {pipeline_mode = #tpu.pipeline_mode<synchronous>, transform_indices = @transform_2, window_bounds = array<i64: 4, 8, 8>}, {pipeline_mode = #tpu.pipeline_mode<synchronous>, transform_indices = @transform_3, window_bounds = array<i64: 2, 2, 1, 32>}, {pipeline_mode = #tpu.pipeline_mode<synchronous>, transform_indices = @transform_4, window_bounds = array<i64: 2, 12, 32, 8>}, {pipeline_mode = #tpu.pipeline_mode<synchronous>, transform_indices = @transform_5, window_bounds = array<i64: 2, 4, 8, 32>}, {pipeline_mode = #tpu.pipeline_mode<synchronous>, transform_indices = @transform_6, window_bounds = array<i64: 2, 32, 64>}, {pipeline_mode = #tpu.pipeline_mode<synchronous>, transform_indices = @transform_7, window_bounds = array<i64: 2, 64, 32>}, {pipeline_mode = #tpu.pipeline_mode<synchronous>, transform_indices = @transform_8, window_bounds = array<i64: 1, 32>}, {pipeline_mode = #tpu.pipeline_mode<synchronous>, transform_indices = @transform_9, window_bounds = array<i64: 2, 3, 1, 32>}, {pipeline_mode = #tpu.pipeline_mode<synchronous>, transform_indices = @transform_10, window_bounds = array<i64: 2, 12, 32, 8>}, {pipeline_mode = #tpu.pipeline_mode<synchronous>, transform_indices = @transform_11, window_bounds = array<i64: 2, 4, 8, 32>}, {pipeline_mode = #tpu.pipeline_mode<synchronous>, transform_indices = @transform_12, window_bounds = array<i64: 2, 12, 32, 8>}, {pipeline_mode = #tpu.pipeline_mode<synchronous>, transform_indices = @transform_13, window_bounds = array<i64: 2, 4, 8, 32>}, {pipeline_mode = #tpu.pipeline_mode<synchronous>, transform_indices = @transform_14, window_bounds = array<i64: 2, 32, 64>}, {pipeline_mode = #tpu.pipeline_mode<synchronous>, transform_indices = @transform_15, window_bounds = array<i64: 2, 64, 32>}, {pipeline_mode = #tpu.pipeline_mode<synchronous>, transform_indices = @transform_16, window_bounds = array<i64: 1, 32>}, {transform_indices = @transform_17, window_bounds = array<i64: 3, 1, 8, 32>}, {transform_indices = @transform_18, window_bounds = array<i64: 8, 1, 8, 8>}, {transform_indices = @transform_19, window_bounds = array<i64: 8, 1, 8, 8>}, {transform_indices = @transform_20, window_bounds = array<i64: 8, 1, 8, 8>}, {transform_indices = @transform_21, window_bounds = array<i64: 8, 1, 8, 8>}]} {
    %c0 = arith.constant 0 : index
    %c0_0 = arith.constant 0 : index
    %c0_1 = arith.constant 0 : index
    %0 = vector.load %arg1[%c0, %c0_0, %c0_1] : memref<1x8x32xf32, #tpu.memory_space<vmem>>, vector<1x8x32xf32>
    %1 = vector.shape_cast %0 : vector<1x8x32xf32> to vector<8x32xf32>
    %c0_2 = arith.constant 0 : index
    %c0_3 = arith.constant 0 : index
    %c0_4 = arith.constant 0 : index
    %c0_5 = arith.constant 0 : index
    %2 = vector.load %arg4[%c0_2, %c0_3, %c0_4, %c0_5] : memref<2x2x1x32xf32, #tpu.memory_space<vmem>>, vector<1x1x1x32xf32>
    %3 = vector.shape_cast %2 : vector<1x1x1x32xf32> to vector<1x32xf32>
    %4 = arith.mulf %1, %1 : vector<8x32xf32>
    %cst = arith.constant dense<0.000000e+00> : vector<8xf32>
    %5 = vector.multi_reduction <add>, %4, %cst [1] : vector<8x32xf32> to vector<8xf32>
    %6 = vector.shape_cast %5 : vector<8xf32> to vector<8x1xf32>
    %cst_6 = arith.constant 3.200000e+01 : f32
    %7 = vector.broadcast %cst_6 : f32 to vector<8x1xf32>
    %8 = arith.divf %6, %7 : vector<8x1xf32>
    %cst_7 = arith.constant 9.99999997E-7 : f32
    %9 = vector.broadcast %cst_7 : f32 to vector<8x1xf32>
    %10 = arith.addf %8, %9 : vector<8x1xf32>
    %11 = math.rsqrt %10 : vector<8x1xf32>
    %12 = vector.broadcast %11 : vector<8x1xf32> to vector<8x32xf32>
    %13 = arith.mulf %1, %12 : vector<8x32xf32>
    %14 = vector.broadcast %3 : vector<1x32xf32> to vector<8x32xf32>
    %15 = arith.mulf %13, %14 : vector<8x32xf32>
    %c0_8 = arith.constant 0 : index
    %c0_9 = arith.constant 0 : index
    %c0_10 = arith.constant 0 : index
    %c0_11 = arith.constant 0 : index
    %16 = vector.load %arg5[%c0_8, %c0_9, %c0_10, %c0_11] : memref<2x12x32x8xf32, #tpu.memory_space<vmem>>, vector<1x1x32x8xf32>
    %17 = vector.shape_cast %16 : vector<1x1x32x8xf32> to vector<32x8xf32>
    %cst_12 = arith.constant dense<0.000000e+00> : vector<8x8xf32>
    %18 = tpu.matmul %15, %17, %cst_12 {dimension_numbers = #tpu.dot_dimension_numbers<[1], [0], [0], [1], [0, 0, 1, 1], [], []>} : vector<8x32xf32>, vector<32x8xf32>, vector<8x8xf32> -> vector<8x8xf32>
    %c0_13 = arith.constant 0 : index
    %c4 = arith.constant 4 : index
    %c0_14 = arith.constant 0 : index
    %c0_15 = arith.constant 0 : index
    %19 = vector.load %arg5[%c0_13, %c4, %c0_14, %c0_15] : memref<2x12x32x8xf32, #tpu.memory_space<vmem>>, vector<1x1x32x8xf32>
    %20 = vector.shape_cast %19 : vector<1x1x32x8xf32> to vector<32x8xf32>
    %cst_16 = arith.constant dense<0.000000e+00> : vector<8x8xf32>
    %21 = tpu.matmul %15, %20, %cst_16 {dimension_numbers = #tpu.dot_dimension_numbers<[1], [0], [0], [1], [0, 0, 1, 1], [], []>} : vector<8x32xf32>, vector<32x8xf32>, vector<8x8xf32> -> vector<8x8xf32>
    %c0_17 = arith.constant 0 : index
    %c8 = arith.constant 8 : index
    %c0_18 = arith.constant 0 : index
    %c0_19 = arith.constant 0 : index
    %22 = vector.load %arg5[%c0_17, %c8, %c0_18, %c0_19] : memref<2x12x32x8xf32, #tpu.memory_space<vmem>>, vector<1x1x32x8xf32>
    %23 = vector.shape_cast %22 : vector<1x1x32x8xf32> to vector<32x8xf32>
    %cst_20 = arith.constant dense<0.000000e+00> : vector<8x8xf32>
    %24 = tpu.matmul %15, %23, %cst_20 {dimension_numbers = #tpu.dot_dimension_numbers<[1], [0], [0], [1], [0, 0, 1, 1], [], []>} : vector<8x32xf32>, vector<32x8xf32>, vector<8x8xf32> -> vector<8x8xf32>
    %cst_21 = arith.constant dense<0.000000e+00> : vector<8x8xf32>
    %25 = tpu.matmul %18, %21, %cst_21 {dimension_numbers = #tpu.dot_dimension_numbers<[1], [1], [0], [0], [0, 0, 1, 0], [], []>} : vector<8x8xf32>, vector<8x8xf32>, vector<8x8xf32> -> vector<8x8xf32>
    %c0_22 = arith.constant 0 : index
    %c0_23 = arith.constant 0 : index
    %c0_24 = arith.constant 0 : index
    %26 = vector.load %arg2[%c0_22, %c0_23, %c0_24] : memref<4x8x8xf32, #tpu.memory_space<vmem>>, vector<1x8x8xf32>
    %27 = vector.shape_cast %26 : vector<1x8x8xf32> to vector<8x8xf32>
    %28 = arith.addf %25, %27 : vector<8x8xf32>
    %cst_25 = arith.constant dense<0xFF800000> : vector<8xf32>
    %29 = vector.multi_reduction <maximumf>, %28, %cst_25 [1] : vector<8x8xf32> to vector<8xf32>
    %30 = vector.shape_cast %29 : vector<8xf32> to vector<8x1xf32>
    %31 = vector.broadcast %30 : vector<8x1xf32> to vector<8x8xf32>
    %32 = arith.subf %28, %31 : vector<8x8xf32>
    %33 = math.exp %32 : vector<8x8xf32>
    %cst_26 = arith.constant dense<0.000000e+00> : vector<8xf32>
    %34 = vector.multi_reduction <add>, %33, %cst_26 [1] : vector<8x8xf32> to vector<8xf32>
    %35 = vector.shape_cast %34 : vector<8xf32> to vector<8x1xf32>
    %36 = tpu.reciprocal %35 {approx = true} : vector<8x1xf32> -> vector<8x1xf32>
    %37 = vector.broadcast %36 : vector<8x1xf32> to vector<8x8xf32>
    %38 = arith.mulf %33, %37 : vector<8x8xf32>
    %cst_27 = arith.constant dense<0.000000e+00> : vector<8x8xf32>
    %39 = tpu.matmul %38, %24, %cst_27 {dimension_numbers = #tpu.dot_dimension_numbers<[1], [0], [0], [1], [0, 0, 1, 1], [], []>} : vector<8x8xf32>, vector<8x8xf32>, vector<8x8xf32> -> vector<8x8xf32>
    %c0_28 = arith.constant 0 : index
    %c0_29 = arith.constant 0 : index
    %c0_30 = arith.constant 0 : index
    %c0_31 = arith.constant 0 : index
    %40 = vector.load %arg6[%c0_28, %c0_29, %c0_30, %c0_31] : memref<2x4x8x32xf32, #tpu.memory_space<vmem>>, vector<1x1x8x32xf32>
    %41 = vector.shape_cast %40 : vector<1x1x8x32xf32> to vector<8x32xf32>
    %cst_32 = arith.constant dense<0.000000e+00> : vector<8x32xf32>
    %42 = tpu.matmul %39, %41, %cst_32 {dimension_numbers = #tpu.dot_dimension_numbers<[1], [0], [0], [1], [0, 0, 1, 1], [], []>} : vector<8x8xf32>, vector<8x32xf32>, vector<8x32xf32> -> vector<8x32xf32>
    %c0_33 = arith.constant 0 : index
    %c1 = arith.constant 1 : index
    %c0_34 = arith.constant 0 : index
    %c0_35 = arith.constant 0 : index
    %43 = vector.load %arg5[%c0_33, %c1, %c0_34, %c0_35] : memref<2x12x32x8xf32, #tpu.memory_space<vmem>>, vector<1x1x32x8xf32>
    %44 = vector.shape_cast %43 : vector<1x1x32x8xf32> to vector<32x8xf32>
    %cst_36 = arith.constant dense<0.000000e+00> : vector<8x8xf32>
    %45 = tpu.matmul %15, %44, %cst_36 {dimension_numbers = #tpu.dot_dimension_numbers<[1], [0], [0], [1], [0, 0, 1, 1], [], []>} : vector<8x32xf32>, vector<32x8xf32>, vector<8x8xf32> -> vector<8x8xf32>
    %c0_37 = arith.constant 0 : index
    %c5 = arith.constant 5 : index
    %c0_38 = arith.constant 0 : index
    %c0_39 = arith.constant 0 : index
    %46 = vector.load %arg5[%c0_37, %c5, %c0_38, %c0_39] : memref<2x12x32x8xf32, #tpu.memory_space<vmem>>, vector<1x1x32x8xf32>
    %47 = vector.shape_cast %46 : vector<1x1x32x8xf32> to vector<32x8xf32>
    %cst_40 = arith.constant dense<0.000000e+00> : vector<8x8xf32>
    %48 = tpu.matmul %15, %47, %cst_40 {dimension_numbers = #tpu.dot_dimension_numbers<[1], [0], [0], [1], [0, 0, 1, 1], [], []>} : vector<8x32xf32>, vector<32x8xf32>, vector<8x8xf32> -> vector<8x8xf32>
    %c0_41 = arith.constant 0 : index
    %c9 = arith.constant 9 : index
    %c0_42 = arith.constant 0 : index
    %c0_43 = arith.constant 0 : index
    %49 = vector.load %arg5[%c0_41, %c9, %c0_42, %c0_43] : memref<2x12x32x8xf32, #tpu.memory_space<vmem>>, vector<1x1x32x8xf32>
    %50 = vector.shape_cast %49 : vector<1x1x32x8xf32> to vector<32x8xf32>
    %cst_44 = arith.constant dense<0.000000e+00> : vector<8x8xf32>
    %51 = tpu.matmul %15, %50, %cst_44 {dimension_numbers = #tpu.dot_dimension_numbers<[1], [0], [0], [1], [0, 0, 1, 1], [], []>} : vector<8x32xf32>, vector<32x8xf32>, vector<8x8xf32> -> vector<8x8xf32>
    %cst_45 = arith.constant dense<0.000000e+00> : vector<8x8xf32>
    %52 = tpu.matmul %45, %48, %cst_45 {dimension_numbers = #tpu.dot_dimension_numbers<[1], [1], [0], [0], [0, 0, 1, 0], [], []>} : vector<8x8xf32>, vector<8x8xf32>, vector<8x8xf32> -> vector<8x8xf32>
    %c1_46 = arith.constant 1 : index
    %c0_47 = arith.constant 0 : index
    %c0_48 = arith.constant 0 : index
    %53 = vector.load %arg2[%c1_46, %c0_47, %c0_48] : memref<4x8x8xf32, #tpu.memory_space<vmem>>, vector<1x8x8xf32>
    %54 = vector.shape_cast %53 : vector<1x8x8xf32> to vector<8x8xf32>
    %55 = arith.addf %52, %54 : vector<8x8xf32>
    %cst_49 = arith.constant dense<0xFF800000> : vector<8xf32>
    %56 = vector.multi_reduction <maximumf>, %55, %cst_49 [1] : vector<8x8xf32> to vector<8xf32>
    %57 = vector.shape_cast %56 : vector<8xf32> to vector<8x1xf32>
    %58 = vector.broadcast %57 : vector<8x1xf32> to vector<8x8xf32>
    %59 = arith.subf %55, %58 : vector<8x8xf32>
    %60 = math.exp %59 : vector<8x8xf32>
    %cst_50 = arith.constant dense<0.000000e+00> : vector<8xf32>
    %61 = vector.multi_reduction <add>, %60, %cst_50 [1] : vector<8x8xf32> to vector<8xf32>
    %62 = vector.shape_cast %61 : vector<8xf32> to vector<8x1xf32>
    %63 = tpu.reciprocal %62 {approx = true} : vector<8x1xf32> -> vector<8x1xf32>
    %64 = vector.broadcast %63 : vector<8x1xf32> to vector<8x8xf32>
    %65 = arith.mulf %60, %64 : vector<8x8xf32>
    %cst_51 = arith.constant dense<0.000000e+00> : vector<8x8xf32>
    %66 = tpu.matmul %65, %51, %cst_51 {dimension_numbers = #tpu.dot_dimension_numbers<[1], [0], [0], [1], [0, 0, 1, 1], [], []>} : vector<8x8xf32>, vector<8x8xf32>, vector<8x8xf32> -> vector<8x8xf32>
    %c0_52 = arith.constant 0 : index
    %c1_53 = arith.constant 1 : index
    %c0_54 = arith.constant 0 : index
    %c0_55 = arith.constant 0 : index
    %67 = vector.load %arg6[%c0_52, %c1_53, %c0_54, %c0_55] : memref<2x4x8x32xf32, #tpu.memory_space<vmem>>, vector<1x1x8x32xf32>
    %68 = vector.shape_cast %67 : vector<1x1x8x32xf32> to vector<8x32xf32>
    %cst_56 = arith.constant dense<0.000000e+00> : vector<8x32xf32>
    %69 = tpu.matmul %66, %68, %cst_56 {dimension_numbers = #tpu.dot_dimension_numbers<[1], [0], [0], [1], [0, 0, 1, 1], [], []>} : vector<8x8xf32>, vector<8x32xf32>, vector<8x32xf32> -> vector<8x32xf32>
    %70 = arith.addf %42, %69 : vector<8x32xf32>
    %c0_57 = arith.constant 0 : index
    %c2 = arith.constant 2 : index
    %c0_58 = arith.constant 0 : index
    %c0_59 = arith.constant 0 : index
    %71 = vector.load %arg5[%c0_57, %c2, %c0_58, %c0_59] : memref<2x12x32x8xf32, #tpu.memory_space<vmem>>, vector<1x1x32x8xf32>
    %72 = vector.shape_cast %71 : vector<1x1x32x8xf32> to vector<32x8xf32>
    %cst_60 = arith.constant dense<0.000000e+00> : vector<8x8xf32>
    %73 = tpu.matmul %15, %72, %cst_60 {dimension_numbers = #tpu.dot_dimension_numbers<[1], [0], [0], [1], [0, 0, 1, 1], [], []>} : vector<8x32xf32>, vector<32x8xf32>, vector<8x8xf32> -> vector<8x8xf32>
    %c0_61 = arith.constant 0 : index
    %c6 = arith.constant 6 : index
    %c0_62 = arith.constant 0 : index
    %c0_63 = arith.constant 0 : index
    %74 = vector.load %arg5[%c0_61, %c6, %c0_62, %c0_63] : memref<2x12x32x8xf32, #tpu.memory_space<vmem>>, vector<1x1x32x8xf32>
    %75 = vector.shape_cast %74 : vector<1x1x32x8xf32> to vector<32x8xf32>
    %cst_64 = arith.constant dense<0.000000e+00> : vector<8x8xf32>
    %76 = tpu.matmul %15, %75, %cst_64 {dimension_numbers = #tpu.dot_dimension_numbers<[1], [0], [0], [1], [0, 0, 1, 1], [], []>} : vector<8x32xf32>, vector<32x8xf32>, vector<8x8xf32> -> vector<8x8xf32>
    %c0_65 = arith.constant 0 : index
    %c10 = arith.constant 10 : index
    %c0_66 = arith.constant 0 : index
    %c0_67 = arith.constant 0 : index
    %77 = vector.load %arg5[%c0_65, %c10, %c0_66, %c0_67] : memref<2x12x32x8xf32, #tpu.memory_space<vmem>>, vector<1x1x32x8xf32>
    %78 = vector.shape_cast %77 : vector<1x1x32x8xf32> to vector<32x8xf32>
    %cst_68 = arith.constant dense<0.000000e+00> : vector<8x8xf32>
    %79 = tpu.matmul %15, %78, %cst_68 {dimension_numbers = #tpu.dot_dimension_numbers<[1], [0], [0], [1], [0, 0, 1, 1], [], []>} : vector<8x32xf32>, vector<32x8xf32>, vector<8x8xf32> -> vector<8x8xf32>
    %cst_69 = arith.constant dense<0.000000e+00> : vector<8x8xf32>
    %80 = tpu.matmul %73, %76, %cst_69 {dimension_numbers = #tpu.dot_dimension_numbers<[1], [1], [0], [0], [0, 0, 1, 0], [], []>} : vector<8x8xf32>, vector<8x8xf32>, vector<8x8xf32> -> vector<8x8xf32>
    %c2_70 = arith.constant 2 : index
    %c0_71 = arith.constant 0 : index
    %c0_72 = arith.constant 0 : index
    %81 = vector.load %arg2[%c2_70, %c0_71, %c0_72] : memref<4x8x8xf32, #tpu.memory_space<vmem>>, vector<1x8x8xf32>
    %82 = vector.shape_cast %81 : vector<1x8x8xf32> to vector<8x8xf32>
    %83 = arith.addf %80, %82 : vector<8x8xf32>
    %cst_73 = arith.constant dense<0xFF800000> : vector<8xf32>
    %84 = vector.multi_reduction <maximumf>, %83, %cst_73 [1] : vector<8x8xf32> to vector<8xf32>
    %85 = vector.shape_cast %84 : vector<8xf32> to vector<8x1xf32>
    %86 = vector.broadcast %85 : vector<8x1xf32> to vector<8x8xf32>
    %87 = arith.subf %83, %86 : vector<8x8xf32>
    %88 = math.exp %87 : vector<8x8xf32>
    %cst_74 = arith.constant dense<0.000000e+00> : vector<8xf32>
    %89 = vector.multi_reduction <add>, %88, %cst_74 [1] : vector<8x8xf32> to vector<8xf32>
    %90 = vector.shape_cast %89 : vector<8xf32> to vector<8x1xf32>
    %91 = tpu.reciprocal %90 {approx = true} : vector<8x1xf32> -> vector<8x1xf32>
    %92 = vector.broadcast %91 : vector<8x1xf32> to vector<8x8xf32>
    %93 = arith.mulf %88, %92 : vector<8x8xf32>
    %cst_75 = arith.constant dense<0.000000e+00> : vector<8x8xf32>
    %94 = tpu.matmul %93, %79, %cst_75 {dimension_numbers = #tpu.dot_dimension_numbers<[1], [0], [0], [1], [0, 0, 1, 1], [], []>} : vector<8x8xf32>, vector<8x8xf32>, vector<8x8xf32> -> vector<8x8xf32>
    %c0_76 = arith.constant 0 : index
    %c2_77 = arith.constant 2 : index
    %c0_78 = arith.constant 0 : index
    %c0_79 = arith.constant 0 : index
    %95 = vector.load %arg6[%c0_76, %c2_77, %c0_78, %c0_79] : memref<2x4x8x32xf32, #tpu.memory_space<vmem>>, vector<1x1x8x32xf32>
    %96 = vector.shape_cast %95 : vector<1x1x8x32xf32> to vector<8x32xf32>
    %cst_80 = arith.constant dense<0.000000e+00> : vector<8x32xf32>
    %97 = tpu.matmul %94, %96, %cst_80 {dimension_numbers = #tpu.dot_dimension_numbers<[1], [0], [0], [1], [0, 0, 1, 1], [], []>} : vector<8x8xf32>, vector<8x32xf32>, vector<8x32xf32> -> vector<8x32xf32>
    %98 = arith.addf %70, %97 : vector<8x32xf32>
    %c0_81 = arith.constant 0 : index
    %c3 = arith.constant 3 : index
    %c0_82 = arith.constant 0 : index
    %c0_83 = arith.constant 0 : index
    %99 = vector.load %arg5[%c0_81, %c3, %c0_82, %c0_83] : memref<2x12x32x8xf32, #tpu.memory_space<vmem>>, vector<1x1x32x8xf32>
    %100 = vector.shape_cast %99 : vector<1x1x32x8xf32> to vector<32x8xf32>
    %cst_84 = arith.constant dense<0.000000e+00> : vector<8x8xf32>
    %101 = tpu.matmul %15, %100, %cst_84 {dimension_numbers = #tpu.dot_dimension_numbers<[1], [0], [0], [1], [0, 0, 1, 1], [], []>} : vector<8x32xf32>, vector<32x8xf32>, vector<8x8xf32> -> vector<8x8xf32>
    %c0_85 = arith.constant 0 : index
    %c7 = arith.constant 7 : index
    %c0_86 = arith.constant 0 : index
    %c0_87 = arith.constant 0 : index
    %102 = vector.load %arg5[%c0_85, %c7, %c0_86, %c0_87] : memref<2x12x32x8xf32, #tpu.memory_space<vmem>>, vector<1x1x32x8xf32>
    %103 = vector.shape_cast %102 : vector<1x1x32x8xf32> to vector<32x8xf32>
    %cst_88 = arith.constant dense<0.000000e+00> : vector<8x8xf32>
    %104 = tpu.matmul %15, %103, %cst_88 {dimension_numbers = #tpu.dot_dimension_numbers<[1], [0], [0], [1], [0, 0, 1, 1], [], []>} : vector<8x32xf32>, vector<32x8xf32>, vector<8x8xf32> -> vector<8x8xf32>
    %c0_89 = arith.constant 0 : index
    %c11 = arith.constant 11 : index
    %c0_90 = arith.constant 0 : index
    %c0_91 = arith.constant 0 : index
    %105 = vector.load %arg5[%c0_89, %c11, %c0_90, %c0_91] : memref<2x12x32x8xf32, #tpu.memory_space<vmem>>, vector<1x1x32x8xf32>
    %106 = vector.shape_cast %105 : vector<1x1x32x8xf32> to vector<32x8xf32>
    %cst_92 = arith.constant dense<0.000000e+00> : vector<8x8xf32>
    %107 = tpu.matmul %15, %106, %cst_92 {dimension_numbers = #tpu.dot_dimension_numbers<[1], [0], [0], [1], [0, 0, 1, 1], [], []>} : vector<8x32xf32>, vector<32x8xf32>, vector<8x8xf32> -> vector<8x8xf32>
    %cst_93 = arith.constant dense<0.000000e+00> : vector<8x8xf32>
    %108 = tpu.matmul %101, %104, %cst_93 {dimension_numbers = #tpu.dot_dimension_numbers<[1], [1], [0], [0], [0, 0, 1, 0], [], []>} : vector<8x8xf32>, vector<8x8xf32>, vector<8x8xf32> -> vector<8x8xf32>
    %c3_94 = arith.constant 3 : index
    %c0_95 = arith.constant 0 : index
    %c0_96 = arith.constant 0 : index
    %109 = vector.load %arg2[%c3_94, %c0_95, %c0_96] : memref<4x8x8xf32, #tpu.memory_space<vmem>>, vector<1x8x8xf32>
    %110 = vector.shape_cast %109 : vector<1x8x8xf32> to vector<8x8xf32>
    %111 = arith.addf %108, %110 : vector<8x8xf32>
    %cst_97 = arith.constant dense<0xFF800000> : vector<8xf32>
    %112 = vector.multi_reduction <maximumf>, %111, %cst_97 [1] : vector<8x8xf32> to vector<8xf32>
    %113 = vector.shape_cast %112 : vector<8xf32> to vector<8x1xf32>
    %114 = vector.broadcast %113 : vector<8x1xf32> to vector<8x8xf32>
    %115 = arith.subf %111, %114 : vector<8x8xf32>
    %116 = math.exp %115 : vector<8x8xf32>
    %cst_98 = arith.constant dense<0.000000e+00> : vector<8xf32>
    %117 = vector.multi_reduction <add>, %116, %cst_98 [1] : vector<8x8xf32> to vector<8xf32>
    %118 = vector.shape_cast %117 : vector<8xf32> to vector<8x1xf32>
    %119 = tpu.reciprocal %118 {approx = true} : vector<8x1xf32> -> vector<8x1xf32>
    %120 = vector.broadcast %119 : vector<8x1xf32> to vector<8x8xf32>
    %121 = arith.mulf %116, %120 : vector<8x8xf32>
    %cst_99 = arith.constant dense<0.000000e+00> : vector<8x8xf32>
    %122 = tpu.matmul %121, %107, %cst_99 {dimension_numbers = #tpu.dot_dimension_numbers<[1], [0], [0], [1], [0, 0, 1, 1], [], []>} : vector<8x8xf32>, vector<8x8xf32>, vector<8x8xf32> -> vector<8x8xf32>
    %c0_100 = arith.constant 0 : index
    %c3_101 = arith.constant 3 : index
    %c0_102 = arith.constant 0 : index
    %c0_103 = arith.constant 0 : index
    %123 = vector.load %arg6[%c0_100, %c3_101, %c0_102, %c0_103] : memref<2x4x8x32xf32, #tpu.memory_space<vmem>>, vector<1x1x8x32xf32>
    %124 = vector.shape_cast %123 : vector<1x1x8x32xf32> to vector<8x32xf32>
    %cst_104 = arith.constant dense<0.000000e+00> : vector<8x32xf32>
    %125 = tpu.matmul %122, %124, %cst_104 {dimension_numbers = #tpu.dot_dimension_numbers<[1], [0], [0], [1], [0, 0, 1, 1], [], []>} : vector<8x8xf32>, vector<8x32xf32>, vector<8x32xf32> -> vector<8x32xf32>
    %126 = arith.addf %98, %125 : vector<8x32xf32>
    %127 = arith.addf %1, %126 : vector<8x32xf32>
    %c0_105 = arith.constant 0 : index
    %c1_106 = arith.constant 1 : index
    %c0_107 = arith.constant 0 : index
    %c0_108 = arith.constant 0 : index
    %128 = vector.load %arg4[%c0_105, %c1_106, %c0_107, %c0_108] : memref<2x2x1x32xf32, #tpu.memory_space<vmem>>, vector<1x1x1x32xf32>
    %129 = vector.shape_cast %128 : vector<1x1x1x32xf32> to vector<1x32xf32>
    %130 = arith.mulf %127, %127 : vector<8x32xf32>
    %cst_109 = arith.constant dense<0.000000e+00> : vector<8xf32>
    %131 = vector.multi_reduction <add>, %130, %cst_109 [1] : vector<8x32xf32> to vector<8xf32>
    %132 = vector.shape_cast %131 : vector<8xf32> to vector<8x1xf32>
    %cst_110 = arith.constant 3.200000e+01 : f32
    %133 = vector.broadcast %cst_110 : f32 to vector<8x1xf32>
    %134 = arith.divf %132, %133 : vector<8x1xf32>
    %cst_111 = arith.constant 9.99999997E-7 : f32
    %135 = vector.broadcast %cst_111 : f32 to vector<8x1xf32>
    %136 = arith.addf %134, %135 : vector<8x1xf32>
    %137 = math.rsqrt %136 : vector<8x1xf32>
    %138 = vector.broadcast %137 : vector<8x1xf32> to vector<8x32xf32>
    %139 = arith.mulf %127, %138 : vector<8x32xf32>
    %140 = vector.broadcast %129 : vector<1x32xf32> to vector<8x32xf32>
    %141 = arith.mulf %139, %140 : vector<8x32xf32>
    %c0_112 = arith.constant 0 : index
    %c0_113 = arith.constant 0 : index
    %c0_114 = arith.constant 0 : index
    %142 = vector.load %arg7[%c0_112, %c0_113, %c0_114] : memref<2x32x64xf32, #tpu.memory_space<vmem>>, vector<1x32x64xf32>
    %143 = vector.shape_cast %142 : vector<1x32x64xf32> to vector<32x64xf32>
    %c0_115 = arith.constant 0 : index
    %c0_116 = arith.constant 0 : index
    %c0_117 = arith.constant 0 : index
    %144 = vector.load %arg8[%c0_115, %c0_116, %c0_117] : memref<2x64x32xf32, #tpu.memory_space<vmem>>, vector<1x64x32xf32>
    %145 = vector.shape_cast %144 : vector<1x64x32xf32> to vector<64x32xf32>
    %cst_118 = arith.constant dense<0.000000e+00> : vector<8x64xf32>
    %146 = tpu.matmul %141, %143, %cst_118 {dimension_numbers = #tpu.dot_dimension_numbers<[1], [0], [0], [1], [0, 0, 1, 1], [], []>} : vector<8x32xf32>, vector<32x64xf32>, vector<8x64xf32> -> vector<8x64xf32>
    %cst_119 = arith.constant 0.000000e+00 : f32
    %147 = vector.broadcast %cst_119 : f32 to vector<8x64xf32>
    %148 = arith.maximumf %146, %147 : vector<8x64xf32>
    %cst_120 = arith.constant dense<0.000000e+00> : vector<8x32xf32>
    %149 = tpu.matmul %148, %145, %cst_120 {dimension_numbers = #tpu.dot_dimension_numbers<[1], [0], [0], [1], [0, 0, 1, 1], [], []>} : vector<8x64xf32>, vector<64x32xf32>, vector<8x32xf32> -> vector<8x32xf32>
    %150 = arith.addf %127, %149 : vector<8x32xf32>
    %c1_121 = arith.constant 1 : index
    %c0_122 = arith.constant 0 : index
    %c0_123 = arith.constant 0 : index
    %c0_124 = arith.constant 0 : index
    %151 = vector.load %arg4[%c1_121, %c0_122, %c0_123, %c0_124] : memref<2x2x1x32xf32, #tpu.memory_space<vmem>>, vector<1x1x1x32xf32>
    %152 = vector.shape_cast %151 : vector<1x1x1x32xf32> to vector<1x32xf32>
    %153 = arith.mulf %150, %150 : vector<8x32xf32>
    %cst_125 = arith.constant dense<0.000000e+00> : vector<8xf32>
    %154 = vector.multi_reduction <add>, %153, %cst_125 [1] : vector<8x32xf32> to vector<8xf32>
    %155 = vector.shape_cast %154 : vector<8xf32> to vector<8x1xf32>
    %cst_126 = arith.constant 3.200000e+01 : f32
    %156 = vector.broadcast %cst_126 : f32 to vector<8x1xf32>
    %157 = arith.divf %155, %156 : vector<8x1xf32>
    %cst_127 = arith.constant 9.99999997E-7 : f32
    %158 = vector.broadcast %cst_127 : f32 to vector<8x1xf32>
    %159 = arith.addf %157, %158 : vector<8x1xf32>
    %160 = math.rsqrt %159 : vector<8x1xf32>
    %161 = vector.broadcast %160 : vector<8x1xf32> to vector<8x32xf32>
    %162 = arith.mulf %150, %161 : vector<8x32xf32>
    %163 = vector.broadcast %152 : vector<1x32xf32> to vector<8x32xf32>
    %164 = arith.mulf %162, %163 : vector<8x32xf32>
    %c1_128 = arith.constant 1 : index
    %c0_129 = arith.constant 0 : index
    %c0_130 = arith.constant 0 : index
    %c0_131 = arith.constant 0 : index
    %165 = vector.load %arg5[%c1_128, %c0_129, %c0_130, %c0_131] : memref<2x12x32x8xf32, #tpu.memory_space<vmem>>, vector<1x1x32x8xf32>
    %166 = vector.shape_cast %165 : vector<1x1x32x8xf32> to vector<32x8xf32>
    %cst_132 = arith.constant dense<0.000000e+00> : vector<8x8xf32>
    %167 = tpu.matmul %164, %166, %cst_132 {dimension_numbers = #tpu.dot_dimension_numbers<[1], [0], [0], [1], [0, 0, 1, 1], [], []>} : vector<8x32xf32>, vector<32x8xf32>, vector<8x8xf32> -> vector<8x8xf32>
    %c1_133 = arith.constant 1 : index
    %c4_134 = arith.constant 4 : index
    %c0_135 = arith.constant 0 : index
    %c0_136 = arith.constant 0 : index
    %168 = vector.load %arg5[%c1_133, %c4_134, %c0_135, %c0_136] : memref<2x12x32x8xf32, #tpu.memory_space<vmem>>, vector<1x1x32x8xf32>
    %169 = vector.shape_cast %168 : vector<1x1x32x8xf32> to vector<32x8xf32>
    %cst_137 = arith.constant dense<0.000000e+00> : vector<8x8xf32>
    %170 = tpu.matmul %164, %169, %cst_137 {dimension_numbers = #tpu.dot_dimension_numbers<[1], [0], [0], [1], [0, 0, 1, 1], [], []>} : vector<8x32xf32>, vector<32x8xf32>, vector<8x8xf32> -> vector<8x8xf32>
    %c1_138 = arith.constant 1 : index
    %c8_139 = arith.constant 8 : index
    %c0_140 = arith.constant 0 : index
    %c0_141 = arith.constant 0 : index
    %171 = vector.load %arg5[%c1_138, %c8_139, %c0_140, %c0_141] : memref<2x12x32x8xf32, #tpu.memory_space<vmem>>, vector<1x1x32x8xf32>
    %172 = vector.shape_cast %171 : vector<1x1x32x8xf32> to vector<32x8xf32>
    %cst_142 = arith.constant dense<0.000000e+00> : vector<8x8xf32>
    %173 = tpu.matmul %164, %172, %cst_142 {dimension_numbers = #tpu.dot_dimension_numbers<[1], [0], [0], [1], [0, 0, 1, 1], [], []>} : vector<8x32xf32>, vector<32x8xf32>, vector<8x8xf32> -> vector<8x8xf32>
    %cst_143 = arith.constant dense<0.000000e+00> : vector<8x8xf32>
    %174 = tpu.matmul %167, %170, %cst_143 {dimension_numbers = #tpu.dot_dimension_numbers<[1], [1], [0], [0], [0, 0, 1, 0], [], []>} : vector<8x8xf32>, vector<8x8xf32>, vector<8x8xf32> -> vector<8x8xf32>
    %c0_144 = arith.constant 0 : index
    %c0_145 = arith.constant 0 : index
    %c0_146 = arith.constant 0 : index
    %175 = vector.load %arg2[%c0_144, %c0_145, %c0_146] : memref<4x8x8xf32, #tpu.memory_space<vmem>>, vector<1x8x8xf32>
    %176 = vector.shape_cast %175 : vector<1x8x8xf32> to vector<8x8xf32>
    %177 = arith.addf %174, %176 : vector<8x8xf32>
    %cst_147 = arith.constant dense<0xFF800000> : vector<8xf32>
    %178 = vector.multi_reduction <maximumf>, %177, %cst_147 [1] : vector<8x8xf32> to vector<8xf32>
    %179 = vector.shape_cast %178 : vector<8xf32> to vector<8x1xf32>
    %180 = vector.broadcast %179 : vector<8x1xf32> to vector<8x8xf32>
    %181 = arith.subf %177, %180 : vector<8x8xf32>
    %182 = math.exp %181 : vector<8x8xf32>
    %cst_148 = arith.constant dense<0.000000e+00> : vector<8xf32>
    %183 = vector.multi_reduction <add>, %182, %cst_148 [1] : vector<8x8xf32> to vector<8xf32>
    %184 = vector.shape_cast %183 : vector<8xf32> to vector<8x1xf32>
    %185 = tpu.reciprocal %184 {approx = true} : vector<8x1xf32> -> vector<8x1xf32>
    %186 = vector.broadcast %185 : vector<8x1xf32> to vector<8x8xf32>
    %187 = arith.mulf %182, %186 : vector<8x8xf32>
    %cst_149 = arith.constant dense<0.000000e+00> : vector<8x8xf32>
    %188 = tpu.matmul %187, %173, %cst_149 {dimension_numbers = #tpu.dot_dimension_numbers<[1], [0], [0], [1], [0, 0, 1, 1], [], []>} : vector<8x8xf32>, vector<8x8xf32>, vector<8x8xf32> -> vector<8x8xf32>
    %c1_150 = arith.constant 1 : index
    %c0_151 = arith.constant 0 : index
    %c0_152 = arith.constant 0 : index
    %c0_153 = arith.constant 0 : index
    %189 = vector.load %arg6[%c1_150, %c0_151, %c0_152, %c0_153] : memref<2x4x8x32xf32, #tpu.memory_space<vmem>>, vector<1x1x8x32xf32>
    %190 = vector.shape_cast %189 : vector<1x1x8x32xf32> to vector<8x32xf32>
    %cst_154 = arith.constant dense<0.000000e+00> : vector<8x32xf32>
    %191 = tpu.matmul %188, %190, %cst_154 {dimension_numbers = #tpu.dot_dimension_numbers<[1], [0], [0], [1], [0, 0, 1, 1], [], []>} : vector<8x8xf32>, vector<8x32xf32>, vector<8x32xf32> -> vector<8x32xf32>
    %c1_155 = arith.constant 1 : index
    %c1_156 = arith.constant 1 : index
    %c0_157 = arith.constant 0 : index
    %c0_158 = arith.constant 0 : index
    %192 = vector.load %arg5[%c1_155, %c1_156, %c0_157, %c0_158] : memref<2x12x32x8xf32, #tpu.memory_space<vmem>>, vector<1x1x32x8xf32>
    %193 = vector.shape_cast %192 : vector<1x1x32x8xf32> to vector<32x8xf32>
    %cst_159 = arith.constant dense<0.000000e+00> : vector<8x8xf32>
    %194 = tpu.matmul %164, %193, %cst_159 {dimension_numbers = #tpu.dot_dimension_numbers<[1], [0], [0], [1], [0, 0, 1, 1], [], []>} : vector<8x32xf32>, vector<32x8xf32>, vector<8x8xf32> -> vector<8x8xf32>
    %c1_160 = arith.constant 1 : index
    %c5_161 = arith.constant 5 : index
    %c0_162 = arith.constant 0 : index
    %c0_163 = arith.constant 0 : index
    %195 = vector.load %arg5[%c1_160, %c5_161, %c0_162, %c0_163] : memref<2x12x32x8xf32, #tpu.memory_space<vmem>>, vector<1x1x32x8xf32>
    %196 = vector.shape_cast %195 : vector<1x1x32x8xf32> to vector<32x8xf32>
    %cst_164 = arith.constant dense<0.000000e+00> : vector<8x8xf32>
    %197 = tpu.matmul %164, %196, %cst_164 {dimension_numbers = #tpu.dot_dimension_numbers<[1], [0], [0], [1], [0, 0, 1, 1], [], []>} : vector<8x32xf32>, vector<32x8xf32>, vector<8x8xf32> -> vector<8x8xf32>
    %c1_165 = arith.constant 1 : index
    %c9_166 = arith.constant 9 : index
    %c0_167 = arith.constant 0 : index
    %c0_168 = arith.constant 0 : index
    %198 = vector.load %arg5[%c1_165, %c9_166, %c0_167, %c0_168] : memref<2x12x32x8xf32, #tpu.memory_space<vmem>>, vector<1x1x32x8xf32>
    %199 = vector.shape_cast %198 : vector<1x1x32x8xf32> to vector<32x8xf32>
    %cst_169 = arith.constant dense<0.000000e+00> : vector<8x8xf32>
    %200 = tpu.matmul %164, %199, %cst_169 {dimension_numbers = #tpu.dot_dimension_numbers<[1], [0], [0], [1], [0, 0, 1, 1], [], []>} : vector<8x32xf32>, vector<32x8xf32>, vector<8x8xf32> -> vector<8x8xf32>
    %cst_170 = arith.constant dense<0.000000e+00> : vector<8x8xf32>
    %201 = tpu.matmul %194, %197, %cst_170 {dimension_numbers = #tpu.dot_dimension_numbers<[1], [1], [0], [0], [0, 0, 1, 0], [], []>} : vector<8x8xf32>, vector<8x8xf32>, vector<8x8xf32> -> vector<8x8xf32>
    %c1_171 = arith.constant 1 : index
    %c0_172 = arith.constant 0 : index
    %c0_173 = arith.constant 0 : index
    %202 = vector.load %arg2[%c1_171, %c0_172, %c0_173] : memref<4x8x8xf32, #tpu.memory_space<vmem>>, vector<1x8x8xf32>
    %203 = vector.shape_cast %202 : vector<1x8x8xf32> to vector<8x8xf32>
    %204 = arith.addf %201, %203 : vector<8x8xf32>
    %cst_174 = arith.constant dense<0xFF800000> : vector<8xf32>
    %205 = vector.multi_reduction <maximumf>, %204, %cst_174 [1] : vector<8x8xf32> to vector<8xf32>
    %206 = vector.shape_cast %205 : vector<8xf32> to vector<8x1xf32>
    %207 = vector.broadcast %206 : vector<8x1xf32> to vector<8x8xf32>
    %208 = arith.subf %204, %207 : vector<8x8xf32>
    %209 = math.exp %208 : vector<8x8xf32>
    %cst_175 = arith.constant dense<0.000000e+00> : vector<8xf32>
    %210 = vector.multi_reduction <add>, %209, %cst_175 [1] : vector<8x8xf32> to vector<8xf32>
    %211 = vector.shape_cast %210 : vector<8xf32> to vector<8x1xf32>
    %212 = tpu.reciprocal %211 {approx = true} : vector<8x1xf32> -> vector<8x1xf32>
    %213 = vector.broadcast %212 : vector<8x1xf32> to vector<8x8xf32>
    %214 = arith.mulf %209, %213 : vector<8x8xf32>
    %cst_176 = arith.constant dense<0.000000e+00> : vector<8x8xf32>
    %215 = tpu.matmul %214, %200, %cst_176 {dimension_numbers = #tpu.dot_dimension_numbers<[1], [0], [0], [1], [0, 0, 1, 1], [], []>} : vector<8x8xf32>, vector<8x8xf32>, vector<8x8xf32> -> vector<8x8xf32>
    %c1_177 = arith.constant 1 : index
    %c1_178 = arith.constant 1 : index
    %c0_179 = arith.constant 0 : index
    %c0_180 = arith.constant 0 : index
    %216 = vector.load %arg6[%c1_177, %c1_178, %c0_179, %c0_180] : memref<2x4x8x32xf32, #tpu.memory_space<vmem>>, vector<1x1x8x32xf32>
    %217 = vector.shape_cast %216 : vector<1x1x8x32xf32> to vector<8x32xf32>
    %cst_181 = arith.constant dense<0.000000e+00> : vector<8x32xf32>
    %218 = tpu.matmul %215, %217, %cst_181 {dimension_numbers = #tpu.dot_dimension_numbers<[1], [0], [0], [1], [0, 0, 1, 1], [], []>} : vector<8x8xf32>, vector<8x32xf32>, vector<8x32xf32> -> vector<8x32xf32>
    %219 = arith.addf %191, %218 : vector<8x32xf32>
    %c1_182 = arith.constant 1 : index
    %c2_183 = arith.constant 2 : index
    %c0_184 = arith.constant 0 : index
    %c0_185 = arith.constant 0 : index
    %220 = vector.load %arg5[%c1_182, %c2_183, %c0_184, %c0_185] : memref<2x12x32x8xf32, #tpu.memory_space<vmem>>, vector<1x1x32x8xf32>
    %221 = vector.shape_cast %220 : vector<1x1x32x8xf32> to vector<32x8xf32>
    %cst_186 = arith.constant dense<0.000000e+00> : vector<8x8xf32>
    %222 = tpu.matmul %164, %221, %cst_186 {dimension_numbers = #tpu.dot_dimension_numbers<[1], [0], [0], [1], [0, 0, 1, 1], [], []>} : vector<8x32xf32>, vector<32x8xf32>, vector<8x8xf32> -> vector<8x8xf32>
    %c1_187 = arith.constant 1 : index
    %c6_188 = arith.constant 6 : index
    %c0_189 = arith.constant 0 : index
    %c0_190 = arith.constant 0 : index
    %223 = vector.load %arg5[%c1_187, %c6_188, %c0_189, %c0_190] : memref<2x12x32x8xf32, #tpu.memory_space<vmem>>, vector<1x1x32x8xf32>
    %224 = vector.shape_cast %223 : vector<1x1x32x8xf32> to vector<32x8xf32>
    %cst_191 = arith.constant dense<0.000000e+00> : vector<8x8xf32>
    %225 = tpu.matmul %164, %224, %cst_191 {dimension_numbers = #tpu.dot_dimension_numbers<[1], [0], [0], [1], [0, 0, 1, 1], [], []>} : vector<8x32xf32>, vector<32x8xf32>, vector<8x8xf32> -> vector<8x8xf32>
    %c1_192 = arith.constant 1 : index
    %c10_193 = arith.constant 10 : index
    %c0_194 = arith.constant 0 : index
    %c0_195 = arith.constant 0 : index
    %226 = vector.load %arg5[%c1_192, %c10_193, %c0_194, %c0_195] : memref<2x12x32x8xf32, #tpu.memory_space<vmem>>, vector<1x1x32x8xf32>
    %227 = vector.shape_cast %226 : vector<1x1x32x8xf32> to vector<32x8xf32>
    %cst_196 = arith.constant dense<0.000000e+00> : vector<8x8xf32>
    %228 = tpu.matmul %164, %227, %cst_196 {dimension_numbers = #tpu.dot_dimension_numbers<[1], [0], [0], [1], [0, 0, 1, 1], [], []>} : vector<8x32xf32>, vector<32x8xf32>, vector<8x8xf32> -> vector<8x8xf32>
    %cst_197 = arith.constant dense<0.000000e+00> : vector<8x8xf32>
    %229 = tpu.matmul %222, %225, %cst_197 {dimension_numbers = #tpu.dot_dimension_numbers<[1], [1], [0], [0], [0, 0, 1, 0], [], []>} : vector<8x8xf32>, vector<8x8xf32>, vector<8x8xf32> -> vector<8x8xf32>
    %c2_198 = arith.constant 2 : index
    %c0_199 = arith.constant 0 : index
    %c0_200 = arith.constant 0 : index
    %230 = vector.load %arg2[%c2_198, %c0_199, %c0_200] : memref<4x8x8xf32, #tpu.memory_space<vmem>>, vector<1x8x8xf32>
    %231 = vector.shape_cast %230 : vector<1x8x8xf32> to vector<8x8xf32>
    %232 = arith.addf %229, %231 : vector<8x8xf32>
    %cst_201 = arith.constant dense<0xFF800000> : vector<8xf32>
    %233 = vector.multi_reduction <maximumf>, %232, %cst_201 [1] : vector<8x8xf32> to vector<8xf32>
    %234 = vector.shape_cast %233 : vector<8xf32> to vector<8x1xf32>
    %235 = vector.broadcast %234 : vector<8x1xf32> to vector<8x8xf32>
    %236 = arith.subf %232, %235 : vector<8x8xf32>
    %237 = math.exp %236 : vector<8x8xf32>
    %cst_202 = arith.constant dense<0.000000e+00> : vector<8xf32>
    %238 = vector.multi_reduction <add>, %237, %cst_202 [1] : vector<8x8xf32> to vector<8xf32>
    %239 = vector.shape_cast %238 : vector<8xf32> to vector<8x1xf32>
    %240 = tpu.reciprocal %239 {approx = true} : vector<8x1xf32> -> vector<8x1xf32>
    %241 = vector.broadcast %240 : vector<8x1xf32> to vector<8x8xf32>
    %242 = arith.mulf %237, %241 : vector<8x8xf32>
    %cst_203 = arith.constant dense<0.000000e+00> : vector<8x8xf32>
    %243 = tpu.matmul %242, %228, %cst_203 {dimension_numbers = #tpu.dot_dimension_numbers<[1], [0], [0], [1], [0, 0, 1, 1], [], []>} : vector<8x8xf32>, vector<8x8xf32>, vector<8x8xf32> -> vector<8x8xf32>
    %c1_204 = arith.constant 1 : index
    %c2_205 = arith.constant 2 : index
    %c0_206 = arith.constant 0 : index
    %c0_207 = arith.constant 0 : index
    %244 = vector.load %arg6[%c1_204, %c2_205, %c0_206, %c0_207] : memref<2x4x8x32xf32, #tpu.memory_space<vmem>>, vector<1x1x8x32xf32>
    %245 = vector.shape_cast %244 : vector<1x1x8x32xf32> to vector<8x32xf32>
    %cst_208 = arith.constant dense<0.000000e+00> : vector<8x32xf32>
    %246 = tpu.matmul %243, %245, %cst_208 {dimension_numbers = #tpu.dot_dimension_numbers<[1], [0], [0], [1], [0, 0, 1, 1], [], []>} : vector<8x8xf32>, vector<8x32xf32>, vector<8x32xf32> -> vector<8x32xf32>
    %247 = arith.addf %219, %246 : vector<8x32xf32>
    %c1_209 = arith.constant 1 : index
    %c3_210 = arith.constant 3 : index
    %c0_211 = arith.constant 0 : index
    %c0_212 = arith.constant 0 : index
    %248 = vector.load %arg5[%c1_209, %c3_210, %c0_211, %c0_212] : memref<2x12x32x8xf32, #tpu.memory_space<vmem>>, vector<1x1x32x8xf32>
    %249 = vector.shape_cast %248 : vector<1x1x32x8xf32> to vector<32x8xf32>
    %cst_213 = arith.constant dense<0.000000e+00> : vector<8x8xf32>
    %250 = tpu.matmul %164, %249, %cst_213 {dimension_numbers = #tpu.dot_dimension_numbers<[1], [0], [0], [1], [0, 0, 1, 1], [], []>} : vector<8x32xf32>, vector<32x8xf32>, vector<8x8xf32> -> vector<8x8xf32>
    %c1_214 = arith.constant 1 : index
    %c7_215 = arith.constant 7 : index
    %c0_216 = arith.constant 0 : index
    %c0_217 = arith.constant 0 : index
    %251 = vector.load %arg5[%c1_214, %c7_215, %c0_216, %c0_217] : memref<2x12x32x8xf32, #tpu.memory_space<vmem>>, vector<1x1x32x8xf32>
    %252 = vector.shape_cast %251 : vector<1x1x32x8xf32> to vector<32x8xf32>
    %cst_218 = arith.constant dense<0.000000e+00> : vector<8x8xf32>
    %253 = tpu.matmul %164, %252, %cst_218 {dimension_numbers = #tpu.dot_dimension_numbers<[1], [0], [0], [1], [0, 0, 1, 1], [], []>} : vector<8x32xf32>, vector<32x8xf32>, vector<8x8xf32> -> vector<8x8xf32>
    %c1_219 = arith.constant 1 : index
    %c11_220 = arith.constant 11 : index
    %c0_221 = arith.constant 0 : index
    %c0_222 = arith.constant 0 : index
    %254 = vector.load %arg5[%c1_219, %c11_220, %c0_221, %c0_222] : memref<2x12x32x8xf32, #tpu.memory_space<vmem>>, vector<1x1x32x8xf32>
    %255 = vector.shape_cast %254 : vector<1x1x32x8xf32> to vector<32x8xf32>
    %cst_223 = arith.constant dense<0.000000e+00> : vector<8x8xf32>
    %256 = tpu.matmul %164, %255, %cst_223 {dimension_numbers = #tpu.dot_dimension_numbers<[1], [0], [0], [1], [0, 0, 1, 1], [], []>} : vector<8x32xf32>, vector<32x8xf32>, vector<8x8xf32> -> vector<8x8xf32>
    %cst_224 = arith.constant dense<0.000000e+00> : vector<8x8xf32>
    %257 = tpu.matmul %250, %253, %cst_224 {dimension_numbers = #tpu.dot_dimension_numbers<[1], [1], [0], [0], [0, 0, 1, 0], [], []>} : vector<8x8xf32>, vector<8x8xf32>, vector<8x8xf32> -> vector<8x8xf32>
    %c3_225 = arith.constant 3 : index
    %c0_226 = arith.constant 0 : index
    %c0_227 = arith.constant 0 : index
    %258 = vector.load %arg2[%c3_225, %c0_226, %c0_227] : memref<4x8x8xf32, #tpu.memory_space<vmem>>, vector<1x8x8xf32>
    %259 = vector.shape_cast %258 : vector<1x8x8xf32> to vector<8x8xf32>
    %260 = arith.addf %257, %259 : vector<8x8xf32>
    %cst_228 = arith.constant dense<0xFF800000> : vector<8xf32>
    %261 = vector.multi_reduction <maximumf>, %260, %cst_228 [1] : vector<8x8xf32> to vector<8xf32>
    %262 = vector.shape_cast %261 : vector<8xf32> to vector<8x1xf32>
    %263 = vector.broadcast %262 : vector<8x1xf32> to vector<8x8xf32>
    %264 = arith.subf %260, %263 : vector<8x8xf32>
    %265 = math.exp %264 : vector<8x8xf32>
    %cst_229 = arith.constant dense<0.000000e+00> : vector<8xf32>
    %266 = vector.multi_reduction <add>, %265, %cst_229 [1] : vector<8x8xf32> to vector<8xf32>
    %267 = vector.shape_cast %266 : vector<8xf32> to vector<8x1xf32>
    %268 = tpu.reciprocal %267 {approx = true} : vector<8x1xf32> -> vector<8x1xf32>
    %269 = vector.broadcast %268 : vector<8x1xf32> to vector<8x8xf32>
    %270 = arith.mulf %265, %269 : vector<8x8xf32>
    %cst_230 = arith.constant dense<0.000000e+00> : vector<8x8xf32>
    %271 = tpu.matmul %270, %256, %cst_230 {dimension_numbers = #tpu.dot_dimension_numbers<[1], [0], [0], [1], [0, 0, 1, 1], [], []>} : vector<8x8xf32>, vector<8x8xf32>, vector<8x8xf32> -> vector<8x8xf32>
    %c1_231 = arith.constant 1 : index
    %c3_232 = arith.constant 3 : index
    %c0_233 = arith.constant 0 : index
    %c0_234 = arith.constant 0 : index
    %272 = vector.load %arg6[%c1_231, %c3_232, %c0_233, %c0_234] : memref<2x4x8x32xf32, #tpu.memory_space<vmem>>, vector<1x1x8x32xf32>
    %273 = vector.shape_cast %272 : vector<1x1x8x32xf32> to vector<8x32xf32>
    %cst_235 = arith.constant dense<0.000000e+00> : vector<8x32xf32>
    %274 = tpu.matmul %271, %273, %cst_235 {dimension_numbers = #tpu.dot_dimension_numbers<[1], [0], [0], [1], [0, 0, 1, 1], [], []>} : vector<8x8xf32>, vector<8x32xf32>, vector<8x32xf32> -> vector<8x32xf32>
    %275 = arith.addf %247, %274 : vector<8x32xf32>
    %276 = arith.addf %150, %275 : vector<8x32xf32>
    %c1_236 = arith.constant 1 : index
    %c1_237 = arith.constant 1 : index
    %c0_238 = arith.constant 0 : index
    %c0_239 = arith.constant 0 : index
    %277 = vector.load %arg4[%c1_236, %c1_237, %c0_238, %c0_239] : memref<2x2x1x32xf32, #tpu.memory_space<vmem>>, vector<1x1x1x32xf32>
    %278 = vector.shape_cast %277 : vector<1x1x1x32xf32> to vector<1x32xf32>
    %279 = arith.mulf %276, %276 : vector<8x32xf32>
    %cst_240 = arith.constant dense<0.000000e+00> : vector<8xf32>
    %280 = vector.multi_reduction <add>, %279, %cst_240 [1] : vector<8x32xf32> to vector<8xf32>
    %281 = vector.shape_cast %280 : vector<8xf32> to vector<8x1xf32>
    %cst_241 = arith.constant 3.200000e+01 : f32
    %282 = vector.broadcast %cst_241 : f32 to vector<8x1xf32>
    %283 = arith.divf %281, %282 : vector<8x1xf32>
    %cst_242 = arith.constant 9.99999997E-7 : f32
    %284 = vector.broadcast %cst_242 : f32 to vector<8x1xf32>
    %285 = arith.addf %283, %284 : vector<8x1xf32>
    %286 = math.rsqrt %285 : vector<8x1xf32>
    %287 = vector.broadcast %286 : vector<8x1xf32> to vector<8x32xf32>
    %288 = arith.mulf %276, %287 : vector<8x32xf32>
    %289 = vector.broadcast %278 : vector<1x32xf32> to vector<8x32xf32>
    %290 = arith.mulf %288, %289 : vector<8x32xf32>
    %c1_243 = arith.constant 1 : index
    %c0_244 = arith.constant 0 : index
    %c0_245 = arith.constant 0 : index
    %291 = vector.load %arg7[%c1_243, %c0_244, %c0_245] : memref<2x32x64xf32, #tpu.memory_space<vmem>>, vector<1x32x64xf32>
    %292 = vector.shape_cast %291 : vector<1x32x64xf32> to vector<32x64xf32>
    %c1_246 = arith.constant 1 : index
    %c0_247 = arith.constant 0 : index
    %c0_248 = arith.constant 0 : index
    %293 = vector.load %arg8[%c1_246, %c0_247, %c0_248] : memref<2x64x32xf32, #tpu.memory_space<vmem>>, vector<1x64x32xf32>
    %294 = vector.shape_cast %293 : vector<1x64x32xf32> to vector<64x32xf32>
    %cst_249 = arith.constant dense<0.000000e+00> : vector<8x64xf32>
    %295 = tpu.matmul %290, %292, %cst_249 {dimension_numbers = #tpu.dot_dimension_numbers<[1], [0], [0], [1], [0, 0, 1, 1], [], []>} : vector<8x32xf32>, vector<32x64xf32>, vector<8x64xf32> -> vector<8x64xf32>
    %cst_250 = arith.constant 0.000000e+00 : f32
    %296 = vector.broadcast %cst_250 : f32 to vector<8x64xf32>
    %297 = arith.maximumf %295, %296 : vector<8x64xf32>
    %cst_251 = arith.constant dense<0.000000e+00> : vector<8x32xf32>
    %298 = tpu.matmul %297, %294, %cst_251 {dimension_numbers = #tpu.dot_dimension_numbers<[1], [0], [0], [1], [0, 0, 1, 1], [], []>} : vector<8x64xf32>, vector<64x32xf32>, vector<8x32xf32> -> vector<8x32xf32>
    %299 = arith.addf %276, %298 : vector<8x32xf32>
    %c0_252 = arith.constant 0 : index
    %c0_253 = arith.constant 0 : index
    %300 = vector.load %arg9[%c0_252, %c0_253] : memref<1x32xf32, #tpu.memory_space<vmem>>, vector<1x32xf32>
    %301 = arith.mulf %299, %299 : vector<8x32xf32>
    %cst_254 = arith.constant dense<0.000000e+00> : vector<8xf32>
    %302 = vector.multi_reduction <add>, %301, %cst_254 [1] : vector<8x32xf32> to vector<8xf32>
    %303 = vector.shape_cast %302 : vector<8xf32> to vector<8x1xf32>
    %cst_255 = arith.constant 3.200000e+01 : f32
    %304 = vector.broadcast %cst_255 : f32 to vector<8x1xf32>
    %305 = arith.divf %303, %304 : vector<8x1xf32>
    %cst_256 = arith.constant 9.99999997E-7 : f32
    %306 = vector.broadcast %cst_256 : f32 to vector<8x1xf32>
    %307 = arith.addf %305, %306 : vector<8x1xf32>
    %308 = math.rsqrt %307 : vector<8x1xf32>
    %309 = vector.broadcast %308 : vector<8x1xf32> to vector<8x32xf32>
    %310 = arith.mulf %299, %309 : vector<8x32xf32>
    %311 = vector.broadcast %300 : vector<1x32xf32> to vector<8x32xf32>
    %312 = arith.mulf %310, %311 : vector<8x32xf32>
    %c0_257 = arith.constant 0 : index
    %c0_258 = arith.constant 0 : index
    %c0_259 = arith.constant 0 : index
    %c0_260 = arith.constant 0 : index
    %313 = vector.load %arg18[%c0_257, %c0_258, %c0_259, %c0_260] : memref<3x1x8x32xf32, #tpu.memory_space<vmem>>, vector<1x1x8x32xf32>
    %314 = vector.shape_cast %313 : vector<1x1x8x32xf32> to vector<8x32xf32>
    %315 = vector.shape_cast %1 : vector<8x32xf32> to vector<1x1x8x32xf32>
    tpu.vector_store %arg18[%c0_257, %c0_258, %c0_259, %c0_260], %315 {strides = array<i32>} : memref<3x1x8x32xf32, #tpu.memory_space<vmem>>, vector<1x1x8x32xf32>,
    %c0_261 = arith.constant 0 : index
    %c0_262 = arith.constant 0 : index
    %c0_263 = arith.constant 0 : index
    %c0_264 = arith.constant 0 : index
    %316 = vector.load %arg10[%c0_261, %c0_262, %c0_263, %c0_264] : memref<2x3x1x32xf32, #tpu.memory_space<vmem>>, vector<1x1x1x32xf32>
    %317 = vector.shape_cast %316 : vector<1x1x1x32xf32> to vector<1x32xf32>
    %318 = arith.mulf %1, %1 : vector<8x32xf32>
    %cst_265 = arith.constant dense<0.000000e+00> : vector<8xf32>
    %319 = vector.multi_reduction <add>, %318, %cst_265 [1] : vector<8x32xf32> to vector<8xf32>
    %320 = vector.shape_cast %319 : vector<8xf32> to vector<8x1xf32>
    %cst_266 = arith.constant 3.200000e+01 : f32
    %321 = vector.broadcast %cst_266 : f32 to vector<8x1xf32>
    %322 = arith.divf %320, %321 : vector<8x1xf32>
    %cst_267 = arith.constant 9.99999997E-7 : f32
    %323 = vector.broadcast %cst_267 : f32 to vector<8x1xf32>
    %324 = arith.addf %322, %323 : vector<8x1xf32>
    %325 = math.rsqrt %324 : vector<8x1xf32>
    %326 = vector.broadcast %325 : vector<8x1xf32> to vector<8x32xf32>
    %327 = arith.mulf %1, %326 : vector<8x32xf32>
    %328 = vector.broadcast %317 : vector<1x32xf32> to vector<8x32xf32>
    %329 = arith.mulf %327, %328 : vector<8x32xf32>
    %c0_268 = arith.constant 0 : index
    %c0_269 = arith.constant 0 : index
    %c0_270 = arith.constant 0 : index
    %c0_271 = arith.constant 0 : index
    %330 = vector.load %arg11[%c0_268, %c0_269, %c0_270, %c0_271] : memref<2x12x32x8xf32, #tpu.memory_space<vmem>>, vector<1x1x32x8xf32>
    %331 = vector.shape_cast %330 : vector<1x1x32x8xf32> to vector<32x8xf32>
    %cst_272 = arith.constant dense<0.000000e+00> : vector<8x8xf32>
    %332 = tpu.matmul %329, %331, %cst_272 {dimension_numbers = #tpu.dot_dimension_numbers<[1], [0], [0], [1], [0, 0, 1, 1], [], []>} : vector<8x32xf32>, vector<32x8xf32>, vector<8x8xf32> -> vector<8x8xf32>
    %c0_273 = arith.constant 0 : index
    %c4_274 = arith.constant 4 : index
    %c0_275 = arith.constant 0 : index
    %c0_276 = arith.constant 0 : index
    %333 = vector.load %arg11[%c0_273, %c4_274, %c0_275, %c0_276] : memref<2x12x32x8xf32, #tpu.memory_space<vmem>>, vector<1x1x32x8xf32>
    %334 = vector.shape_cast %333 : vector<1x1x32x8xf32> to vector<32x8xf32>
    %cst_277 = arith.constant dense<0.000000e+00> : vector<8x8xf32>
    %335 = tpu.matmul %329, %334, %cst_277 {dimension_numbers = #tpu.dot_dimension_numbers<[1], [0], [0], [1], [0, 0, 1, 1], [], []>} : vector<8x32xf32>, vector<32x8xf32>, vector<8x8xf32> -> vector<8x8xf32>
    %c0_278 = arith.constant 0 : index
    %c8_279 = arith.constant 8 : index
    %c0_280 = arith.constant 0 : index
    %c0_281 = arith.constant 0 : index
    %336 = vector.load %arg11[%c0_278, %c8_279, %c0_280, %c0_281] : memref<2x12x32x8xf32, #tpu.memory_space<vmem>>, vector<1x1x32x8xf32>
    %337 = vector.shape_cast %336 : vector<1x1x32x8xf32> to vector<32x8xf32>
    %cst_282 = arith.constant dense<0.000000e+00> : vector<8x8xf32>
    %338 = tpu.matmul %329, %337, %cst_282 {dimension_numbers = #tpu.dot_dimension_numbers<[1], [0], [0], [1], [0, 0, 1, 1], [], []>} : vector<8x32xf32>, vector<32x8xf32>, vector<8x8xf32> -> vector<8x8xf32>
    %c0_283 = arith.constant 0 : index
    %c0_284 = arith.constant 0 : index
    %c0_285 = arith.constant 0 : index
    %c0_286 = arith.constant 0 : index
    %339 = vector.load %arg19[%c0_283, %c0_284, %c0_285, %c0_286] : memref<8x1x8x8xf32, #tpu.memory_space<vmem>>, vector<1x1x8x8xf32>
    %340 = vector.shape_cast %339 : vector<1x1x8x8xf32> to vector<8x8xf32>
    %341 = vector.shape_cast %335 : vector<8x8xf32> to vector<1x1x8x8xf32>
    tpu.vector_store %arg19[%c0_283, %c0_284, %c0_285, %c0_286], %341 {strides = array<i32>} : memref<8x1x8x8xf32, #tpu.memory_space<vmem>>, vector<1x1x8x8xf32>,
    %c0_287 = arith.constant 0 : index
    %c0_288 = arith.constant 0 : index
    %c0_289 = arith.constant 0 : index
    %c0_290 = arith.constant 0 : index
    %342 = vector.load %arg20[%c0_287, %c0_288, %c0_289, %c0_290] : memref<8x1x8x8xf32, #tpu.memory_space<vmem>>, vector<1x1x8x8xf32>
    %343 = vector.shape_cast %342 : vector<1x1x8x8xf32> to vector<8x8xf32>
    %344 = vector.shape_cast %338 : vector<8x8xf32> to vector<1x1x8x8xf32>
    tpu.vector_store %arg20[%c0_287, %c0_288, %c0_289, %c0_290], %344 {strides = array<i32>} : memref<8x1x8x8xf32, #tpu.memory_space<vmem>>, vector<1x1x8x8xf32>,
    %cst_291 = arith.constant dense<0.000000e+00> : vector<8x8xf32>
    %345 = tpu.matmul %332, %335, %cst_291 {dimension_numbers = #tpu.dot_dimension_numbers<[1], [1], [0], [0], [0, 0, 1, 0], [], []>} : vector<8x8xf32>, vector<8x8xf32>, vector<8x8xf32> -> vector<8x8xf32>
    %c0_292 = arith.constant 0 : index
    %c0_293 = arith.constant 0 : index
    %c0_294 = arith.constant 0 : index
    %346 = vector.load %arg3[%c0_292, %c0_293, %c0_294] : memref<4x8x8xf32, #tpu.memory_space<vmem>>, vector<1x8x8xf32>
    %347 = vector.shape_cast %346 : vector<1x8x8xf32> to vector<8x8xf32>
    %348 = arith.addf %345, %347 : vector<8x8xf32>
    %cst_295 = arith.constant dense<0xFF800000> : vector<8xf32>
    %349 = vector.multi_reduction <maximumf>, %348, %cst_295 [1] : vector<8x8xf32> to vector<8xf32>
    %350 = vector.shape_cast %349 : vector<8xf32> to vector<8x1xf32>
    %351 = vector.broadcast %350 : vector<8x1xf32> to vector<8x8xf32>
    %352 = arith.subf %348, %351 : vector<8x8xf32>
    %353 = math.exp %352 : vector<8x8xf32>
    %cst_296 = arith.constant dense<0.000000e+00> : vector<8xf32>
    %354 = vector.multi_reduction <add>, %353, %cst_296 [1] : vector<8x8xf32> to vector<8xf32>
    %355 = vector.shape_cast %354 : vector<8xf32> to vector<8x1xf32>
    %356 = tpu.reciprocal %355 {approx = true} : vector<8x1xf32> -> vector<8x1xf32>
    %357 = vector.broadcast %356 : vector<8x1xf32> to vector<8x8xf32>
    %358 = arith.mulf %353, %357 : vector<8x8xf32>
    %cst_297 = arith.constant dense<0.000000e+00> : vector<8x8xf32>
    %359 = tpu.matmul %358, %338, %cst_297 {dimension_numbers = #tpu.dot_dimension_numbers<[1], [0], [0], [1], [0, 0, 1, 1], [], []>} : vector<8x8xf32>, vector<8x8xf32>, vector<8x8xf32> -> vector<8x8xf32>
    %c0_298 = arith.constant 0 : index
    %c0_299 = arith.constant 0 : index
    %c0_300 = arith.constant 0 : index
    %c0_301 = arith.constant 0 : index
    %360 = vector.load %arg12[%c0_298, %c0_299, %c0_300, %c0_301] : memref<2x4x8x32xf32, #tpu.memory_space<vmem>>, vector<1x1x8x32xf32>
    %361 = vector.shape_cast %360 : vector<1x1x8x32xf32> to vector<8x32xf32>
    %cst_302 = arith.constant dense<0.000000e+00> : vector<8x32xf32>
    %362 = tpu.matmul %359, %361, %cst_302 {dimension_numbers = #tpu.dot_dimension_numbers<[1], [0], [0], [1], [0, 0, 1, 1], [], []>} : vector<8x8xf32>, vector<8x32xf32>, vector<8x32xf32> -> vector<8x32xf32>
    %c0_303 = arith.constant 0 : index
    %c1_304 = arith.constant 1 : index
    %c0_305 = arith.constant 0 : index
    %c0_306 = arith.constant 0 : index
    %363 = vector.load %arg11[%c0_303, %c1_304, %c0_305, %c0_306] : memref<2x12x32x8xf32, #tpu.memory_space<vmem>>, vector<1x1x32x8xf32>
    %364 = vector.shape_cast %363 : vector<1x1x32x8xf32> to vector<32x8xf32>
    %cst_307 = arith.constant dense<0.000000e+00> : vector<8x8xf32>
    %365 = tpu.matmul %329, %364, %cst_307 {dimension_numbers = #tpu.dot_dimension_numbers<[1], [0], [0], [1], [0, 0, 1, 1], [], []>} : vector<8x32xf32>, vector<32x8xf32>, vector<8x8xf32> -> vector<8x8xf32>
    %c0_308 = arith.constant 0 : index
    %c5_309 = arith.constant 5 : index
    %c0_310 = arith.constant 0 : index
    %c0_311 = arith.constant 0 : index
    %366 = vector.load %arg11[%c0_308, %c5_309, %c0_310, %c0_311] : memref<2x12x32x8xf32, #tpu.memory_space<vmem>>, vector<1x1x32x8xf32>
    %367 = vector.shape_cast %366 : vector<1x1x32x8xf32> to vector<32x8xf32>
    %cst_312 = arith.constant dense<0.000000e+00> : vector<8x8xf32>
    %368 = tpu.matmul %329, %367, %cst_312 {dimension_numbers = #tpu.dot_dimension_numbers<[1], [0], [0], [1], [0, 0, 1, 1], [], []>} : vector<8x32xf32>, vector<32x8xf32>, vector<8x8xf32> -> vector<8x8xf32>
    %c0_313 = arith.constant 0 : index
    %c9_314 = arith.constant 9 : index
    %c0_315 = arith.constant 0 : index
    %c0_316 = arith.constant 0 : index
    %369 = vector.load %arg11[%c0_313, %c9_314, %c0_315, %c0_316] : memref<2x12x32x8xf32, #tpu.memory_space<vmem>>, vector<1x1x32x8xf32>
    %370 = vector.shape_cast %369 : vector<1x1x32x8xf32> to vector<32x8xf32>
    %cst_317 = arith.constant dense<0.000000e+00> : vector<8x8xf32>
    %371 = tpu.matmul %329, %370, %cst_317 {dimension_numbers = #tpu.dot_dimension_numbers<[1], [0], [0], [1], [0, 0, 1, 1], [], []>} : vector<8x32xf32>, vector<32x8xf32>, vector<8x8xf32> -> vector<8x8xf32>
    %c1_318 = arith.constant 1 : index
    %c0_319 = arith.constant 0 : index
    %c0_320 = arith.constant 0 : index
    %c0_321 = arith.constant 0 : index
    %372 = vector.load %arg19[%c1_318, %c0_319, %c0_320, %c0_321] : memref<8x1x8x8xf32, #tpu.memory_space<vmem>>, vector<1x1x8x8xf32>
    %373 = vector.shape_cast %372 : vector<1x1x8x8xf32> to vector<8x8xf32>
    %374 = vector.shape_cast %368 : vector<8x8xf32> to vector<1x1x8x8xf32>
    tpu.vector_store %arg19[%c1_318, %c0_319, %c0_320, %c0_321], %374 {strides = array<i32>} : memref<8x1x8x8xf32, #tpu.memory_space<vmem>>, vector<1x1x8x8xf32>,
    %c1_322 = arith.constant 1 : index
    %c0_323 = arith.constant 0 : index
    %c0_324 = arith.constant 0 : index
    %c0_325 = arith.constant 0 : index
    %375 = vector.load %arg20[%c1_322, %c0_323, %c0_324, %c0_325] : memref<8x1x8x8xf32, #tpu.memory_space<vmem>>, vector<1x1x8x8xf32>
    %376 = vector.shape_cast %375 : vector<1x1x8x8xf32> to vector<8x8xf32>
    %377 = vector.shape_cast %371 : vector<8x8xf32> to vector<1x1x8x8xf32>
    tpu.vector_store %arg20[%c1_322, %c0_323, %c0_324, %c0_325], %377 {strides = array<i32>} : memref<8x1x8x8xf32, #tpu.memory_space<vmem>>, vector<1x1x8x8xf32>,
    %cst_326 = arith.constant dense<0.000000e+00> : vector<8x8xf32>
    %378 = tpu.matmul %365, %368, %cst_326 {dimension_numbers = #tpu.dot_dimension_numbers<[1], [1], [0], [0], [0, 0, 1, 0], [], []>} : vector<8x8xf32>, vector<8x8xf32>, vector<8x8xf32> -> vector<8x8xf32>
    %c1_327 = arith.constant 1 : index
    %c0_328 = arith.constant 0 : index
    %c0_329 = arith.constant 0 : index
    %379 = vector.load %arg3[%c1_327, %c0_328, %c0_329] : memref<4x8x8xf32, #tpu.memory_space<vmem>>, vector<1x8x8xf32>
    %380 = vector.shape_cast %379 : vector<1x8x8xf32> to vector<8x8xf32>
    %381 = arith.addf %378, %380 : vector<8x8xf32>
    %cst_330 = arith.constant dense<0xFF800000> : vector<8xf32>
    %382 = vector.multi_reduction <maximumf>, %381, %cst_330 [1] : vector<8x8xf32> to vector<8xf32>
    %383 = vector.shape_cast %382 : vector<8xf32> to vector<8x1xf32>
    %384 = vector.broadcast %383 : vector<8x1xf32> to vector<8x8xf32>
    %385 = arith.subf %381, %384 : vector<8x8xf32>
    %386 = math.exp %385 : vector<8x8xf32>
    %cst_331 = arith.constant dense<0.000000e+00> : vector<8xf32>
    %387 = vector.multi_reduction <add>, %386, %cst_331 [1] : vector<8x8xf32> to vector<8xf32>
    %388 = vector.shape_cast %387 : vector<8xf32> to vector<8x1xf32>
    %389 = tpu.reciprocal %388 {approx = true} : vector<8x1xf32> -> vector<8x1xf32>
    %390 = vector.broadcast %389 : vector<8x1xf32> to vector<8x8xf32>
    %391 = arith.mulf %386, %390 : vector<8x8xf32>
    %cst_332 = arith.constant dense<0.000000e+00> : vector<8x8xf32>
    %392 = tpu.matmul %391, %371, %cst_332 {dimension_numbers = #tpu.dot_dimension_numbers<[1], [0], [0], [1], [0, 0, 1, 1], [], []>} : vector<8x8xf32>, vector<8x8xf32>, vector<8x8xf32> -> vector<8x8xf32>
    %c0_333 = arith.constant 0 : index
    %c1_334 = arith.constant 1 : index
    %c0_335 = arith.constant 0 : index
    %c0_336 = arith.constant 0 : index
    %393 = vector.load %arg12[%c0_333, %c1_334, %c0_335, %c0_336] : memref<2x4x8x32xf32, #tpu.memory_space<vmem>>, vector<1x1x8x32xf32>
    %394 = vector.shape_cast %393 : vector<1x1x8x32xf32> to vector<8x32xf32>
    %cst_337 = arith.constant dense<0.000000e+00> : vector<8x32xf32>
    %395 = tpu.matmul %392, %394, %cst_337 {dimension_numbers = #tpu.dot_dimension_numbers<[1], [0], [0], [1], [0, 0, 1, 1], [], []>} : vector<8x8xf32>, vector<8x32xf32>, vector<8x32xf32> -> vector<8x32xf32>
    %396 = arith.addf %362, %395 : vector<8x32xf32>
    %c0_338 = arith.constant 0 : index
    %c2_339 = arith.constant 2 : index
    %c0_340 = arith.constant 0 : index
    %c0_341 = arith.constant 0 : index
    %397 = vector.load %arg11[%c0_338, %c2_339, %c0_340, %c0_341] : memref<2x12x32x8xf32, #tpu.memory_space<vmem>>, vector<1x1x32x8xf32>
    %398 = vector.shape_cast %397 : vector<1x1x32x8xf32> to vector<32x8xf32>
    %cst_342 = arith.constant dense<0.000000e+00> : vector<8x8xf32>
    %399 = tpu.matmul %329, %398, %cst_342 {dimension_numbers = #tpu.dot_dimension_numbers<[1], [0], [0], [1], [0, 0, 1, 1], [], []>} : vector<8x32xf32>, vector<32x8xf32>, vector<8x8xf32> -> vector<8x8xf32>
    %c0_343 = arith.constant 0 : index
    %c6_344 = arith.constant 6 : index
    %c0_345 = arith.constant 0 : index
    %c0_346 = arith.constant 0 : index
    %400 = vector.load %arg11[%c0_343, %c6_344, %c0_345, %c0_346] : memref<2x12x32x8xf32, #tpu.memory_space<vmem>>, vector<1x1x32x8xf32>
    %401 = vector.shape_cast %400 : vector<1x1x32x8xf32> to vector<32x8xf32>
    %cst_347 = arith.constant dense<0.000000e+00> : vector<8x8xf32>
    %402 = tpu.matmul %329, %401, %cst_347 {dimension_numbers = #tpu.dot_dimension_numbers<[1], [0], [0], [1], [0, 0, 1, 1], [], []>} : vector<8x32xf32>, vector<32x8xf32>, vector<8x8xf32> -> vector<8x8xf32>
    %c0_348 = arith.constant 0 : index
    %c10_349 = arith.constant 10 : index
    %c0_350 = arith.constant 0 : index
    %c0_351 = arith.constant 0 : index
    %403 = vector.load %arg11[%c0_348, %c10_349, %c0_350, %c0_351] : memref<2x12x32x8xf32, #tpu.memory_space<vmem>>, vector<1x1x32x8xf32>
    %404 = vector.shape_cast %403 : vector<1x1x32x8xf32> to vector<32x8xf32>
    %cst_352 = arith.constant dense<0.000000e+00> : vector<8x8xf32>
    %405 = tpu.matmul %329, %404, %cst_352 {dimension_numbers = #tpu.dot_dimension_numbers<[1], [0], [0], [1], [0, 0, 1, 1], [], []>} : vector<8x32xf32>, vector<32x8xf32>, vector<8x8xf32> -> vector<8x8xf32>
    %c2_353 = arith.constant 2 : index
    %c0_354 = arith.constant 0 : index
    %c0_355 = arith.constant 0 : index
    %c0_356 = arith.constant 0 : index
    %406 = vector.load %arg19[%c2_353, %c0_354, %c0_355, %c0_356] : memref<8x1x8x8xf32, #tpu.memory_space<vmem>>, vector<1x1x8x8xf32>
    %407 = vector.shape_cast %406 : vector<1x1x8x8xf32> to vector<8x8xf32>
    %408 = vector.shape_cast %402 : vector<8x8xf32> to vector<1x1x8x8xf32>
    tpu.vector_store %arg19[%c2_353, %c0_354, %c0_355, %c0_356], %408 {strides = array<i32>} : memref<8x1x8x8xf32, #tpu.memory_space<vmem>>, vector<1x1x8x8xf32>,
    %c2_357 = arith.constant 2 : index
    %c0_358 = arith.constant 0 : index
    %c0_359 = arith.constant 0 : index
    %c0_360 = arith.constant 0 : index
    %409 = vector.load %arg20[%c2_357, %c0_358, %c0_359, %c0_360] : memref<8x1x8x8xf32, #tpu.memory_space<vmem>>, vector<1x1x8x8xf32>
    %410 = vector.shape_cast %409 : vector<1x1x8x8xf32> to vector<8x8xf32>
    %411 = vector.shape_cast %405 : vector<8x8xf32> to vector<1x1x8x8xf32>
    tpu.vector_store %arg20[%c2_357, %c0_358, %c0_359, %c0_360], %411 {strides = array<i32>} : memref<8x1x8x8xf32, #tpu.memory_space<vmem>>, vector<1x1x8x8xf32>,
    %cst_361 = arith.constant dense<0.000000e+00> : vector<8x8xf32>
    %412 = tpu.matmul %399, %402, %cst_361 {dimension_numbers = #tpu.dot_dimension_numbers<[1], [1], [0], [0], [0, 0, 1, 0], [], []>} : vector<8x8xf32>, vector<8x8xf32>, vector<8x8xf32> -> vector<8x8xf32>
    %c2_362 = arith.constant 2 : index
    %c0_363 = arith.constant 0 : index
    %c0_364 = arith.constant 0 : index
    %413 = vector.load %arg3[%c2_362, %c0_363, %c0_364] : memref<4x8x8xf32, #tpu.memory_space<vmem>>, vector<1x8x8xf32>
    %414 = vector.shape_cast %413 : vector<1x8x8xf32> to vector<8x8xf32>
    %415 = arith.addf %412, %414 : vector<8x8xf32>
    %cst_365 = arith.constant dense<0xFF800000> : vector<8xf32>
    %416 = vector.multi_reduction <maximumf>, %415, %cst_365 [1] : vector<8x8xf32> to vector<8xf32>
    %417 = vector.shape_cast %416 : vector<8xf32> to vector<8x1xf32>
    %418 = vector.broadcast %417 : vector<8x1xf32> to vector<8x8xf32>
    %419 = arith.subf %415, %418 : vector<8x8xf32>
    %420 = math.exp %419 : vector<8x8xf32>
    %cst_366 = arith.constant dense<0.000000e+00> : vector<8xf32>
    %421 = vector.multi_reduction <add>, %420, %cst_366 [1] : vector<8x8xf32> to vector<8xf32>
    %422 = vector.shape_cast %421 : vector<8xf32> to vector<8x1xf32>
    %423 = tpu.reciprocal %422 {approx = true} : vector<8x1xf32> -> vector<8x1xf32>
    %424 = vector.broadcast %423 : vector<8x1xf32> to vector<8x8xf32>
    %425 = arith.mulf %420, %424 : vector<8x8xf32>
    %cst_367 = arith.constant dense<0.000000e+00> : vector<8x8xf32>
    %426 = tpu.matmul %425, %405, %cst_367 {dimension_numbers = #tpu.dot_dimension_numbers<[1], [0], [0], [1], [0, 0, 1, 1], [], []>} : vector<8x8xf32>, vector<8x8xf32>, vector<8x8xf32> -> vector<8x8xf32>
    %c0_368 = arith.constant 0 : index
    %c2_369 = arith.constant 2 : index
    %c0_370 = arith.constant 0 : index
    %c0_371 = arith.constant 0 : index
    %427 = vector.load %arg12[%c0_368, %c2_369, %c0_370, %c0_371] : memref<2x4x8x32xf32, #tpu.memory_space<vmem>>, vector<1x1x8x32xf32>
    %428 = vector.shape_cast %427 : vector<1x1x8x32xf32> to vector<8x32xf32>
    %cst_372 = arith.constant dense<0.000000e+00> : vector<8x32xf32>
    %429 = tpu.matmul %426, %428, %cst_372 {dimension_numbers = #tpu.dot_dimension_numbers<[1], [0], [0], [1], [0, 0, 1, 1], [], []>} : vector<8x8xf32>, vector<8x32xf32>, vector<8x32xf32> -> vector<8x32xf32>
    %430 = arith.addf %396, %429 : vector<8x32xf32>
    %c0_373 = arith.constant 0 : index
    %c3_374 = arith.constant 3 : index
    %c0_375 = arith.constant 0 : index
    %c0_376 = arith.constant 0 : index
    %431 = vector.load %arg11[%c0_373, %c3_374, %c0_375, %c0_376] : memref<2x12x32x8xf32, #tpu.memory_space<vmem>>, vector<1x1x32x8xf32>
    %432 = vector.shape_cast %431 : vector<1x1x32x8xf32> to vector<32x8xf32>
    %cst_377 = arith.constant dense<0.000000e+00> : vector<8x8xf32>
    %433 = tpu.matmul %329, %432, %cst_377 {dimension_numbers = #tpu.dot_dimension_numbers<[1], [0], [0], [1], [0, 0, 1, 1], [], []>} : vector<8x32xf32>, vector<32x8xf32>, vector<8x8xf32> -> vector<8x8xf32>
    %c0_378 = arith.constant 0 : index
    %c7_379 = arith.constant 7 : index
    %c0_380 = arith.constant 0 : index
    %c0_381 = arith.constant 0 : index
    %434 = vector.load %arg11[%c0_378, %c7_379, %c0_380, %c0_381] : memref<2x12x32x8xf32, #tpu.memory_space<vmem>>, vector<1x1x32x8xf32>
    %435 = vector.shape_cast %434 : vector<1x1x32x8xf32> to vector<32x8xf32>
    %cst_382 = arith.constant dense<0.000000e+00> : vector<8x8xf32>
    %436 = tpu.matmul %329, %435, %cst_382 {dimension_numbers = #tpu.dot_dimension_numbers<[1], [0], [0], [1], [0, 0, 1, 1], [], []>} : vector<8x32xf32>, vector<32x8xf32>, vector<8x8xf32> -> vector<8x8xf32>
    %c0_383 = arith.constant 0 : index
    %c11_384 = arith.constant 11 : index
    %c0_385 = arith.constant 0 : index
    %c0_386 = arith.constant 0 : index
    %437 = vector.load %arg11[%c0_383, %c11_384, %c0_385, %c0_386] : memref<2x12x32x8xf32, #tpu.memory_space<vmem>>, vector<1x1x32x8xf32>
    %438 = vector.shape_cast %437 : vector<1x1x32x8xf32> to vector<32x8xf32>
    %cst_387 = arith.constant dense<0.000000e+00> : vector<8x8xf32>
    %439 = tpu.matmul %329, %438, %cst_387 {dimension_numbers = #tpu.dot_dimension_numbers<[1], [0], [0], [1], [0, 0, 1, 1], [], []>} : vector<8x32xf32>, vector<32x8xf32>, vector<8x8xf32> -> vector<8x8xf32>
    %c3_388 = arith.constant 3 : index
    %c0_389 = arith.constant 0 : index
    %c0_390 = arith.constant 0 : index
    %c0_391 = arith.constant 0 : index
    %440 = vector.load %arg19[%c3_388, %c0_389, %c0_390, %c0_391] : memref<8x1x8x8xf32, #tpu.memory_space<vmem>>, vector<1x1x8x8xf32>
    %441 = vector.shape_cast %440 : vector<1x1x8x8xf32> to vector<8x8xf32>
    %442 = vector.shape_cast %436 : vector<8x8xf32> to vector<1x1x8x8xf32>
    tpu.vector_store %arg19[%c3_388, %c0_389, %c0_390, %c0_391], %442 {strides = array<i32>} : memref<8x1x8x8xf32, #tpu.memory_space<vmem>>, vector<1x1x8x8xf32>,
    %c3_392 = arith.constant 3 : index
    %c0_393 = arith.constant 0 : index
    %c0_394 = arith.constant 0 : index
    %c0_395 = arith.constant 0 : index
    %443 = vector.load %arg20[%c3_392, %c0_393, %c0_394, %c0_395] : memref<8x1x8x8xf32, #tpu.memory_space<vmem>>, vector<1x1x8x8xf32>
    %444 = vector.shape_cast %443 : vector<1x1x8x8xf32> to vector<8x8xf32>
    %445 = vector.shape_cast %439 : vector<8x8xf32> to vector<1x1x8x8xf32>
    tpu.vector_store %arg20[%c3_392, %c0_393, %c0_394, %c0_395], %445 {strides = array<i32>} : memref<8x1x8x8xf32, #tpu.memory_space<vmem>>, vector<1x1x8x8xf32>,
    %cst_396 = arith.constant dense<0.000000e+00> : vector<8x8xf32>
    %446 = tpu.matmul %433, %436, %cst_396 {dimension_numbers = #tpu.dot_dimension_numbers<[1], [1], [0], [0], [0, 0, 1, 0], [], []>} : vector<8x8xf32>, vector<8x8xf32>, vector<8x8xf32> -> vector<8x8xf32>
    %c3_397 = arith.constant 3 : index
    %c0_398 = arith.constant 0 : index
    %c0_399 = arith.constant 0 : index
    %447 = vector.load %arg3[%c3_397, %c0_398, %c0_399] : memref<4x8x8xf32, #tpu.memory_space<vmem>>, vector<1x8x8xf32>
    %448 = vector.shape_cast %447 : vector<1x8x8xf32> to vector<8x8xf32>
    %449 = arith.addf %446, %448 : vector<8x8xf32>
    %cst_400 = arith.constant dense<0xFF800000> : vector<8xf32>
    %450 = vector.multi_reduction <maximumf>, %449, %cst_400 [1] : vector<8x8xf32> to vector<8xf32>
    %451 = vector.shape_cast %450 : vector<8xf32> to vector<8x1xf32>
    %452 = vector.broadcast %451 : vector<8x1xf32> to vector<8x8xf32>
    %453 = arith.subf %449, %452 : vector<8x8xf32>
    %454 = math.exp %453 : vector<8x8xf32>
    %cst_401 = arith.constant dense<0.000000e+00> : vector<8xf32>
    %455 = vector.multi_reduction <add>, %454, %cst_401 [1] : vector<8x8xf32> to vector<8xf32>
    %456 = vector.shape_cast %455 : vector<8xf32> to vector<8x1xf32>
    %457 = tpu.reciprocal %456 {approx = true} : vector<8x1xf32> -> vector<8x1xf32>
    %458 = vector.broadcast %457 : vector<8x1xf32> to vector<8x8xf32>
    %459 = arith.mulf %454, %458 : vector<8x8xf32>
    %cst_402 = arith.constant dense<0.000000e+00> : vector<8x8xf32>
    %460 = tpu.matmul %459, %439, %cst_402 {dimension_numbers = #tpu.dot_dimension_numbers<[1], [0], [0], [1], [0, 0, 1, 1], [], []>} : vector<8x8xf32>, vector<8x8xf32>, vector<8x8xf32> -> vector<8x8xf32>
    %c0_403 = arith.constant 0 : index
    %c3_404 = arith.constant 3 : index
    %c0_405 = arith.constant 0 : index
    %c0_406 = arith.constant 0 : index
    %461 = vector.load %arg12[%c0_403, %c3_404, %c0_405, %c0_406] : memref<2x4x8x32xf32, #tpu.memory_space<vmem>>, vector<1x1x8x32xf32>
    %462 = vector.shape_cast %461 : vector<1x1x8x32xf32> to vector<8x32xf32>
    %cst_407 = arith.constant dense<0.000000e+00> : vector<8x32xf32>
    %463 = tpu.matmul %460, %462, %cst_407 {dimension_numbers = #tpu.dot_dimension_numbers<[1], [0], [0], [1], [0, 0, 1, 1], [], []>} : vector<8x8xf32>, vector<8x32xf32>, vector<8x32xf32> -> vector<8x32xf32>
    %464 = arith.addf %430, %463 : vector<8x32xf32>
    %465 = arith.addf %1, %464 : vector<8x32xf32>
    %c0_408 = arith.constant 0 : index
    %c1_409 = arith.constant 1 : index
    %c0_410 = arith.constant 0 : index
    %c0_411 = arith.constant 0 : index
    %466 = vector.load %arg10[%c0_408, %c1_409, %c0_410, %c0_411] : memref<2x3x1x32xf32, #tpu.memory_space<vmem>>, vector<1x1x1x32xf32>
    %467 = vector.shape_cast %466 : vector<1x1x1x32xf32> to vector<1x32xf32>
    %468 = arith.mulf %465, %465 : vector<8x32xf32>
    %cst_412 = arith.constant dense<0.000000e+00> : vector<8xf32>
    %469 = vector.multi_reduction <add>, %468, %cst_412 [1] : vector<8x32xf32> to vector<8xf32>
    %470 = vector.shape_cast %469 : vector<8xf32> to vector<8x1xf32>
    %cst_413 = arith.constant 3.200000e+01 : f32
    %471 = vector.broadcast %cst_413 : f32 to vector<8x1xf32>
    %472 = arith.divf %470, %471 : vector<8x1xf32>
    %cst_414 = arith.constant 9.99999997E-7 : f32
    %473 = vector.broadcast %cst_414 : f32 to vector<8x1xf32>
    %474 = arith.addf %472, %473 : vector<8x1xf32>
    %475 = math.rsqrt %474 : vector<8x1xf32>
    %476 = vector.broadcast %475 : vector<8x1xf32> to vector<8x32xf32>
    %477 = arith.mulf %465, %476 : vector<8x32xf32>
    %478 = vector.broadcast %467 : vector<1x32xf32> to vector<8x32xf32>
    %479 = arith.mulf %477, %478 : vector<8x32xf32>
    %c0_415 = arith.constant 0 : index
    %c0_416 = arith.constant 0 : index
    %c0_417 = arith.constant 0 : index
    %c0_418 = arith.constant 0 : index
    %480 = vector.load %arg13[%c0_415, %c0_416, %c0_417, %c0_418] : memref<2x12x32x8xf32, #tpu.memory_space<vmem>>, vector<1x1x32x8xf32>
    %481 = vector.shape_cast %480 : vector<1x1x32x8xf32> to vector<32x8xf32>
    %cst_419 = arith.constant dense<0.000000e+00> : vector<8x8xf32>
    %482 = tpu.matmul %479, %481, %cst_419 {dimension_numbers = #tpu.dot_dimension_numbers<[1], [0], [0], [1], [0, 0, 1, 1], [], []>} : vector<8x32xf32>, vector<32x8xf32>, vector<8x8xf32> -> vector<8x8xf32>
    %c0_420 = arith.constant 0 : index
    %c4_421 = arith.constant 4 : index
    %c0_422 = arith.constant 0 : index
    %c0_423 = arith.constant 0 : index
    %483 = vector.load %arg13[%c0_420, %c4_421, %c0_422, %c0_423] : memref<2x12x32x8xf32, #tpu.memory_space<vmem>>, vector<1x1x32x8xf32>
    %484 = vector.shape_cast %483 : vector<1x1x32x8xf32> to vector<32x8xf32>
    %cst_424 = arith.constant dense<0.000000e+00> : vector<8x8xf32>
    %485 = tpu.matmul %312, %484, %cst_424 {dimension_numbers = #tpu.dot_dimension_numbers<[1], [0], [0], [1], [0, 0, 1, 1], [], []>} : vector<8x32xf32>, vector<32x8xf32>, vector<8x8xf32> -> vector<8x8xf32>
    %c0_425 = arith.constant 0 : index
    %c8_426 = arith.constant 8 : index
    %c0_427 = arith.constant 0 : index
    %c0_428 = arith.constant 0 : index
    %486 = vector.load %arg13[%c0_425, %c8_426, %c0_427, %c0_428] : memref<2x12x32x8xf32, #tpu.memory_space<vmem>>, vector<1x1x32x8xf32>
    %487 = vector.shape_cast %486 : vector<1x1x32x8xf32> to vector<32x8xf32>
    %cst_429 = arith.constant dense<0.000000e+00> : vector<8x8xf32>
    %488 = tpu.matmul %312, %487, %cst_429 {dimension_numbers = #tpu.dot_dimension_numbers<[1], [0], [0], [1], [0, 0, 1, 1], [], []>} : vector<8x32xf32>, vector<32x8xf32>, vector<8x8xf32> -> vector<8x8xf32>
    %c0_430 = arith.constant 0 : index
    %c0_431 = arith.constant 0 : index
    %c0_432 = arith.constant 0 : index
    %c0_433 = arith.constant 0 : index
    %489 = vector.load %arg21[%c0_430, %c0_431, %c0_432, %c0_433] : memref<8x1x8x8xf32, #tpu.memory_space<vmem>>, vector<1x1x8x8xf32>
    %490 = vector.shape_cast %489 : vector<1x1x8x8xf32> to vector<8x8xf32>
    %491 = vector.shape_cast %485 : vector<8x8xf32> to vector<1x1x8x8xf32>
    tpu.vector_store %arg21[%c0_430, %c0_431, %c0_432, %c0_433], %491 {strides = array<i32>} : memref<8x1x8x8xf32, #tpu.memory_space<vmem>>, vector<1x1x8x8xf32>,
    %c0_434 = arith.constant 0 : index
    %c0_435 = arith.constant 0 : index
    %c0_436 = arith.constant 0 : index
    %c0_437 = arith.constant 0 : index
    %492 = vector.load %arg22[%c0_434, %c0_435, %c0_436, %c0_437] : memref<8x1x8x8xf32, #tpu.memory_space<vmem>>, vector<1x1x8x8xf32>
    %493 = vector.shape_cast %492 : vector<1x1x8x8xf32> to vector<8x8xf32>
    %494 = vector.shape_cast %488 : vector<8x8xf32> to vector<1x1x8x8xf32>
    tpu.vector_store %arg22[%c0_434, %c0_435, %c0_436, %c0_437], %494 {strides = array<i32>} : memref<8x1x8x8xf32, #tpu.memory_space<vmem>>, vector<1x1x8x8xf32>,
    %cst_438 = arith.constant dense<0.000000e+00> : vector<8x8xf32>
    %495 = tpu.matmul %482, %485, %cst_438 {dimension_numbers = #tpu.dot_dimension_numbers<[1], [1], [0], [0], [0, 0, 1, 0], [], []>} : vector<8x8xf32>, vector<8x8xf32>, vector<8x8xf32> -> vector<8x8xf32>
    %cst_439 = arith.constant dense<0xFF800000> : vector<8xf32>
    %496 = vector.multi_reduction <maximumf>, %495, %cst_439 [1] : vector<8x8xf32> to vector<8xf32>
    %497 = vector.shape_cast %496 : vector<8xf32> to vector<8x1xf32>
    %498 = vector.broadcast %497 : vector<8x1xf32> to vector<8x8xf32>
    %499 = arith.subf %495, %498 : vector<8x8xf32>
    %500 = math.exp %499 : vector<8x8xf32>
    %cst_440 = arith.constant dense<0.000000e+00> : vector<8xf32>
    %501 = vector.multi_reduction <add>, %500, %cst_440 [1] : vector<8x8xf32> to vector<8xf32>
    %502 = vector.shape_cast %501 : vector<8xf32> to vector<8x1xf32>
    %503 = tpu.reciprocal %502 {approx = true} : vector<8x1xf32> -> vector<8x1xf32>
    %504 = vector.broadcast %503 : vector<8x1xf32> to vector<8x8xf32>
    %505 = arith.mulf %500, %504 : vector<8x8xf32>
    %cst_441 = arith.constant dense<0.000000e+00> : vector<8x8xf32>
    %506 = tpu.matmul %505, %488, %cst_441 {dimension_numbers = #tpu.dot_dimension_numbers<[1], [0], [0], [1], [0, 0, 1, 1], [], []>} : vector<8x8xf32>, vector<8x8xf32>, vector<8x8xf32> -> vector<8x8xf32>
    %c0_442 = arith.constant 0 : index
    %c0_443 = arith.constant 0 : index
    %c0_444 = arith.constant 0 : index
    %c0_445 = arith.constant 0 : index
    %507 = vector.load %arg14[%c0_442, %c0_443, %c0_444, %c0_445] : memref<2x4x8x32xf32, #tpu.memory_space<vmem>>, vector<1x1x8x32xf32>
    %508 = vector.shape_cast %507 : vector<1x1x8x32xf32> to vector<8x32xf32>
    %cst_446 = arith.constant dense<0.000000e+00> : vector<8x32xf32>
    %509 = tpu.matmul %506, %508, %cst_446 {dimension_numbers = #tpu.dot_dimension_numbers<[1], [0], [0], [1], [0, 0, 1, 1], [], []>} : vector<8x8xf32>, vector<8x32xf32>, vector<8x32xf32> -> vector<8x32xf32>
    %c0_447 = arith.constant 0 : index
    %c1_448 = arith.constant 1 : index
    %c0_449 = arith.constant 0 : index
    %c0_450 = arith.constant 0 : index
    %510 = vector.load %arg13[%c0_447, %c1_448, %c0_449, %c0_450] : memref<2x12x32x8xf32, #tpu.memory_space<vmem>>, vector<1x1x32x8xf32>
    %511 = vector.shape_cast %510 : vector<1x1x32x8xf32> to vector<32x8xf32>
    %cst_451 = arith.constant dense<0.000000e+00> : vector<8x8xf32>
    %512 = tpu.matmul %479, %511, %cst_451 {dimension_numbers = #tpu.dot_dimension_numbers<[1], [0], [0], [1], [0, 0, 1, 1], [], []>} : vector<8x32xf32>, vector<32x8xf32>, vector<8x8xf32> -> vector<8x8xf32>
    %c0_452 = arith.constant 0 : index
    %c5_453 = arith.constant 5 : index
    %c0_454 = arith.constant 0 : index
    %c0_455 = arith.constant 0 : index
    %513 = vector.load %arg13[%c0_452, %c5_453, %c0_454, %c0_455] : memref<2x12x32x8xf32, #tpu.memory_space<vmem>>, vector<1x1x32x8xf32>
    %514 = vector.shape_cast %513 : vector<1x1x32x8xf32> to vector<32x8xf32>
    %cst_456 = arith.constant dense<0.000000e+00> : vector<8x8xf32>
    %515 = tpu.matmul %312, %514, %cst_456 {dimension_numbers = #tpu.dot_dimension_numbers<[1], [0], [0], [1], [0, 0, 1, 1], [], []>} : vector<8x32xf32>, vector<32x8xf32>, vector<8x8xf32> -> vector<8x8xf32>
    %c0_457 = arith.constant 0 : index
    %c9_458 = arith.constant 9 : index
    %c0_459 = arith.constant 0 : index
    %c0_460 = arith.constant 0 : index
    %516 = vector.load %arg13[%c0_457, %c9_458, %c0_459, %c0_460] : memref<2x12x32x8xf32, #tpu.memory_space<vmem>>, vector<1x1x32x8xf32>
    %517 = vector.shape_cast %516 : vector<1x1x32x8xf32> to vector<32x8xf32>
    %cst_461 = arith.constant dense<0.000000e+00> : vector<8x8xf32>
    %518 = tpu.matmul %312, %517, %cst_461 {dimension_numbers = #tpu.dot_dimension_numbers<[1], [0], [0], [1], [0, 0, 1, 1], [], []>} : vector<8x32xf32>, vector<32x8xf32>, vector<8x8xf32> -> vector<8x8xf32>
    %c1_462 = arith.constant 1 : index
    %c0_463 = arith.constant 0 : index
    %c0_464 = arith.constant 0 : index
    %c0_465 = arith.constant 0 : index
    %519 = vector.load %arg21[%c1_462, %c0_463, %c0_464, %c0_465] : memref<8x1x8x8xf32, #tpu.memory_space<vmem>>, vector<1x1x8x8xf32>
    %520 = vector.shape_cast %519 : vector<1x1x8x8xf32> to vector<8x8xf32>
    %521 = vector.shape_cast %515 : vector<8x8xf32> to vector<1x1x8x8xf32>
    tpu.vector_store %arg21[%c1_462, %c0_463, %c0_464, %c0_465], %521 {strides = array<i32>} : memref<8x1x8x8xf32, #tpu.memory_space<vmem>>, vector<1x1x8x8xf32>,
    %c1_466 = arith.constant 1 : index
    %c0_467 = arith.constant 0 : index
    %c0_468 = arith.constant 0 : index
    %c0_469 = arith.constant 0 : index
    %522 = vector.load %arg22[%c1_466, %c0_467, %c0_468, %c0_469] : memref<8x1x8x8xf32, #tpu.memory_space<vmem>>, vector<1x1x8x8xf32>
    %523 = vector.shape_cast %522 : vector<1x1x8x8xf32> to vector<8x8xf32>
    %524 = vector.shape_cast %518 : vector<8x8xf32> to vector<1x1x8x8xf32>
    tpu.vector_store %arg22[%c1_466, %c0_467, %c0_468, %c0_469], %524 {strides = array<i32>} : memref<8x1x8x8xf32, #tpu.memory_space<vmem>>, vector<1x1x8x8xf32>,
    %cst_470 = arith.constant dense<0.000000e+00> : vector<8x8xf32>
    %525 = tpu.matmul %512, %515, %cst_470 {dimension_numbers = #tpu.dot_dimension_numbers<[1], [1], [0], [0], [0, 0, 1, 0], [], []>} : vector<8x8xf32>, vector<8x8xf32>, vector<8x8xf32> -> vector<8x8xf32>
    %cst_471 = arith.constant dense<0xFF800000> : vector<8xf32>
    %526 = vector.multi_reduction <maximumf>, %525, %cst_471 [1] : vector<8x8xf32> to vector<8xf32>
    %527 = vector.shape_cast %526 : vector<8xf32> to vector<8x1xf32>
    %528 = vector.broadcast %527 : vector<8x1xf32> to vector<8x8xf32>
    %529 = arith.subf %525, %528 : vector<8x8xf32>
    %530 = math.exp %529 : vector<8x8xf32>
    %cst_472 = arith.constant dense<0.000000e+00> : vector<8xf32>
    %531 = vector.multi_reduction <add>, %530, %cst_472 [1] : vector<8x8xf32> to vector<8xf32>
    %532 = vector.shape_cast %531 : vector<8xf32> to vector<8x1xf32>
    %533 = tpu.reciprocal %532 {approx = true} : vector<8x1xf32> -> vector<8x1xf32>
    %534 = vector.broadcast %533 : vector<8x1xf32> to vector<8x8xf32>
    %535 = arith.mulf %530, %534 : vector<8x8xf32>
    %cst_473 = arith.constant dense<0.000000e+00> : vector<8x8xf32>
    %536 = tpu.matmul %535, %518, %cst_473 {dimension_numbers = #tpu.dot_dimension_numbers<[1], [0], [0], [1], [0, 0, 1, 1], [], []>} : vector<8x8xf32>, vector<8x8xf32>, vector<8x8xf32> -> vector<8x8xf32>
    %c0_474 = arith.constant 0 : index
    %c1_475 = arith.constant 1 : index
    %c0_476 = arith.constant 0 : index
    %c0_477 = arith.constant 0 : index
    %537 = vector.load %arg14[%c0_474, %c1_475, %c0_476, %c0_477] : memref<2x4x8x32xf32, #tpu.memory_space<vmem>>, vector<1x1x8x32xf32>
    %538 = vector.shape_cast %537 : vector<1x1x8x32xf32> to vector<8x32xf32>
    %cst_478 = arith.constant dense<0.000000e+00> : vector<8x32xf32>
    %539 = tpu.matmul %536, %538, %cst_478 {dimension_numbers = #tpu.dot_dimension_numbers<[1], [0], [0], [1], [0, 0, 1, 1], [], []>} : vector<8x8xf32>, vector<8x32xf32>, vector<8x32xf32> -> vector<8x32xf32>
    %540 = arith.addf %509, %539 : vector<8x32xf32>
    %c0_479 = arith.constant 0 : index
    %c2_480 = arith.constant 2 : index
    %c0_481 = arith.constant 0 : index
    %c0_482 = arith.constant 0 : index
    %541 = vector.load %arg13[%c0_479, %c2_480, %c0_481, %c0_482] : memref<2x12x32x8xf32, #tpu.memory_space<vmem>>, vector<1x1x32x8xf32>
    %542 = vector.shape_cast %541 : vector<1x1x32x8xf32> to vector<32x8xf32>
    %cst_483 = arith.constant dense<0.000000e+00> : vector<8x8xf32>
    %543 = tpu.matmul %479, %542, %cst_483 {dimension_numbers = #tpu.dot_dimension_numbers<[1], [0], [0], [1], [0, 0, 1, 1], [], []>} : vector<8x32xf32>, vector<32x8xf32>, vector<8x8xf32> -> vector<8x8xf32>
    %c0_484 = arith.constant 0 : index
    %c6_485 = arith.constant 6 : index
    %c0_486 = arith.constant 0 : index
    %c0_487 = arith.constant 0 : index
    %544 = vector.load %arg13[%c0_484, %c6_485, %c0_486, %c0_487] : memref<2x12x32x8xf32, #tpu.memory_space<vmem>>, vector<1x1x32x8xf32>
    %545 = vector.shape_cast %544 : vector<1x1x32x8xf32> to vector<32x8xf32>
    %cst_488 = arith.constant dense<0.000000e+00> : vector<8x8xf32>
    %546 = tpu.matmul %312, %545, %cst_488 {dimension_numbers = #tpu.dot_dimension_numbers<[1], [0], [0], [1], [0, 0, 1, 1], [], []>} : vector<8x32xf32>, vector<32x8xf32>, vector<8x8xf32> -> vector<8x8xf32>
    %c0_489 = arith.constant 0 : index
    %c10_490 = arith.constant 10 : index
    %c0_491 = arith.constant 0 : index
    %c0_492 = arith.constant 0 : index
    %547 = vector.load %arg13[%c0_489, %c10_490, %c0_491, %c0_492] : memref<2x12x32x8xf32, #tpu.memory_space<vmem>>, vector<1x1x32x8xf32>
    %548 = vector.shape_cast %547 : vector<1x1x32x8xf32> to vector<32x8xf32>
    %cst_493 = arith.constant dense<0.000000e+00> : vector<8x8xf32>
    %549 = tpu.matmul %312, %548, %cst_493 {dimension_numbers = #tpu.dot_dimension_numbers<[1], [0], [0], [1], [0, 0, 1, 1], [], []>} : vector<8x32xf32>, vector<32x8xf32>, vector<8x8xf32> -> vector<8x8xf32>
    %c2_494 = arith.constant 2 : index
    %c0_495 = arith.constant 0 : index
    %c0_496 = arith.constant 0 : index
    %c0_497 = arith.constant 0 : index
    %550 = vector.load %arg21[%c2_494, %c0_495, %c0_496, %c0_497] : memref<8x1x8x8xf32, #tpu.memory_space<vmem>>, vector<1x1x8x8xf32>
    %551 = vector.shape_cast %550 : vector<1x1x8x8xf32> to vector<8x8xf32>
    %552 = vector.shape_cast %546 : vector<8x8xf32> to vector<1x1x8x8xf32>
    tpu.vector_store %arg21[%c2_494, %c0_495, %c0_496, %c0_497], %552 {strides = array<i32>} : memref<8x1x8x8xf32, #tpu.memory_space<vmem>>, vector<1x1x8x8xf32>,
    %c2_498 = arith.constant 2 : index
    %c0_499 = arith.constant 0 : index
    %c0_500 = arith.constant 0 : index
    %c0_501 = arith.constant 0 : index
    %553 = vector.load %arg22[%c2_498, %c0_499, %c0_500, %c0_501] : memref<8x1x8x8xf32, #tpu.memory_space<vmem>>, vector<1x1x8x8xf32>
    %554 = vector.shape_cast %553 : vector<1x1x8x8xf32> to vector<8x8xf32>
    %555 = vector.shape_cast %549 : vector<8x8xf32> to vector<1x1x8x8xf32>
    tpu.vector_store %arg22[%c2_498, %c0_499, %c0_500, %c0_501], %555 {strides = array<i32>} : memref<8x1x8x8xf32, #tpu.memory_space<vmem>>, vector<1x1x8x8xf32>,
    %cst_502 = arith.constant dense<0.000000e+00> : vector<8x8xf32>
    %556 = tpu.matmul %543, %546, %cst_502 {dimension_numbers = #tpu.dot_dimension_numbers<[1], [1], [0], [0], [0, 0, 1, 0], [], []>} : vector<8x8xf32>, vector<8x8xf32>, vector<8x8xf32> -> vector<8x8xf32>
    %cst_503 = arith.constant dense<0xFF800000> : vector<8xf32>
    %557 = vector.multi_reduction <maximumf>, %556, %cst_503 [1] : vector<8x8xf32> to vector<8xf32>
    %558 = vector.shape_cast %557 : vector<8xf32> to vector<8x1xf32>
    %559 = vector.broadcast %558 : vector<8x1xf32> to vector<8x8xf32>
    %560 = arith.subf %556, %559 : vector<8x8xf32>
    %561 = math.exp %560 : vector<8x8xf32>
    %cst_504 = arith.constant dense<0.000000e+00> : vector<8xf32>
    %562 = vector.multi_reduction <add>, %561, %cst_504 [1] : vector<8x8xf32> to vector<8xf32>
    %563 = vector.shape_cast %562 : vector<8xf32> to vector<8x1xf32>
    %564 = tpu.reciprocal %563 {approx = true} : vector<8x1xf32> -> vector<8x1xf32>
    %565 = vector.broadcast %564 : vector<8x1xf32> to vector<8x8xf32>
    %566 = arith.mulf %561, %565 : vector<8x8xf32>
    %cst_505 = arith.constant dense<0.000000e+00> : vector<8x8xf32>
    %567 = tpu.matmul %566, %549, %cst_505 {dimension_numbers = #tpu.dot_dimension_numbers<[1], [0], [0], [1], [0, 0, 1, 1], [], []>} : vector<8x8xf32>, vector<8x8xf32>, vector<8x8xf32> -> vector<8x8xf32>
    %c0_506 = arith.constant 0 : index
    %c2_507 = arith.constant 2 : index
    %c0_508 = arith.constant 0 : index
    %c0_509 = arith.constant 0 : index
    %568 = vector.load %arg14[%c0_506, %c2_507, %c0_508, %c0_509] : memref<2x4x8x32xf32, #tpu.memory_space<vmem>>, vector<1x1x8x32xf32>
    %569 = vector.shape_cast %568 : vector<1x1x8x32xf32> to vector<8x32xf32>
    %cst_510 = arith.constant dense<0.000000e+00> : vector<8x32xf32>
    %570 = tpu.matmul %567, %569, %cst_510 {dimension_numbers = #tpu.dot_dimension_numbers<[1], [0], [0], [1], [0, 0, 1, 1], [], []>} : vector<8x8xf32>, vector<8x32xf32>, vector<8x32xf32> -> vector<8x32xf32>
    %571 = arith.addf %540, %570 : vector<8x32xf32>
    %c0_511 = arith.constant 0 : index
    %c3_512 = arith.constant 3 : index
    %c0_513 = arith.constant 0 : index
    %c0_514 = arith.constant 0 : index
    %572 = vector.load %arg13[%c0_511, %c3_512, %c0_513, %c0_514] : memref<2x12x32x8xf32, #tpu.memory_space<vmem>>, vector<1x1x32x8xf32>
    %573 = vector.shape_cast %572 : vector<1x1x32x8xf32> to vector<32x8xf32>
    %cst_515 = arith.constant dense<0.000000e+00> : vector<8x8xf32>
    %574 = tpu.matmul %479, %573, %cst_515 {dimension_numbers = #tpu.dot_dimension_numbers<[1], [0], [0], [1], [0, 0, 1, 1], [], []>} : vector<8x32xf32>, vector<32x8xf32>, vector<8x8xf32> -> vector<8x8xf32>
    %c0_516 = arith.constant 0 : index
    %c7_517 = arith.constant 7 : index
    %c0_518 = arith.constant 0 : index
    %c0_519 = arith.constant 0 : index
    %575 = vector.load %arg13[%c0_516, %c7_517, %c0_518, %c0_519] : memref<2x12x32x8xf32, #tpu.memory_space<vmem>>, vector<1x1x32x8xf32>
    %576 = vector.shape_cast %575 : vector<1x1x32x8xf32> to vector<32x8xf32>
    %cst_520 = arith.constant dense<0.000000e+00> : vector<8x8xf32>
    %577 = tpu.matmul %312, %576, %cst_520 {dimension_numbers = #tpu.dot_dimension_numbers<[1], [0], [0], [1], [0, 0, 1, 1], [], []>} : vector<8x32xf32>, vector<32x8xf32>, vector<8x8xf32> -> vector<8x8xf32>
    %c0_521 = arith.constant 0 : index
    %c11_522 = arith.constant 11 : index
    %c0_523 = arith.constant 0 : index
    %c0_524 = arith.constant 0 : index
    %578 = vector.load %arg13[%c0_521, %c11_522, %c0_523, %c0_524] : memref<2x12x32x8xf32, #tpu.memory_space<vmem>>, vector<1x1x32x8xf32>
    %579 = vector.shape_cast %578 : vector<1x1x32x8xf32> to vector<32x8xf32>
    %cst_525 = arith.constant dense<0.000000e+00> : vector<8x8xf32>
    %580 = tpu.matmul %312, %579, %cst_525 {dimension_numbers = #tpu.dot_dimension_numbers<[1], [0], [0], [1], [0, 0, 1, 1], [], []>} : vector<8x32xf32>, vector<32x8xf32>, vector<8x8xf32> -> vector<8x8xf32>
    %c3_526 = arith.constant 3 : index
    %c0_527 = arith.constant 0 : index
    %c0_528 = arith.constant 0 : index
    %c0_529 = arith.constant 0 : index
    %581 = vector.load %arg21[%c3_526, %c0_527, %c0_528, %c0_529] : memref<8x1x8x8xf32, #tpu.memory_space<vmem>>, vector<1x1x8x8xf32>
    %582 = vector.shape_cast %581 : vector<1x1x8x8xf32> to vector<8x8xf32>
    %583 = vector.shape_cast %577 : vector<8x8xf32> to vector<1x1x8x8xf32>
    tpu.vector_store %arg21[%c3_526, %c0_527, %c0_528, %c0_529], %583 {strides = array<i32>} : memref<8x1x8x8xf32, #tpu.memory_space<vmem>>, vector<1x1x8x8xf32>,
    %c3_530 = arith.constant 3 : index
    %c0_531 = arith.constant 0 : index
    %c0_532 = arith.constant 0 : index
    %c0_533 = arith.constant 0 : index
    %584 = vector.load %arg22[%c3_530, %c0_531, %c0_532, %c0_533] : memref<8x1x8x8xf32, #tpu.memory_space<vmem>>, vector<1x1x8x8xf32>
    %585 = vector.shape_cast %584 : vector<1x1x8x8xf32> to vector<8x8xf32>
    %586 = vector.shape_cast %580 : vector<8x8xf32> to vector<1x1x8x8xf32>
    tpu.vector_store %arg22[%c3_530, %c0_531, %c0_532, %c0_533], %586 {strides = array<i32>} : memref<8x1x8x8xf32, #tpu.memory_space<vmem>>, vector<1x1x8x8xf32>,
    %cst_534 = arith.constant dense<0.000000e+00> : vector<8x8xf32>
    %587 = tpu.matmul %574, %577, %cst_534 {dimension_numbers = #tpu.dot_dimension_numbers<[1], [1], [0], [0], [0, 0, 1, 0], [], []>} : vector<8x8xf32>, vector<8x8xf32>, vector<8x8xf32> -> vector<8x8xf32>
    %cst_535 = arith.constant dense<0xFF800000> : vector<8xf32>
    %588 = vector.multi_reduction <maximumf>, %587, %cst_535 [1] : vector<8x8xf32> to vector<8xf32>
    %589 = vector.shape_cast %588 : vector<8xf32> to vector<8x1xf32>
    %590 = vector.broadcast %589 : vector<8x1xf32> to vector<8x8xf32>
    %591 = arith.subf %587, %590 : vector<8x8xf32>
    %592 = math.exp %591 : vector<8x8xf32>
    %cst_536 = arith.constant dense<0.000000e+00> : vector<8xf32>
    %593 = vector.multi_reduction <add>, %592, %cst_536 [1] : vector<8x8xf32> to vector<8xf32>
    %594 = vector.shape_cast %593 : vector<8xf32> to vector<8x1xf32>
    %595 = tpu.reciprocal %594 {approx = true} : vector<8x1xf32> -> vector<8x1xf32>
    %596 = vector.broadcast %595 : vector<8x1xf32> to vector<8x8xf32>
    %597 = arith.mulf %592, %596 : vector<8x8xf32>
    %cst_537 = arith.constant dense<0.000000e+00> : vector<8x8xf32>
    %598 = tpu.matmul %597, %580, %cst_537 {dimension_numbers = #tpu.dot_dimension_numbers<[1], [0], [0], [1], [0, 0, 1, 1], [], []>} : vector<8x8xf32>, vector<8x8xf32>, vector<8x8xf32> -> vector<8x8xf32>
    %c0_538 = arith.constant 0 : index
    %c3_539 = arith.constant 3 : index
    %c0_540 = arith.constant 0 : index
    %c0_541 = arith.constant 0 : index
    %599 = vector.load %arg14[%c0_538, %c3_539, %c0_540, %c0_541] : memref<2x4x8x32xf32, #tpu.memory_space<vmem>>, vector<1x1x8x32xf32>
    %600 = vector.shape_cast %599 : vector<1x1x8x32xf32> to vector<8x32xf32>
    %cst_542 = arith.constant dense<0.000000e+00> : vector<8x32xf32>
    %601 = tpu.matmul %598, %600, %cst_542 {dimension_numbers = #tpu.dot_dimension_numbers<[1], [0], [0], [1], [0, 0, 1, 1], [], []>} : vector<8x8xf32>, vector<8x32xf32>, vector<8x32xf32> -> vector<8x32xf32>
    %602 = arith.addf %571, %601 : vector<8x32xf32>
    %603 = arith.addf %465, %602 : vector<8x32xf32>
    %c0_543 = arith.constant 0 : index
    %c2_544 = arith.constant 2 : index
    %c0_545 = arith.constant 0 : index
    %c0_546 = arith.constant 0 : index
    %604 = vector.load %arg10[%c0_543, %c2_544, %c0_545, %c0_546] : memref<2x3x1x32xf32, #tpu.memory_space<vmem>>, vector<1x1x1x32xf32>
    %605 = vector.shape_cast %604 : vector<1x1x1x32xf32> to vector<1x32xf32>
    %606 = arith.mulf %603, %603 : vector<8x32xf32>
    %cst_547 = arith.constant dense<0.000000e+00> : vector<8xf32>
    %607 = vector.multi_reduction <add>, %606, %cst_547 [1] : vector<8x32xf32> to vector<8xf32>
    %608 = vector.shape_cast %607 : vector<8xf32> to vector<8x1xf32>
    %cst_548 = arith.constant 3.200000e+01 : f32
    %609 = vector.broadcast %cst_548 : f32 to vector<8x1xf32>
    %610 = arith.divf %608, %609 : vector<8x1xf32>
    %cst_549 = arith.constant 9.99999997E-7 : f32
    %611 = vector.broadcast %cst_549 : f32 to vector<8x1xf32>
    %612 = arith.addf %610, %611 : vector<8x1xf32>
    %613 = math.rsqrt %612 : vector<8x1xf32>
    %614 = vector.broadcast %613 : vector<8x1xf32> to vector<8x32xf32>
    %615 = arith.mulf %603, %614 : vector<8x32xf32>
    %616 = vector.broadcast %605 : vector<1x32xf32> to vector<8x32xf32>
    %617 = arith.mulf %615, %616 : vector<8x32xf32>
    %c0_550 = arith.constant 0 : index
    %c0_551 = arith.constant 0 : index
    %c0_552 = arith.constant 0 : index
    %618 = vector.load %arg15[%c0_550, %c0_551, %c0_552] : memref<2x32x64xf32, #tpu.memory_space<vmem>>, vector<1x32x64xf32>
    %619 = vector.shape_cast %618 : vector<1x32x64xf32> to vector<32x64xf32>
    %c0_553 = arith.constant 0 : index
    %c0_554 = arith.constant 0 : index
    %c0_555 = arith.constant 0 : index
    %620 = vector.load %arg16[%c0_553, %c0_554, %c0_555] : memref<2x64x32xf32, #tpu.memory_space<vmem>>, vector<1x64x32xf32>
    %621 = vector.shape_cast %620 : vector<1x64x32xf32> to vector<64x32xf32>
    %cst_556 = arith.constant dense<0.000000e+00> : vector<8x64xf32>
    %622 = tpu.matmul %617, %619, %cst_556 {dimension_numbers = #tpu.dot_dimension_numbers<[1], [0], [0], [1], [0, 0, 1, 1], [], []>} : vector<8x32xf32>, vector<32x64xf32>, vector<8x64xf32> -> vector<8x64xf32>
    %cst_557 = arith.constant 0.000000e+00 : f32
    %623 = vector.broadcast %cst_557 : f32 to vector<8x64xf32>
    %624 = arith.maximumf %622, %623 : vector<8x64xf32>
    %cst_558 = arith.constant dense<0.000000e+00> : vector<8x32xf32>
    %625 = tpu.matmul %624, %621, %cst_558 {dimension_numbers = #tpu.dot_dimension_numbers<[1], [0], [0], [1], [0, 0, 1, 1], [], []>} : vector<8x64xf32>, vector<64x32xf32>, vector<8x32xf32> -> vector<8x32xf32>
    %626 = arith.addf %603, %625 : vector<8x32xf32>
    %c1_559 = arith.constant 1 : index
    %c0_560 = arith.constant 0 : index
    %c0_561 = arith.constant 0 : index
    %c0_562 = arith.constant 0 : index
    %627 = vector.load %arg18[%c1_559, %c0_560, %c0_561, %c0_562] : memref<3x1x8x32xf32, #tpu.memory_space<vmem>>, vector<1x1x8x32xf32>
    %628 = vector.shape_cast %627 : vector<1x1x8x32xf32> to vector<8x32xf32>
    %629 = vector.shape_cast %626 : vector<8x32xf32> to vector<1x1x8x32xf32>
    tpu.vector_store %arg18[%c1_559, %c0_560, %c0_561, %c0_562], %629 {strides = array<i32>} : memref<3x1x8x32xf32, #tpu.memory_space<vmem>>, vector<1x1x8x32xf32>,
    %c1_563 = arith.constant 1 : index
    %c0_564 = arith.constant 0 : index
    %c0_565 = arith.constant 0 : index
    %c0_566 = arith.constant 0 : index
    %630 = vector.load %arg10[%c1_563, %c0_564, %c0_565, %c0_566] : memref<2x3x1x32xf32, #tpu.memory_space<vmem>>, vector<1x1x1x32xf32>
    %631 = vector.shape_cast %630 : vector<1x1x1x32xf32> to vector<1x32xf32>
    %632 = arith.mulf %626, %626 : vector<8x32xf32>
    %cst_567 = arith.constant dense<0.000000e+00> : vector<8xf32>
    %633 = vector.multi_reduction <add>, %632, %cst_567 [1] : vector<8x32xf32> to vector<8xf32>
    %634 = vector.shape_cast %633 : vector<8xf32> to vector<8x1xf32>
    %cst_568 = arith.constant 3.200000e+01 : f32
    %635 = vector.broadcast %cst_568 : f32 to vector<8x1xf32>
    %636 = arith.divf %634, %635 : vector<8x1xf32>
    %cst_569 = arith.constant 9.99999997E-7 : f32
    %637 = vector.broadcast %cst_569 : f32 to vector<8x1xf32>
    %638 = arith.addf %636, %637 : vector<8x1xf32>
    %639 = math.rsqrt %638 : vector<8x1xf32>
    %640 = vector.broadcast %639 : vector<8x1xf32> to vector<8x32xf32>
    %641 = arith.mulf %626, %640 : vector<8x32xf32>
    %642 = vector.broadcast %631 : vector<1x32xf32> to vector<8x32xf32>
    %643 = arith.mulf %641, %642 : vector<8x32xf32>
    %c1_570 = arith.constant 1 : index
    %c0_571 = arith.constant 0 : index
    %c0_572 = arith.constant 0 : index
    %c0_573 = arith.constant 0 : index
    %644 = vector.load %arg11[%c1_570, %c0_571, %c0_572, %c0_573] : memref<2x12x32x8xf32, #tpu.memory_space<vmem>>, vector<1x1x32x8xf32>
    %645 = vector.shape_cast %644 : vector<1x1x32x8xf32> to vector<32x8xf32>
    %cst_574 = arith.constant dense<0.000000e+00> : vector<8x8xf32>
    %646 = tpu.matmul %643, %645, %cst_574 {dimension_numbers = #tpu.dot_dimension_numbers<[1], [0], [0], [1], [0, 0, 1, 1], [], []>} : vector<8x32xf32>, vector<32x8xf32>, vector<8x8xf32> -> vector<8x8xf32>
    %c1_575 = arith.constant 1 : index
    %c4_576 = arith.constant 4 : index
    %c0_577 = arith.constant 0 : index
    %c0_578 = arith.constant 0 : index
    %647 = vector.load %arg11[%c1_575, %c4_576, %c0_577, %c0_578] : memref<2x12x32x8xf32, #tpu.memory_space<vmem>>, vector<1x1x32x8xf32>
    %648 = vector.shape_cast %647 : vector<1x1x32x8xf32> to vector<32x8xf32>
    %cst_579 = arith.constant dense<0.000000e+00> : vector<8x8xf32>
    %649 = tpu.matmul %643, %648, %cst_579 {dimension_numbers = #tpu.dot_dimension_numbers<[1], [0], [0], [1], [0, 0, 1, 1], [], []>} : vector<8x32xf32>, vector<32x8xf32>, vector<8x8xf32> -> vector<8x8xf32>
    %c1_580 = arith.constant 1 : index
    %c8_581 = arith.constant 8 : index
    %c0_582 = arith.constant 0 : index
    %c0_583 = arith.constant 0 : index
    %650 = vector.load %arg11[%c1_580, %c8_581, %c0_582, %c0_583] : memref<2x12x32x8xf32, #tpu.memory_space<vmem>>, vector<1x1x32x8xf32>
    %651 = vector.shape_cast %650 : vector<1x1x32x8xf32> to vector<32x8xf32>
    %cst_584 = arith.constant dense<0.000000e+00> : vector<8x8xf32>
    %652 = tpu.matmul %643, %651, %cst_584 {dimension_numbers = #tpu.dot_dimension_numbers<[1], [0], [0], [1], [0, 0, 1, 1], [], []>} : vector<8x32xf32>, vector<32x8xf32>, vector<8x8xf32> -> vector<8x8xf32>
    %c4_585 = arith.constant 4 : index
    %c0_586 = arith.constant 0 : index
    %c0_587 = arith.constant 0 : index
    %c0_588 = arith.constant 0 : index
    %653 = vector.load %arg19[%c4_585, %c0_586, %c0_587, %c0_588] : memref<8x1x8x8xf32, #tpu.memory_space<vmem>>, vector<1x1x8x8xf32>
    %654 = vector.shape_cast %653 : vector<1x1x8x8xf32> to vector<8x8xf32>
    %655 = vector.shape_cast %649 : vector<8x8xf32> to vector<1x1x8x8xf32>
    tpu.vector_store %arg19[%c4_585, %c0_586, %c0_587, %c0_588], %655 {strides = array<i32>} : memref<8x1x8x8xf32, #tpu.memory_space<vmem>>, vector<1x1x8x8xf32>,
    %c4_589 = arith.constant 4 : index
    %c0_590 = arith.constant 0 : index
    %c0_591 = arith.constant 0 : index
    %c0_592 = arith.constant 0 : index
    %656 = vector.load %arg20[%c4_589, %c0_590, %c0_591, %c0_592] : memref<8x1x8x8xf32, #tpu.memory_space<vmem>>, vector<1x1x8x8xf32>
    %657 = vector.shape_cast %656 : vector<1x1x8x8xf32> to vector<8x8xf32>
    %658 = vector.shape_cast %652 : vector<8x8xf32> to vector<1x1x8x8xf32>
    tpu.vector_store %arg20[%c4_589, %c0_590, %c0_591, %c0_592], %658 {strides = array<i32>} : memref<8x1x8x8xf32, #tpu.memory_space<vmem>>, vector<1x1x8x8xf32>,
    %cst_593 = arith.constant dense<0.000000e+00> : vector<8x8xf32>
    %659 = tpu.matmul %646, %649, %cst_593 {dimension_numbers = #tpu.dot_dimension_numbers<[1], [1], [0], [0], [0, 0, 1, 0], [], []>} : vector<8x8xf32>, vector<8x8xf32>, vector<8x8xf32> -> vector<8x8xf32>
    %c0_594 = arith.constant 0 : index
    %c0_595 = arith.constant 0 : index
    %c0_596 = arith.constant 0 : index
    %660 = vector.load %arg3[%c0_594, %c0_595, %c0_596] : memref<4x8x8xf32, #tpu.memory_space<vmem>>, vector<1x8x8xf32>
    %661 = vector.shape_cast %660 : vector<1x8x8xf32> to vector<8x8xf32>
    %662 = arith.addf %659, %661 : vector<8x8xf32>
    %cst_597 = arith.constant dense<0xFF800000> : vector<8xf32>
    %663 = vector.multi_reduction <maximumf>, %662, %cst_597 [1] : vector<8x8xf32> to vector<8xf32>
    %664 = vector.shape_cast %663 : vector<8xf32> to vector<8x1xf32>
    %665 = vector.broadcast %664 : vector<8x1xf32> to vector<8x8xf32>
    %666 = arith.subf %662, %665 : vector<8x8xf32>
    %667 = math.exp %666 : vector<8x8xf32>
    %cst_598 = arith.constant dense<0.000000e+00> : vector<8xf32>
    %668 = vector.multi_reduction <add>, %667, %cst_598 [1] : vector<8x8xf32> to vector<8xf32>
    %669 = vector.shape_cast %668 : vector<8xf32> to vector<8x1xf32>
    %670 = tpu.reciprocal %669 {approx = true} : vector<8x1xf32> -> vector<8x1xf32>
    %671 = vector.broadcast %670 : vector<8x1xf32> to vector<8x8xf32>
    %672 = arith.mulf %667, %671 : vector<8x8xf32>
    %cst_599 = arith.constant dense<0.000000e+00> : vector<8x8xf32>
    %673 = tpu.matmul %672, %652, %cst_599 {dimension_numbers = #tpu.dot_dimension_numbers<[1], [0], [0], [1], [0, 0, 1, 1], [], []>} : vector<8x8xf32>, vector<8x8xf32>, vector<8x8xf32> -> vector<8x8xf32>
    %c1_600 = arith.constant 1 : index
    %c0_601 = arith.constant 0 : index
    %c0_602 = arith.constant 0 : index
    %c0_603 = arith.constant 0 : index
    %674 = vector.load %arg12[%c1_600, %c0_601, %c0_602, %c0_603] : memref<2x4x8x32xf32, #tpu.memory_space<vmem>>, vector<1x1x8x32xf32>
    %675 = vector.shape_cast %674 : vector<1x1x8x32xf32> to vector<8x32xf32>
    %cst_604 = arith.constant dense<0.000000e+00> : vector<8x32xf32>
    %676 = tpu.matmul %673, %675, %cst_604 {dimension_numbers = #tpu.dot_dimension_numbers<[1], [0], [0], [1], [0, 0, 1, 1], [], []>} : vector<8x8xf32>, vector<8x32xf32>, vector<8x32xf32> -> vector<8x32xf32>
    %c1_605 = arith.constant 1 : index
    %c1_606 = arith.constant 1 : index
    %c0_607 = arith.constant 0 : index
    %c0_608 = arith.constant 0 : index
    %677 = vector.load %arg11[%c1_605, %c1_606, %c0_607, %c0_608] : memref<2x12x32x8xf32, #tpu.memory_space<vmem>>, vector<1x1x32x8xf32>
    %678 = vector.shape_cast %677 : vector<1x1x32x8xf32> to vector<32x8xf32>
    %cst_609 = arith.constant dense<0.000000e+00> : vector<8x8xf32>
    %679 = tpu.matmul %643, %678, %cst_609 {dimension_numbers = #tpu.dot_dimension_numbers<[1], [0], [0], [1], [0, 0, 1, 1], [], []>} : vector<8x32xf32>, vector<32x8xf32>, vector<8x8xf32> -> vector<8x8xf32>
    %c1_610 = arith.constant 1 : index
    %c5_611 = arith.constant 5 : index
    %c0_612 = arith.constant 0 : index
    %c0_613 = arith.constant 0 : index
    %680 = vector.load %arg11[%c1_610, %c5_611, %c0_612, %c0_613] : memref<2x12x32x8xf32, #tpu.memory_space<vmem>>, vector<1x1x32x8xf32>
    %681 = vector.shape_cast %680 : vector<1x1x32x8xf32> to vector<32x8xf32>
    %cst_614 = arith.constant dense<0.000000e+00> : vector<8x8xf32>
    %682 = tpu.matmul %643, %681, %cst_614 {dimension_numbers = #tpu.dot_dimension_numbers<[1], [0], [0], [1], [0, 0, 1, 1], [], []>} : vector<8x32xf32>, vector<32x8xf32>, vector<8x8xf32> -> vector<8x8xf32>
    %c1_615 = arith.constant 1 : index
    %c9_616 = arith.constant 9 : index
    %c0_617 = arith.constant 0 : index
    %c0_618 = arith.constant 0 : index
    %683 = vector.load %arg11[%c1_615, %c9_616, %c0_617, %c0_618] : memref<2x12x32x8xf32, #tpu.memory_space<vmem>>, vector<1x1x32x8xf32>
    %684 = vector.shape_cast %683 : vector<1x1x32x8xf32> to vector<32x8xf32>
    %cst_619 = arith.constant dense<0.000000e+00> : vector<8x8xf32>
    %685 = tpu.matmul %643, %684, %cst_619 {dimension_numbers = #tpu.dot_dimension_numbers<[1], [0], [0], [1], [0, 0, 1, 1], [], []>} : vector<8x32xf32>, vector<32x8xf32>, vector<8x8xf32> -> vector<8x8xf32>
    %c5_620 = arith.constant 5 : index
    %c0_621 = arith.constant 0 : index
    %c0_622 = arith.constant 0 : index
    %c0_623 = arith.constant 0 : index
    %686 = vector.load %arg19[%c5_620, %c0_621, %c0_622, %c0_623] : memref<8x1x8x8xf32, #tpu.memory_space<vmem>>, vector<1x1x8x8xf32>
    %687 = vector.shape_cast %686 : vector<1x1x8x8xf32> to vector<8x8xf32>
    %688 = vector.shape_cast %682 : vector<8x8xf32> to vector<1x1x8x8xf32>
    tpu.vector_store %arg19[%c5_620, %c0_621, %c0_622, %c0_623], %688 {strides = array<i32>} : memref<8x1x8x8xf32, #tpu.memory_space<vmem>>, vector<1x1x8x8xf32>,
    %c5_624 = arith.constant 5 : index
    %c0_625 = arith.constant 0 : index
    %c0_626 = arith.constant 0 : index
    %c0_627 = arith.constant 0 : index
    %689 = vector.load %arg20[%c5_624, %c0_625, %c0_626, %c0_627] : memref<8x1x8x8xf32, #tpu.memory_space<vmem>>, vector<1x1x8x8xf32>
    %690 = vector.shape_cast %689 : vector<1x1x8x8xf32> to vector<8x8xf32>
    %691 = vector.shape_cast %685 : vector<8x8xf32> to vector<1x1x8x8xf32>
    tpu.vector_store %arg20[%c5_624, %c0_625, %c0_626, %c0_627], %691 {strides = array<i32>} : memref<8x1x8x8xf32, #tpu.memory_space<vmem>>, vector<1x1x8x8xf32>,
    %cst_628 = arith.constant dense<0.000000e+00> : vector<8x8xf32>
    %692 = tpu.matmul %679, %682, %cst_628 {dimension_numbers = #tpu.dot_dimension_numbers<[1], [1], [0], [0], [0, 0, 1, 0], [], []>} : vector<8x8xf32>, vector<8x8xf32>, vector<8x8xf32> -> vector<8x8xf32>
    %c1_629 = arith.constant 1 : index
    %c0_630 = arith.constant 0 : index
    %c0_631 = arith.constant 0 : index
    %693 = vector.load %arg3[%c1_629, %c0_630, %c0_631] : memref<4x8x8xf32, #tpu.memory_space<vmem>>, vector<1x8x8xf32>
    %694 = vector.shape_cast %693 : vector<1x8x8xf32> to vector<8x8xf32>
    %695 = arith.addf %692, %694 : vector<8x8xf32>
    %cst_632 = arith.constant dense<0xFF800000> : vector<8xf32>
    %696 = vector.multi_reduction <maximumf>, %695, %cst_632 [1] : vector<8x8xf32> to vector<8xf32>
    %697 = vector.shape_cast %696 : vector<8xf32> to vector<8x1xf32>
    %698 = vector.broadcast %697 : vector<8x1xf32> to vector<8x8xf32>
    %699 = arith.subf %695, %698 : vector<8x8xf32>
    %700 = math.exp %699 : vector<8x8xf32>
    %cst_633 = arith.constant dense<0.000000e+00> : vector<8xf32>
    %701 = vector.multi_reduction <add>, %700, %cst_633 [1] : vector<8x8xf32> to vector<8xf32>
    %702 = vector.shape_cast %701 : vector<8xf32> to vector<8x1xf32>
    %703 = tpu.reciprocal %702 {approx = true} : vector<8x1xf32> -> vector<8x1xf32>
    %704 = vector.broadcast %703 : vector<8x1xf32> to vector<8x8xf32>
    %705 = arith.mulf %700, %704 : vector<8x8xf32>
    %cst_634 = arith.constant dense<0.000000e+00> : vector<8x8xf32>
    %706 = tpu.matmul %705, %685, %cst_634 {dimension_numbers = #tpu.dot_dimension_numbers<[1], [0], [0], [1], [0, 0, 1, 1], [], []>} : vector<8x8xf32>, vector<8x8xf32>, vector<8x8xf32> -> vector<8x8xf32>
    %c1_635 = arith.constant 1 : index
    %c1_636 = arith.constant 1 : index
    %c0_637 = arith.constant 0 : index
    %c0_638 = arith.constant 0 : index
    %707 = vector.load %arg12[%c1_635, %c1_636, %c0_637, %c0_638] : memref<2x4x8x32xf32, #tpu.memory_space<vmem>>, vector<1x1x8x32xf32>
    %708 = vector.shape_cast %707 : vector<1x1x8x32xf32> to vector<8x32xf32>
    %cst_639 = arith.constant dense<0.000000e+00> : vector<8x32xf32>
    %709 = tpu.matmul %706, %708, %cst_639 {dimension_numbers = #tpu.dot_dimension_numbers<[1], [0], [0], [1], [0, 0, 1, 1], [], []>} : vector<8x8xf32>, vector<8x32xf32>, vector<8x32xf32> -> vector<8x32xf32>
    %710 = arith.addf %676, %709 : vector<8x32xf32>
    %c1_640 = arith.constant 1 : index
    %c2_641 = arith.constant 2 : index
    %c0_642 = arith.constant 0 : index
    %c0_643 = arith.constant 0 : index
    %711 = vector.load %arg11[%c1_640, %c2_641, %c0_642, %c0_643] : memref<2x12x32x8xf32, #tpu.memory_space<vmem>>, vector<1x1x32x8xf32>
    %712 = vector.shape_cast %711 : vector<1x1x32x8xf32> to vector<32x8xf32>
    %cst_644 = arith.constant dense<0.000000e+00> : vector<8x8xf32>
    %713 = tpu.matmul %643, %712, %cst_644 {dimension_numbers = #tpu.dot_dimension_numbers<[1], [0], [0], [1], [0, 0, 1, 1], [], []>} : vector<8x32xf32>, vector<32x8xf32>, vector<8x8xf32> -> vector<8x8xf32>
    %c1_645 = arith.constant 1 : index
    %c6_646 = arith.constant 6 : index
    %c0_647 = arith.constant 0 : index
    %c0_648 = arith.constant 0 : index
    %714 = vector.load %arg11[%c1_645, %c6_646, %c0_647, %c0_648] : memref<2x12x32x8xf32, #tpu.memory_space<vmem>>, vector<1x1x32x8xf32>
    %715 = vector.shape_cast %714 : vector<1x1x32x8xf32> to vector<32x8xf32>
    %cst_649 = arith.constant dense<0.000000e+00> : vector<8x8xf32>
    %716 = tpu.matmul %643, %715, %cst_649 {dimension_numbers = #tpu.dot_dimension_numbers<[1], [0], [0], [1], [0, 0, 1, 1], [], []>} : vector<8x32xf32>, vector<32x8xf32>, vector<8x8xf32> -> vector<8x8xf32>
    %c1_650 = arith.constant 1 : index
    %c10_651 = arith.constant 10 : index
    %c0_652 = arith.constant 0 : index
    %c0_653 = arith.constant 0 : index
    %717 = vector.load %arg11[%c1_650, %c10_651, %c0_652, %c0_653] : memref<2x12x32x8xf32, #tpu.memory_space<vmem>>, vector<1x1x32x8xf32>
    %718 = vector.shape_cast %717 : vector<1x1x32x8xf32> to vector<32x8xf32>
    %cst_654 = arith.constant dense<0.000000e+00> : vector<8x8xf32>
    %719 = tpu.matmul %643, %718, %cst_654 {dimension_numbers = #tpu.dot_dimension_numbers<[1], [0], [0], [1], [0, 0, 1, 1], [], []>} : vector<8x32xf32>, vector<32x8xf32>, vector<8x8xf32> -> vector<8x8xf32>
    %c6_655 = arith.constant 6 : index
    %c0_656 = arith.constant 0 : index
    %c0_657 = arith.constant 0 : index
    %c0_658 = arith.constant 0 : index
    %720 = vector.load %arg19[%c6_655, %c0_656, %c0_657, %c0_658] : memref<8x1x8x8xf32, #tpu.memory_space<vmem>>, vector<1x1x8x8xf32>
    %721 = vector.shape_cast %720 : vector<1x1x8x8xf32> to vector<8x8xf32>
    %722 = vector.shape_cast %716 : vector<8x8xf32> to vector<1x1x8x8xf32>
    tpu.vector_store %arg19[%c6_655, %c0_656, %c0_657, %c0_658], %722 {strides = array<i32>} : memref<8x1x8x8xf32, #tpu.memory_space<vmem>>, vector<1x1x8x8xf32>,
    %c6_659 = arith.constant 6 : index
    %c0_660 = arith.constant 0 : index
    %c0_661 = arith.constant 0 : index
    %c0_662 = arith.constant 0 : index
    %723 = vector.load %arg20[%c6_659, %c0_660, %c0_661, %c0_662] : memref<8x1x8x8xf32, #tpu.memory_space<vmem>>, vector<1x1x8x8xf32>
    %724 = vector.shape_cast %723 : vector<1x1x8x8xf32> to vector<8x8xf32>
    %725 = vector.shape_cast %719 : vector<8x8xf32> to vector<1x1x8x8xf32>
    tpu.vector_store %arg20[%c6_659, %c0_660, %c0_661, %c0_662], %725 {strides = array<i32>} : memref<8x1x8x8xf32, #tpu.memory_space<vmem>>, vector<1x1x8x8xf32>,
    %cst_663 = arith.constant dense<0.000000e+00> : vector<8x8xf32>
    %726 = tpu.matmul %713, %716, %cst_663 {dimension_numbers = #tpu.dot_dimension_numbers<[1], [1], [0], [0], [0, 0, 1, 0], [], []>} : vector<8x8xf32>, vector<8x8xf32>, vector<8x8xf32> -> vector<8x8xf32>
    %c2_664 = arith.constant 2 : index
    %c0_665 = arith.constant 0 : index
    %c0_666 = arith.constant 0 : index
    %727 = vector.load %arg3[%c2_664, %c0_665, %c0_666] : memref<4x8x8xf32, #tpu.memory_space<vmem>>, vector<1x8x8xf32>
    %728 = vector.shape_cast %727 : vector<1x8x8xf32> to vector<8x8xf32>
    %729 = arith.addf %726, %728 : vector<8x8xf32>
    %cst_667 = arith.constant dense<0xFF800000> : vector<8xf32>
    %730 = vector.multi_reduction <maximumf>, %729, %cst_667 [1] : vector<8x8xf32> to vector<8xf32>
    %731 = vector.shape_cast %730 : vector<8xf32> to vector<8x1xf32>
    %732 = vector.broadcast %731 : vector<8x1xf32> to vector<8x8xf32>
    %733 = arith.subf %729, %732 : vector<8x8xf32>
    %734 = math.exp %733 : vector<8x8xf32>
    %cst_668 = arith.constant dense<0.000000e+00> : vector<8xf32>
    %735 = vector.multi_reduction <add>, %734, %cst_668 [1] : vector<8x8xf32> to vector<8xf32>
    %736 = vector.shape_cast %735 : vector<8xf32> to vector<8x1xf32>
    %737 = tpu.reciprocal %736 {approx = true} : vector<8x1xf32> -> vector<8x1xf32>
    %738 = vector.broadcast %737 : vector<8x1xf32> to vector<8x8xf32>
    %739 = arith.mulf %734, %738 : vector<8x8xf32>
    %cst_669 = arith.constant dense<0.000000e+00> : vector<8x8xf32>
    %740 = tpu.matmul %739, %719, %cst_669 {dimension_numbers = #tpu.dot_dimension_numbers<[1], [0], [0], [1], [0, 0, 1, 1], [], []>} : vector<8x8xf32>, vector<8x8xf32>, vector<8x8xf32> -> vector<8x8xf32>
    %c1_670 = arith.constant 1 : index
    %c2_671 = arith.constant 2 : index
    %c0_672 = arith.constant 0 : index
    %c0_673 = arith.constant 0 : index
    %741 = vector.load %arg12[%c1_670, %c2_671, %c0_672, %c0_673] : memref<2x4x8x32xf32, #tpu.memory_space<vmem>>, vector<1x1x8x32xf32>
    %742 = vector.shape_cast %741 : vector<1x1x8x32xf32> to vector<8x32xf32>
    %cst_674 = arith.constant dense<0.000000e+00> : vector<8x32xf32>
    %743 = tpu.matmul %740, %742, %cst_674 {dimension_numbers = #tpu.dot_dimension_numbers<[1], [0], [0], [1], [0, 0, 1, 1], [], []>} : vector<8x8xf32>, vector<8x32xf32>, vector<8x32xf32> -> vector<8x32xf32>
    %744 = arith.addf %710, %743 : vector<8x32xf32>
    %c1_675 = arith.constant 1 : index
    %c3_676 = arith.constant 3 : index
    %c0_677 = arith.constant 0 : index
    %c0_678 = arith.constant 0 : index
    %745 = vector.load %arg11[%c1_675, %c3_676, %c0_677, %c0_678] : memref<2x12x32x8xf32, #tpu.memory_space<vmem>>, vector<1x1x32x8xf32>
    %746 = vector.shape_cast %745 : vector<1x1x32x8xf32> to vector<32x8xf32>
    %cst_679 = arith.constant dense<0.000000e+00> : vector<8x8xf32>
    %747 = tpu.matmul %643, %746, %cst_679 {dimension_numbers = #tpu.dot_dimension_numbers<[1], [0], [0], [1], [0, 0, 1, 1], [], []>} : vector<8x32xf32>, vector<32x8xf32>, vector<8x8xf32> -> vector<8x8xf32>
    %c1_680 = arith.constant 1 : index
    %c7_681 = arith.constant 7 : index
    %c0_682 = arith.constant 0 : index
    %c0_683 = arith.constant 0 : index
    %748 = vector.load %arg11[%c1_680, %c7_681, %c0_682, %c0_683] : memref<2x12x32x8xf32, #tpu.memory_space<vmem>>, vector<1x1x32x8xf32>
    %749 = vector.shape_cast %748 : vector<1x1x32x8xf32> to vector<32x8xf32>
    %cst_684 = arith.constant dense<0.000000e+00> : vector<8x8xf32>
    %750 = tpu.matmul %643, %749, %cst_684 {dimension_numbers = #tpu.dot_dimension_numbers<[1], [0], [0], [1], [0, 0, 1, 1], [], []>} : vector<8x32xf32>, vector<32x8xf32>, vector<8x8xf32> -> vector<8x8xf32>
    %c1_685 = arith.constant 1 : index
    %c11_686 = arith.constant 11 : index
    %c0_687 = arith.constant 0 : index
    %c0_688 = arith.constant 0 : index
    %751 = vector.load %arg11[%c1_685, %c11_686, %c0_687, %c0_688] : memref<2x12x32x8xf32, #tpu.memory_space<vmem>>, vector<1x1x32x8xf32>
    %752 = vector.shape_cast %751 : vector<1x1x32x8xf32> to vector<32x8xf32>
    %cst_689 = arith.constant dense<0.000000e+00> : vector<8x8xf32>
    %753 = tpu.matmul %643, %752, %cst_689 {dimension_numbers = #tpu.dot_dimension_numbers<[1], [0], [0], [1], [0, 0, 1, 1], [], []>} : vector<8x32xf32>, vector<32x8xf32>, vector<8x8xf32> -> vector<8x8xf32>
    %c7_690 = arith.constant 7 : index
    %c0_691 = arith.constant 0 : index
    %c0_692 = arith.constant 0 : index
    %c0_693 = arith.constant 0 : index
    %754 = vector.load %arg19[%c7_690, %c0_691, %c0_692, %c0_693] : memref<8x1x8x8xf32, #tpu.memory_space<vmem>>, vector<1x1x8x8xf32>
    %755 = vector.shape_cast %754 : vector<1x1x8x8xf32> to vector<8x8xf32>
    %756 = vector.shape_cast %750 : vector<8x8xf32> to vector<1x1x8x8xf32>
    tpu.vector_store %arg19[%c7_690, %c0_691, %c0_692, %c0_693], %756 {strides = array<i32>} : memref<8x1x8x8xf32, #tpu.memory_space<vmem>>, vector<1x1x8x8xf32>,
    %c7_694 = arith.constant 7 : index
    %c0_695 = arith.constant 0 : index
    %c0_696 = arith.constant 0 : index
    %c0_697 = arith.constant 0 : index
    %757 = vector.load %arg20[%c7_694, %c0_695, %c0_696, %c0_697] : memref<8x1x8x8xf32, #tpu.memory_space<vmem>>, vector<1x1x8x8xf32>
    %758 = vector.shape_cast %757 : vector<1x1x8x8xf32> to vector<8x8xf32>
    %759 = vector.shape_cast %753 : vector<8x8xf32> to vector<1x1x8x8xf32>
    tpu.vector_store %arg20[%c7_694, %c0_695, %c0_696, %c0_697], %759 {strides = array<i32>} : memref<8x1x8x8xf32, #tpu.memory_space<vmem>>, vector<1x1x8x8xf32>,
    %cst_698 = arith.constant dense<0.000000e+00> : vector<8x8xf32>
    %760 = tpu.matmul %747, %750, %cst_698 {dimension_numbers = #tpu.dot_dimension_numbers<[1], [1], [0], [0], [0, 0, 1, 0], [], []>} : vector<8x8xf32>, vector<8x8xf32>, vector<8x8xf32> -> vector<8x8xf32>
    %c3_699 = arith.constant 3 : index
    %c0_700 = arith.constant 0 : index
    %c0_701 = arith.constant 0 : index
    %761 = vector.load %arg3[%c3_699, %c0_700, %c0_701] : memref<4x8x8xf32, #tpu.memory_space<vmem>>, vector<1x8x8xf32>
    %762 = vector.shape_cast %761 : vector<1x8x8xf32> to vector<8x8xf32>
    %763 = arith.addf %760, %762 : vector<8x8xf32>
    %cst_702 = arith.constant dense<0xFF800000> : vector<8xf32>
    %764 = vector.multi_reduction <maximumf>, %763, %cst_702 [1] : vector<8x8xf32> to vector<8xf32>
    %765 = vector.shape_cast %764 : vector<8xf32> to vector<8x1xf32>
    %766 = vector.broadcast %765 : vector<8x1xf32> to vector<8x8xf32>
    %767 = arith.subf %763, %766 : vector<8x8xf32>
    %768 = math.exp %767 : vector<8x8xf32>
    %cst_703 = arith.constant dense<0.000000e+00> : vector<8xf32>
    %769 = vector.multi_reduction <add>, %768, %cst_703 [1] : vector<8x8xf32> to vector<8xf32>
    %770 = vector.shape_cast %769 : vector<8xf32> to vector<8x1xf32>
    %771 = tpu.reciprocal %770 {approx = true} : vector<8x1xf32> -> vector<8x1xf32>
    %772 = vector.broadcast %771 : vector<8x1xf32> to vector<8x8xf32>
    %773 = arith.mulf %768, %772 : vector<8x8xf32>
    %cst_704 = arith.constant dense<0.000000e+00> : vector<8x8xf32>
    %774 = tpu.matmul %773, %753, %cst_704 {dimension_numbers = #tpu.dot_dimension_numbers<[1], [0], [0], [1], [0, 0, 1, 1], [], []>} : vector<8x8xf32>, vector<8x8xf32>, vector<8x8xf32> -> vector<8x8xf32>
    %c1_705 = arith.constant 1 : index
    %c3_706 = arith.constant 3 : index
    %c0_707 = arith.constant 0 : index
    %c0_708 = arith.constant 0 : index
    %775 = vector.load %arg12[%c1_705, %c3_706, %c0_707, %c0_708] : memref<2x4x8x32xf32, #tpu.memory_space<vmem>>, vector<1x1x8x32xf32>
    %776 = vector.shape_cast %775 : vector<1x1x8x32xf32> to vector<8x32xf32>
    %cst_709 = arith.constant dense<0.000000e+00> : vector<8x32xf32>
    %777 = tpu.matmul %774, %776, %cst_709 {dimension_numbers = #tpu.dot_dimension_numbers<[1], [0], [0], [1], [0, 0, 1, 1], [], []>} : vector<8x8xf32>, vector<8x32xf32>, vector<8x32xf32> -> vector<8x32xf32>
    %778 = arith.addf %744, %777 : vector<8x32xf32>
    %779 = arith.addf %626, %778 : vector<8x32xf32>
    %c1_710 = arith.constant 1 : index
    %c1_711 = arith.constant 1 : index
    %c0_712 = arith.constant 0 : index
    %c0_713 = arith.constant 0 : index
    %780 = vector.load %arg10[%c1_710, %c1_711, %c0_712, %c0_713] : memref<2x3x1x32xf32, #tpu.memory_space<vmem>>, vector<1x1x1x32xf32>
    %781 = vector.shape_cast %780 : vector<1x1x1x32xf32> to vector<1x32xf32>
    %782 = arith.mulf %779, %779 : vector<8x32xf32>
    %cst_714 = arith.constant dense<0.000000e+00> : vector<8xf32>
    %783 = vector.multi_reduction <add>, %782, %cst_714 [1] : vector<8x32xf32> to vector<8xf32>
    %784 = vector.shape_cast %783 : vector<8xf32> to vector<8x1xf32>
    %cst_715 = arith.constant 3.200000e+01 : f32
    %785 = vector.broadcast %cst_715 : f32 to vector<8x1xf32>
    %786 = arith.divf %784, %785 : vector<8x1xf32>
    %cst_716 = arith.constant 9.99999997E-7 : f32
    %787 = vector.broadcast %cst_716 : f32 to vector<8x1xf32>
    %788 = arith.addf %786, %787 : vector<8x1xf32>
    %789 = math.rsqrt %788 : vector<8x1xf32>
    %790 = vector.broadcast %789 : vector<8x1xf32> to vector<8x32xf32>
    %791 = arith.mulf %779, %790 : vector<8x32xf32>
    %792 = vector.broadcast %781 : vector<1x32xf32> to vector<8x32xf32>
    %793 = arith.mulf %791, %792 : vector<8x32xf32>
    %c1_717 = arith.constant 1 : index
    %c0_718 = arith.constant 0 : index
    %c0_719 = arith.constant 0 : index
    %c0_720 = arith.constant 0 : index
    %794 = vector.load %arg13[%c1_717, %c0_718, %c0_719, %c0_720] : memref<2x12x32x8xf32, #tpu.memory_space<vmem>>, vector<1x1x32x8xf32>
    %795 = vector.shape_cast %794 : vector<1x1x32x8xf32> to vector<32x8xf32>
    %cst_721 = arith.constant dense<0.000000e+00> : vector<8x8xf32>
    %796 = tpu.matmul %793, %795, %cst_721 {dimension_numbers = #tpu.dot_dimension_numbers<[1], [0], [0], [1], [0, 0, 1, 1], [], []>} : vector<8x32xf32>, vector<32x8xf32>, vector<8x8xf32> -> vector<8x8xf32>
    %c1_722 = arith.constant 1 : index
    %c4_723 = arith.constant 4 : index
    %c0_724 = arith.constant 0 : index
    %c0_725 = arith.constant 0 : index
    %797 = vector.load %arg13[%c1_722, %c4_723, %c0_724, %c0_725] : memref<2x12x32x8xf32, #tpu.memory_space<vmem>>, vector<1x1x32x8xf32>
    %798 = vector.shape_cast %797 : vector<1x1x32x8xf32> to vector<32x8xf32>
    %cst_726 = arith.constant dense<0.000000e+00> : vector<8x8xf32>
    %799 = tpu.matmul %312, %798, %cst_726 {dimension_numbers = #tpu.dot_dimension_numbers<[1], [0], [0], [1], [0, 0, 1, 1], [], []>} : vector<8x32xf32>, vector<32x8xf32>, vector<8x8xf32> -> vector<8x8xf32>
    %c1_727 = arith.constant 1 : index
    %c8_728 = arith.constant 8 : index
    %c0_729 = arith.constant 0 : index
    %c0_730 = arith.constant 0 : index
    %800 = vector.load %arg13[%c1_727, %c8_728, %c0_729, %c0_730] : memref<2x12x32x8xf32, #tpu.memory_space<vmem>>, vector<1x1x32x8xf32>
    %801 = vector.shape_cast %800 : vector<1x1x32x8xf32> to vector<32x8xf32>
    %cst_731 = arith.constant dense<0.000000e+00> : vector<8x8xf32>
    %802 = tpu.matmul %312, %801, %cst_731 {dimension_numbers = #tpu.dot_dimension_numbers<[1], [0], [0], [1], [0, 0, 1, 1], [], []>} : vector<8x32xf32>, vector<32x8xf32>, vector<8x8xf32> -> vector<8x8xf32>
    %c4_732 = arith.constant 4 : index
    %c0_733 = arith.constant 0 : index
    %c0_734 = arith.constant 0 : index
    %c0_735 = arith.constant 0 : index
    %803 = vector.load %arg21[%c4_732, %c0_733, %c0_734, %c0_735] : memref<8x1x8x8xf32, #tpu.memory_space<vmem>>, vector<1x1x8x8xf32>
    %804 = vector.shape_cast %803 : vector<1x1x8x8xf32> to vector<8x8xf32>
    %805 = vector.shape_cast %799 : vector<8x8xf32> to vector<1x1x8x8xf32>
    tpu.vector_store %arg21[%c4_732, %c0_733, %c0_734, %c0_735], %805 {strides = array<i32>} : memref<8x1x8x8xf32, #tpu.memory_space<vmem>>, vector<1x1x8x8xf32>,
    %c4_736 = arith.constant 4 : index
    %c0_737 = arith.constant 0 : index
    %c0_738 = arith.constant 0 : index
    %c0_739 = arith.constant 0 : index
    %806 = vector.load %arg22[%c4_736, %c0_737, %c0_738, %c0_739] : memref<8x1x8x8xf32, #tpu.memory_space<vmem>>, vector<1x1x8x8xf32>
    %807 = vector.shape_cast %806 : vector<1x1x8x8xf32> to vector<8x8xf32>
    %808 = vector.shape_cast %802 : vector<8x8xf32> to vector<1x1x8x8xf32>
    tpu.vector_store %arg22[%c4_736, %c0_737, %c0_738, %c0_739], %808 {strides = array<i32>} : memref<8x1x8x8xf32, #tpu.memory_space<vmem>>, vector<1x1x8x8xf32>,
    %cst_740 = arith.constant dense<0.000000e+00> : vector<8x8xf32>
    %809 = tpu.matmul %796, %799, %cst_740 {dimension_numbers = #tpu.dot_dimension_numbers<[1], [1], [0], [0], [0, 0, 1, 0], [], []>} : vector<8x8xf32>, vector<8x8xf32>, vector<8x8xf32> -> vector<8x8xf32>
    %cst_741 = arith.constant dense<0xFF800000> : vector<8xf32>
    %810 = vector.multi_reduction <maximumf>, %809, %cst_741 [1] : vector<8x8xf32> to vector<8xf32>
    %811 = vector.shape_cast %810 : vector<8xf32> to vector<8x1xf32>
    %812 = vector.broadcast %811 : vector<8x1xf32> to vector<8x8xf32>
    %813 = arith.subf %809, %812 : vector<8x8xf32>
    %814 = math.exp %813 : vector<8x8xf32>
    %cst_742 = arith.constant dense<0.000000e+00> : vector<8xf32>
    %815 = vector.multi_reduction <add>, %814, %cst_742 [1] : vector<8x8xf32> to vector<8xf32>
    %816 = vector.shape_cast %815 : vector<8xf32> to vector<8x1xf32>
    %817 = tpu.reciprocal %816 {approx = true} : vector<8x1xf32> -> vector<8x1xf32>
    %818 = vector.broadcast %817 : vector<8x1xf32> to vector<8x8xf32>
    %819 = arith.mulf %814, %818 : vector<8x8xf32>
    %cst_743 = arith.constant dense<0.000000e+00> : vector<8x8xf32>
    %820 = tpu.matmul %819, %802, %cst_743 {dimension_numbers = #tpu.dot_dimension_numbers<[1], [0], [0], [1], [0, 0, 1, 1], [], []>} : vector<8x8xf32>, vector<8x8xf32>, vector<8x8xf32> -> vector<8x8xf32>
    %c1_744 = arith.constant 1 : index
    %c0_745 = arith.constant 0 : index
    %c0_746 = arith.constant 0 : index
    %c0_747 = arith.constant 0 : index
    %821 = vector.load %arg14[%c1_744, %c0_745, %c0_746, %c0_747] : memref<2x4x8x32xf32, #tpu.memory_space<vmem>>, vector<1x1x8x32xf32>
    %822 = vector.shape_cast %821 : vector<1x1x8x32xf32> to vector<8x32xf32>
    %cst_748 = arith.constant dense<0.000000e+00> : vector<8x32xf32>
    %823 = tpu.matmul %820, %822, %cst_748 {dimension_numbers = #tpu.dot_dimension_numbers<[1], [0], [0], [1], [0, 0, 1, 1], [], []>} : vector<8x8xf32>, vector<8x32xf32>, vector<8x32xf32> -> vector<8x32xf32>
    %c1_749 = arith.constant 1 : index
    %c1_750 = arith.constant 1 : index
    %c0_751 = arith.constant 0 : index
    %c0_752 = arith.constant 0 : index
    %824 = vector.load %arg13[%c1_749, %c1_750, %c0_751, %c0_752] : memref<2x12x32x8xf32, #tpu.memory_space<vmem>>, vector<1x1x32x8xf32>
    %825 = vector.shape_cast %824 : vector<1x1x32x8xf32> to vector<32x8xf32>
    %cst_753 = arith.constant dense<0.000000e+00> : vector<8x8xf32>
    %826 = tpu.matmul %793, %825, %cst_753 {dimension_numbers = #tpu.dot_dimension_numbers<[1], [0], [0], [1], [0, 0, 1, 1], [], []>} : vector<8x32xf32>, vector<32x8xf32>, vector<8x8xf32> -> vector<8x8xf32>
    %c1_754 = arith.constant 1 : index
    %c5_755 = arith.constant 5 : index
    %c0_756 = arith.constant 0 : index
    %c0_757 = arith.constant 0 : index
    %827 = vector.load %arg13[%c1_754, %c5_755, %c0_756, %c0_757] : memref<2x12x32x8xf32, #tpu.memory_space<vmem>>, vector<1x1x32x8xf32>
    %828 = vector.shape_cast %827 : vector<1x1x32x8xf32> to vector<32x8xf32>
    %cst_758 = arith.constant dense<0.000000e+00> : vector<8x8xf32>
    %829 = tpu.matmul %312, %828, %cst_758 {dimension_numbers = #tpu.dot_dimension_numbers<[1], [0], [0], [1], [0, 0, 1, 1], [], []>} : vector<8x32xf32>, vector<32x8xf32>, vector<8x8xf32> -> vector<8x8xf32>
    %c1_759 = arith.constant 1 : index
    %c9_760 = arith.constant 9 : index
    %c0_761 = arith.constant 0 : index
    %c0_762 = arith.constant 0 : index
    %830 = vector.load %arg13[%c1_759, %c9_760, %c0_761, %c0_762] : memref<2x12x32x8xf32, #tpu.memory_space<vmem>>, vector<1x1x32x8xf32>
    %831 = vector.shape_cast %830 : vector<1x1x32x8xf32> to vector<32x8xf32>
    %cst_763 = arith.constant dense<0.000000e+00> : vector<8x8xf32>
    %832 = tpu.matmul %312, %831, %cst_763 {dimension_numbers = #tpu.dot_dimension_numbers<[1], [0], [0], [1], [0, 0, 1, 1], [], []>} : vector<8x32xf32>, vector<32x8xf32>, vector<8x8xf32> -> vector<8x8xf32>
    %c5_764 = arith.constant 5 : index
    %c0_765 = arith.constant 0 : index
    %c0_766 = arith.constant 0 : index
    %c0_767 = arith.constant 0 : index
    %833 = vector.load %arg21[%c5_764, %c0_765, %c0_766, %c0_767] : memref<8x1x8x8xf32, #tpu.memory_space<vmem>>, vector<1x1x8x8xf32>
    %834 = vector.shape_cast %833 : vector<1x1x8x8xf32> to vector<8x8xf32>
    %835 = vector.shape_cast %829 : vector<8x8xf32> to vector<1x1x8x8xf32>
    tpu.vector_store %arg21[%c5_764, %c0_765, %c0_766, %c0_767], %835 {strides = array<i32>} : memref<8x1x8x8xf32, #tpu.memory_space<vmem>>, vector<1x1x8x8xf32>,
    %c5_768 = arith.constant 5 : index
    %c0_769 = arith.constant 0 : index
    %c0_770 = arith.constant 0 : index
    %c0_771 = arith.constant 0 : index
    %836 = vector.load %arg22[%c5_768, %c0_769, %c0_770, %c0_771] : memref<8x1x8x8xf32, #tpu.memory_space<vmem>>, vector<1x1x8x8xf32>
    %837 = vector.shape_cast %836 : vector<1x1x8x8xf32> to vector<8x8xf32>
    %838 = vector.shape_cast %832 : vector<8x8xf32> to vector<1x1x8x8xf32>
    tpu.vector_store %arg22[%c5_768, %c0_769, %c0_770, %c0_771], %838 {strides = array<i32>} : memref<8x1x8x8xf32, #tpu.memory_space<vmem>>, vector<1x1x8x8xf32>,
    %cst_772 = arith.constant dense<0.000000e+00> : vector<8x8xf32>
    %839 = tpu.matmul %826, %829, %cst_772 {dimension_numbers = #tpu.dot_dimension_numbers<[1], [1], [0], [0], [0, 0, 1, 0], [], []>} : vector<8x8xf32>, vector<8x8xf32>, vector<8x8xf32> -> vector<8x8xf32>
    %cst_773 = arith.constant dense<0xFF800000> : vector<8xf32>
    %840 = vector.multi_reduction <maximumf>, %839, %cst_773 [1] : vector<8x8xf32> to vector<8xf32>
    %841 = vector.shape_cast %840 : vector<8xf32> to vector<8x1xf32>
    %842 = vector.broadcast %841 : vector<8x1xf32> to vector<8x8xf32>
    %843 = arith.subf %839, %842 : vector<8x8xf32>
    %844 = math.exp %843 : vector<8x8xf32>
    %cst_774 = arith.constant dense<0.000000e+00> : vector<8xf32>
    %845 = vector.multi_reduction <add>, %844, %cst_774 [1] : vector<8x8xf32> to vector<8xf32>
    %846 = vector.shape_cast %845 : vector<8xf32> to vector<8x1xf32>
    %847 = tpu.reciprocal %846 {approx = true} : vector<8x1xf32> -> vector<8x1xf32>
    %848 = vector.broadcast %847 : vector<8x1xf32> to vector<8x8xf32>
    %849 = arith.mulf %844, %848 : vector<8x8xf32>
    %cst_775 = arith.constant dense<0.000000e+00> : vector<8x8xf32>
    %850 = tpu.matmul %849, %832, %cst_775 {dimension_numbers = #tpu.dot_dimension_numbers<[1], [0], [0], [1], [0, 0, 1, 1], [], []>} : vector<8x8xf32>, vector<8x8xf32>, vector<8x8xf32> -> vector<8x8xf32>
    %c1_776 = arith.constant 1 : index
    %c1_777 = arith.constant 1 : index
    %c0_778 = arith.constant 0 : index
    %c0_779 = arith.constant 0 : index
    %851 = vector.load %arg14[%c1_776, %c1_777, %c0_778, %c0_779] : memref<2x4x8x32xf32, #tpu.memory_space<vmem>>, vector<1x1x8x32xf32>
    %852 = vector.shape_cast %851 : vector<1x1x8x32xf32> to vector<8x32xf32>
    %cst_780 = arith.constant dense<0.000000e+00> : vector<8x32xf32>
    %853 = tpu.matmul %850, %852, %cst_780 {dimension_numbers = #tpu.dot_dimension_numbers<[1], [0], [0], [1], [0, 0, 1, 1], [], []>} : vector<8x8xf32>, vector<8x32xf32>, vector<8x32xf32> -> vector<8x32xf32>
    %854 = arith.addf %823, %853 : vector<8x32xf32>
    %c1_781 = arith.constant 1 : index
    %c2_782 = arith.constant 2 : index
    %c0_783 = arith.constant 0 : index
    %c0_784 = arith.constant 0 : index
    %855 = vector.load %arg13[%c1_781, %c2_782, %c0_783, %c0_784] : memref<2x12x32x8xf32, #tpu.memory_space<vmem>>, vector<1x1x32x8xf32>
    %856 = vector.shape_cast %855 : vector<1x1x32x8xf32> to vector<32x8xf32>
    %cst_785 = arith.constant dense<0.000000e+00> : vector<8x8xf32>
    %857 = tpu.matmul %793, %856, %cst_785 {dimension_numbers = #tpu.dot_dimension_numbers<[1], [0], [0], [1], [0, 0, 1, 1], [], []>} : vector<8x32xf32>, vector<32x8xf32>, vector<8x8xf32> -> vector<8x8xf32>
    %c1_786 = arith.constant 1 : index
    %c6_787 = arith.constant 6 : index
    %c0_788 = arith.constant 0 : index
    %c0_789 = arith.constant 0 : index
    %858 = vector.load %arg13[%c1_786, %c6_787, %c0_788, %c0_789] : memref<2x12x32x8xf32, #tpu.memory_space<vmem>>, vector<1x1x32x8xf32>
    %859 = vector.shape_cast %858 : vector<1x1x32x8xf32> to vector<32x8xf32>
    %cst_790 = arith.constant dense<0.000000e+00> : vector<8x8xf32>
    %860 = tpu.matmul %312, %859, %cst_790 {dimension_numbers = #tpu.dot_dimension_numbers<[1], [0], [0], [1], [0, 0, 1, 1], [], []>} : vector<8x32xf32>, vector<32x8xf32>, vector<8x8xf32> -> vector<8x8xf32>
    %c1_791 = arith.constant 1 : index
    %c10_792 = arith.constant 10 : index
    %c0_793 = arith.constant 0 : index
    %c0_794 = arith.constant 0 : index
    %861 = vector.load %arg13[%c1_791, %c10_792, %c0_793, %c0_794] : memref<2x12x32x8xf32, #tpu.memory_space<vmem>>, vector<1x1x32x8xf32>
    %862 = vector.shape_cast %861 : vector<1x1x32x8xf32> to vector<32x8xf32>
    %cst_795 = arith.constant dense<0.000000e+00> : vector<8x8xf32>
    %863 = tpu.matmul %312, %862, %cst_795 {dimension_numbers = #tpu.dot_dimension_numbers<[1], [0], [0], [1], [0, 0, 1, 1], [], []>} : vector<8x32xf32>, vector<32x8xf32>, vector<8x8xf32> -> vector<8x8xf32>
    %c6_796 = arith.constant 6 : index
    %c0_797 = arith.constant 0 : index
    %c0_798 = arith.constant 0 : index
    %c0_799 = arith.constant 0 : index
    %864 = vector.load %arg21[%c6_796, %c0_797, %c0_798, %c0_799] : memref<8x1x8x8xf32, #tpu.memory_space<vmem>>, vector<1x1x8x8xf32>
    %865 = vector.shape_cast %864 : vector<1x1x8x8xf32> to vector<8x8xf32>
    %866 = vector.shape_cast %860 : vector<8x8xf32> to vector<1x1x8x8xf32>
    tpu.vector_store %arg21[%c6_796, %c0_797, %c0_798, %c0_799], %866 {strides = array<i32>} : memref<8x1x8x8xf32, #tpu.memory_space<vmem>>, vector<1x1x8x8xf32>,
    %c6_800 = arith.constant 6 : index
    %c0_801 = arith.constant 0 : index
    %c0_802 = arith.constant 0 : index
    %c0_803 = arith.constant 0 : index
    %867 = vector.load %arg22[%c6_800, %c0_801, %c0_802, %c0_803] : memref<8x1x8x8xf32, #tpu.memory_space<vmem>>, vector<1x1x8x8xf32>
    %868 = vector.shape_cast %867 : vector<1x1x8x8xf32> to vector<8x8xf32>
    %869 = vector.shape_cast %863 : vector<8x8xf32> to vector<1x1x8x8xf32>
    tpu.vector_store %arg22[%c6_800, %c0_801, %c0_802, %c0_803], %869 {strides = array<i32>} : memref<8x1x8x8xf32, #tpu.memory_space<vmem>>, vector<1x1x8x8xf32>,
    %cst_804 = arith.constant dense<0.000000e+00> : vector<8x8xf32>
    %870 = tpu.matmul %857, %860, %cst_804 {dimension_numbers = #tpu.dot_dimension_numbers<[1], [1], [0], [0], [0, 0, 1, 0], [], []>} : vector<8x8xf32>, vector<8x8xf32>, vector<8x8xf32> -> vector<8x8xf32>
    %cst_805 = arith.constant dense<0xFF800000> : vector<8xf32>
    %871 = vector.multi_reduction <maximumf>, %870, %cst_805 [1] : vector<8x8xf32> to vector<8xf32>
    %872 = vector.shape_cast %871 : vector<8xf32> to vector<8x1xf32>
    %873 = vector.broadcast %872 : vector<8x1xf32> to vector<8x8xf32>
    %874 = arith.subf %870, %873 : vector<8x8xf32>
    %875 = math.exp %874 : vector<8x8xf32>
    %cst_806 = arith.constant dense<0.000000e+00> : vector<8xf32>
    %876 = vector.multi_reduction <add>, %875, %cst_806 [1] : vector<8x8xf32> to vector<8xf32>
    %877 = vector.shape_cast %876 : vector<8xf32> to vector<8x1xf32>
    %878 = tpu.reciprocal %877 {approx = true} : vector<8x1xf32> -> vector<8x1xf32>
    %879 = vector.broadcast %878 : vector<8x1xf32> to vector<8x8xf32>
    %880 = arith.mulf %875, %879 : vector<8x8xf32>
    %cst_807 = arith.constant dense<0.000000e+00> : vector<8x8xf32>
    %881 = tpu.matmul %880, %863, %cst_807 {dimension_numbers = #tpu.dot_dimension_numbers<[1], [0], [0], [1], [0, 0, 1, 1], [], []>} : vector<8x8xf32>, vector<8x8xf32>, vector<8x8xf32> -> vector<8x8xf32>
    %c1_808 = arith.constant 1 : index
    %c2_809 = arith.constant 2 : index
    %c0_810 = arith.constant 0 : index
    %c0_811 = arith.constant 0 : index
    %882 = vector.load %arg14[%c1_808, %c2_809, %c0_810, %c0_811] : memref<2x4x8x32xf32, #tpu.memory_space<vmem>>, vector<1x1x8x32xf32>
    %883 = vector.shape_cast %882 : vector<1x1x8x32xf32> to vector<8x32xf32>
    %cst_812 = arith.constant dense<0.000000e+00> : vector<8x32xf32>
    %884 = tpu.matmul %881, %883, %cst_812 {dimension_numbers = #tpu.dot_dimension_numbers<[1], [0], [0], [1], [0, 0, 1, 1], [], []>} : vector<8x8xf32>, vector<8x32xf32>, vector<8x32xf32> -> vector<8x32xf32>
    %885 = arith.addf %854, %884 : vector<8x32xf32>
    %c1_813 = arith.constant 1 : index
    %c3_814 = arith.constant 3 : index
    %c0_815 = arith.constant 0 : index
    %c0_816 = arith.constant 0 : index
    %886 = vector.load %arg13[%c1_813, %c3_814, %c0_815, %c0_816] : memref<2x12x32x8xf32, #tpu.memory_space<vmem>>, vector<1x1x32x8xf32>
    %887 = vector.shape_cast %886 : vector<1x1x32x8xf32> to vector<32x8xf32>
    %cst_817 = arith.constant dense<0.000000e+00> : vector<8x8xf32>
    %888 = tpu.matmul %793, %887, %cst_817 {dimension_numbers = #tpu.dot_dimension_numbers<[1], [0], [0], [1], [0, 0, 1, 1], [], []>} : vector<8x32xf32>, vector<32x8xf32>, vector<8x8xf32> -> vector<8x8xf32>
    %c1_818 = arith.constant 1 : index
    %c7_819 = arith.constant 7 : index
    %c0_820 = arith.constant 0 : index
    %c0_821 = arith.constant 0 : index
    %889 = vector.load %arg13[%c1_818, %c7_819, %c0_820, %c0_821] : memref<2x12x32x8xf32, #tpu.memory_space<vmem>>, vector<1x1x32x8xf32>
    %890 = vector.shape_cast %889 : vector<1x1x32x8xf32> to vector<32x8xf32>
    %cst_822 = arith.constant dense<0.000000e+00> : vector<8x8xf32>
    %891 = tpu.matmul %312, %890, %cst_822 {dimension_numbers = #tpu.dot_dimension_numbers<[1], [0], [0], [1], [0, 0, 1, 1], [], []>} : vector<8x32xf32>, vector<32x8xf32>, vector<8x8xf32> -> vector<8x8xf32>
    %c1_823 = arith.constant 1 : index
    %c11_824 = arith.constant 11 : index
    %c0_825 = arith.constant 0 : index
    %c0_826 = arith.constant 0 : index
    %892 = vector.load %arg13[%c1_823, %c11_824, %c0_825, %c0_826] : memref<2x12x32x8xf32, #tpu.memory_space<vmem>>, vector<1x1x32x8xf32>
    %893 = vector.shape_cast %892 : vector<1x1x32x8xf32> to vector<32x8xf32>
    %cst_827 = arith.constant dense<0.000000e+00> : vector<8x8xf32>
    %894 = tpu.matmul %312, %893, %cst_827 {dimension_numbers = #tpu.dot_dimension_numbers<[1], [0], [0], [1], [0, 0, 1, 1], [], []>} : vector<8x32xf32>, vector<32x8xf32>, vector<8x8xf32> -> vector<8x8xf32>
    %c7_828 = arith.constant 7 : index
    %c0_829 = arith.constant 0 : index
    %c0_830 = arith.constant 0 : index
    %c0_831 = arith.constant 0 : index
    %895 = vector.load %arg21[%c7_828, %c0_829, %c0_830, %c0_831] : memref<8x1x8x8xf32, #tpu.memory_space<vmem>>, vector<1x1x8x8xf32>
    %896 = vector.shape_cast %895 : vector<1x1x8x8xf32> to vector<8x8xf32>
    %897 = vector.shape_cast %891 : vector<8x8xf32> to vector<1x1x8x8xf32>
    tpu.vector_store %arg21[%c7_828, %c0_829, %c0_830, %c0_831], %897 {strides = array<i32>} : memref<8x1x8x8xf32, #tpu.memory_space<vmem>>, vector<1x1x8x8xf32>,
    %c7_832 = arith.constant 7 : index
    %c0_833 = arith.constant 0 : index
    %c0_834 = arith.constant 0 : index
    %c0_835 = arith.constant 0 : index
    %898 = vector.load %arg22[%c7_832, %c0_833, %c0_834, %c0_835] : memref<8x1x8x8xf32, #tpu.memory_space<vmem>>, vector<1x1x8x8xf32>
    %899 = vector.shape_cast %898 : vector<1x1x8x8xf32> to vector<8x8xf32>
    %900 = vector.shape_cast %894 : vector<8x8xf32> to vector<1x1x8x8xf32>
    tpu.vector_store %arg22[%c7_832, %c0_833, %c0_834, %c0_835], %900 {strides = array<i32>} : memref<8x1x8x8xf32, #tpu.memory_space<vmem>>, vector<1x1x8x8xf32>,
    %cst_836 = arith.constant dense<0.000000e+00> : vector<8x8xf32>
    %901 = tpu.matmul %888, %891, %cst_836 {dimension_numbers = #tpu.dot_dimension_numbers<[1], [1], [0], [0], [0, 0, 1, 0], [], []>} : vector<8x8xf32>, vector<8x8xf32>, vector<8x8xf32> -> vector<8x8xf32>
    %cst_837 = arith.constant dense<0xFF800000> : vector<8xf32>
    %902 = vector.multi_reduction <maximumf>, %901, %cst_837 [1] : vector<8x8xf32> to vector<8xf32>
    %903 = vector.shape_cast %902 : vector<8xf32> to vector<8x1xf32>
    %904 = vector.broadcast %903 : vector<8x1xf32> to vector<8x8xf32>
    %905 = arith.subf %901, %904 : vector<8x8xf32>
    %906 = math.exp %905 : vector<8x8xf32>
    %cst_838 = arith.constant dense<0.000000e+00> : vector<8xf32>
    %907 = vector.multi_reduction <add>, %906, %cst_838 [1] : vector<8x8xf32> to vector<8xf32>
    %908 = vector.shape_cast %907 : vector<8xf32> to vector<8x1xf32>
    %909 = tpu.reciprocal %908 {approx = true} : vector<8x1xf32> -> vector<8x1xf32>
    %910 = vector.broadcast %909 : vector<8x1xf32> to vector<8x8xf32>
    %911 = arith.mulf %906, %910 : vector<8x8xf32>
    %cst_839 = arith.constant dense<0.000000e+00> : vector<8x8xf32>
    %912 = tpu.matmul %911, %894, %cst_839 {dimension_numbers = #tpu.dot_dimension_numbers<[1], [0], [0], [1], [0, 0, 1, 1], [], []>} : vector<8x8xf32>, vector<8x8xf32>, vector<8x8xf32> -> vector<8x8xf32>
    %c1_840 = arith.constant 1 : index
    %c3_841 = arith.constant 3 : index
    %c0_842 = arith.constant 0 : index
    %c0_843 = arith.constant 0 : index
    %913 = vector.load %arg14[%c1_840, %c3_841, %c0_842, %c0_843] : memref<2x4x8x32xf32, #tpu.memory_space<vmem>>, vector<1x1x8x32xf32>
    %914 = vector.shape_cast %913 : vector<1x1x8x32xf32> to vector<8x32xf32>
    %cst_844 = arith.constant dense<0.000000e+00> : vector<8x32xf32>
    %915 = tpu.matmul %912, %914, %cst_844 {dimension_numbers = #tpu.dot_dimension_numbers<[1], [0], [0], [1], [0, 0, 1, 1], [], []>} : vector<8x8xf32>, vector<8x32xf32>, vector<8x32xf32> -> vector<8x32xf32>
    %916 = arith.addf %885, %915 : vector<8x32xf32>
    %917 = arith.addf %779, %916 : vector<8x32xf32>
    %c1_845 = arith.constant 1 : index
    %c2_846 = arith.constant 2 : index
    %c0_847 = arith.constant 0 : index
    %c0_848 = arith.constant 0 : index
    %918 = vector.load %arg10[%c1_845, %c2_846, %c0_847, %c0_848] : memref<2x3x1x32xf32, #tpu.memory_space<vmem>>, vector<1x1x1x32xf32>
    %919 = vector.shape_cast %918 : vector<1x1x1x32xf32> to vector<1x32xf32>
    %920 = arith.mulf %917, %917 : vector<8x32xf32>
    %cst_849 = arith.constant dense<0.000000e+00> : vector<8xf32>
    %921 = vector.multi_reduction <add>, %920, %cst_849 [1] : vector<8x32xf32> to vector<8xf32>
    %922 = vector.shape_cast %921 : vector<8xf32> to vector<8x1xf32>
    %cst_850 = arith.constant 3.200000e+01 : f32
    %923 = vector.broadcast %cst_850 : f32 to vector<8x1xf32>
    %924 = arith.divf %922, %923 : vector<8x1xf32>
    %cst_851 = arith.constant 9.99999997E-7 : f32
    %925 = vector.broadcast %cst_851 : f32 to vector<8x1xf32>
    %926 = arith.addf %924, %925 : vector<8x1xf32>
    %927 = math.rsqrt %926 : vector<8x1xf32>
    %928 = vector.broadcast %927 : vector<8x1xf32> to vector<8x32xf32>
    %929 = arith.mulf %917, %928 : vector<8x32xf32>
    %930 = vector.broadcast %919 : vector<1x32xf32> to vector<8x32xf32>
    %931 = arith.mulf %929, %930 : vector<8x32xf32>
    %c1_852 = arith.constant 1 : index
    %c0_853 = arith.constant 0 : index
    %c0_854 = arith.constant 0 : index
    %932 = vector.load %arg15[%c1_852, %c0_853, %c0_854] : memref<2x32x64xf32, #tpu.memory_space<vmem>>, vector<1x32x64xf32>
    %933 = vector.shape_cast %932 : vector<1x32x64xf32> to vector<32x64xf32>
    %c1_855 = arith.constant 1 : index
    %c0_856 = arith.constant 0 : index
    %c0_857 = arith.constant 0 : index
    %934 = vector.load %arg16[%c1_855, %c0_856, %c0_857] : memref<2x64x32xf32, #tpu.memory_space<vmem>>, vector<1x64x32xf32>
    %935 = vector.shape_cast %934 : vector<1x64x32xf32> to vector<64x32xf32>
    %cst_858 = arith.constant dense<0.000000e+00> : vector<8x64xf32>
    %936 = tpu.matmul %931, %933, %cst_858 {dimension_numbers = #tpu.dot_dimension_numbers<[1], [0], [0], [1], [0, 0, 1, 1], [], []>} : vector<8x32xf32>, vector<32x64xf32>, vector<8x64xf32> -> vector<8x64xf32>
    %cst_859 = arith.constant 0.000000e+00 : f32
    %937 = vector.broadcast %cst_859 : f32 to vector<8x64xf32>
    %938 = arith.maximumf %936, %937 : vector<8x64xf32>
    %cst_860 = arith.constant dense<0.000000e+00> : vector<8x32xf32>
    %939 = tpu.matmul %938, %935, %cst_860 {dimension_numbers = #tpu.dot_dimension_numbers<[1], [0], [0], [1], [0, 0, 1, 1], [], []>} : vector<8x64xf32>, vector<64x32xf32>, vector<8x32xf32> -> vector<8x32xf32>
    %940 = arith.addf %917, %939 : vector<8x32xf32>
    %c0_861 = arith.constant 0 : index
    %c0_862 = arith.constant 0 : index
    %941 = vector.load %arg17[%c0_861, %c0_862] : memref<1x32xf32, #tpu.memory_space<vmem>>, vector<1x32xf32>
    %942 = arith.mulf %940, %940 : vector<8x32xf32>
    %cst_863 = arith.constant dense<0.000000e+00> : vector<8xf32>
    %943 = vector.multi_reduction <add>, %942, %cst_863 [1] : vector<8x32xf32> to vector<8xf32>
    %944 = vector.shape_cast %943 : vector<8xf32> to vector<8x1xf32>
    %cst_864 = arith.constant 3.200000e+01 : f32
    %945 = vector.broadcast %cst_864 : f32 to vector<8x1xf32>
    %946 = arith.divf %944, %945 : vector<8x1xf32>
    %cst_865 = arith.constant 9.99999997E-7 : f32
    %947 = vector.broadcast %cst_865 : f32 to vector<8x1xf32>
    %948 = arith.addf %946, %947 : vector<8x1xf32>
    %949 = math.rsqrt %948 : vector<8x1xf32>
    %950 = vector.broadcast %949 : vector<8x1xf32> to vector<8x32xf32>
    %951 = arith.mulf %940, %950 : vector<8x32xf32>
    %952 = vector.broadcast %941 : vector<1x32xf32> to vector<8x32xf32>
    %953 = arith.mulf %951, %952 : vector<8x32xf32>
    %c2_866 = arith.constant 2 : index
    %c0_867 = arith.constant 0 : index
    %c0_868 = arith.constant 0 : index
    %c0_869 = arith.constant 0 : index
    %954 = vector.load %arg18[%c2_866, %c0_867, %c0_868, %c0_869] : memref<3x1x8x32xf32, #tpu.memory_space<vmem>>, vector<1x1x8x32xf32>
    %955 = vector.shape_cast %954 : vector<1x1x8x32xf32> to vector<8x32xf32>
    %956 = vector.shape_cast %953 : vector<8x32xf32> to vector<1x1x8x32xf32>
    tpu.vector_store %arg18[%c2_866, %c0_867, %c0_868, %c0_869], %956 {strides = array<i32>} : memref<3x1x8x32xf32, #tpu.memory_space<vmem>>, vector<1x1x8x32xf32>,
    return
  }
  func.func @transform_0(%arg0: i32) -> (i32, i32, i32) {
    %c0_i32 = arith.constant 0 : i32
    %c0_i32_0 = arith.constant 0 : i32
    %c0_i32_1 = arith.constant 0 : i32
    return %arg0, %c0_i32, %c0_i32_0 : i32, i32, i32
  }
  func.func @transform_1(%arg0: i32) -> (i32, i32, i32) {
    %c0_i32 = arith.constant 0 : i32
    %c0_i32_0 = arith.constant 0 : i32
    %c0_i32_1 = arith.constant 0 : i32
    %c0_i32_2 = arith.constant 0 : i32
    return %c0_i32, %c0_i32_0, %c0_i32_1 : i32, i32, i32
  }
  func.func @transform_2(%arg0: i32) -> (i32, i32, i32) {
    %c0_i32 = arith.constant 0 : i32
    %c0_i32_0 = arith.constant 0 : i32
    %c0_i32_1 = arith.constant 0 : i32
    %c0_i32_2 = arith.constant 0 : i32
    return %c0_i32, %c0_i32_0, %c0_i32_1 : i32, i32, i32
  }
  func.func @transform_3(%arg0: i32) -> (i32, i32, i32, i32) {
    %c0_i32 = arith.constant 0 : i32
    %c0_i32_0 = arith.constant 0 : i32
    %c0_i32_1 = arith.constant 0 : i32
    %c0_i32_2 = arith.constant 0 : i32
    %c0_i32_3 = arith.constant 0 : i32
    return %c0_i32, %c0_i32_0, %c0_i32_1, %c0_i32_2 : i32, i32, i32, i32
  }
  func.func @transform_4(%arg0: i32) -> (i32, i32, i32, i32) {
    %c0_i32 = arith.constant 0 : i32
    %c0_i32_0 = arith.constant 0 : i32
    %c0_i32_1 = arith.constant 0 : i32
    %c0_i32_2 = arith.constant 0 : i32
    %c0_i32_3 = arith.constant 0 : i32
    return %c0_i32, %c0_i32_0, %c0_i32_1, %c0_i32_2 : i32, i32, i32, i32
  }
  func.func @transform_5(%arg0: i32) -> (i32, i32, i32, i32) {
    %c0_i32 = arith.constant 0 : i32
    %c0_i32_0 = arith.constant 0 : i32
    %c0_i32_1 = arith.constant 0 : i32
    %c0_i32_2 = arith.constant 0 : i32
    %c0_i32_3 = arith.constant 0 : i32
    return %c0_i32, %c0_i32_0, %c0_i32_1, %c0_i32_2 : i32, i32, i32, i32
  }
  func.func @transform_6(%arg0: i32) -> (i32, i32, i32) {
    %c0_i32 = arith.constant 0 : i32
    %c0_i32_0 = arith.constant 0 : i32
    %c0_i32_1 = arith.constant 0 : i32
    %c0_i32_2 = arith.constant 0 : i32
    return %c0_i32, %c0_i32_0, %c0_i32_1 : i32, i32, i32
  }
  func.func @transform_7(%arg0: i32) -> (i32, i32, i32) {
    %c0_i32 = arith.constant 0 : i32
    %c0_i32_0 = arith.constant 0 : i32
    %c0_i32_1 = arith.constant 0 : i32
    %c0_i32_2 = arith.constant 0 : i32
    return %c0_i32, %c0_i32_0, %c0_i32_1 : i32, i32, i32
  }
  func.func @transform_8(%arg0: i32) -> (i32, i32) {
    %c0_i32 = arith.constant 0 : i32
    %c0_i32_0 = arith.constant 0 : i32
    %c0_i32_1 = arith.constant 0 : i32
    return %c0_i32, %c0_i32_0 : i32, i32
  }
  func.func @transform_9(%arg0: i32) -> (i32, i32, i32, i32) {
    %c0_i32 = arith.constant 0 : i32
    %c0_i32_0 = arith.constant 0 : i32
    %c0_i32_1 = arith.constant 0 : i32
    %c0_i32_2 = arith.constant 0 : i32
    %c0_i32_3 = arith.constant 0 : i32
    return %c0_i32, %c0_i32_0, %c0_i32_1, %c0_i32_2 : i32, i32, i32, i32
  }
  func.func @transform_10(%arg0: i32) -> (i32, i32, i32, i32) {
    %c0_i32 = arith.constant 0 : i32
    %c0_i32_0 = arith.constant 0 : i32
    %c0_i32_1 = arith.constant 0 : i32
    %c0_i32_2 = arith.constant 0 : i32
    %c0_i32_3 = arith.constant 0 : i32
    return %c0_i32, %c0_i32_0, %c0_i32_1, %c0_i32_2 : i32, i32, i32, i32
  }
  func.func @transform_11(%arg0: i32) -> (i32, i32, i32, i32) {
    %c0_i32 = arith.constant 0 : i32
    %c0_i32_0 = arith.constant 0 : i32
    %c0_i32_1 = arith.constant 0 : i32
    %c0_i32_2 = arith.constant 0 : i32
    %c0_i32_3 = arith.constant 0 : i32
    return %c0_i32, %c0_i32_0, %c0_i32_1, %c0_i32_2 : i32, i32, i32, i32
  }
  func.func @transform_12(%arg0: i32) -> (i32, i32, i32, i32) {
    %c0_i32 = arith.constant 0 : i32
    %c0_i32_0 = arith.constant 0 : i32
    %c0_i32_1 = arith.constant 0 : i32
    %c0_i32_2 = arith.constant 0 : i32
    %c0_i32_3 = arith.constant 0 : i32
    return %c0_i32, %c0_i32_0, %c0_i32_1, %c0_i32_2 : i32, i32, i32, i32
  }
  func.func @transform_13(%arg0: i32) -> (i32, i32, i32, i32) {
    %c0_i32 = arith.constant 0 : i32
    %c0_i32_0 = arith.constant 0 : i32
    %c0_i32_1 = arith.constant 0 : i32
    %c0_i32_2 = arith.constant 0 : i32
    %c0_i32_3 = arith.constant 0 : i32
    return %c0_i32, %c0_i32_0, %c0_i32_1, %c0_i32_2 : i32, i32, i32, i32
  }
  func.func @transform_14(%arg0: i32) -> (i32, i32, i32) {
    %c0_i32 = arith.constant 0 : i32
    %c0_i32_0 = arith.constant 0 : i32
    %c0_i32_1 = arith.constant 0 : i32
    %c0_i32_2 = arith.constant 0 : i32
    return %c0_i32, %c0_i32_0, %c0_i32_1 : i32, i32, i32
  }
  func.func @transform_15(%arg0: i32) -> (i32, i32, i32) {
    %c0_i32 = arith.constant 0 : i32
    %c0_i32_0 = arith.constant 0 : i32
    %c0_i32_1 = arith.constant 0 : i32
    %c0_i32_2 = arith.constant 0 : i32
    return %c0_i32, %c0_i32_0, %c0_i32_1 : i32, i32, i32
  }
  func.func @transform_16(%arg0: i32) -> (i32, i32) {
    %c0_i32 = arith.constant 0 : i32
    %c0_i32_0 = arith.constant 0 : i32
    %c0_i32_1 = arith.constant 0 : i32
    return %c0_i32, %c0_i32_0 : i32, i32
  }
  func.func @transform_17(%arg0: i32) -> (i32, i32, i32, i32) {
    %c0_i32 = arith.constant 0 : i32
    %c0_i32_0 = arith.constant 0 : i32
    %c0_i32_1 = arith.constant 0 : i32
    %c0_i32_2 = arith.constant 0 : i32
    return %c0_i32, %arg0, %c0_i32_0, %c0_i32_1 : i32, i32, i32, i32
  }
  func.func @transform_18(%arg0: i32) -> (i32, i32, i32, i32) {
    %c0_i32 = arith.constant 0 : i32
    %c0_i32_0 = arith.constant 0 : i32
    %c0_i32_1 = arith.constant 0 : i32
    %c0_i32_2 = arith.constant 0 : i32
    return %c0_i32, %arg0, %c0_i32_0, %c0_i32_1 : i32, i32, i32, i32
  }
  func.func @transform_19(%arg0: i32) -> (i32, i32, i32, i32) {
    %c0_i32 = arith.constant 0 : i32
    %c0_i32_0 = arith.constant 0 : i32
    %c0_i32_1 = arith.constant 0 : i32
    %c0_i32_2 = arith.constant 0 : i32
    return %c0_i32, %arg0, %c0_i32_0, %c0_i32_1 : i32, i32, i32, i32
  }
  func.func @transform_20(%arg0: i32) -> (i32, i32, i32, i32) {
    %c0_i32 = arith.constant 0 : i32
    %c0_i32_0 = arith.constant 0 : i32
    %c0_i32_1 = arith.constant 0 : i32
    %c0_i32_2 = arith.constant 0 : i32
    return %c0_i32, %arg0, %c0_i32_0, %c0_i32_1 : i32, i32, i32, i32
  }
  func.func @transform_21(%arg0: i32) -> (i32, i32, i32, i32) {
    %c0_i32 = arith.constant 0 : i32
    %c0_i32_0 = arith.constant 0 : i32
    %c0_i32_1 = arith.constant 0 : i32
    %c0_i32_2 = arith.constant 0 : i32
    return %c0_i32, %arg0, %c0_i32_0, %c0_i32_1 : i32, i32, i32, i32
  }
}

</mosaic_0001>

<llo_original>
// kernel: wrap_t5_forward.1
$region0: #{wrap_t5_forward.1}
  #allocation0 [shape = 'u32[]', space=smem, size = 0x4, offset = 0x4, fixed_abs, tag = 'smem constant byte address 0x4 - core index']
  #allocation1 [shape = 'u32[72,128]{1,0:T(1,128)}', space=vmem, size = 0x9000, scoped, tag = 'internal scratch']
  %s0 = inlined_call_operand.vmem [shape: f32[2,8,32], index: 0, kind: input, shape index: {}]
  %s1 = inlined_call_operand.vmem [shape: f32[4,8,8], index: 1, kind: input, shape index: {}]
  %s2 = inlined_call_operand.vmem [shape: f32[4,8,8], index: 2, kind: input, shape index: {}]
  %s3 = inlined_call_operand.vmem [shape: f32[2,2,1,32], index: 3, kind: input, shape index: {}]
  %s4 = inlined_call_operand.vmem [shape: f32[2,12,32,8], index: 4, kind: input, shape index: {}]
  %s5 = inlined_call_operand.vmem [shape: f32[2,4,8,32], index: 5, kind: input, shape index: {}]
  %s6 = inlined_call_operand.vmem [shape: f32[2,32,64], index: 6, kind: input, shape index: {}]
  %s7 = inlined_call_operand.vmem [shape: f32[2,64,32], index: 7, kind: input, shape index: {}]
  %s8 = inlined_call_operand.vmem [shape: f32[1,32], index: 8, kind: input, shape index: {}]
  %s9 = inlined_call_operand.vmem [shape: f32[2,3,1,32], index: 9, kind: input, shape index: {}]
  %s10 = inlined_call_operand.vmem [shape: f32[2,12,32,8], index: 10, kind: input, shape index: {}]
  %s11 = inlined_call_operand.vmem [shape: f32[2,4,8,32], index: 11, kind: input, shape index: {}]
  %s12 = inlined_call_operand.vmem [shape: f32[2,12,32,8], index: 12, kind: input, shape index: {}]
  %s13 = inlined_call_operand.vmem [shape: f32[2,4,8,32], index: 13, kind: input, shape index: {}]
  %s14 = inlined_call_operand.vmem [shape: f32[2,32,64], index: 14, kind: input, shape index: {}]
  %s15 = inlined_call_operand.vmem [shape: f32[2,64,32], index: 15, kind: input, shape index: {}]
  %s16 = inlined_call_operand.vmem [shape: f32[1,32], index: 16, kind: input, shape index: {}]
  %s17 = inlined_call_operand.vmem [shape: f32[3,2,8,32], index: 17, kind: output, shape index: {0}]
  %s18 = inlined_call_operand.vmem [shape: f32[8,2,8,8], index: 18, kind: output, shape index: {1}]
  %s19 = inlined_call_operand.vmem [shape: f32[8,2,8,8], index: 19, kind: output, shape index: {2}]
  %s20 = inlined_call_operand.vmem [shape: f32[8,2,8,8], index: 20, kind: output, shape index: {3}]
  %s21 = inlined_call_operand.vmem [shape: f32[8,2,8,8], index: 21, kind: output, shape index: {4}]
  %22 = xla_tuple %s17, %s18, %s19, %s20, %s21
  %s23 = sld [smem:[#allocation0]]
  $region303: #{wrap_t5_forward.1} parent=0
    _
  %s25 = ssub.s32 1, %s23
  %s26 = scalar_select 0, %s25, %s23
  $region1: #{wrap_t5_forward.1} parent=0
    #allocation2 [shape = 'u8[24576]{0}', space=vmem, size = 0x6000, scoped, tag = 'output window, operand 0']
    #allocation3 [shape = 'u8[65536]{0}', space=vmem, size = 0x10000, scoped, tag = 'output window, operand 1']
    #allocation4 [shape = 'u8[65536]{0}', space=vmem, size = 0x10000, scoped, tag = 'output window, operand 2']
    #allocation5 [shape = 'u8[65536]{0}', space=vmem, size = 0x10000, scoped, tag = 'output window, operand 3']
    #allocation6 [shape = 'u8[65536]{0}', space=vmem, size = 0x10000, scoped, tag = 'output window, operand 4']
    loop: start=0, step=1, limit=4
    $region2: #{wrap_t5_forward.1} parent=1 // loop_pre_header
      _
    $region3: #{wrap_t5_forward.1} parent=1 // loop_header
      %s28 = sphi 0, %s32
      %p29 = scmp.ge.s32.totalorder %s28, 4
      %s38 = sphi 0, %s40
      %s41 = sphi 0, %s38
      %s42 = sphi 0, %s41
      %s58 = sphi 0, %s42
      %s62 = sphi 0, %s62
      %s64 = sphi 0, %s62
      %s65 = sphi 0, %s64
      %s79 = sphi 0, %s65
      %s83 = sphi 0, %s83
      %s85 = sphi 0, %s83
      %s86 = sphi 0, %s85
      %s100 = sphi 0, %s86
      %s104 = sphi 0, %s104
      %s106 = sphi 0, %s104
      %s107 = sphi 0, %s106
      %s121 = sphi 0, %s107
      %s125 = sphi 0, %s125
      %s127 = sphi 0, %s125
      %s128 = sphi 0, %s127
      %s142 = sphi 0, %s128
      %s146 = sphi 0, %s146
      %s148 = sphi 0, %s146
      %s149 = sphi 0, %s148
      %s163 = sphi 0, %s149
      %s167 = sphi 0, %s167
      %s169 = sphi 0, %s167
      %s170 = sphi 0, %s169
      %s184 = sphi 0, %s170
      %s188 = sphi 0, %s188
      %s190 = sphi 0, %s188
      %s191 = sphi 0, %s190
      %s205 = sphi 0, %s191
      %s209 = sphi 0, %s209
      %s211 = sphi 0, %s209
      %s212 = sphi 0, %s211
      %s226 = sphi 0, %s212
      %s230 = sphi 0, %s230
      %s232 = sphi 0, %s230
      %s233 = sphi 0, %s232
      %s247 = sphi 0, %s233
      %s251 = sphi 0, %s251
      %s253 = sphi 0, %s251
      %s254 = sphi 0, %s253
      %s268 = sphi 0, %s254
      %s272 = sphi 0, %s272
      %s274 = sphi 0, %s272
      %s275 = sphi 0, %s274
      %s289 = sphi 0, %s275
      %s293 = sphi 0, %s293
      %s295 = sphi 0, %s293
      %s296 = sphi 0, %s295
      %s310 = sphi 0, %s296
      %s314 = sphi 0, %s314
      %s316 = sphi 0, %s314
      %s317 = sphi 0, %s316
      %s331 = sphi 0, %s317
      %s335 = sphi 0, %s335
      %s337 = sphi 0, %s335
      %s338 = sphi 0, %s337
      %s352 = sphi 0, %s338
      %s356 = sphi 0, %s356
      %s358 = sphi 0, %s356
      %s359 = sphi 0, %s358
      %s373 = sphi 0, %s359
      %s377 = sphi 0, %s377
      %s379 = sphi 0, %s377
      %s380 = sphi 0, %s379
      %s394 = sphi 0, %s380
      %s400 = sphi 0, %s402
      %s403 = sphi 0, %s400
      %s404 = sphi 0, %s403
      %s420 = sphi 0, %s404
      %s426 = sphi 0, %s428
      %s429 = sphi 0, %s426
      %s430 = sphi 0, %s429
      %s446 = sphi 0, %s430
      %s452 = sphi 0, %s454
      %s455 = sphi 0, %s452
      %s456 = sphi 0, %s455
      %s472 = sphi 0, %s456
      %s478 = sphi 0, %s480
      %s481 = sphi 0, %s478
      %s482 = sphi 0, %s481
      %s498 = sphi 0, %s482
      %s504 = sphi 0, %s506
      %s507 = sphi 0, %s504
      %s508 = sphi 0, %s507
      %s524 = sphi 0, %s508
    $region4: #{wrap_t5_forward.1} parent=1 // loop_header_branch
      %31 = sbr.rel (%p29) target = $region8
    $region5: #{wrap_t5_forward.1} parent=1 // loop_body
      %s33 = ssub.s32 %s28, 1
      %s34 = ssub.s32 %s28, 2
      %s35 = sadd.s32 %s28, 1
      %s36 = ssub.s32 %s28, %s35
      %p37 = scmp.eq.s32.totalorder %s36, 0
      %s39 = sadd.s32 %s38, 1
      %s40 = scalar_select %p37, %s38, %s39
      %p43 = pneg %p37
      %p44 = scmp.eq.s32.totalorder %s28, 1
      %p45 = por %p43, %p44
      %p46 = scmp.ne.s32.totalorder %s38, %s41
      %p47 = scmp.eq.s32.totalorder %s28, 0
      %p48 = por %p46, %p47
      %p49 = scmp.ne.s32.totalorder %s38, %s41
      %p50 = scmp.eq.s32.totalorder %s33, 1
      %p51 = por %p49, %p50
      %p52 = scmp.ne.s32.totalorder %s41, %s42
      %p53 = scmp.eq.s32.totalorder %s33, 0
      %p54 = por %p52, %p53
      %p55 = scmp.ne.s32.totalorder %s41, %s42
      %p56 = scmp.eq.s32.totalorder %s34, 1
      %p57 = por %p55, %p56
      %p59 = scmp.ne.s32.totalorder %s42, %s58
      %p60 = scmp.eq.s32.totalorder %s34, 0
      %p61 = por %p59, %p60
      %s63 = sadd.s32 %s62, 1
      %p66 = scmp.eq.s32.totalorder %s28, 1
      %p67 = scmp.ne.s32.totalorder %s62, %s64
      %p68 = scmp.eq.s32.totalorder %s28, 0
      %p69 = por %p67, %p68
      %p70 = scmp.ne.s32.totalorder %s62, %s64
      %p71 = scmp.eq.s32.totalorder %s33, 1
      %p72 = por %p70, %p71
      %p73 = scmp.ne.s32.totalorder %s64, %s65
      %p74 = scmp.eq.s32.totalorder %s33, 0
      %p75 = por %p73, %p74
      %p76 = scmp.ne.s32.totalorder %s64, %s65
      %p77 = scmp.eq.s32.totalorder %s34, 1
      %p78 = por %p76, %p77
      %p80 = scmp.ne.s32.totalorder %s65, %s79
      %p81 = scmp.eq.s32.totalorder %s34, 0
      %p82 = por %p80, %p81
      %s84 = sadd.s32 %s83, 1
      %p87 = scmp.eq.s32.totalorder %s28, 1
      %p88 = scmp.ne.s32.totalorder %s83, %s85
      %p89 = scmp.eq.s32.totalorder %s28, 0
      %p90 = por %p88, %p89
      %p91 = scmp.ne.s32.totalorder %s83, %s85
      %p92 = scmp.eq.s32.totalorder %s33, 1
      %p93 = por %p91, %p92
      %p94 = scmp.ne.s32.totalorder %s85, %s86
      %p95 = scmp.eq.s32.totalorder %s33, 0
      %p96 = por %p94, %p95
      %p97 = scmp.ne.s32.totalorder %s85, %s86
      %p98 = scmp.eq.s32.totalorder %s34, 1
      %p99 = por %p97, %p98
      %p101 = scmp.ne.s32.totalorder %s86, %s100
      %p102 = scmp.eq.s32.totalorder %s34, 0
      %p103 = por %p101, %p102
      %s105 = sadd.s32 %s104, 1
      %p108 = scmp.eq.s32.totalorder %s28, 1
      %p109 = scmp.ne.s32.totalorder %s104, %s106
      %p110 = scmp.eq.s32.totalorder %s28, 0
      %p111 = por %p109, %p110
      %p112 = scmp.ne.s32.totalorder %s104, %s106
      %p113 = scmp.eq.s32.totalorder %s33, 1
      %p114 = por %p112, %p113
      %p115 = scmp.ne.s32.totalorder %s106, %s107
      %p116 = scmp.eq.s32.totalorder %s33, 0
      %p117 = por %p115, %p116
      %p118 = scmp.ne.s32.totalorder %s106, %s107
      %p119 = scmp.eq.s32.totalorder %s34, 1
      %p120 = por %p118, %p119
      %p122 = scmp.ne.s32.totalorder %s107, %s121
      %p123 = scmp.eq.s32.totalorder %s34, 0
      %p124 = por %p122, %p123
      %s126 = sadd.s32 %s125, 1
      %p129 = scmp.eq.s32.totalorder %s28, 1
      %p130 = scmp.ne.s32.totalorder %s125, %s127
      %p131 = scmp.eq.s32.totalorder %s28, 0
      %p132 = por %p130, %p131
      %p133 = scmp.ne.s32.totalorder %s125, %s127
      %p134 = scmp.eq.s32.totalorder %s33, 1
      %p135 = por %p133, %p134
      %p136 = scmp.ne.s32.totalorder %s127, %s128
      %p137 = scmp.eq.s32.totalorder %s33, 0
      %p138 = por %p136, %p137
      %p139 = scmp.ne.s32.totalorder %s127, %s128
      %p140 = scmp.eq.s32.totalorder %s34, 1
      %p141 = por %p139, %p140
      %p143 = scmp.ne.s32.totalorder %s128, %s142
      %p144 = scmp.eq.s32.totalorder %s34, 0
      %p145 = por %p143, %p144
      %s147 = sadd.s32 %s146, 1
      %p150 = scmp.eq.s32.totalorder %s28, 1
      %p151 = scmp.ne.s32.totalorder %s146, %s148
      %p152 = scmp.eq.s32.totalorder %s28, 0
      %p153 = por %p151, %p152
      %p154 = scmp.ne.s32.totalorder %s146, %s148
      %p155 = scmp.eq.s32.totalorder %s33, 1
      %p156 = por %p154, %p155
      %p157 = scmp.ne.s32.totalorder %s148, %s149
      %p158 = scmp.eq.s32.totalorder %s33, 0
      %p159 = por %p157, %p158
      %p160 = scmp.ne.s32.totalorder %s148, %s149
      %p161 = scmp.eq.s32.totalorder %s34, 1
      %p162 = por %p160, %p161
      %p164 = scmp.ne.s32.totalorder %s149, %s163
      %p165 = scmp.eq.s32.totalorder %s34, 0
      %p166 = por %p164, %p165
      %s168 = sadd.s32 %s167, 1
      %p171 = scmp.eq.s32.totalorder %s28, 1
      %p172 = scmp.ne.s32.totalorder %s167, %s169
      %p173 = scmp.eq.s32.totalorder %s28, 0
      %p174 = por %p172, %p173
      %p175 = scmp.ne.s32.totalorder %s167, %s169
      %p176 = scmp.eq.s32.totalorder %s33, 1
      %p177 = por %p175, %p176
      %p178 = scmp.ne.s32.totalorder %s169, %s170
      %p179 = scmp.eq.s32.totalorder %s33, 0
      %p180 = por %p178, %p179
      %p181 = scmp.ne.s32.totalorder %s169, %s170
      %p182 = scmp.eq.s32.totalorder %s34, 1
      %p183 = por %p181, %p182
      %p185 = scmp.ne.s32.totalorder %s170, %s184
      %p186 = scmp.eq.s32.totalorder %s34, 0
      %p187 = por %p185, %p186
      %s189 = sadd.s32 %s188, 1
      %p192 = scmp.eq.s32.totalorder %s28, 1
      %p193 = scmp.ne.s32.totalorder %s188, %s190
      %p194 = scmp.eq.s32.totalorder %s28, 0
      %p195 = por %p193, %p194
      %p196 = scmp.ne.s32.totalorder %s188, %s190
      %p197 = scmp.eq.s32.totalorder %s33, 1
      %p198 = por %p196, %p197
      %p199 = scmp.ne.s32.totalorder %s190, %s191
      %p200 = scmp.eq.s32.totalorder %s33, 0
      %p201 = por %p199, %p200
      %p202 = scmp.ne.s32.totalorder %s190, %s191
      %p203 = scmp.eq.s32.totalorder %s34, 1
      %p204 = por %p202, %p203
      %p206 = scmp.ne.s32.totalorder %s191, %s205
      %p207 = scmp.eq.s32.totalorder %s34, 0
      %p208 = por %p206, %p207
      %s210 = sadd.s32 %s209, 1
      %p213 = scmp.eq.s32.totalorder %s28, 1
      %p214 = scmp.ne.s32.totalorder %s209, %s211
      %p215 = scmp.eq.s32.totalorder %s28, 0
      %p216 = por %p214, %p215
      %p217 = scmp.ne.s32.totalorder %s209, %s211
      %p218 = scmp.eq.s32.totalorder %s33, 1
      %p219 = por %p217, %p218
      %p220 = scmp.ne.s32.totalorder %s211, %s212
      %p221 = scmp.eq.s32.totalorder %s33, 0
      %p222 = por %p220, %p221
      %p223 = scmp.ne.s32.totalorder %s211, %s212
      %p224 = scmp.eq.s32.totalorder %s34, 1
      %p225 = por %p223, %p224
      %p227 = scmp.ne.s32.totalorder %s212, %s226
      %p228 = scmp.eq.s32.totalorder %s34, 0
      %p229 = por %p227, %p228
      %s231 = sadd.s32 %s230, 1
      %p234 = scmp.eq.s32.totalorder %s28, 1
      %p235 = scmp.ne.s32.totalorder %s230, %s232
      %p236 = scmp.eq.s32.totalorder %s28, 0
      %p237 = por %p235, %p236
      %p238 = scmp.ne.s32.totalorder %s230, %s232
      %p239 = scmp.eq.s32.totalorder %s33, 1
      %p240 = por %p238, %p239
      %p241 = scmp.ne.s32.totalorder %s232, %s233
      %p242 = scmp.eq.s32.totalorder %s33, 0
      %p243 = por %p241, %p242
      %p244 = scmp.ne.s32.totalorder %s232, %s233
      %p245 = scmp.eq.s32.totalorder %s34, 1
      %p246 = por %p244, %p245
      %p248 = scmp.ne.s32.totalorder %s233, %s247
      %p249 = scmp.eq.s32.totalorder %s34, 0
      %p250 = por %p248, %p249
      %s252 = sadd.s32 %s251, 1
      %p255 = scmp.eq.s32.totalorder %s28, 1
      %p256 = scmp.ne.s32.totalorder %s251, %s253
      %p257 = scmp.eq.s32.totalorder %s28, 0
      %p258 = por %p256, %p257
      %p259 = scmp.ne.s32.totalorder %s251, %s253
      %p260 = scmp.eq.s32.totalorder %s33, 1
      %p261 = por %p259, %p260
      %p262 = scmp.ne.s32.totalorder %s253, %s254
      %p263 = scmp.eq.s32.totalorder %s33, 0
      %p264 = por %p262, %p263
      %p265 = scmp.ne.s32.totalorder %s253, %s254
      %p266 = scmp.eq.s32.totalorder %s34, 1
      %p267 = por %p265, %p266
      %p269 = scmp.ne.s32.totalorder %s254, %s268
      %p270 = scmp.eq.s32.totalorder %s34, 0
      %p271 = por %p269, %p270
      %s273 = sadd.s32 %s272, 1
      %p276 = scmp.eq.s32.totalorder %s28, 1
      %p277 = scmp.ne.s32.totalorder %s272, %s274
      %p278 = scmp.eq.s32.totalorder %s28, 0
      %p279 = por %p277, %p278
      %p280 = scmp.ne.s32.totalorder %s272, %s274
      %p281 = scmp.eq.s32.totalorder %s33, 1
      %p282 = por %p280, %p281
      %p283 = scmp.ne.s32.totalorder %s274, %s275
      %p284 = scmp.eq.s32.totalorder %s33, 0
      %p285 = por %p283, %p284
      %p286 = scmp.ne.s32.totalorder %s274, %s275
      %p287 = scmp.eq.s32.totalorder %s34, 1
      %p288 = por %p286, %p287
      %p290 = scmp.ne.s32.totalorder %s275, %s289
      %p291 = scmp.eq.s32.totalorder %s34, 0
      %p292 = por %p290, %p291
      %s294 = sadd.s32 %s293, 1
      %p297 = scmp.eq.s32.totalorder %s28, 1
      %p298 = scmp.ne.s32.totalorder %s293, %s295
      %p299 = scmp.eq.s32.totalorder %s28, 0
      %p300 = por %p298, %p299
      %p301 = scmp.ne.s32.totalorder %s293, %s295
      %p302 = scmp.eq.s32.totalorder %s33, 1
      %p303 = por %p301, %p302
      %p304 = scmp.ne.s32.totalorder %s295, %s296
      %p305 = scmp.eq.s32.totalorder %s33, 0
      %p306 = por %p304, %p305
      %p307 = scmp.ne.s32.totalorder %s295, %s296
      %p308 = scmp.eq.s32.totalorder %s34, 1
      %p309 = por %p307, %p308
      %p311 = scmp.ne.s32.totalorder %s296, %s310
      %p312 = scmp.eq.s32.totalorder %s34, 0
      %p313 = por %p311, %p312
      %s315 = sadd.s32 %s314, 1
      %p318 = scmp.eq.s32.totalorder %s28, 1
      %p319 = scmp.ne.s32.totalorder %s314, %s316
      %p320 = scmp.eq.s32.totalorder %s28, 0
      %p321 = por %p319, %p320
      %p322 = scmp.ne.s32.totalorder %s314, %s316
      %p323 = scmp.eq.s32.totalorder %s33, 1
      %p324 = por %p322, %p323
      %p325 = scmp.ne.s32.totalorder %s316, %s317
      %p326 = scmp.eq.s32.totalorder %s33, 0
      %p327 = por %p325, %p326
      %p328 = scmp.ne.s32.totalorder %s316, %s317
      %p329 = scmp.eq.s32.totalorder %s34, 1
      %p330 = por %p328, %p329
      %p332 = scmp.ne.s32.totalorder %s317, %s331
      %p333 = scmp.eq.s32.totalorder %s34, 0
      %p334 = por %p332, %p333
      %s336 = sadd.s32 %s335, 1
      %p339 = scmp.eq.s32.totalorder %s28, 1
      %p340 = scmp.ne.s32.totalorder %s335, %s337
      %p341 = scmp.eq.s32.totalorder %s28, 0
      %p342 = por %p340, %p341
      %p343 = scmp.ne.s32.totalorder %s335, %s337
      %p344 = scmp.eq.s32.totalorder %s33, 1
      %p345 = por %p343, %p344
      %p346 = scmp.ne.s32.totalorder %s337, %s338
      %p347 = scmp.eq.s32.totalorder %s33, 0
      %p348 = por %p346, %p347
      %p349 = scmp.ne.s32.totalorder %s337, %s338
      %p350 = scmp.eq.s32.totalorder %s34, 1
      %p351 = por %p349, %p350
      %p353 = scmp.ne.s32.totalorder %s338, %s352
      %p354 = scmp.eq.s32.totalorder %s34, 0
      %p355 = por %p353, %p354
      %s357 = sadd.s32 %s356, 1
      %p360 = scmp.eq.s32.totalorder %s28, 1
      %p361 = scmp.ne.s32.totalorder %s356, %s358
      %p362 = scmp.eq.s32.totalorder %s28, 0
      %p363 = por %p361, %p362
      %p364 = scmp.ne.s32.totalorder %s356, %s358
      %p365 = scmp.eq.s32.totalorder %s33, 1
      %p366 = por %p364, %p365
      %p367 = scmp.ne.s32.totalorder %s358, %s359
      %p368 = scmp.eq.s32.totalorder %s33, 0
      %p369 = por %p367, %p368
      %p370 = scmp.ne.s32.totalorder %s358, %s359
      %p371 = scmp.eq.s32.totalorder %s34, 1
      %p372 = por %p370, %p371
      %p374 = scmp.ne.s32.totalorder %s359, %s373
      %p375 = scmp.eq.s32.totalorder %s34, 0
      %p376 = por %p374, %p375
      %s378 = sadd.s32 %s377, 1
      %p381 = scmp.eq.s32.totalorder %s28, 1
      %p382 = scmp.ne.s32.totalorder %s377, %s379
      %p383 = scmp.eq.s32.totalorder %s28, 0
      %p384 = por %p382, %p383
      %p385 = scmp.ne.s32.totalorder %s377, %s379
      %p386 = scmp.eq.s32.totalorder %s33, 1
      %p387 = por %p385, %p386
      %p388 = scmp.ne.s32.totalorder %s379, %s380
      %p389 = scmp.eq.s32.totalorder %s33, 0
      %p390 = por %p388, %p389
      %p391 = scmp.ne.s32.totalorder %s379, %s380
      %p392 = scmp.eq.s32.totalorder %s34, 1
      %p393 = por %p391, %p392
      %p395 = scmp.ne.s32.totalorder %s380, %s394
      %p396 = scmp.eq.s32.totalorder %s34, 0
      %p397 = por %p395, %p396
      %s398 = ssub.s32 %s28, %s35
      %p399 = scmp.eq.s32.totalorder %s398, 0
      %s401 = sadd.s32 %s400, 1
      %s402 = scalar_select %p399, %s400, %s401
      %p405 = pneg %p399
      %p406 = scmp.eq.s32.totalorder %s28, 1
      %p407 = por %p405, %p406
      %p408 = scmp.ne.s32.totalorder %s400, %s403
      %p409 = scmp.eq.s32.totalorder %s28, 0
      %p410 = por %p408, %p409
      %p411 = scmp.ne.s32.totalorder %s400, %s403
      %p412 = scmp.eq.s32.totalorder %s33, 1
      %p413 = por %p411, %p412
      %p414 = scmp.ne.s32.totalorder %s403, %s404
      %p415 = scmp.eq.s32.totalorder %s33, 0
      %p416 = por %p414, %p415
      %p417 = scmp.ne.s32.totalorder %s403, %s404
      %p418 = scmp.eq.s32.totalorder %s34, 1
      %p419 = por %p417, %p418
      %p421 = scmp.ne.s32.totalorder %s404, %s420
      %p422 = scmp.eq.s32.totalorder %s34, 0
      %p423 = por %p421, %p422
      %s424 = ssub.s32 %s28, %s35
      %p425 = scmp.eq.s32.totalorder %s424, 0
      %s427 = sadd.s32 %s426, 1
      %s428 = scalar_select %p425, %s426, %s427
      %p431 = pneg %p425
      %p432 = scmp.eq.s32.totalorder %s28, 1
      %p433 = por %p431, %p432
      %p434 = scmp.ne.s32.totalorder %s426, %s429
      %p435 = scmp.eq.s32.totalorder %s28, 0
      %p436 = por %p434, %p435
      %p437 = scmp.ne.s32.totalorder %s426, %s429
      %p438 = scmp.eq.s32.totalorder %s33, 1
      %p439 = por %p437, %p438
      %p440 = scmp.ne.s32.totalorder %s429, %s430
      %p441 = scmp.eq.s32.totalorder %s33, 0
      %p442 = por %p440, %p441
      %p443 = scmp.ne.s32.totalorder %s429, %s430
      %p444 = scmp.eq.s32.totalorder %s34, 1
      %p445 = por %p443, %p444
      %p447 = scmp.ne.s32.totalorder %s430, %s446
      %p448 = scmp.eq.s32.totalorder %s34, 0
      %p449 = por %p447, %p448
      %s450 = ssub.s32 %s28, %s35
      %p451 = scmp.eq.s32.totalorder %s450, 0
      %s453 = sadd.s32 %s452, 1
      %s454 = scalar_select %p451, %s452, %s453
      %p457 = pneg %p451
      %p458 = scmp.eq.s32.totalorder %s28, 1
      %p459 = por %p457, %p458
      %p460 = scmp.ne.s32.totalorder %s452, %s455
      %p461 = scmp.eq.s32.totalorder %s28, 0
      %p462 = por %p460, %p461
      %p463 = scmp.ne.s32.totalorder %s452, %s455
      %p464 = scmp.eq.s32.totalorder %s33, 1
      %p465 = por %p463, %p464
      %p466 = scmp.ne.s32.totalorder %s455, %s456
      %p467 = scmp.eq.s32.totalorder %s33, 0
      %p468 = por %p466, %p467
      %p469 = scmp.ne.s32.totalorder %s455, %s456
      %p470 = scmp.eq.s32.totalorder %s34, 1
      %p471 = por %p469, %p470
      %p473 = scmp.ne.s32.totalorder %s456, %s472
      %p474 = scmp.eq.s32.totalorder %s34, 0
      %p475 = por %p473, %p474
      %s476 = ssub.s32 %s28, %s35
      %p477 = scmp.eq.s32.totalorder %s476, 0
      %s479 = sadd.s32 %s478, 1
      %s480 = scalar_select %p477, %s478, %s479
      %p483 = pneg %p477
      %p484 = scmp.eq.s32.totalorder %s28, 1
      %p485 = por %p483, %p484
      %p486 = scmp.ne.s32.totalorder %s478, %s481
      %p487 = scmp.eq.s32.totalorder %s28, 0
      %p488 = por %p486, %p487
      %p489 = scmp.ne.s32.totalorder %s478, %s481
      %p490 = scmp.eq.s32.totalorder %s33, 1
      %p491 = por %p489, %p490
      %p492 = scmp.ne.s32.totalorder %s481, %s482
      %p493 = scmp.eq.s32.totalorder %s33, 0
      %p494 = por %p492, %p493
      %p495 = scmp.ne.s32.totalorder %s481, %s482
      %p496 = scmp.eq.s32.totalorder %s34, 1
      %p497 = por %p495, %p496
      %p499 = scmp.ne.s32.totalorder %s482, %s498
      %p500 = scmp.eq.s32.totalorder %s34, 0
      %p501 = por %p499, %p500
      %s502 = ssub.s32 %s28, %s35
      %p503 = scmp.eq.s32.totalorder %s502, 0
      %s505 = sadd.s32 %s504, 1
      %s506 = scalar_select %p503, %s504, %s505
      %p509 = pneg %p503
      %p510 = scmp.eq.s32.totalorder %s28, 1
      %p511 = por %p509, %p510
      %p512 = scmp.ne.s32.totalorder %s504, %s507
      %p513 = scmp.eq.s32.totalorder %s28, 0
      %p514 = por %p512, %p513
      %p515 = scmp.ne.s32.totalorder %s504, %s507
      %p516 = scmp.eq.s32.totalorder %s33, 1
      %p517 = por %p515, %p516
      %p518 = scmp.ne.s32.totalorder %s507, %s508
      %p519 = scmp.eq.s32.totalorder %s33, 0
      %p520 = por %p518, %p519
      %p521 = scmp.ne.s32.totalorder %s507, %s508
      %p522 = scmp.eq.s32.totalorder %s34, 1
      %p523 = por %p521, %p522
      %p525 = scmp.ne.s32.totalorder %s508, %s524
      %p526 = scmp.eq.s32.totalorder %s34, 0
      %p527 = por %p525, %p526
      %p528 = scmp.le.s32.totalorder 1, %s28
      %p529 = scmp.lt.s32.totalorder %s28, 3
      %p530 = pnand %p528, %p529
      %p531 = pneg %p530
      // Predicated region
      $region9: #{wrap_t5_forward.1} parent=5 // pred_check
        _
      $region10: #{wrap_t5_forward.1} parent=5 // pred_check_branch
        %533 = sbr.rel (%p530) target = $region12
      $region11: #{wrap_t5_forward.1} parent=5 // pred_region
        %s534 = ssub.s32 %s28, 1
        // Predicated region
        $region13: #{wrap_t5_forward.1} parent=11 // pred_check
          %p535 = pneg %p75
        $region14: #{wrap_t5_forward.1} parent=11 // pred_check_branch
          %537 = sbr.rel (%p535) target = $region16
        $region15: #{wrap_t5_forward.1} parent=11 // pred_region
          _
        $region16: #{wrap_t5_forward.1} parent=11 // pred_fallthru
          _
        // Predicated region
        $region17: #{wrap_t5_forward.1} parent=11 // pred_check
          %p538 = pneg %p96
        $region18: #{wrap_t5_forward.1} parent=11 // pred_check_branch
          %540 = sbr.rel (%p538) target = $region20
        $region19: #{wrap_t5_forward.1} parent=11 // pred_region
          _
        $region20: #{wrap_t5_forward.1} parent=11 // pred_fallthru
          _
        // Predicated region
        $region21: #{wrap_t5_forward.1} parent=11 // pred_check
          %p541 = pneg %p117
        $region22: #{wrap_t5_forward.1} parent=11 // pred_check_branch
          %543 = sbr.rel (%p541) target = $region24
        $region23: #{wrap_t5_forward.1} parent=11 // pred_region
          _
        $region24: #{wrap_t5_forward.1} parent=11 // pred_fallthru
          _
        // Predicated region
        $region25: #{wrap_t5_forward.1} parent=11 // pred_check
          %p544 = pneg %p138
        $region26: #{wrap_t5_forward.1} parent=11 // pred_check_branch
          %546 = sbr.rel (%p544) target = $region28
        $region27: #{wrap_t5_forward.1} parent=11 // pred_region
          _
        $region28: #{wrap_t5_forward.1} parent=11 // pred_fallthru
          _
        // Predicated region
        $region29: #{wrap_t5_forward.1} parent=11 // pred_check
          %p547 = pneg %p159
        $region30: #{wrap_t5_forward.1} parent=11 // pred_check_branch
          %549 = sbr.rel (%p547) target = $region32
        $region31: #{wrap_t5_forward.1} parent=11 // pred_region
          _
        $region32: #{wrap_t5_forward.1} parent=11 // pred_fallthru
          _
        // Predicated region
        $region33: #{wrap_t5_forward.1} parent=11 // pred_check
          %p550 = pneg %p180
        $region34: #{wrap_t5_forward.1} parent=11 // pred_check_branch
          %552 = sbr.rel (%p550) target = $region36
        $region35: #{wrap_t5_forward.1} parent=11 // pred_region
          _
        $region36: #{wrap_t5_forward.1} parent=11 // pred_fallthru
          _
        // Predicated region
        $region37: #{wrap_t5_forward.1} parent=11 // pred_check
          %p553 = pneg %p201
        $region38: #{wrap_t5_forward.1} parent=11 // pred_check_branch
          %555 = sbr.rel (%p553) target = $region40
        $region39: #{wrap_t5_forward.1} parent=11 // pred_region
          _
        $region40: #{wrap_t5_forward.1} parent=11 // pred_fallthru
          _
        // Predicated region
        $region41: #{wrap_t5_forward.1} parent=11 // pred_check
          %p556 = pneg %p222
        $region42: #{wrap_t5_forward.1} parent=11 // pred_check_branch
          %558 = sbr.rel (%p556) target = $region44
        $region43: #{wrap_t5_forward.1} parent=11 // pred_region
          _
        $region44: #{wrap_t5_forward.1} parent=11 // pred_fallthru
          _
        // Predicated region
        $region45: #{wrap_t5_forward.1} parent=11 // pred_check
          %p559 = pneg %p243
        $region46: #{wrap_t5_forward.1} parent=11 // pred_check_branch
          %561 = sbr.rel (%p559) target = $region48
        $region47: #{wrap_t5_forward.1} parent=11 // pred_region
          _
        $region48: #{wrap_t5_forward.1} parent=11 // pred_fallthru
          _
        // Predicated region
        $region49: #{wrap_t5_forward.1} parent=11 // pred_check
          %p562 = pneg %p264
        $region50: #{wrap_t5_forward.1} parent=11 // pred_check_branch
          %564 = sbr.rel (%p562) target = $region52
        $region51: #{wrap_t5_forward.1} parent=11 // pred_region
          _
        $region52: #{wrap_t5_forward.1} parent=11 // pred_fallthru
          _
        // Predicated region
        $region53: #{wrap_t5_forward.1} parent=11 // pred_check
          %p565 = pneg %p285
        $region54: #{wrap_t5_forward.1} parent=11 // pred_check_branch
          %567 = sbr.rel (%p565) target = $region56
        $region55: #{wrap_t5_forward.1} parent=11 // pred_region
          _
        $region56: #{wrap_t5_forward.1} parent=11 // pred_fallthru
          _
        // Predicated region
        $region57: #{wrap_t5_forward.1} parent=11 // pred_check
          %p568 = pneg %p306
        $region58: #{wrap_t5_forward.1} parent=11 // pred_check_branch
          %570 = sbr.rel (%p568) target = $region60
        $region59: #{wrap_t5_forward.1} parent=11 // pred_region
          _
        $region60: #{wrap_t5_forward.1} parent=11 // pred_fallthru
          _
        // Predicated region
        $region61: #{wrap_t5_forward.1} parent=11 // pred_check
          %p571 = pneg %p327
        $region62: #{wrap_t5_forward.1} parent=11 // pred_check_branch
          %573 = sbr.rel (%p571) target = $region64
        $region63: #{wrap_t5_forward.1} parent=11 // pred_region
          _
        $region64: #{wrap_t5_forward.1} parent=11 // pred_fallthru
          _
        // Predicated region
        $region65: #{wrap_t5_forward.1} parent=11 // pred_check
          %p574 = pneg %p348
        $region66: #{wrap_t5_forward.1} parent=11 // pred_check_branch
          %576 = sbr.rel (%p574) target = $region68
        $region67: #{wrap_t5_forward.1} parent=11 // pred_region
          _
        $region68: #{wrap_t5_forward.1} parent=11 // pred_fallthru
          _
        // Predicated region
        $region69: #{wrap_t5_forward.1} parent=11 // pred_check
          %p577 = pneg %p369
        $region70: #{wrap_t5_forward.1} parent=11 // pred_check_branch
          %579 = sbr.rel (%p577) target = $region72
        $region71: #{wrap_t5_forward.1} parent=11 // pred_region
          _
        $region72: #{wrap_t5_forward.1} parent=11 // pred_fallthru
          _
        // Predicated region
        $region73: #{wrap_t5_forward.1} parent=11 // pred_check
          %p580 = pneg %p390
        $region74: #{wrap_t5_forward.1} parent=11 // pred_check_branch
          %582 = sbr.rel (%p580) target = $region76
        $region75: #{wrap_t5_forward.1} parent=11 // pred_region
          _
        $region76: #{wrap_t5_forward.1} parent=11 // pred_fallthru
          _
      $region12: #{wrap_t5_forward.1} parent=5 // pred_fallthru
        _
      %p583 = scmp.lt.s32.totalorder %s28, 2
      // Predicated region
      $region77: #{wrap_t5_forward.1} parent=5 // pred_check
        %p584 = pneg %p583
      $region78: #{wrap_t5_forward.1} parent=5 // pred_check_branch
        %586 = sbr.rel (%p584) target = $region80
      $region79: #{wrap_t5_forward.1} parent=5 // pred_region
        // Predicated region
        $region81: #{wrap_t5_forward.1} parent=79 // pred_check
          %p587 = pneg %p48
        $region82: #{wrap_t5_forward.1} parent=79 // pred_check_branch
          %589 = sbr.rel (%p587) target = $region84
        $region83: #{wrap_t5_forward.1} parent=79 // pred_region
          %p590 = scmp.lt.s32.totalorder %s28, 1
          %s591 = scalar_select %p590, %s28, 1
          %s592 = smul.addr %s591, 8
          %s593 = scalar_lea.vmem %s0, %s592
        $region84: #{wrap_t5_forward.1} parent=79 // pred_fallthru
          _
      $region80: #{wrap_t5_forward.1} parent=5 // pred_fallthru
        _
      %p594 = scmp.le.s32.totalorder 1, %s28
      %p595 = scmp.lt.s32.totalorder %s28, 3
      %p596 = pnand %p594, %p595
      %p597 = pneg %p596
      // Predicated region
      $region85: #{wrap_t5_forward.1} parent=5 // pred_check
        _
      $region86: #{wrap_t5_forward.1} parent=5 // pred_check_branch
        %599 = sbr.rel (%p596) target = $region88
      $region87: #{wrap_t5_forward.1} parent=5 // pred_region
        %s600 = ssub.s32 %s28, 1
        %p601 = scmp.lt.s32.totalorder %s33, 1
        %s602 = scalar_select %p601, %s33, 1
        %s603 = smul.addr %s602, 8
        %s604 = scalar_lea.vmem %s0, %s603
        %p605 = pneg %p54
        %p606 = pneg %p51
        %p607 = pneg %p75
        %p608 = pneg %p72
        %p609 = pneg %p96
        %p610 = pneg %p93
        %p611 = pneg %p117
        %p612 = pneg %p114
        %p613 = pneg %p138
        %p614 = pneg %p135
        %p615 = pneg %p159
        %p616 = pneg %p156
        %p617 = pneg %p180
        %p618 = pneg %p177
        %p619 = pneg %p201
        %p620 = pneg %p198
        %p621 = pneg %p222
        %p622 = pneg %p219
        %p623 = pneg %p243
        %p624 = pneg %p240
        %p625 = pneg %p264
        %p626 = pneg %p261
        %p627 = pneg %p285
        %p628 = pneg %p282
        %p629 = pneg %p306
        %p630 = pneg %p303
        %p631 = pneg %p327
        %p632 = pneg %p324
        %p633 = pneg %p348
        %p634 = pneg %p345
        %p635 = pneg %p369
        %p636 = pneg %p366
        %p637 = pneg %p390
        %p638 = pneg %p387
        %p639 = pneg %p416
        %p640 = pneg %p413
        %s641 = sand.u32 %s403, 1
        %s642 = sand.u32 %s403, 1
        %s643 = smul.addr %s642, 24
        %s644 = scalar_lea.vmem [#allocation2], %s643
        %p645 = pneg %p442
        %p646 = pneg %p439
        %s647 = sand.u32 %s429, 1
        %s648 = sand.u32 %s429, 1
        %s649 = smul.addr %s648, 64
        %s650 = scalar_lea.vmem [#allocation3], %s649
        %p651 = pneg %p468
        %p652 = pneg %p465
        %s653 = sand.u32 %s455, 1
        %s654 = sand.u32 %s455, 1
        %s655 = smul.addr %s654, 64
        %s656 = scalar_lea.vmem [#allocation4], %s655
        %p657 = pneg %p494
        %p658 = pneg %p491
        %s659 = sand.u32 %s481, 1
        %s660 = sand.u32 %s481, 1
        %s661 = smul.addr %s660, 64
        %s662 = scalar_lea.vmem [#allocation5], %s661
        %p663 = pneg %p520
        %p664 = pneg %p517
        %s665 = sand.u32 %s507, 1
        %s666 = sand.u32 %s507, 1
        %s667 = smul.addr %s666, 64
        %s668 = scalar_lea.vmem [#allocation6], %s667
        %p669 = scmp.lt.s32.totalorder %s33, 1
        %s670 = scalar_select %p669, %s33, 1
        %s671 = smul.addr %s670, 8
        %s672 = scalar_lea.vmem %s0, %s671
        %v673 = vld [vmem:[%s672] sm:$0xff]
        %v674 = vld [vmem:[%s3] sm:$0x1]
        %v675 = vmul.f32 %v673, %v673
        %vm676 = vcmask 261120
        %v677 = vsel %vm676, %v675, 0.0
        %678 = vadd.xlane.f32.xlu0 %v677
        %v679 = vpop.xlane.xlu0 %678
        %v680 = vrcp.pop 32.0
        %v681 = vmul.f32 32.0, %v680
        %v682 = vsub.f32 1.0, %v681
        %v683 = vmul.f32 %v680, %v682
        %v684 = vadd.f32 %v680, %v683
        %vm685 = vweird.f32 %v680
        %v686 = vsel %vm685, %v680, %v684
        %v687 = vmul.f32 %v679, %v686
        %v688 = vadd.f32 %v687, 1e-06
        %v689 = vrsqrt.pop %v688
        %v690 = vmul.f32 %v689, %v688
        %v691 = vmul.f32 %v690, %v689
        %v692 = vmul.f32 0.5, %v691
        %v693 = vsub.f32 1.5, %v692
        %v694 = vmul.f32 %v689, %v693
        %vm695 = vweird.f32 %v688
        %vm696 = vweird.f32 %v689
        %vm697 = vmor %vm695, %vm696
        %v698 = vsel %vm697, %v689, %v694
        %v699 = vmul.f32 %v673, %v698
        %v701 = vperm.slane %v674, 0
        %v703 = vmul.f32 %v699, %v701
        %v704 = vld [vmem:[%s4] sm:$0xff]
        %v705 = vld [vmem:[%s4 + $0x8] sm:$0xff]
        %v706 = vld [vmem:[%s4 + $0x10] sm:$0xff]
        %v707 = vld [vmem:[%s4 + $0x18] sm:$0xff]
        %v709 = vsel %vm676, %v703, 0
        %711 = vmatpush.msra.mxu0 0.0
        %712 = vmatpush.msra.mxu0 0.0
        %713 = vmatpush.msra.mxu0 0.0
        %714 = vmatpush.msra.mxu0 0.0
        %715 = vmatpush.msra.mxu0 0.0
        %716 = vmatpush.msra.mxu0 0.0
        %717 = vmatpush.msra.mxu0 0.0
        %718 = vmatpush.msra.mxu0 0.0
        %719 = vmatpush.msra.mxu0 0.0
        %720 = vmatpush.msra.mxu0 0.0
        %721 = vmatpush.msra.mxu0 0.0
        %722 = vmatpush.msra.mxu0 0.0
        %723 = vmatpush.msra.mxu0 %v707
        %724 = vmatpush.msra.mxu0 %v706
        %725 = vmatpush.msra.mxu0 %v705
        %726 = vmatpush.msra.mxu0 %v704
        %727 = vmatmul.f32.gmra.mxu0 %v709
        %v728 = vpop.f32.mrf.mxu0
        %v729 = vadd.f32 0.0, %v728
        %730 = vdwg.mxu0
        %s731 = scalar_lea.vmem %s4, 128
        %v732 = vld [vmem:[%s731] sm:$0xff]
        %v733 = vld [vmem:[%s731 + $0x8] sm:$0xff]
        %v734 = vld [vmem:[%s731 + $0x10] sm:$0xff]
        %v735 = vld [vmem:[%s731 + $0x18] sm:$0xff]
        %736 = vmatpush.msra.mxu0 0.0
        %737 = vmatpush.msra.mxu0 0.0
        %738 = vmatpush.msra.mxu0 0.0
        %739 = vmatpush.msra.mxu0 0.0
        %740 = vmatpush.msra.mxu0 0.0
        %741 = vmatpush.msra.mxu0 0.0
        %742 = vmatpush.msra.mxu0 0.0
        %743 = vmatpush.msra.mxu0 0.0
        %744 = vmatpush.msra.mxu0 0.0
        %745 = vmatpush.msra.mxu0 0.0
        %746 = vmatpush.msra.mxu0 0.0
        %747 = vmatpush.msra.mxu0 0.0
        %748 = vmatpush.msra.mxu0 %v735
        %749 = vmatpush.msra.mxu0 %v734
        %750 = vmatpush.msra.mxu0 %v733
        %751 = vmatpush.msra.mxu0 %v732
        %752 = vmatmul.f32.gmra.mxu0 %v709
        %v753 = vpop.f32.mrf.mxu0
        %v754 = vadd.f32 0.0, %v753
        %755 = vdwg.mxu0
        %s756 = scalar_lea.vmem %s4, 256
        %v757 = vld [vmem:[%s756] sm:$0xff]
        %v758 = vld [vmem:[%s756 + $0x8] sm:$0xff]
        %v759 = vld [vmem:[%s756 + $0x10] sm:$0xff]
        %v760 = vld [vmem:[%s756 + $0x18] sm:$0xff]
        %761 = vmatpush.msra.mxu0 0.0
        %762 = vmatpush.msra.mxu0 0.0
        %763 = vmatpush.msra.mxu0 0.0
        %764 = vmatpush.msra.mxu0 0.0
        %765 = vmatpush.msra.mxu0 0.0
        %766 = vmatpush.msra.mxu0 0.0
        %767 = vmatpush.msra.mxu0 0.0
        %768 = vmatpush.msra.mxu0 0.0
        %769 = vmatpush.msra.mxu0 0.0
        %770 = vmatpush.msra.mxu0 0.0
        %771 = vmatpush.msra.mxu0 0.0
        %772 = vmatpush.msra.mxu0 0.0
        %773 = vmatpush.msra.mxu0 %v760
        %774 = vmatpush.msra.mxu0 %v759
        %775 = vmatpush.msra.mxu0 %v758
        %776 = vmatpush.msra.mxu0 %v757
        %777 = vmatmul.f32.gmra.mxu0 %v709
        %v778 = vpop.f32.mrf.mxu0
        %v779 = vadd.f32 0.0, %v778
        %780 = vdwg.mxu0
        %v781 = vld [vmem:[%s1] sm:$0xff]
        %vm782 = vcmask 64512
        %v784 = vsel %vm782, %v729, 0
        %v787 = vsel %vm782, %v754, 0
        %789 = vmatpush.xpose.msra.mxu0 0.0
        %790 = vmatpush.xpose.msra.mxu0 0.0
        %791 = vmatpush.xpose.msra.mxu0 0.0
        %792 = vmatpush.xpose.msra.mxu0 0.0
        %793 = vmatpush.xpose.msra.mxu0 0.0
        %794 = vmatpush.xpose.msra.mxu0 0.0
        %795 = vmatpush.xpose.msra.mxu0 0.0
        %796 = vmatpush.xpose.msra.mxu0 0.0
        %797 = vmatpush.xpose.msra.mxu0 0.0
        %798 = vmatpush.xpose.msra.mxu0 0.0
        %799 = vmatpush.xpose.msra.mxu0 0.0
        %800 = vmatpush.xpose.msra.mxu0 0.0
        %801 = vmatpush.xpose.msra.mxu0 0.0
        %802 = vmatpush.xpose.msra.mxu0 0.0
        %803 = vmatpush.xpose.msra.mxu0 0.0
        %804 = vmatpush.xpose.msra.mxu0 %v787
        %805 = vmatmul.f32.gmra.mxu0 %v784
        %v806 = vpop.f32.mrf.mxu0
        %v807 = vadd.f32 %v781, %v806
        %808 = vdwg.mxu0
        %v809 = vsel %vm782, %v807, -inf
        %810 = vmax.xlane.f32.xlu0 %v809
        %v811 = vpop.xlane.xlu0 %810
        %v812 = vsub.f32 %v807, %v811
        %v813 = vmul.f32 %v812, 1.442695
        %v814 = vpow.pop %v813
        %v815 = vsel %vm782, %v814, 0.0
        %816 = vadd.xlane.f32.xlu0 %v815
        %v817 = vpop.xlane.xlu0 %816
        %v818 = vrcp.pop %v817
        %v819 = vmul.f32 %v814, %v818
        %v821 = vsel %vm782, %v819, 0
        %823 = vmatpush.msra.mxu0 0.0
        %824 = vmatpush.msra.mxu0 0.0
        %825 = vmatpush.msra.mxu0 0.0
        %826 = vmatpush.msra.mxu0 0.0
        %827 = vmatpush.msra.mxu0 0.0
        %828 = vmatpush.msra.mxu0 0.0
        %829 = vmatpush.msra.mxu0 0.0
        %830 = vmatpush.msra.mxu0 0.0
        %831 = vmatpush.msra.mxu0 0.0
        %832 = vmatpush.msra.mxu0 0.0
        %833 = vmatpush.msra.mxu0 0.0
        %834 = vmatpush.msra.mxu0 0.0
        %835 = vmatpush.msra.mxu0 0.0
        %836 = vmatpush.msra.mxu0 0.0
        %837 = vmatpush.msra.mxu0 0.0
        %838 = vmatpush.msra.mxu0 %v779
        %839 = vmatmul.f32.gmra.mxu0 %v821
        %v840 = vpop.f32.mrf.mxu0
        %v841 = vadd.f32 0.0, %v840
        %842 = vdwg.mxu0
        %v843 = vld [vmem:[%s5] sm:$0xff]
        %s844 = scalar_lea.vmem %s4, 32
        %v845 = vld [vmem:[%s844] sm:$0xff]
        %v846 = vld [vmem:[%s844 + $0x8] sm:$0xff]
        %v847 = vld [vmem:[%s844 + $0x10] sm:$0xff]
        %v848 = vld [vmem:[%s844 + $0x18] sm:$0xff]
        %849 = vmatpush.msra.mxu0 0.0
        %850 = vmatpush.msra.mxu0 0.0
        %851 = vmatpush.msra.mxu0 0.0
        %852 = vmatpush.msra.mxu0 0.0
        %853 = vmatpush.msra.mxu0 0.0
        %854 = vmatpush.msra.mxu0 0.0
        %855 = vmatpush.msra.mxu0 0.0
        %856 = vmatpush.msra.mxu0 0.0
        %857 = vmatpush.msra.mxu0 0.0
        %858 = vmatpush.msra.mxu0 0.0
        %859 = vmatpush.msra.mxu0 0.0
        %860 = vmatpush.msra.mxu0 0.0
        %861 = vmatpush.msra.mxu0 %v848
        %862 = vmatpush.msra.mxu0 %v847
        %863 = vmatpush.msra.mxu0 %v846
        %864 = vmatpush.msra.mxu0 %v845
        %865 = vmatmul.f32.gmra.mxu0 %v709
        %v866 = vpop.f32.mrf.mxu0
        %v867 = vadd.f32 0.0, %v866
        %868 = vdwg.mxu0
        %s869 = scalar_lea.vmem %s4, 160
        %v870 = vld [vmem:[%s869] sm:$0xff]
        %v871 = vld [vmem:[%s869 + $0x8] sm:$0xff]
        %v872 = vld [vmem:[%s869 + $0x10] sm:$0xff]
        %v873 = vld [vmem:[%s869 + $0x18] sm:$0xff]
        %874 = vmatpush.msra.mxu0 0.0
        %875 = vmatpush.msra.mxu0 0.0
        %876 = vmatpush.msra.mxu0 0.0
        %877 = vmatpush.msra.mxu0 0.0
        %878 = vmatpush.msra.mxu0 0.0
        %879 = vmatpush.msra.mxu0 0.0
        %880 = vmatpush.msra.mxu0 0.0
        %881 = vmatpush.msra.mxu0 0.0
        %882 = vmatpush.msra.mxu0 0.0
        %883 = vmatpush.msra.mxu0 0.0
        %884 = vmatpush.msra.mxu0 0.0
        %885 = vmatpush.msra.mxu0 0.0
        %886 = vmatpush.msra.mxu0 %v873
        %887 = vmatpush.msra.mxu0 %v872
        %888 = vmatpush.msra.mxu0 %v871
        %889 = vmatpush.msra.mxu0 %v870
        %890 = vmatmul.f32.gmra.mxu0 %v709
        %v891 = vpop.f32.mrf.mxu0
        %v892 = vadd.f32 0.0, %v891
        %893 = vdwg.mxu0
        %s894 = scalar_lea.vmem %s4, 288
        %v895 = vld [vmem:[%s894] sm:$0xff]
        %v896 = vld [vmem:[%s894 + $0x8] sm:$0xff]
        %v897 = vld [vmem:[%s894 + $0x10] sm:$0xff]
        %v898 = vld [vmem:[%s894 + $0x18] sm:$0xff]
        %899 = vmatpush.msra.mxu0 0.0
        %900 = vmatpush.msra.mxu0 0.0
        %901 = vmatpush.msra.mxu0 0.0
        %902 = vmatpush.msra.mxu0 0.0
        %903 = vmatpush.msra.mxu0 0.0
        %904 = vmatpush.msra.mxu0 0.0
        %905 = vmatpush.msra.mxu0 0.0
        %906 = vmatpush.msra.mxu0 0.0
        %907 = vmatpush.msra.mxu0 0.0
        %908 = vmatpush.msra.mxu0 0.0
        %909 = vmatpush.msra.mxu0 0.0
        %910 = vmatpush.msra.mxu0 0.0
        %911 = vmatpush.msra.mxu0 %v898
        %912 = vmatpush.msra.mxu0 %v897
        %913 = vmatpush.msra.mxu0 %v896
        %914 = vmatpush.msra.mxu0 %v895
        %915 = vmatmul.f32.gmra.mxu0 %v709
        %v916 = vpop.f32.mrf.mxu0
        %v917 = vadd.f32 0.0, %v916
        %918 = vdwg.mxu0
        %s919 = scalar_lea.vmem %s1, 8
        %v920 = vld [vmem:[%s919] sm:$0xff]
        %v922 = vsel %vm782, %v867, 0
        %v925 = vsel %vm782, %v892, 0
        %927 = vmatpush.xpose.msra.mxu0 0.0
        %928 = vmatpush.xpose.msra.mxu0 0.0
        %929 = vmatpush.xpose.msra.mxu0 0.0
        %930 = vmatpush.xpose.msra.mxu0 0.0
        %931 = vmatpush.xpose.msra.mxu0 0.0
        %932 = vmatpush.xpose.msra.mxu0 0.0
        %933 = vmatpush.xpose.msra.mxu0 0.0
        %934 = vmatpush.xpose.msra.mxu0 0.0
        %935 = vmatpush.xpose.msra.mxu0 0.0
        %936 = vmatpush.xpose.msra.mxu0 0.0
        %937 = vmatpush.xpose.msra.mxu0 0.0
        %938 = vmatpush.xpose.msra.mxu0 0.0
        %939 = vmatpush.xpose.msra.mxu0 0.0
        %940 = vmatpush.xpose.msra.mxu0 0.0
        %941 = vmatpush.xpose.msra.mxu0 0.0
        %942 = vmatpush.xpose.msra.mxu0 %v925
        %943 = vmatmul.f32.gmra.mxu0 %v922
        %v944 = vpop.f32.mrf.mxu0
        %v945 = vadd.f32 %v920, %v944
        %946 = vdwg.mxu0
        %v947 = vsel %vm782, %v945, -inf
        %948 = vmax.xlane.f32.xlu0 %v947
        %v949 = vpop.xlane.xlu0 %948
        %v950 = vsub.f32 %v945, %v949
        %v951 = vmul.f32 %v950, 1.442695
        %v952 = vpow.pop %v951
        %v953 = vsel %vm782, %v952, 0.0
        %954 = vadd.xlane.f32.xlu0 %v953
        %v955 = vpop.xlane.xlu0 %954
        %v956 = vrcp.pop %v955
        %v957 = vmul.f32 %v952, %v956
        %v959 = vsel %vm782, %v957, 0
        %961 = vmatpush.msra.mxu0 0.0
        %962 = vmatpush.msra.mxu0 0.0
        %963 = vmatpush.msra.mxu0 0.0
        %964 = vmatpush.msra.mxu0 0.0
        %965 = vmatpush.msra.mxu0 0.0
        %966 = vmatpush.msra.mxu0 0.0
        %967 = vmatpush.msra.mxu0 0.0
        %968 = vmatpush.msra.mxu0 0.0
        %969 = vmatpush.msra.mxu0 0.0
        %970 = vmatpush.msra.mxu0 0.0
        %971 = vmatpush.msra.mxu0 0.0
        %972 = vmatpush.msra.mxu0 0.0
        %973 = vmatpush.msra.mxu0 0.0
        %974 = vmatpush.msra.mxu0 0.0
        %975 = vmatpush.msra.mxu0 0.0
        %976 = vmatpush.msra.mxu0 %v917
        %977 = vmatmul.f32.gmra.mxu0 %v959
        %v978 = vpop.f32.mrf.mxu0
        %v979 = vadd.f32 0.0, %v978
        %980 = vdwg.mxu0
        %s981 = scalar_lea.vmem %s5, 8
        %v982 = vld [vmem:[%s981] sm:$0xff]
        %v984 = vsel %vm782, %v979, 0
        %986 = vmatpush.msra.mxu0 0.0
        %987 = vmatpush.msra.mxu0 0.0
        %988 = vmatpush.msra.mxu0 0.0
        %989 = vmatpush.msra.mxu0 0.0
        %990 = vmatpush.msra.mxu0 0.0
        %991 = vmatpush.msra.mxu0 0.0
        %992 = vmatpush.msra.mxu0 0.0
        %993 = vmatpush.msra.mxu0 0.0
        %994 = vmatpush.msra.mxu0 0.0
        %995 = vmatpush.msra.mxu0 0.0
        %996 = vmatpush.msra.mxu0 0.0
        %997 = vmatpush.msra.mxu0 0.0
        %998 = vmatpush.msra.mxu0 0.0
        %999 = vmatpush.msra.mxu0 0.0
        %1000 = vmatpush.msra.mxu0 0.0
        %1001 = vmatpush.msra.mxu0 %v982
        %1002 = vmatmul.f32.gmra.mxu0 %v984
        %v1003 = vpop.f32.mrf.mxu0
        %v1004 = vadd.f32 0.0, %v1003
        %1005 = vdwg.mxu0
        %v1007 = vsel %vm782, %v841, 0
        %1009 = vmatpush.msra.mxu0 0.0
        %1010 = vmatpush.msra.mxu0 0.0
        %1011 = vmatpush.msra.mxu0 0.0
        %1012 = vmatpush.msra.mxu0 0.0
        %1013 = vmatpush.msra.mxu0 0.0
        %1014 = vmatpush.msra.mxu0 0.0
        %1015 = vmatpush.msra.mxu0 0.0
        %1016 = vmatpush.msra.mxu0 0.0
        %1017 = vmatpush.msra.mxu0 0.0
        %1018 = vmatpush.msra.mxu0 0.0
        %1019 = vmatpush.msra.mxu0 0.0
        %1020 = vmatpush.msra.mxu0 0.0
        %1021 = vmatpush.msra.mxu0 0.0
        %1022 = vmatpush.msra.mxu0 0.0
        %1023 = vmatpush.msra.mxu0 0.0
        %1024 = vmatpush.msra.mxu0 %v843
        %1025 = vmatmul.f32.gmra.mxu0 %v1007
        %v1026 = vpop.f32.mrf.mxu0
        %v1027 = vadd.f32 %v1004, %v1026
        %1028 = vdwg.mxu0
        %s1029 = scalar_lea.vmem %s4, 64
        %v1030 = vld [vmem:[%s1029] sm:$0xff]
        %v1031 = vld [vmem:[%s1029 + $0x8] sm:$0xff]
        %v1032 = vld [vmem:[%s1029 + $0x10] sm:$0xff]
        %v1033 = vld [vmem:[%s1029 + $0x18] sm:$0xff]
        %1034 = vmatpush.msra.mxu0 0.0
        %1035 = vmatpush.msra.mxu0 0.0
        %1036 = vmatpush.msra.mxu0 0.0
        %1037 = vmatpush.msra.mxu0 0.0
        %1038 = vmatpush.msra.mxu0 0.0
        %1039 = vmatpush.msra.mxu0 0.0
        %1040 = vmatpush.msra.mxu0 0.0
        %1041 = vmatpush.msra.mxu0 0.0
        %1042 = vmatpush.msra.mxu0 0.0
        %1043 = vmatpush.msra.mxu0 0.0
        %1044 = vmatpush.msra.mxu0 0.0
        %1045 = vmatpush.msra.mxu0 0.0
        %1046 = vmatpush.msra.mxu0 %v1033
        %1047 = vmatpush.msra.mxu0 %v1032
        %1048 = vmatpush.msra.mxu0 %v1031
        %1049 = vmatpush.msra.mxu0 %v1030
        %1050 = vmatmul.f32.gmra.mxu0 %v709
        %v1051 = vpop.f32.mrf.mxu0
        %v1052 = vadd.f32 0.0, %v1051
        %1053 = vdwg.mxu0
        %s1054 = scalar_lea.vmem %s4, 192
        %v1055 = vld [vmem:[%s1054] sm:$0xff]
        %v1056 = vld [vmem:[%s1054 + $0x8] sm:$0xff]
        %v1057 = vld [vmem:[%s1054 + $0x10] sm:$0xff]
        %v1058 = vld [vmem:[%s1054 + $0x18] sm:$0xff]
        %1059 = vmatpush.msra.mxu0 0.0
        %1060 = vmatpush.msra.mxu0 0.0
        %1061 = vmatpush.msra.mxu0 0.0
        %1062 = vmatpush.msra.mxu0 0.0
        %1063 = vmatpush.msra.mxu0 0.0
        %1064 = vmatpush.msra.mxu0 0.0
        %1065 = vmatpush.msra.mxu0 0.0
        %1066 = vmatpush.msra.mxu0 0.0
        %1067 = vmatpush.msra.mxu0 0.0
        %1068 = vmatpush.msra.mxu0 0.0
        %1069 = vmatpush.msra.mxu0 0.0
        %1070 = vmatpush.msra.mxu0 0.0
        %1071 = vmatpush.msra.mxu0 %v1058
        %1072 = vmatpush.msra.mxu0 %v1057
        %1073 = vmatpush.msra.mxu0 %v1056
        %1074 = vmatpush.msra.mxu0 %v1055
        %1075 = vmatmul.f32.gmra.mxu0 %v709
        %v1076 = vpop.f32.mrf.mxu0
        %v1077 = vadd.f32 0.0, %v1076
        %1078 = vdwg.mxu0
        %s1079 = scalar_lea.vmem %s4, 320
        %v1080 = vld [vmem:[%s1079] sm:$0xff]
        %v1081 = vld [vmem:[%s1079 + $0x8] sm:$0xff]
        %v1082 = vld [vmem:[%s1079 + $0x10] sm:$0xff]
        %v1083 = vld [vmem:[%s1079 + $0x18] sm:$0xff]
        %1084 = vmatpush.msra.mxu0 0.0
        %1085 = vmatpush.msra.mxu0 0.0
        %1086 = vmatpush.msra.mxu0 0.0
        %1087 = vmatpush.msra.mxu0 0.0
        %1088 = vmatpush.msra.mxu0 0.0
        %1089 = vmatpush.msra.mxu0 0.0
        %1090 = vmatpush.msra.mxu0 0.0
        %1091 = vmatpush.msra.mxu0 0.0
        %1092 = vmatpush.msra.mxu0 0.0
        %1093 = vmatpush.msra.mxu0 0.0
        %1094 = vmatpush.msra.mxu0 0.0
        %1095 = vmatpush.msra.mxu0 0.0
        %1096 = vmatpush.msra.mxu0 %v1083
        %1097 = vmatpush.msra.mxu0 %v1082
        %1098 = vmatpush.msra.mxu0 %v1081
        %1099 = vmatpush.msra.mxu0 %v1080
        %1100 = vmatmul.f32.gmra.mxu0 %v709
        %v1101 = vpop.f32.mrf.mxu0
        %v1102 = vadd.f32 0.0, %v1101
        %1103 = vdwg.mxu0
        %s1104 = scalar_lea.vmem %s1, 16
        %v1105 = vld [vmem:[%s1104] sm:$0xff]
        %v1107 = vsel %vm782, %v1052, 0
        %v1110 = vsel %vm782, %v1077, 0
        %1112 = vmatpush.xpose.msra.mxu0 0.0
        %1113 = vmatpush.xpose.msra.mxu0 0.0
        %1114 = vmatpush.xpose.msra.mxu0 0.0
        %1115 = vmatpush.xpose.msra.mxu0 0.0
        %1116 = vmatpush.xpose.msra.mxu0 0.0
        %1117 = vmatpush.xpose.msra.mxu0 0.0
        %1118 = vmatpush.xpose.msra.mxu0 0.0
        %1119 = vmatpush.xpose.msra.mxu0 0.0
        %1120 = vmatpush.xpose.msra.mxu0 0.0
        %1121 = vmatpush.xpose.msra.mxu0 0.0
        %1122 = vmatpush.xpose.msra.mxu0 0.0
        %1123 = vmatpush.xpose.msra.mxu0 0.0
        %1124 = vmatpush.xpose.msra.mxu0 0.0
        %1125 = vmatpush.xpose.msra.mxu0 0.0
        %1126 = vmatpush.xpose.msra.mxu0 0.0
        %1127 = vmatpush.xpose.msra.mxu0 %v1110
        %1128 = vmatmul.f32.gmra.mxu0 %v1107
        %v1129 = vpop.f32.mrf.mxu0
        %v1130 = vadd.f32 %v1105, %v1129
        %1131 = vdwg.mxu0
        %v1132 = vsel %vm782, %v1130, -inf
        %1133 = vmax.xlane.f32.xlu0 %v1132
        %v1134 = vpop.xlane.xlu0 %1133
        %v1135 = vsub.f32 %v1130, %v1134
        %v1136 = vmul.f32 %v1135, 1.442695
        %v1137 = vpow.pop %v1136
        %v1138 = vsel %vm782, %v1137, 0.0
        %1139 = vadd.xlane.f32.xlu0 %v1138
        %v1140 = vpop.xlane.xlu0 %1139
        %v1141 = vrcp.pop %v1140
        %v1142 = vmul.f32 %v1137, %v1141
        %v1144 = vsel %vm782, %v1142, 0
        %1146 = vmatpush.msra.mxu0 0.0
        %1147 = vmatpush.msra.mxu0 0.0
        %1148 = vmatpush.msra.mxu0 0.0
        %1149 = vmatpush.msra.mxu0 0.0
        %1150 = vmatpush.msra.mxu0 0.0
        %1151 = vmatpush.msra.mxu0 0.0
        %1152 = vmatpush.msra.mxu0 0.0
        %1153 = vmatpush.msra.mxu0 0.0
        %1154 = vmatpush.msra.mxu0 0.0
        %1155 = vmatpush.msra.mxu0 0.0
        %1156 = vmatpush.msra.mxu0 0.0
        %1157 = vmatpush.msra.mxu0 0.0
        %1158 = vmatpush.msra.mxu0 0.0
        %1159 = vmatpush.msra.mxu0 0.0
        %1160 = vmatpush.msra.mxu0 0.0
        %1161 = vmatpush.msra.mxu0 %v1102
        %1162 = vmatmul.f32.gmra.mxu0 %v1144
        %v1163 = vpop.f32.mrf.mxu0
        %v1164 = vadd.f32 0.0, %v1163
        %1165 = vdwg.mxu0
        %s1166 = scalar_lea.vmem %s5, 16
        %v1167 = vld [vmem:[%s1166] sm:$0xff]
        %v1169 = vsel %vm782, %v1164, 0
        %1171 = vmatpush.msra.mxu0 0.0
        %1172 = vmatpush.msra.mxu0 0.0
        %1173 = vmatpush.msra.mxu0 0.0
        %1174 = vmatpush.msra.mxu0 0.0
        %1175 = vmatpush.msra.mxu0 0.0
        %1176 = vmatpush.msra.mxu0 0.0
        %1177 = vmatpush.msra.mxu0 0.0
        %1178 = vmatpush.msra.mxu0 0.0
        %1179 = vmatpush.msra.mxu0 0.0
        %1180 = vmatpush.msra.mxu0 0.0
        %1181 = vmatpush.msra.mxu0 0.0
        %1182 = vmatpush.msra.mxu0 0.0
        %1183 = vmatpush.msra.mxu0 0.0
        %1184 = vmatpush.msra.mxu0 0.0
        %1185 = vmatpush.msra.mxu0 0.0
        %1186 = vmatpush.msra.mxu0 %v1167
        %1187 = vmatmul.f32.gmra.mxu0 %v1169
        %v1188 = vpop.f32.mrf.mxu0
        %v1189 = vadd.f32 0.0, %v1188
        %1190 = vdwg.mxu0
        %v1191 = vadd.f32 %v1027, %v1189
        %s1192 = scalar_lea.vmem %s4, 96
        %v1193 = vld [vmem:[%s1192] sm:$0xff]
        %v1194 = vld [vmem:[%s1192 + $0x8] sm:$0xff]
        %v1195 = vld [vmem:[%s1192 + $0x10] sm:$0xff]
        %v1196 = vld [vmem:[%s1192 + $0x18] sm:$0xff]
        %1197 = vmatpush.msra.mxu0 0.0
        %1198 = vmatpush.msra.mxu0 0.0
        %1199 = vmatpush.msra.mxu0 0.0
        %1200 = vmatpush.msra.mxu0 0.0
        %1201 = vmatpush.msra.mxu0 0.0
        %1202 = vmatpush.msra.mxu0 0.0
        %1203 = vmatpush.msra.mxu0 0.0
        %1204 = vmatpush.msra.mxu0 0.0
        %1205 = vmatpush.msra.mxu0 0.0
        %1206 = vmatpush.msra.mxu0 0.0
        %1207 = vmatpush.msra.mxu0 0.0
        %1208 = vmatpush.msra.mxu0 0.0
        %1209 = vmatpush.msra.mxu0 %v1196
        %1210 = vmatpush.msra.mxu0 %v1195
        %1211 = vmatpush.msra.mxu0 %v1194
        %1212 = vmatpush.msra.mxu0 %v1193
        %1213 = vmatmul.f32.gmra.mxu0 %v709
        %v1214 = vpop.f32.mrf.mxu0
        %v1215 = vadd.f32 0.0, %v1214
        %1216 = vdwg.mxu0
        %s1217 = scalar_lea.vmem %s4, 224
        %v1218 = vld [vmem:[%s1217] sm:$0xff]
        %v1219 = vld [vmem:[%s1217 + $0x8] sm:$0xff]
        %v1220 = vld [vmem:[%s1217 + $0x10] sm:$0xff]
        %v1221 = vld [vmem:[%s1217 + $0x18] sm:$0xff]
        %1222 = vmatpush.msra.mxu0 0.0
        %1223 = vmatpush.msra.mxu0 0.0
        %1224 = vmatpush.msra.mxu0 0.0
        %1225 = vmatpush.msra.mxu0 0.0
        %1226 = vmatpush.msra.mxu0 0.0
        %1227 = vmatpush.msra.mxu0 0.0
        %1228 = vmatpush.msra.mxu0 0.0
        %1229 = vmatpush.msra.mxu0 0.0
        %1230 = vmatpush.msra.mxu0 0.0
        %1231 = vmatpush.msra.mxu0 0.0
        %1232 = vmatpush.msra.mxu0 0.0
        %1233 = vmatpush.msra.mxu0 0.0
        %1234 = vmatpush.msra.mxu0 %v1221
        %1235 = vmatpush.msra.mxu0 %v1220
        %1236 = vmatpush.msra.mxu0 %v1219
        %1237 = vmatpush.msra.mxu0 %v1218
        %1238 = vmatmul.f32.gmra.mxu0 %v709
        %v1239 = vpop.f32.mrf.mxu0
        %v1240 = vadd.f32 0.0, %v1239
        %1241 = vdwg.mxu0
        %s1242 = scalar_lea.vmem %s4, 352
        %v1243 = vld [vmem:[%s1242] sm:$0xff]
        %v1244 = vld [vmem:[%s1242 + $0x8] sm:$0xff]
        %v1245 = vld [vmem:[%s1242 + $0x10] sm:$0xff]
        %v1246 = vld [vmem:[%s1242 + $0x18] sm:$0xff]
        %1247 = vmatpush.msra.mxu0 0.0
        %1248 = vmatpush.msra.mxu0 0.0
        %1249 = vmatpush.msra.mxu0 0.0
        %1250 = vmatpush.msra.mxu0 0.0
        %1251 = vmatpush.msra.mxu0 0.0
        %1252 = vmatpush.msra.mxu0 0.0
        %1253 = vmatpush.msra.mxu0 0.0
        %1254 = vmatpush.msra.mxu0 0.0
        %1255 = vmatpush.msra.mxu0 0.0
        %1256 = vmatpush.msra.mxu0 0.0
        %1257 = vmatpush.msra.mxu0 0.0
        %1258 = vmatpush.msra.mxu0 0.0
        %1259 = vmatpush.msra.mxu0 %v1246
        %1260 = vmatpush.msra.mxu0 %v1245
        %1261 = vmatpush.msra.mxu0 %v1244
        %1262 = vmatpush.msra.mxu0 %v1243
        %1263 = vmatmul.f32.gmra.mxu0 %v709
        %v1264 = vpop.f32.mrf.mxu0
        %v1265 = vadd.f32 0.0, %v1264
        %1266 = vdwg.mxu0
        %s1267 = scalar_lea.vmem %s1, 24
        %v1268 = vld [vmem:[%s1267] sm:$0xff]
        %v1270 = vsel %vm782, %v1215, 0
        %v1273 = vsel %vm782, %v1240, 0
        %1275 = vmatpush.xpose.msra.mxu0 0.0
        %1276 = vmatpush.xpose.msra.mxu0 0.0
        %1277 = vmatpush.xpose.msra.mxu0 0.0
        %1278 = vmatpush.xpose.msra.mxu0 0.0
        %1279 = vmatpush.xpose.msra.mxu0 0.0
        %1280 = vmatpush.xpose.msra.mxu0 0.0
        %1281 = vmatpush.xpose.msra.mxu0 0.0
        %1282 = vmatpush.xpose.msra.mxu0 0.0
        %1283 = vmatpush.xpose.msra.mxu0 0.0
        %1284 = vmatpush.xpose.msra.mxu0 0.0
        %1285 = vmatpush.xpose.msra.mxu0 0.0
        %1286 = vmatpush.xpose.msra.mxu0 0.0
        %1287 = vmatpush.xpose.msra.mxu0 0.0
        %1288 = vmatpush.xpose.msra.mxu0 0.0
        %1289 = vmatpush.xpose.msra.mxu0 0.0
        %1290 = vmatpush.xpose.msra.mxu0 %v1273
        %1291 = vmatmul.f32.gmra.mxu0 %v1270
        %v1292 = vpop.f32.mrf.mxu0
        %v1293 = vadd.f32 %v1268, %v1292
        %1294 = vdwg.mxu0
        %v1295 = vsel %vm782, %v1293, -inf
        %1296 = vmax.xlane.f32.xlu0 %v1295
        %v1297 = vpop.xlane.xlu0 %1296
        %v1298 = vsub.f32 %v1293, %v1297
        %v1299 = vmul.f32 %v1298, 1.442695
        %v1300 = vpow.pop %v1299
        %v1301 = vsel %vm782, %v1300, 0.0
        %1302 = vadd.xlane.f32.xlu0 %v1301
        %v1303 = vpop.xlane.xlu0 %1302
        %v1304 = vrcp.pop %v1303
        %v1305 = vmul.f32 %v1300, %v1304
        %v1307 = vsel %vm782, %v1305, 0
        %1309 = vmatpush.msra.mxu0 0.0
        %1310 = vmatpush.msra.mxu0 0.0
        %1311 = vmatpush.msra.mxu0 0.0
        %1312 = vmatpush.msra.mxu0 0.0
        %1313 = vmatpush.msra.mxu0 0.0
        %1314 = vmatpush.msra.mxu0 0.0
        %1315 = vmatpush.msra.mxu0 0.0
        %1316 = vmatpush.msra.mxu0 0.0
        %1317 = vmatpush.msra.mxu0 0.0
        %1318 = vmatpush.msra.mxu0 0.0
        %1319 = vmatpush.msra.mxu0 0.0
        %1320 = vmatpush.msra.mxu0 0.0
        %1321 = vmatpush.msra.mxu0 0.0
        %1322 = vmatpush.msra.mxu0 0.0
        %1323 = vmatpush.msra.mxu0 0.0
        %1324 = vmatpush.msra.mxu0 %v1265
        %1325 = vmatmul.f32.gmra.mxu0 %v1307
        %v1326 = vpop.f32.mrf.mxu0
        %v1327 = vadd.f32 0.0, %v1326
        %1328 = vdwg.mxu0
        %s1329 = scalar_lea.vmem %s5, 24
        %v1330 = vld [vmem:[%s1329] sm:$0xff]
        %v1332 = vsel %vm782, %v1327, 0
        %1334 = vmatpush.msra.mxu0 0.0
        %1335 = vmatpush.msra.mxu0 0.0
        %1336 = vmatpush.msra.mxu0 0.0
        %1337 = vmatpush.msra.mxu0 0.0
        %1338 = vmatpush.msra.mxu0 0.0
        %1339 = vmatpush.msra.mxu0 0.0
        %1340 = vmatpush.msra.mxu0 0.0
        %1341 = vmatpush.msra.mxu0 0.0
        %1342 = vmatpush.msra.mxu0 0.0
        %1343 = vmatpush.msra.mxu0 0.0
        %1344 = vmatpush.msra.mxu0 0.0
        %1345 = vmatpush.msra.mxu0 0.0
        %1346 = vmatpush.msra.mxu0 0.0
        %1347 = vmatpush.msra.mxu0 0.0
        %1348 = vmatpush.msra.mxu0 0.0
        %1349 = vmatpush.msra.mxu0 %v1330
        %1350 = vmatmul.f32.gmra.mxu0 %v1332
        %v1351 = vpop.f32.mrf.mxu0
        %v1352 = vadd.f32 0.0, %v1351
        %1353 = vdwg.mxu0
        %v1354 = vadd.f32 %v1191, %v1352
        %v1355 = vadd.f32 %v673, %v1354
        %s1356 = scalar_lea.vmem %s3, 1
        %v1357 = vld [vmem:[%s1356] sm:$0x1]
        %v1358 = vmul.f32 %v1355, %v1355
        %v1359 = vsel %vm676, %v1358, 0.0
        %1360 = vadd.xlane.f32.xlu0 %v1359
        %v1361 = vpop.xlane.xlu0 %1360
        %v1362 = vmul.f32 %v1361, %v686
        %v1363 = vadd.f32 %v1362, 1e-06
        %v1364 = vrsqrt.pop %v1363
        %v1365 = vmul.f32 %v1364, %v1363
        %v1366 = vmul.f32 %v1365, %v1364
        %v1367 = vmul.f32 0.5, %v1366
        %v1368 = vsub.f32 1.5, %v1367
        %v1369 = vmul.f32 %v1364, %v1368
        %vm1370 = vweird.f32 %v1363
        %vm1371 = vweird.f32 %v1364
        %vm1372 = vmor %vm1370, %vm1371
        %v1373 = vsel %vm1372, %v1364, %v1369
        %v1374 = vmul.f32 %v1355, %v1373
        %v1376 = vperm.slane %v1357, 0
        %v1378 = vmul.f32 %v1374, %v1376
        %v1379 = vld [vmem:[%s6] sm:$0xff]
        %v1380 = vld [vmem:[%s6 + $0x8] sm:$0xff]
        %v1381 = vld [vmem:[%s6 + $0x10] sm:$0xff]
        %v1382 = vld [vmem:[%s6 + $0x18] sm:$0xff]
        %v1383 = vld [vmem:[%s7] sm:$0xff]
        %v1384 = vld [vmem:[%s7 + $0x8] sm:$0xff]
        %v1385 = vld [vmem:[%s7 + $0x10] sm:$0xff]
        %v1386 = vld [vmem:[%s7 + $0x18] sm:$0xff]
        %v1387 = vld [vmem:[%s7 + $0x20] sm:$0xff]
        %v1388 = vld [vmem:[%s7 + $0x28] sm:$0xff]
        %v1389 = vld [vmem:[%s7 + $0x30] sm:$0xff]
        %v1390 = vld [vmem:[%s7 + $0x38] sm:$0xff]
        %v1392 = vsel %vm676, %v1378, 0
        %1394 = vmatpush.msra.mxu0 0.0
        %1395 = vmatpush.msra.mxu0 0.0
        %1396 = vmatpush.msra.mxu0 0.0
        %1397 = vmatpush.msra.mxu0 0.0
        %1398 = vmatpush.msra.mxu0 0.0
        %1399 = vmatpush.msra.mxu0 0.0
        %1400 = vmatpush.msra.mxu0 0.0
        %1401 = vmatpush.msra.mxu0 0.0
        %1402 = vmatpush.msra.mxu0 0.0
        %1403 = vmatpush.msra.mxu0 0.0
        %1404 = vmatpush.msra.mxu0 0.0
        %1405 = vmatpush.msra.mxu0 0.0
        %1406 = vmatpush.msra.mxu0 %v1382
        %1407 = vmatpush.msra.mxu0 %v1381
        %1408 = vmatpush.msra.mxu0 %v1380
        %1409 = vmatpush.msra.mxu0 %v1379
        %1410 = vmatmul.f32.gmra.mxu0 %v1392
        %v1411 = vpop.f32.mrf.mxu0
        %v1412 = vadd.f32 0.0, %v1411
        %1413 = vdwg.mxu0
        %v1414 = vmax.f32 %v1412, 0.0
        %vm1415 = vcmask 523264
        %v1417 = vsel %vm1415, %v1414, 0
        %1419 = vmatpush.msra.mxu0 0.0
        %1420 = vmatpush.msra.mxu0 0.0
        %1421 = vmatpush.msra.mxu0 0.0
        %1422 = vmatpush.msra.mxu0 0.0
        %1423 = vmatpush.msra.mxu0 0.0
        %1424 = vmatpush.msra.mxu0 0.0
        %1425 = vmatpush.msra.mxu0 0.0
        %1426 = vmatpush.msra.mxu0 0.0
        %1427 = vmatpush.msra.mxu0 %v1390
        %1428 = vmatpush.msra.mxu0 %v1389
        %1429 = vmatpush.msra.mxu0 %v1388
        %1430 = vmatpush.msra.mxu0 %v1387
        %1431 = vmatpush.msra.mxu0 %v1386
        %1432 = vmatpush.msra.mxu0 %v1385
        %1433 = vmatpush.msra.mxu0 %v1384
        %1434 = vmatpush.msra.mxu0 %v1383
        %1435 = vmatmul.f32.gmra.mxu0 %v1417
        %v1436 = vpop.f32.mrf.mxu0
        %v1437 = vadd.f32 0.0, %v1436
        %1438 = vdwg.mxu0
        %v1439 = vadd.f32 %v1355, %v1437
        %s1440 = scalar_lea.vmem %s3, 2
        %v1441 = vld [vmem:[%s1440] sm:$0x1]
        %v1442 = vmul.f32 %v1439, %v1439
        %v1443 = vsel %vm676, %v1442, 0.0
        %1444 = vadd.xlane.f32.xlu0 %v1443
        %v1445 = vpop.xlane.xlu0 %1444
        %v1446 = vmul.f32 %v1445, %v686
        %v1447 = vadd.f32 %v1446, 1e-06
        %v1448 = vrsqrt.pop %v1447
        %v1449 = vmul.f32 %v1448, %v1447
        %v1450 = vmul.f32 %v1449, %v1448
        %v1451 = vmul.f32 0.5, %v1450
        %v1452 = vsub.f32 1.5, %v1451
        %v1453 = vmul.f32 %v1448, %v1452
        %vm1454 = vweird.f32 %v1447
        %vm1455 = vweird.f32 %v1448
        %vm1456 = vmor %vm1454, %vm1455
        %v1457 = vsel %vm1456, %v1448, %v1453
        %v1458 = vmul.f32 %v1439, %v1457
        %v1460 = vperm.slane %v1441, 0
        %v1462 = vmul.f32 %v1458, %v1460
        %s1463 = scalar_lea.vmem %s4, 384
        %v1464 = vld [vmem:[%s1463] sm:$0xff]
        %v1465 = vld [vmem:[%s1463 + $0x8] sm:$0xff]
        %v1466 = vld [vmem:[%s1463 + $0x10] sm:$0xff]
        %v1467 = vld [vmem:[%s1463 + $0x18] sm:$0xff]
        %v1469 = vsel %vm676, %v1462, 0
        %1471 = vmatpush.msra.mxu0 0.0
        %1472 = vmatpush.msra.mxu0 0.0
        %1473 = vmatpush.msra.mxu0 0.0
        %1474 = vmatpush.msra.mxu0 0.0
        %1475 = vmatpush.msra.mxu0 0.0
        %1476 = vmatpush.msra.mxu0 0.0
        %1477 = vmatpush.msra.mxu0 0.0
        %1478 = vmatpush.msra.mxu0 0.0
        %1479 = vmatpush.msra.mxu0 0.0
        %1480 = vmatpush.msra.mxu0 0.0
        %1481 = vmatpush.msra.mxu0 0.0
        %1482 = vmatpush.msra.mxu0 0.0
        %1483 = vmatpush.msra.mxu0 %v1467
        %1484 = vmatpush.msra.mxu0 %v1466
        %1485 = vmatpush.msra.mxu0 %v1465
        %1486 = vmatpush.msra.mxu0 %v1464
        %1487 = vmatmul.f32.gmra.mxu0 %v1469
        %v1488 = vpop.f32.mrf.mxu0
        %v1489 = vadd.f32 0.0, %v1488
        %1490 = vdwg.mxu0
        %s1491 = scalar_lea.vmem %s4, 512
        %v1492 = vld [vmem:[%s1491] sm:$0xff]
        %v1493 = vld [vmem:[%s1491 + $0x8] sm:$0xff]
        %v1494 = vld [vmem:[%s1491 + $0x10] sm:$0xff]
        %v1495 = vld [vmem:[%s1491 + $0x18] sm:$0xff]
        %1496 = vmatpush.msra.mxu0 0.0
        %1497 = vmatpush.msra.mxu0 0.0
        %1498 = vmatpush.msra.mxu0 0.0
        %1499 = vmatpush.msra.mxu0 0.0
        %1500 = vmatpush.msra.mxu0 0.0
        %1501 = vmatpush.msra.mxu0 0.0
        %1502 = vmatpush.msra.mxu0 0.0
        %1503 = vmatpush.msra.mxu0 0.0
        %1504 = vmatpush.msra.mxu0 0.0
        %1505 = vmatpush.msra.mxu0 0.0
        %1506 = vmatpush.msra.mxu0 0.0
        %1507 = vmatpush.msra.mxu0 0.0
        %1508 = vmatpush.msra.mxu0 %v1495
        %1509 = vmatpush.msra.mxu0 %v1494
        %1510 = vmatpush.msra.mxu0 %v1493
        %1511 = vmatpush.msra.mxu0 %v1492
        %1512 = vmatmul.f32.gmra.mxu0 %v1469
        %v1513 = vpop.f32.mrf.mxu0
        %v1514 = vadd.f32 0.0, %v1513
        %1515 = vdwg.mxu0
        %s1516 = scalar_lea.vmem %s4, 640
        %v1517 = vld [vmem:[%s1516] sm:$0xff]
        %v1518 = vld [vmem:[%s1516 + $0x8] sm:$0xff]
        %v1519 = vld [vmem:[%s1516 + $0x10] sm:$0xff]
        %v1520 = vld [vmem:[%s1516 + $0x18] sm:$0xff]
        %1521 = vmatpush.msra.mxu0 0.0
        %1522 = vmatpush.msra.mxu0 0.0
        %1523 = vmatpush.msra.mxu0 0.0
        %1524 = vmatpush.msra.mxu0 0.0
        %1525 = vmatpush.msra.mxu0 0.0
        %1526 = vmatpush.msra.mxu0 0.0
        %1527 = vmatpush.msra.mxu0 0.0
        %1528 = vmatpush.msra.mxu0 0.0
        %1529 = vmatpush.msra.mxu0 0.0
        %1530 = vmatpush.msra.mxu0 0.0
        %1531 = vmatpush.msra.mxu0 0.0
        %1532 = vmatpush.msra.mxu0 0.0
        %1533 = vmatpush.msra.mxu0 %v1520
        %1534 = vmatpush.msra.mxu0 %v1519
        %1535 = vmatpush.msra.mxu0 %v1518
        %1536 = vmatpush.msra.mxu0 %v1517
        %1537 = vmatmul.f32.gmra.mxu0 %v1469
        %v1538 = vpop.f32.mrf.mxu0
        %v1539 = vadd.f32 0.0, %v1538
        %1540 = vdwg.mxu0
        %v1542 = vsel %vm782, %v1489, 0
        %v1545 = vsel %vm782, %v1514, 0
        %1547 = vmatpush.xpose.msra.mxu0 0.0
        %1548 = vmatpush.xpose.msra.mxu0 0.0
        %1549 = vmatpush.xpose.msra.mxu0 0.0
        %1550 = vmatpush.xpose.msra.mxu0 0.0
        %1551 = vmatpush.xpose.msra.mxu0 0.0
        %1552 = vmatpush.xpose.msra.mxu0 0.0
        %1553 = vmatpush.xpose.msra.mxu0 0.0
        %1554 = vmatpush.xpose.msra.mxu0 0.0
        %1555 = vmatpush.xpose.msra.mxu0 0.0
        %1556 = vmatpush.xpose.msra.mxu0 0.0
        %1557 = vmatpush.xpose.msra.mxu0 0.0
        %1558 = vmatpush.xpose.msra.mxu0 0.0
        %1559 = vmatpush.xpose.msra.mxu0 0.0
        %1560 = vmatpush.xpose.msra.mxu0 0.0
        %1561 = vmatpush.xpose.msra.mxu0 0.0
        %1562 = vmatpush.xpose.msra.mxu0 %v1545
        %1563 = vmatmul.f32.gmra.mxu0 %v1542
        %v1564 = vpop.f32.mrf.mxu0
        %v1565 = vadd.f32 %v781, %v1564
        %1566 = vdwg.mxu0
        %v1567 = vsel %vm782, %v1565, -inf
        %1568 = vmax.xlane.f32.xlu0 %v1567
        %v1569 = vpop.xlane.xlu0 %1568
        %v1570 = vsub.f32 %v1565, %v1569
        %v1571 = vmul.f32 %v1570, 1.442695
        %v1572 = vpow.pop %v1571
        %v1573 = vsel %vm782, %v1572, 0.0
        %1574 = vadd.xlane.f32.xlu0 %v1573
        %v1575 = vpop.xlane.xlu0 %1574
        %v1576 = vrcp.pop %v1575
        %v1577 = vmul.f32 %v1572, %v1576
        %v1579 = vsel %vm782, %v1577, 0
        %1581 = vmatpush.msra.mxu0 0.0
        %1582 = vmatpush.msra.mxu0 0.0
        %1583 = vmatpush.msra.mxu0 0.0
        %1584 = vmatpush.msra.mxu0 0.0
        %1585 = vmatpush.msra.mxu0 0.0
        %1586 = vmatpush.msra.mxu0 0.0
        %1587 = vmatpush.msra.mxu0 0.0
        %1588 = vmatpush.msra.mxu0 0.0
        %1589 = vmatpush.msra.mxu0 0.0
        %1590 = vmatpush.msra.mxu0 0.0
        %1591 = vmatpush.msra.mxu0 0.0
        %1592 = vmatpush.msra.mxu0 0.0
        %1593 = vmatpush.msra.mxu0 0.0
        %1594 = vmatpush.msra.mxu0 0.0
        %1595 = vmatpush.msra.mxu0 0.0
        %1596 = vmatpush.msra.mxu0 %v1539
        %1597 = vmatmul.f32.gmra.mxu0 %v1579
        %v1598 = vpop.f32.mrf.mxu0
        %v1599 = vadd.f32 0.0, %v1598
        %1600 = vdwg.mxu0
        %s1601 = scalar_lea.vmem %s5, 32
        %v1602 = vld [vmem:[%s1601] sm:$0xff]
        %s1603 = scalar_lea.vmem %s4, 416
        %v1604 = vld [vmem:[%s1603] sm:$0xff]
        %v1605 = vld [vmem:[%s1603 + $0x8] sm:$0xff]
        %v1606 = vld [vmem:[%s1603 + $0x10] sm:$0xff]
        %v1607 = vld [vmem:[%s1603 + $0x18] sm:$0xff]
        %1608 = vmatpush.msra.mxu0 0.0
        %1609 = vmatpush.msra.mxu0 0.0
        %1610 = vmatpush.msra.mxu0 0.0
        %1611 = vmatpush.msra.mxu0 0.0
        %1612 = vmatpush.msra.mxu0 0.0
        %1613 = vmatpush.msra.mxu0 0.0
        %1614 = vmatpush.msra.mxu0 0.0
        %1615 = vmatpush.msra.mxu0 0.0
        %1616 = vmatpush.msra.mxu0 0.0
        %1617 = vmatpush.msra.mxu0 0.0
        %1618 = vmatpush.msra.mxu0 0.0
        %1619 = vmatpush.msra.mxu0 0.0
        %1620 = vmatpush.msra.mxu0 %v1607
        %1621 = vmatpush.msra.mxu0 %v1606
        %1622 = vmatpush.msra.mxu0 %v1605
        %1623 = vmatpush.msra.mxu0 %v1604
        %1624 = vmatmul.f32.gmra.mxu0 %v1469
        %v1625 = vpop.f32.mrf.mxu0
        %v1626 = vadd.f32 0.0, %v1625
        %1627 = vdwg.mxu0
        %s1628 = scalar_lea.vmem %s4, 544
        %v1629 = vld [vmem:[%s1628] sm:$0xff]
        %v1630 = vld [vmem:[%s1628 + $0x8] sm:$0xff]
        %v1631 = vld [vmem:[%s1628 + $0x10] sm:$0xff]
        %v1632 = vld [vmem:[%s1628 + $0x18] sm:$0xff]
        %1633 = vmatpush.msra.mxu0 0.0
        %1634 = vmatpush.msra.mxu0 0.0
        %1635 = vmatpush.msra.mxu0 0.0
        %1636 = vmatpush.msra.mxu0 0.0
        %1637 = vmatpush.msra.mxu0 0.0
        %1638 = vmatpush.msra.mxu0 0.0
        %1639 = vmatpush.msra.mxu0 0.0
        %1640 = vmatpush.msra.mxu0 0.0
        %1641 = vmatpush.msra.mxu0 0.0
        %1642 = vmatpush.msra.mxu0 0.0
        %1643 = vmatpush.msra.mxu0 0.0
        %1644 = vmatpush.msra.mxu0 0.0
        %1645 = vmatpush.msra.mxu0 %v1632
        %1646 = vmatpush.msra.mxu0 %v1631
        %1647 = vmatpush.msra.mxu0 %v1630
        %1648 = vmatpush.msra.mxu0 %v1629
        %1649 = vmatmul.f32.gmra.mxu0 %v1469
        %v1650 = vpop.f32.mrf.mxu0
        %v1651 = vadd.f32 0.0, %v1650
        %1652 = vdwg.mxu0
        %s1653 = scalar_lea.vmem %s4, 672
        %v1654 = vld [vmem:[%s1653] sm:$0xff]
        %v1655 = vld [vmem:[%s1653 + $0x8] sm:$0xff]
        %v1656 = vld [vmem:[%s1653 + $0x10] sm:$0xff]
        %v1657 = vld [vmem:[%s1653 + $0x18] sm:$0xff]
        %1658 = vmatpush.msra.mxu0 0.0
        %1659 = vmatpush.msra.mxu0 0.0
        %1660 = vmatpush.msra.mxu0 0.0
        %1661 = vmatpush.msra.mxu0 0.0
        %1662 = vmatpush.msra.mxu0 0.0
        %1663 = vmatpush.msra.mxu0 0.0
        %1664 = vmatpush.msra.mxu0 0.0
        %1665 = vmatpush.msra.mxu0 0.0
        %1666 = vmatpush.msra.mxu0 0.0
        %1667 = vmatpush.msra.mxu0 0.0
        %1668 = vmatpush.msra.mxu0 0.0
        %1669 = vmatpush.msra.mxu0 0.0
        %1670 = vmatpush.msra.mxu0 %v1657
        %1671 = vmatpush.msra.mxu0 %v1656
        %1672 = vmatpush.msra.mxu0 %v1655
        %1673 = vmatpush.msra.mxu0 %v1654
        %1674 = vmatmul.f32.gmra.mxu0 %v1469
        %v1675 = vpop.f32.mrf.mxu0
        %v1676 = vadd.f32 0.0, %v1675
        %1677 = vdwg.mxu0
        %v1679 = vsel %vm782, %v1626, 0
        %v1682 = vsel %vm782, %v1651, 0
        %1684 = vmatpush.xpose.msra.mxu0 0.0
        %1685 = vmatpush.xpose.msra.mxu0 0.0
        %1686 = vmatpush.xpose.msra.mxu0 0.0
        %1687 = vmatpush.xpose.msra.mxu0 0.0
        %1688 = vmatpush.xpose.msra.mxu0 0.0
        %1689 = vmatpush.xpose.msra.mxu0 0.0
        %1690 = vmatpush.xpose.msra.mxu0 0.0
        %1691 = vmatpush.xpose.msra.mxu0 0.0
        %1692 = vmatpush.xpose.msra.mxu0 0.0
        %1693 = vmatpush.xpose.msra.mxu0 0.0
        %1694 = vmatpush.xpose.msra.mxu0 0.0
        %1695 = vmatpush.xpose.msra.mxu0 0.0
        %1696 = vmatpush.xpose.msra.mxu0 0.0
        %1697 = vmatpush.xpose.msra.mxu0 0.0
        %1698 = vmatpush.xpose.msra.mxu0 0.0
        %1699 = vmatpush.xpose.msra.mxu0 %v1682
        %1700 = vmatmul.f32.gmra.mxu0 %v1679
        %v1701 = vpop.f32.mrf.mxu0
        %v1702 = vadd.f32 %v920, %v1701
        %1703 = vdwg.mxu0
        %v1704 = vsel %vm782, %v1702, -inf
        %1705 = vmax.xlane.f32.xlu0 %v1704
        %v1706 = vpop.xlane.xlu0 %1705
        %v1707 = vsub.f32 %v1702, %v1706
        %v1708 = vmul.f32 %v1707, 1.442695
        %v1709 = vpow.pop %v1708
        %v1710 = vsel %vm782, %v1709, 0.0
        %1711 = vadd.xlane.f32.xlu0 %v1710
        %v1712 = vpop.xlane.xlu0 %1711
        %v1713 = vrcp.pop %v1712
        %v1714 = vmul.f32 %v1709, %v1713
        %v1716 = vsel %vm782, %v1714, 0
        %1718 = vmatpush.msra.mxu0 0.0
        %1719 = vmatpush.msra.mxu0 0.0
        %1720 = vmatpush.msra.mxu0 0.0
        %1721 = vmatpush.msra.mxu0 0.0
        %1722 = vmatpush.msra.mxu0 0.0
        %1723 = vmatpush.msra.mxu0 0.0
        %1724 = vmatpush.msra.mxu0 0.0
        %1725 = vmatpush.msra.mxu0 0.0
        %1726 = vmatpush.msra.mxu0 0.0
        %1727 = vmatpush.msra.mxu0 0.0
        %1728 = vmatpush.msra.mxu0 0.0
        %1729 = vmatpush.msra.mxu0 0.0
        %1730 = vmatpush.msra.mxu0 0.0
        %1731 = vmatpush.msra.mxu0 0.0
        %1732 = vmatpush.msra.mxu0 0.0
        %1733 = vmatpush.msra.mxu0 %v1676
        %1734 = vmatmul.f32.gmra.mxu0 %v1716
        %v1735 = vpop.f32.mrf.mxu0
        %v1736 = vadd.f32 0.0, %v1735
        %1737 = vdwg.mxu0
        %s1738 = scalar_lea.vmem %s5, 40
        %v1739 = vld [vmem:[%s1738] sm:$0xff]
        %v1741 = vsel %vm782, %v1736, 0
        %1743 = vmatpush.msra.mxu0 0.0
        %1744 = vmatpush.msra.mxu0 0.0
        %1745 = vmatpush.msra.mxu0 0.0
        %1746 = vmatpush.msra.mxu0 0.0
        %1747 = vmatpush.msra.mxu0 0.0
        %1748 = vmatpush.msra.mxu0 0.0
        %1749 = vmatpush.msra.mxu0 0.0
        %1750 = vmatpush.msra.mxu0 0.0
        %1751 = vmatpush.msra.mxu0 0.0
        %1752 = vmatpush.msra.mxu0 0.0
        %1753 = vmatpush.msra.mxu0 0.0
        %1754 = vmatpush.msra.mxu0 0.0
        %1755 = vmatpush.msra.mxu0 0.0
        %1756 = vmatpush.msra.mxu0 0.0
        %1757 = vmatpush.msra.mxu0 0.0
        %1758 = vmatpush.msra.mxu0 %v1739
        %1759 = vmatmul.f32.gmra.mxu0 %v1741
        %v1760 = vpop.f32.mrf.mxu0
        %v1761 = vadd.f32 0.0, %v1760
        %1762 = vdwg.mxu0
        %v1764 = vsel %vm782, %v1599, 0
        %1766 = vmatpush.msra.mxu0 0.0
        %1767 = vmatpush.msra.mxu0 0.0
        %1768 = vmatpush.msra.mxu0 0.0
        %1769 = vmatpush.msra.mxu0 0.0
        %1770 = vmatpush.msra.mxu0 0.0
        %1771 = vmatpush.msra.mxu0 0.0
        %1772 = vmatpush.msra.mxu0 0.0
        %1773 = vmatpush.msra.mxu0 0.0
        %1774 = vmatpush.msra.mxu0 0.0
        %1775 = vmatpush.msra.mxu0 0.0
        %1776 = vmatpush.msra.mxu0 0.0
        %1777 = vmatpush.msra.mxu0 0.0
        %1778 = vmatpush.msra.mxu0 0.0
        %1779 = vmatpush.msra.mxu0 0.0
        %1780 = vmatpush.msra.mxu0 0.0
        %1781 = vmatpush.msra.mxu0 %v1602
        %1782 = vmatmul.f32.gmra.mxu0 %v1764
        %v1783 = vpop.f32.mrf.mxu0
        %v1784 = vadd.f32 %v1761, %v1783
        %1785 = vdwg.mxu0
        %s1786 = scalar_lea.vmem %s4, 448
        %v1787 = vld [vmem:[%s1786] sm:$0xff]
        %v1788 = vld [vmem:[%s1786 + $0x8] sm:$0xff]
        %v1789 = vld [vmem:[%s1786 + $0x10] sm:$0xff]
        %v1790 = vld [vmem:[%s1786 + $0x18] sm:$0xff]
        %1791 = vmatpush.msra.mxu0 0.0
        %1792 = vmatpush.msra.mxu0 0.0
        %1793 = vmatpush.msra.mxu0 0.0
        %1794 = vmatpush.msra.mxu0 0.0
        %1795 = vmatpush.msra.mxu0 0.0
        %1796 = vmatpush.msra.mxu0 0.0
        %1797 = vmatpush.msra.mxu0 0.0
        %1798 = vmatpush.msra.mxu0 0.0
        %1799 = vmatpush.msra.mxu0 0.0
        %1800 = vmatpush.msra.mxu0 0.0
        %1801 = vmatpush.msra.mxu0 0.0
        %1802 = vmatpush.msra.mxu0 0.0
        %1803 = vmatpush.msra.mxu0 %v1790
        %1804 = vmatpush.msra.mxu0 %v1789
        %1805 = vmatpush.msra.mxu0 %v1788
        %1806 = vmatpush.msra.mxu0 %v1787
        %1807 = vmatmul.f32.gmra.mxu0 %v1469
        %v1808 = vpop.f32.mrf.mxu0
        %v1809 = vadd.f32 0.0, %v1808
        %1810 = vdwg.mxu0
        %s1811 = scalar_lea.vmem %s4, 576
        %v1812 = vld [vmem:[%s1811] sm:$0xff]
        %v1813 = vld [vmem:[%s1811 + $0x8] sm:$0xff]
        %v1814 = vld [vmem:[%s1811 + $0x10] sm:$0xff]
        %v1815 = vld [vmem:[%s1811 + $0x18] sm:$0xff]
        %1816 = vmatpush.msra.mxu0 0.0
        %1817 = vmatpush.msra.mxu0 0.0
        %1818 = vmatpush.msra.mxu0 0.0
        %1819 = vmatpush.msra.mxu0 0.0
        %1820 = vmatpush.msra.mxu0 0.0
        %1821 = vmatpush.msra.mxu0 0.0
        %1822 = vmatpush.msra.mxu0 0.0
        %1823 = vmatpush.msra.mxu0 0.0
        %1824 = vmatpush.msra.mxu0 0.0
        %1825 = vmatpush.msra.mxu0 0.0
        %1826 = vmatpush.msra.mxu0 0.0
        %1827 = vmatpush.msra.mxu0 0.0
        %1828 = vmatpush.msra.mxu0 %v1815
        %1829 = vmatpush.msra.mxu0 %v1814
        %1830 = vmatpush.msra.mxu0 %v1813
        %1831 = vmatpush.msra.mxu0 %v1812
        %1832 = vmatmul.f32.gmra.mxu0 %v1469
        %v1833 = vpop.f32.mrf.mxu0
        %v1834 = vadd.f32 0.0, %v1833
        %1835 = vdwg.mxu0
        %s1836 = scalar_lea.vmem %s4, 704
        %v1837 = vld [vmem:[%s1836] sm:$0xff]
        %v1838 = vld [vmem:[%s1836 + $0x8] sm:$0xff]
        %v1839 = vld [vmem:[%s1836 + $0x10] sm:$0xff]
        %v1840 = vld [vmem:[%s1836 + $0x18] sm:$0xff]
        %1841 = vmatpush.msra.mxu0 0.0
        %1842 = vmatpush.msra.mxu0 0.0
        %1843 = vmatpush.msra.mxu0 0.0
        %1844 = vmatpush.msra.mxu0 0.0
        %1845 = vmatpush.msra.mxu0 0.0
        %1846 = vmatpush.msra.mxu0 0.0
        %1847 = vmatpush.msra.mxu0 0.0
        %1848 = vmatpush.msra.mxu0 0.0
        %1849 = vmatpush.msra.mxu0 0.0
        %1850 = vmatpush.msra.mxu0 0.0
        %1851 = vmatpush.msra.mxu0 0.0
        %1852 = vmatpush.msra.mxu0 0.0
        %1853 = vmatpush.msra.mxu0 %v1840
        %1854 = vmatpush.msra.mxu0 %v1839
        %1855 = vmatpush.msra.mxu0 %v1838
        %1856 = vmatpush.msra.mxu0 %v1837
        %1857 = vmatmul.f32.gmra.mxu0 %v1469
        %v1858 = vpop.f32.mrf.mxu0
        %v1859 = vadd.f32 0.0, %v1858
        %1860 = vdwg.mxu0
        %v1862 = vsel %vm782, %v1809, 0
        %v1865 = vsel %vm782, %v1834, 0
        %1867 = vmatpush.xpose.msra.mxu0 0.0
        %1868 = vmatpush.xpose.msra.mxu0 0.0
        %1869 = vmatpush.xpose.msra.mxu0 0.0
        %1870 = vmatpush.xpose.msra.mxu0 0.0
        %1871 = vmatpush.xpose.msra.mxu0 0.0
        %1872 = vmatpush.xpose.msra.mxu0 0.0
        %1873 = vmatpush.xpose.msra.mxu0 0.0
        %1874 = vmatpush.xpose.msra.mxu0 0.0
        %1875 = vmatpush.xpose.msra.mxu0 0.0
        %1876 = vmatpush.xpose.msra.mxu0 0.0
        %1877 = vmatpush.xpose.msra.mxu0 0.0
        %1878 = vmatpush.xpose.msra.mxu0 0.0
        %1879 = vmatpush.xpose.msra.mxu0 0.0
        %1880 = vmatpush.xpose.msra.mxu0 0.0
        %1881 = vmatpush.xpose.msra.mxu0 0.0
        %1882 = vmatpush.xpose.msra.mxu0 %v1865
        %1883 = vmatmul.f32.gmra.mxu0 %v1862
        %v1884 = vpop.f32.mrf.mxu0
        %v1885 = vadd.f32 %v1105, %v1884
        %1886 = vdwg.mxu0
        %v1887 = vsel %vm782, %v1885, -inf
        %1888 = vmax.xlane.f32.xlu0 %v1887
        %v1889 = vpop.xlane.xlu0 %1888
        %v1890 = vsub.f32 %v1885, %v1889
        %v1891 = vmul.f32 %v1890, 1.442695
        %v1892 = vpow.pop %v1891
        %v1893 = vsel %vm782, %v1892, 0.0
        %1894 = vadd.xlane.f32.xlu0 %v1893
        %v1895 = vpop.xlane.xlu0 %1894
        %v1896 = vrcp.pop %v1895
        %v1897 = vmul.f32 %v1892, %v1896
        %v1899 = vsel %vm782, %v1897, 0
        %1901 = vmatpush.msra.mxu0 0.0
        %1902 = vmatpush.msra.mxu0 0.0
        %1903 = vmatpush.msra.mxu0 0.0
        %1904 = vmatpush.msra.mxu0 0.0
        %1905 = vmatpush.msra.mxu0 0.0
        %1906 = vmatpush.msra.mxu0 0.0
        %1907 = vmatpush.msra.mxu0 0.0
        %1908 = vmatpush.msra.mxu0 0.0
        %1909 = vmatpush.msra.mxu0 0.0
        %1910 = vmatpush.msra.mxu0 0.0
        %1911 = vmatpush.msra.mxu0 0.0
        %1912 = vmatpush.msra.mxu0 0.0
        %1913 = vmatpush.msra.mxu0 0.0
        %1914 = vmatpush.msra.mxu0 0.0
        %1915 = vmatpush.msra.mxu0 0.0
        %1916 = vmatpush.msra.mxu0 %v1859
        %1917 = vmatmul.f32.gmra.mxu0 %v1899
        %v1918 = vpop.f32.mrf.mxu0
        %v1919 = vadd.f32 0.0, %v1918
        %1920 = vdwg.mxu0
        %s1921 = scalar_lea.vmem %s5, 48
        %v1922 = vld [vmem:[%s1921] sm:$0xff]
        %v1924 = vsel %vm782, %v1919, 0
        %1926 = vmatpush.msra.mxu0 0.0
        %1927 = vmatpush.msra.mxu0 0.0
        %1928 = vmatpush.msra.mxu0 0.0
        %1929 = vmatpush.msra.mxu0 0.0
        %1930 = vmatpush.msra.mxu0 0.0
        %1931 = vmatpush.msra.mxu0 0.0
        %1932 = vmatpush.msra.mxu0 0.0
        %1933 = vmatpush.msra.mxu0 0.0
        %1934 = vmatpush.msra.mxu0 0.0
        %1935 = vmatpush.msra.mxu0 0.0
        %1936 = vmatpush.msra.mxu0 0.0
        %1937 = vmatpush.msra.mxu0 0.0
        %1938 = vmatpush.msra.mxu0 0.0
        %1939 = vmatpush.msra.mxu0 0.0
        %1940 = vmatpush.msra.mxu0 0.0
        %1941 = vmatpush.msra.mxu0 %v1922
        %1942 = vmatmul.f32.gmra.mxu0 %v1924
        %v1943 = vpop.f32.mrf.mxu0
        %v1944 = vadd.f32 0.0, %v1943
        %1945 = vdwg.mxu0
        %v1946 = vadd.f32 %v1784, %v1944
        %s1947 = scalar_lea.vmem %s4, 480
        %v1948 = vld [vmem:[%s1947] sm:$0xff]
        %v1949 = vld [vmem:[%s1947 + $0x8] sm:$0xff]
        %v1950 = vld [vmem:[%s1947 + $0x10] sm:$0xff]
        %v1951 = vld [vmem:[%s1947 + $0x18] sm:$0xff]
        %1952 = vmatpush.msra.mxu0 0.0
        %1953 = vmatpush.msra.mxu0 0.0
        %1954 = vmatpush.msra.mxu0 0.0
        %1955 = vmatpush.msra.mxu0 0.0
        %1956 = vmatpush.msra.mxu0 0.0
        %1957 = vmatpush.msra.mxu0 0.0
        %1958 = vmatpush.msra.mxu0 0.0
        %1959 = vmatpush.msra.mxu0 0.0
        %1960 = vmatpush.msra.mxu0 0.0
        %1961 = vmatpush.msra.mxu0 0.0
        %1962 = vmatpush.msra.mxu0 0.0
        %1963 = vmatpush.msra.mxu0 0.0
        %1964 = vmatpush.msra.mxu0 %v1951
        %1965 = vmatpush.msra.mxu0 %v1950
        %1966 = vmatpush.msra.mxu0 %v1949
        %1967 = vmatpush.msra.mxu0 %v1948
        %1968 = vmatmul.f32.gmra.mxu0 %v1469
        %v1969 = vpop.f32.mrf.mxu0
        %v1970 = vadd.f32 0.0, %v1969
        %1971 = vdwg.mxu0
        %s1972 = scalar_lea.vmem %s4, 608
        %v1973 = vld [vmem:[%s1972] sm:$0xff]
        %v1974 = vld [vmem:[%s1972 + $0x8] sm:$0xff]
        %v1975 = vld [vmem:[%s1972 + $0x10] sm:$0xff]
        %v1976 = vld [vmem:[%s1972 + $0x18] sm:$0xff]
        %1977 = vmatpush.msra.mxu0 0.0
        %1978 = vmatpush.msra.mxu0 0.0
        %1979 = vmatpush.msra.mxu0 0.0
        %1980 = vmatpush.msra.mxu0 0.0
        %1981 = vmatpush.msra.mxu0 0.0
        %1982 = vmatpush.msra.mxu0 0.0
        %1983 = vmatpush.msra.mxu0 0.0
        %1984 = vmatpush.msra.mxu0 0.0
        %1985 = vmatpush.msra.mxu0 0.0
        %1986 = vmatpush.msra.mxu0 0.0
        %1987 = vmatpush.msra.mxu0 0.0
        %1988 = vmatpush.msra.mxu0 0.0
        %1989 = vmatpush.msra.mxu0 %v1976
        %1990 = vmatpush.msra.mxu0 %v1975
        %1991 = vmatpush.msra.mxu0 %v1974
        %1992 = vmatpush.msra.mxu0 %v1973
        %1993 = vmatmul.f32.gmra.mxu0 %v1469
        %v1994 = vpop.f32.mrf.mxu0
        %v1995 = vadd.f32 0.0, %v1994
        %1996 = vdwg.mxu0
        %s1997 = scalar_lea.vmem %s4, 736
        %v1998 = vld [vmem:[%s1997] sm:$0xff]
        %v1999 = vld [vmem:[%s1997 + $0x8] sm:$0xff]
        %v2000 = vld [vmem:[%s1997 + $0x10] sm:$0xff]
        %v2001 = vld [vmem:[%s1997 + $0x18] sm:$0xff]
        %2002 = vmatpush.msra.mxu0 0.0
        %2003 = vmatpush.msra.mxu0 0.0
        %2004 = vmatpush.msra.mxu0 0.0
        %2005 = vmatpush.msra.mxu0 0.0
        %2006 = vmatpush.msra.mxu0 0.0
        %2007 = vmatpush.msra.mxu0 0.0
        %2008 = vmatpush.msra.mxu0 0.0
        %2009 = vmatpush.msra.mxu0 0.0
        %2010 = vmatpush.msra.mxu0 0.0
        %2011 = vmatpush.msra.mxu0 0.0
        %2012 = vmatpush.msra.mxu0 0.0
        %2013 = vmatpush.msra.mxu0 0.0
        %2014 = vmatpush.msra.mxu0 %v2001
        %2015 = vmatpush.msra.mxu0 %v2000
        %2016 = vmatpush.msra.mxu0 %v1999
        %2017 = vmatpush.msra.mxu0 %v1998
        %2018 = vmatmul.f32.gmra.mxu0 %v1469
        %v2019 = vpop.f32.mrf.mxu0
        %v2020 = vadd.f32 0.0, %v2019
        %2021 = vdwg.mxu0
        %v2023 = vsel %vm782, %v1970, 0
        %v2026 = vsel %vm782, %v1995, 0
        %2028 = vmatpush.xpose.msra.mxu0 0.0
        %2029 = vmatpush.xpose.msra.mxu0 0.0
        %2030 = vmatpush.xpose.msra.mxu0 0.0
        %2031 = vmatpush.xpose.msra.mxu0 0.0
        %2032 = vmatpush.xpose.msra.mxu0 0.0
        %2033 = vmatpush.xpose.msra.mxu0 0.0
        %2034 = vmatpush.xpose.msra.mxu0 0.0
        %2035 = vmatpush.xpose.msra.mxu0 0.0
        %2036 = vmatpush.xpose.msra.mxu0 0.0
        %2037 = vmatpush.xpose.msra.mxu0 0.0
        %2038 = vmatpush.xpose.msra.mxu0 0.0
        %2039 = vmatpush.xpose.msra.mxu0 0.0
        %2040 = vmatpush.xpose.msra.mxu0 0.0
        %2041 = vmatpush.xpose.msra.mxu0 0.0
        %2042 = vmatpush.xpose.msra.mxu0 0.0
        %2043 = vmatpush.xpose.msra.mxu0 %v2026
        %2044 = vmatmul.f32.gmra.mxu0 %v2023
        %v2045 = vpop.f32.mrf.mxu0
        %v2046 = vadd.f32 %v1268, %v2045
        %2047 = vdwg.mxu0
        %v2048 = vsel %vm782, %v2046, -inf
        %2049 = vmax.xlane.f32.xlu0 %v2048
        %v2050 = vpop.xlane.xlu0 %2049
        %v2051 = vsub.f32 %v2046, %v2050
        %v2052 = vmul.f32 %v2051, 1.442695
        %v2053 = vpow.pop %v2052
        %v2054 = vsel %vm782, %v2053, 0.0
        %2055 = vadd.xlane.f32.xlu0 %v2054
        %v2056 = vpop.xlane.xlu0 %2055
        %v2057 = vrcp.pop %v2056
        %v2058 = vmul.f32 %v2053, %v2057
        %v2060 = vsel %vm782, %v2058, 0
        %2062 = vmatpush.msra.mxu0 0.0
        %2063 = vmatpush.msra.mxu0 0.0
        %2064 = vmatpush.msra.mxu0 0.0
        %2065 = vmatpush.msra.mxu0 0.0
        %2066 = vmatpush.msra.mxu0 0.0
        %2067 = vmatpush.msra.mxu0 0.0
        %2068 = vmatpush.msra.mxu0 0.0
        %2069 = vmatpush.msra.mxu0 0.0
        %2070 = vmatpush.msra.mxu0 0.0
        %2071 = vmatpush.msra.mxu0 0.0
        %2072 = vmatpush.msra.mxu0 0.0
        %2073 = vmatpush.msra.mxu0 0.0
        %2074 = vmatpush.msra.mxu0 0.0
        %2075 = vmatpush.msra.mxu0 0.0
        %2076 = vmatpush.msra.mxu0 0.0
        %2077 = vmatpush.msra.mxu0 %v2020
        %2078 = vmatmul.f32.gmra.mxu0 %v2060
        %v2079 = vpop.f32.mrf.mxu0
        %v2080 = vadd.f32 0.0, %v2079
        %2081 = vdwg.mxu0
        %s2082 = scalar_lea.vmem %s5, 56
        %v2083 = vld [vmem:[%s2082] sm:$0xff]
        %v2085 = vsel %vm782, %v2080, 0
        %2087 = vmatpush.msra.mxu0 0.0
        %2088 = vmatpush.msra.mxu0 0.0
        %2089 = vmatpush.msra.mxu0 0.0
        %2090 = vmatpush.msra.mxu0 0.0
        %2091 = vmatpush.msra.mxu0 0.0
        %2092 = vmatpush.msra.mxu0 0.0
        %2093 = vmatpush.msra.mxu0 0.0
        %2094 = vmatpush.msra.mxu0 0.0
        %2095 = vmatpush.msra.mxu0 0.0
        %2096 = vmatpush.msra.mxu0 0.0
        %2097 = vmatpush.msra.mxu0 0.0
        %2098 = vmatpush.msra.mxu0 0.0
        %2099 = vmatpush.msra.mxu0 0.0
        %2100 = vmatpush.msra.mxu0 0.0
        %2101 = vmatpush.msra.mxu0 0.0
        %2102 = vmatpush.msra.mxu0 %v2083
        %2103 = vmatmul.f32.gmra.mxu0 %v2085
        %v2104 = vpop.f32.mrf.mxu0
        %v2105 = vadd.f32 0.0, %v2104
        %2106 = vdwg.mxu0
        %v2107 = vadd.f32 %v1946, %v2105
        %v2108 = vadd.f32 %v1439, %v2107
        %s2109 = scalar_lea.vmem %s3, 3
        %v2110 = vld [vmem:[%s2109] sm:$0x1]
        %v2111 = vmul.f32 %v2108, %v2108
        %v2112 = vsel %vm676, %v2111, 0.0
        %2113 = vadd.xlane.f32.xlu0 %v2112
        %v2114 = vpop.xlane.xlu0 %2113
        %v2115 = vmul.f32 %v2114, %v686
        %v2116 = vadd.f32 %v2115, 1e-06
        %v2117 = vrsqrt.pop %v2116
        %v2118 = vmul.f32 %v2117, %v2116
        %v2119 = vmul.f32 %v2118, %v2117
        %v2120 = vmul.f32 0.5, %v2119
        %v2121 = vsub.f32 1.5, %v2120
        %v2122 = vmul.f32 %v2117, %v2121
        %vm2123 = vweird.f32 %v2116
        %vm2124 = vweird.f32 %v2117
        %vm2125 = vmor %vm2123, %vm2124
        %v2126 = vsel %vm2125, %v2117, %v2122
        %v2127 = vmul.f32 %v2108, %v2126
        %v2129 = vperm.slane %v2110, 0
        %v2131 = vmul.f32 %v2127, %v2129
        %s2132 = scalar_lea.vmem %s6, 32
        %v2133 = vld [vmem:[%s2132] sm:$0xff]
        %v2134 = vld [vmem:[%s2132 + $0x8] sm:$0xff]
        %v2135 = vld [vmem:[%s2132 + $0x10] sm:$0xff]
        %v2136 = vld [vmem:[%s2132 + $0x18] sm:$0xff]
        %s2137 = scalar_lea.vmem %s7, 64
        %v2138 = vld [vmem:[%s2137] sm:$0xff]
        %v2139 = vld [vmem:[%s2137 + $0x8] sm:$0xff]
        %v2140 = vld [vmem:[%s2137 + $0x10] sm:$0xff]
        %v2141 = vld [vmem:[%s2137 + $0x18] sm:$0xff]
        %v2142 = vld [vmem:[%s2137 + $0x20] sm:$0xff]
        %v2143 = vld [vmem:[%s2137 + $0x28] sm:$0xff]
        %v2144 = vld [vmem:[%s2137 + $0x30] sm:$0xff]
        %v2145 = vld [vmem:[%s2137 + $0x38] sm:$0xff]
        %v2147 = vsel %vm676, %v2131, 0
        %2149 = vmatpush.msra.mxu0 0.0
        %2150 = vmatpush.msra.mxu0 0.0
        %2151 = vmatpush.msra.mxu0 0.0
        %2152 = vmatpush.msra.mxu0 0.0
        %2153 = vmatpush.msra.mxu0 0.0
        %2154 = vmatpush.msra.mxu0 0.0
        %2155 = vmatpush.msra.mxu0 0.0
        %2156 = vmatpush.msra.mxu0 0.0
        %2157 = vmatpush.msra.mxu0 0.0
        %2158 = vmatpush.msra.mxu0 0.0
        %2159 = vmatpush.msra.mxu0 0.0
        %2160 = vmatpush.msra.mxu0 0.0
        %2161 = vmatpush.msra.mxu0 %v2136
        %2162 = vmatpush.msra.mxu0 %v2135
        %2163 = vmatpush.msra.mxu0 %v2134
        %2164 = vmatpush.msra.mxu0 %v2133
        %2165 = vmatmul.f32.gmra.mxu0 %v2147
        %v2166 = vpop.f32.mrf.mxu0
        %v2167 = vadd.f32 0.0, %v2166
        %2168 = vdwg.mxu0
        %v2169 = vmax.f32 %v2167, 0.0
        %v2171 = vsel %vm1415, %v2169, 0
        %2173 = vmatpush.msra.mxu0 0.0
        %2174 = vmatpush.msra.mxu0 0.0
        %2175 = vmatpush.msra.mxu0 0.0
        %2176 = vmatpush.msra.mxu0 0.0
        %2177 = vmatpush.msra.mxu0 0.0
        %2178 = vmatpush.msra.mxu0 0.0
        %2179 = vmatpush.msra.mxu0 0.0
        %2180 = vmatpush.msra.mxu0 0.0
        %2181 = vmatpush.msra.mxu0 %v2145
        %2182 = vmatpush.msra.mxu0 %v2144
        %2183 = vmatpush.msra.mxu0 %v2143
        %2184 = vmatpush.msra.mxu0 %v2142
        %2185 = vmatpush.msra.mxu0 %v2141
        %2186 = vmatpush.msra.mxu0 %v2140
        %2187 = vmatpush.msra.mxu0 %v2139
        %2188 = vmatpush.msra.mxu0 %v2138
        %2189 = vmatmul.f32.gmra.mxu0 %v2171
        %v2190 = vpop.f32.mrf.mxu0
        %v2191 = vadd.f32 0.0, %v2190
        %2192 = vdwg.mxu0
        %v2193 = vadd.f32 %v2108, %v2191
        %v2194 = vld [vmem:[%s8] sm:$0x1]
        %v2195 = vmul.f32 %v2193, %v2193
        %v2196 = vsel %vm676, %v2195, 0.0
        %2197 = vadd.xlane.f32.xlu0 %v2196
        %v2198 = vpop.xlane.xlu0 %2197
        %v2199 = vmul.f32 %v2198, %v686
        %v2200 = vadd.f32 %v2199, 1e-06
        %v2201 = vrsqrt.pop %v2200
        %v2202 = vmul.f32 %v2201, %v2200
        %v2203 = vmul.f32 %v2202, %v2201
        %v2204 = vmul.f32 0.5, %v2203
        %v2205 = vsub.f32 1.5, %v2204
        %v2206 = vmul.f32 %v2201, %v2205
        %vm2207 = vweird.f32 %v2200
        %vm2208 = vweird.f32 %v2201
        %vm2209 = vmor %vm2207, %vm2208
        %v2210 = vsel %vm2209, %v2201, %v2206
        %v2211 = vmul.f32 %v2193, %v2210
        %v2213 = vperm.slane %v2194, 0
        %v2215 = vmul.f32 %v2211, %v2213
        %2216 = vst.msk [vmem:[%s644] sm:$0xff] %vm676, %v673
        %v2217 = vld [vmem:[%s9] sm:$0x1]
        %v2219 = vperm.slane %v2217, 0
        %v2221 = vmul.f32 %v699, %v2219
        %v2222 = vld [vmem:[%s10] sm:$0xff]
        %v2223 = vld [vmem:[%s10 + $0x8] sm:$0xff]
        %v2224 = vld [vmem:[%s10 + $0x10] sm:$0xff]
        %v2225 = vld [vmem:[%s10 + $0x18] sm:$0xff]
        %v2227 = vsel %vm676, %v2221, 0
        %2229 = vmatpush.msra.mxu0 0.0
        %2230 = vmatpush.msra.mxu0 0.0
        %2231 = vmatpush.msra.mxu0 0.0
        %2232 = vmatpush.msra.mxu0 0.0
        %2233 = vmatpush.msra.mxu0 0.0
        %2234 = vmatpush.msra.mxu0 0.0
        %2235 = vmatpush.msra.mxu0 0.0
        %2236 = vmatpush.msra.mxu0 0.0
        %2237 = vmatpush.msra.mxu0 0.0
        %2238 = vmatpush.msra.mxu0 0.0
        %2239 = vmatpush.msra.mxu0 0.0
        %2240 = vmatpush.msra.mxu0 0.0
        %2241 = vmatpush.msra.mxu0 %v2225
        %2242 = vmatpush.msra.mxu0 %v2224
        %2243 = vmatpush.msra.mxu0 %v2223
        %2244 = vmatpush.msra.mxu0 %v2222
        %2245 = vmatmul.f32.gmra.mxu0 %v2227
        %v2246 = vpop.f32.mrf.mxu0
        %v2247 = vadd.f32 0.0, %v2246
        %2248 = vdwg.mxu0
        %s2249 = scalar_lea.vmem %s10, 128
        %v2250 = vld [vmem:[%s2249] sm:$0xff]
        %v2251 = vld [vmem:[%s2249 + $0x8] sm:$0xff]
        %v2252 = vld [vmem:[%s2249 + $0x10] sm:$0xff]
        %v2253 = vld [vmem:[%s2249 + $0x18] sm:$0xff]
        %2254 = vmatpush.msra.mxu0 0.0
        %2255 = vmatpush.msra.mxu0 0.0
        %2256 = vmatpush.msra.mxu0 0.0
        %2257 = vmatpush.msra.mxu0 0.0
        %2258 = vmatpush.msra.mxu0 0.0
        %2259 = vmatpush.msra.mxu0 0.0
        %2260 = vmatpush.msra.mxu0 0.0
        %2261 = vmatpush.msra.mxu0 0.0
        %2262 = vmatpush.msra.mxu0 0.0
        %2263 = vmatpush.msra.mxu0 0.0
        %2264 = vmatpush.msra.mxu0 0.0
        %2265 = vmatpush.msra.mxu0 0.0
        %2266 = vmatpush.msra.mxu0 %v2253
        %2267 = vmatpush.msra.mxu0 %v2252
        %2268 = vmatpush.msra.mxu0 %v2251
        %2269 = vmatpush.msra.mxu0 %v2250
        %2270 = vmatmul.f32.gmra.mxu0 %v2227
        %v2271 = vpop.f32.mrf.mxu0
        %v2272 = vadd.f32 0.0, %v2271
        %2273 = vdwg.mxu0
        %s2274 = scalar_lea.vmem %s10, 256
        %v2275 = vld [vmem:[%s2274] sm:$0xff]
        %v2276 = vld [vmem:[%s2274 + $0x8] sm:$0xff]
        %v2277 = vld [vmem:[%s2274 + $0x10] sm:$0xff]
        %v2278 = vld [vmem:[%s2274 + $0x18] sm:$0xff]
        %2279 = vmatpush.msra.mxu0 0.0
        %2280 = vmatpush.msra.mxu0 0.0
        %2281 = vmatpush.msra.mxu0 0.0
        %2282 = vmatpush.msra.mxu0 0.0
        %2283 = vmatpush.msra.mxu0 0.0
        %2284 = vmatpush.msra.mxu0 0.0
        %2285 = vmatpush.msra.mxu0 0.0
        %2286 = vmatpush.msra.mxu0 0.0
        %2287 = vmatpush.msra.mxu0 0.0
        %2288 = vmatpush.msra.mxu0 0.0
        %2289 = vmatpush.msra.mxu0 0.0
        %2290 = vmatpush.msra.mxu0 0.0
        %2291 = vmatpush.msra.mxu0 %v2278
        %2292 = vmatpush.msra.mxu0 %v2277
        %2293 = vmatpush.msra.mxu0 %v2276
        %2294 = vmatpush.msra.mxu0 %v2275
        %2295 = vmatmul.f32.gmra.mxu0 %v2227
        %v2296 = vpop.f32.mrf.mxu0
        %v2297 = vadd.f32 0.0, %v2296
        %2298 = vdwg.mxu0
        %2299 = vst.msk [vmem:[%s650] sm:$0xff] %vm782, %v2272
        %2300 = vst.msk [vmem:[%s656] sm:$0xff] %vm782, %v2297
        %v2301 = vld [vmem:[%s2] sm:$0xff]
        %v2303 = vsel %vm782, %v2247, 0
        %v2306 = vsel %vm782, %v2272, 0
        %2308 = vmatpush.xpose.msra.mxu0 0.0
        %2309 = vmatpush.xpose.msra.mxu0 0.0
        %2310 = vmatpush.xpose.msra.mxu0 0.0
        %2311 = vmatpush.xpose.msra.mxu0 0.0
        %2312 = vmatpush.xpose.msra.mxu0 0.0
        %2313 = vmatpush.xpose.msra.mxu0 0.0
        %2314 = vmatpush.xpose.msra.mxu0 0.0
        %2315 = vmatpush.xpose.msra.mxu0 0.0
        %2316 = vmatpush.xpose.msra.mxu0 0.0
        %2317 = vmatpush.xpose.msra.mxu0 0.0
        %2318 = vmatpush.xpose.msra.mxu0 0.0
        %2319 = vmatpush.xpose.msra.mxu0 0.0
        %2320 = vmatpush.xpose.msra.mxu0 0.0
        %2321 = vmatpush.xpose.msra.mxu0 0.0
        %2322 = vmatpush.xpose.msra.mxu0 0.0
        %2323 = vmatpush.xpose.msra.mxu0 %v2306
        %2324 = vmatmul.f32.gmra.mxu0 %v2303
        %v2325 = vpop.f32.mrf.mxu0
        %v2326 = vadd.f32 %v2301, %v2325
        %2327 = vdwg.mxu0
        %v2328 = vsel %vm782, %v2326, -inf
        %2329 = vmax.xlane.f32.xlu0 %v2328
        %v2330 = vpop.xlane.xlu0 %2329
        %v2331 = vsub.f32 %v2326, %v2330
        %v2332 = vmul.f32 %v2331, 1.442695
        %v2333 = vpow.pop %v2332
        %v2334 = vsel %vm782, %v2333, 0.0
        %2335 = vadd.xlane.f32.xlu0 %v2334
        %v2336 = vpop.xlane.xlu0 %2335
        %v2337 = vrcp.pop %v2336
        %v2338 = vmul.f32 %v2333, %v2337
        %v2340 = vsel %vm782, %v2338, 0
        %2342 = vmatpush.msra.mxu0 0.0
        %2343 = vmatpush.msra.mxu0 0.0
        %2344 = vmatpush.msra.mxu0 0.0
        %2345 = vmatpush.msra.mxu0 0.0
        %2346 = vmatpush.msra.mxu0 0.0
        %2347 = vmatpush.msra.mxu0 0.0
        %2348 = vmatpush.msra.mxu0 0.0
        %2349 = vmatpush.msra.mxu0 0.0
        %2350 = vmatpush.msra.mxu0 0.0
        %2351 = vmatpush.msra.mxu0 0.0
        %2352 = vmatpush.msra.mxu0 0.0
        %2353 = vmatpush.msra.mxu0 0.0
        %2354 = vmatpush.msra.mxu0 0.0
        %2355 = vmatpush.msra.mxu0 0.0
        %2356 = vmatpush.msra.mxu0 0.0
        %2357 = vmatpush.msra.mxu0 %v2297
        %2358 = vmatmul.f32.gmra.mxu0 %v2340
        %v2359 = vpop.f32.mrf.mxu0
        %v2360 = vadd.f32 0.0, %v2359
        %2361 = vdwg.mxu0
        %v2362 = vld [vmem:[%s11] sm:$0xff]
        %s2363 = scalar_lea.vmem %s10, 32
        %v2364 = vld [vmem:[%s2363] sm:$0xff]
        %v2365 = vld [vmem:[%s2363 + $0x8] sm:$0xff]
        %v2366 = vld [vmem:[%s2363 + $0x10] sm:$0xff]
        %v2367 = vld [vmem:[%s2363 + $0x18] sm:$0xff]
        %2368 = vmatpush.msra.mxu0 0.0
        %2369 = vmatpush.msra.mxu0 0.0
        %2370 = vmatpush.msra.mxu0 0.0
        %2371 = vmatpush.msra.mxu0 0.0
        %2372 = vmatpush.msra.mxu0 0.0
        %2373 = vmatpush.msra.mxu0 0.0
        %2374 = vmatpush.msra.mxu0 0.0
        %2375 = vmatpush.msra.mxu0 0.0
        %2376 = vmatpush.msra.mxu0 0.0
        %2377 = vmatpush.msra.mxu0 0.0
        %2378 = vmatpush.msra.mxu0 0.0
        %2379 = vmatpush.msra.mxu0 0.0
        %2380 = vmatpush.msra.mxu0 %v2367
        %2381 = vmatpush.msra.mxu0 %v2366
        %2382 = vmatpush.msra.mxu0 %v2365
        %2383 = vmatpush.msra.mxu0 %v2364
        %2384 = vmatmul.f32.gmra.mxu0 %v2227
        %v2385 = vpop.f32.mrf.mxu0
        %v2386 = vadd.f32 0.0, %v2385
        %2387 = vdwg.mxu0
        %s2388 = scalar_lea.vmem %s10, 160
        %v2389 = vld [vmem:[%s2388] sm:$0xff]
        %v2390 = vld [vmem:[%s2388 + $0x8] sm:$0xff]
        %v2391 = vld [vmem:[%s2388 + $0x10] sm:$0xff]
        %v2392 = vld [vmem:[%s2388 + $0x18] sm:$0xff]
        %2393 = vmatpush.msra.mxu0 0.0
        %2394 = vmatpush.msra.mxu0 0.0
        %2395 = vmatpush.msra.mxu0 0.0
        %2396 = vmatpush.msra.mxu0 0.0
        %2397 = vmatpush.msra.mxu0 0.0
        %2398 = vmatpush.msra.mxu0 0.0
        %2399 = vmatpush.msra.mxu0 0.0
        %2400 = vmatpush.msra.mxu0 0.0
        %2401 = vmatpush.msra.mxu0 0.0
        %2402 = vmatpush.msra.mxu0 0.0
        %2403 = vmatpush.msra.mxu0 0.0
        %2404 = vmatpush.msra.mxu0 0.0
        %2405 = vmatpush.msra.mxu0 %v2392
        %2406 = vmatpush.msra.mxu0 %v2391
        %2407 = vmatpush.msra.mxu0 %v2390
        %2408 = vmatpush.msra.mxu0 %v2389
        %2409 = vmatmul.f32.gmra.mxu0 %v2227
        %v2410 = vpop.f32.mrf.mxu0
        %v2411 = vadd.f32 0.0, %v2410
        %2412 = vdwg.mxu0
        %s2413 = scalar_lea.vmem %s10, 288
        %v2414 = vld [vmem:[%s2413] sm:$0xff]
        %v2415 = vld [vmem:[%s2413 + $0x8] sm:$0xff]
        %v2416 = vld [vmem:[%s2413 + $0x10] sm:$0xff]
        %v2417 = vld [vmem:[%s2413 + $0x18] sm:$0xff]
        %2418 = vmatpush.msra.mxu0 0.0
        %2419 = vmatpush.msra.mxu0 0.0
        %2420 = vmatpush.msra.mxu0 0.0
        %2421 = vmatpush.msra.mxu0 0.0
        %2422 = vmatpush.msra.mxu0 0.0
        %2423 = vmatpush.msra.mxu0 0.0
        %2424 = vmatpush.msra.mxu0 0.0
        %2425 = vmatpush.msra.mxu0 0.0
        %2426 = vmatpush.msra.mxu0 0.0
        %2427 = vmatpush.msra.mxu0 0.0
        %2428 = vmatpush.msra.mxu0 0.0
        %2429 = vmatpush.msra.mxu0 0.0
        %2430 = vmatpush.msra.mxu0 %v2417
        %2431 = vmatpush.msra.mxu0 %v2416
        %2432 = vmatpush.msra.mxu0 %v2415
        %2433 = vmatpush.msra.mxu0 %v2414
        %2434 = vmatmul.f32.gmra.mxu0 %v2227
        %v2435 = vpop.f32.mrf.mxu0
        %v2436 = vadd.f32 0.0, %v2435
        %2437 = vdwg.mxu0
        %s2438 = scalar_lea.vmem %s650, 8 [#allocation3]
        %2439 = vst.msk [vmem:[%s2438] sm:$0xff] %vm782, %v2411
        %s2440 = scalar_lea.vmem %s656, 8 [#allocation4]
        %2441 = vst.msk [vmem:[%s2440] sm:$0xff] %vm782, %v2436
        %s2442 = scalar_lea.vmem %s2, 8
        %v2443 = vld [vmem:[%s2442] sm:$0xff]
        %v2445 = vsel %vm782, %v2386, 0
        %v2448 = vsel %vm782, %v2411, 0
        %2450 = vmatpush.xpose.msra.mxu0 0.0
        %2451 = vmatpush.xpose.msra.mxu0 0.0
        %2452 = vmatpush.xpose.msra.mxu0 0.0
        %2453 = vmatpush.xpose.msra.mxu0 0.0
        %2454 = vmatpush.xpose.msra.mxu0 0.0
        %2455 = vmatpush.xpose.msra.mxu0 0.0
        %2456 = vmatpush.xpose.msra.mxu0 0.0
        %2457 = vmatpush.xpose.msra.mxu0 0.0
        %2458 = vmatpush.xpose.msra.mxu0 0.0
        %2459 = vmatpush.xpose.msra.mxu0 0.0
        %2460 = vmatpush.xpose.msra.mxu0 0.0
        %2461 = vmatpush.xpose.msra.mxu0 0.0
        %2462 = vmatpush.xpose.msra.mxu0 0.0
        %2463 = vmatpush.xpose.msra.mxu0 0.0
        %2464 = vmatpush.xpose.msra.mxu0 0.0
        %2465 = vmatpush.xpose.msra.mxu0 %v2448
        %2466 = vmatmul.f32.gmra.mxu0 %v2445
        %v2467 = vpop.f32.mrf.mxu0
        %v2468 = vadd.f32 %v2443, %v2467
        %2469 = vdwg.mxu0
        %v2470 = vsel %vm782, %v2468, -inf
        %2471 = vmax.xlane.f32.xlu0 %v2470
        %v2472 = vpop.xlane.xlu0 %2471
        %v2473 = vsub.f32 %v2468, %v2472
        %v2474 = vmul.f32 %v2473, 1.442695
        %v2475 = vpow.pop %v2474
        %v2476 = vsel %vm782, %v2475, 0.0
        %2477 = vadd.xlane.f32.xlu0 %v2476
        %v2478 = vpop.xlane.xlu0 %2477
        %v2479 = vrcp.pop %v2478
        %v2480 = vmul.f32 %v2475, %v2479
        %v2482 = vsel %vm782, %v2480, 0
        %2484 = vmatpush.msra.mxu0 0.0
        %2485 = vmatpush.msra.mxu0 0.0
        %2486 = vmatpush.msra.mxu0 0.0
        %2487 = vmatpush.msra.mxu0 0.0
        %2488 = vmatpush.msra.mxu0 0.0
        %2489 = vmatpush.msra.mxu0 0.0
        %2490 = vmatpush.msra.mxu0 0.0
        %2491 = vmatpush.msra.mxu0 0.0
        %2492 = vmatpush.msra.mxu0 0.0
        %2493 = vmatpush.msra.mxu0 0.0
        %2494 = vmatpush.msra.mxu0 0.0
        %2495 = vmatpush.msra.mxu0 0.0
        %2496 = vmatpush.msra.mxu0 0.0
        %2497 = vmatpush.msra.mxu0 0.0
        %2498 = vmatpush.msra.mxu0 0.0
        %2499 = vmatpush.msra.mxu0 %v2436
        %2500 = vmatmul.f32.gmra.mxu0 %v2482
        %v2501 = vpop.f32.mrf.mxu0
        %v2502 = vadd.f32 0.0, %v2501
        %2503 = vdwg.mxu0
        %s2504 = scalar_lea.vmem %s11, 8
        %v2505 = vld [vmem:[%s2504] sm:$0xff]
        %v2507 = vsel %vm782, %v2502, 0
        %2509 = vmatpush.msra.mxu0 0.0
        %2510 = vmatpush.msra.mxu0 0.0
        %2511 = vmatpush.msra.mxu0 0.0
        %2512 = vmatpush.msra.mxu0 0.0
        %2513 = vmatpush.msra.mxu0 0.0
        %2514 = vmatpush.msra.mxu0 0.0
        %2515 = vmatpush.msra.mxu0 0.0
        %2516 = vmatpush.msra.mxu0 0.0
        %2517 = vmatpush.msra.mxu0 0.0
        %2518 = vmatpush.msra.mxu0 0.0
        %2519 = vmatpush.msra.mxu0 0.0
        %2520 = vmatpush.msra.mxu0 0.0
        %2521 = vmatpush.msra.mxu0 0.0
        %2522 = vmatpush.msra.mxu0 0.0
        %2523 = vmatpush.msra.mxu0 0.0
        %2524 = vmatpush.msra.mxu0 %v2505
        %2525 = vmatmul.f32.gmra.mxu0 %v2507
        %v2526 = vpop.f32.mrf.mxu0
        %v2527 = vadd.f32 0.0, %v2526
        %2528 = vdwg.mxu0
        %v2530 = vsel %vm782, %v2360, 0
        %2532 = vmatpush.msra.mxu0 0.0
        %2533 = vmatpush.msra.mxu0 0.0
        %2534 = vmatpush.msra.mxu0 0.0
        %2535 = vmatpush.msra.mxu0 0.0
        %2536 = vmatpush.msra.mxu0 0.0
        %2537 = vmatpush.msra.mxu0 0.0
        %2538 = vmatpush.msra.mxu0 0.0
        %2539 = vmatpush.msra.mxu0 0.0
        %2540 = vmatpush.msra.mxu0 0.0
        %2541 = vmatpush.msra.mxu0 0.0
        %2542 = vmatpush.msra.mxu0 0.0
        %2543 = vmatpush.msra.mxu0 0.0
        %2544 = vmatpush.msra.mxu0 0.0
        %2545 = vmatpush.msra.mxu0 0.0
        %2546 = vmatpush.msra.mxu0 0.0
        %2547 = vmatpush.msra.mxu0 %v2362
        %2548 = vmatmul.f32.gmra.mxu0 %v2530
        %v2549 = vpop.f32.mrf.mxu0
        %v2550 = vadd.f32 %v2527, %v2549
        %2551 = vdwg.mxu0
        %s2552 = scalar_lea.vmem %s10, 64
        %v2553 = vld [vmem:[%s2552] sm:$0xff]
        %v2554 = vld [vmem:[%s2552 + $0x8] sm:$0xff]
        %v2555 = vld [vmem:[%s2552 + $0x10] sm:$0xff]
        %v2556 = vld [vmem:[%s2552 + $0x18] sm:$0xff]
        %2557 = vmatpush.msra.mxu0 0.0
        %2558 = vmatpush.msra.mxu0 0.0
        %2559 = vmatpush.msra.mxu0 0.0
        %2560 = vmatpush.msra.mxu0 0.0
        %2561 = vmatpush.msra.mxu0 0.0
        %2562 = vmatpush.msra.mxu0 0.0
        %2563 = vmatpush.msra.mxu0 0.0
        %2564 = vmatpush.msra.mxu0 0.0
        %2565 = vmatpush.msra.mxu0 0.0
        %2566 = vmatpush.msra.mxu0 0.0
        %2567 = vmatpush.msra.mxu0 0.0
        %2568 = vmatpush.msra.mxu0 0.0
        %2569 = vmatpush.msra.mxu0 %v2556
        %2570 = vmatpush.msra.mxu0 %v2555
        %2571 = vmatpush.msra.mxu0 %v2554
        %2572 = vmatpush.msra.mxu0 %v2553
        %2573 = vmatmul.f32.gmra.mxu0 %v2227
        %v2574 = vpop.f32.mrf.mxu0
        %v2575 = vadd.f32 0.0, %v2574
        %2576 = vdwg.mxu0
        %s2577 = scalar_lea.vmem %s10, 192
        %v2578 = vld [vmem:[%s2577] sm:$0xff]
        %v2579 = vld [vmem:[%s2577 + $0x8] sm:$0xff]
        %v2580 = vld [vmem:[%s2577 + $0x10] sm:$0xff]
        %v2581 = vld [vmem:[%s2577 + $0x18] sm:$0xff]
        %2582 = vmatpush.msra.mxu0 0.0
        %2583 = vmatpush.msra.mxu0 0.0
        %2584 = vmatpush.msra.mxu0 0.0
        %2585 = vmatpush.msra.mxu0 0.0
        %2586 = vmatpush.msra.mxu0 0.0
        %2587 = vmatpush.msra.mxu0 0.0
        %2588 = vmatpush.msra.mxu0 0.0
        %2589 = vmatpush.msra.mxu0 0.0
        %2590 = vmatpush.msra.mxu0 0.0
        %2591 = vmatpush.msra.mxu0 0.0
        %2592 = vmatpush.msra.mxu0 0.0
        %2593 = vmatpush.msra.mxu0 0.0
        %2594 = vmatpush.msra.mxu0 %v2581
        %2595 = vmatpush.msra.mxu0 %v2580
        %2596 = vmatpush.msra.mxu0 %v2579
        %2597 = vmatpush.msra.mxu0 %v2578
        %2598 = vmatmul.f32.gmra.mxu0 %v2227
        %v2599 = vpop.f32.mrf.mxu0
        %v2600 = vadd.f32 0.0, %v2599
        %2601 = vdwg.mxu0
        %s2602 = scalar_lea.vmem %s10, 320
        %v2603 = vld [vmem:[%s2602] sm:$0xff]
        %v2604 = vld [vmem:[%s2602 + $0x8] sm:$0xff]
        %v2605 = vld [vmem:[%s2602 + $0x10] sm:$0xff]
        %v2606 = vld [vmem:[%s2602 + $0x18] sm:$0xff]
        %2607 = vmatpush.msra.mxu0 0.0
        %2608 = vmatpush.msra.mxu0 0.0
        %2609 = vmatpush.msra.mxu0 0.0
        %2610 = vmatpush.msra.mxu0 0.0
        %2611 = vmatpush.msra.mxu0 0.0
        %2612 = vmatpush.msra.mxu0 0.0
        %2613 = vmatpush.msra.mxu0 0.0
        %2614 = vmatpush.msra.mxu0 0.0
        %2615 = vmatpush.msra.mxu0 0.0
        %2616 = vmatpush.msra.mxu0 0.0
        %2617 = vmatpush.msra.mxu0 0.0
        %2618 = vmatpush.msra.mxu0 0.0
        %2619 = vmatpush.msra.mxu0 %v2606
        %2620 = vmatpush.msra.mxu0 %v2605
        %2621 = vmatpush.msra.mxu0 %v2604
        %2622 = vmatpush.msra.mxu0 %v2603
        %2623 = vmatmul.f32.gmra.mxu0 %v2227
        %v2624 = vpop.f32.mrf.mxu0
        %v2625 = vadd.f32 0.0, %v2624
        %2626 = vdwg.mxu0
        %s2627 = scalar_lea.vmem %s650, 16 [#allocation3]
        %2628 = vst.msk [vmem:[%s2627] sm:$0xff] %vm782, %v2600
        %s2629 = scalar_lea.vmem %s656, 16 [#allocation4]
        %2630 = vst.msk [vmem:[%s2629] sm:$0xff] %vm782, %v2625
        %s2631 = scalar_lea.vmem %s2, 16
        %v2632 = vld [vmem:[%s2631] sm:$0xff]
        %v2634 = vsel %vm782, %v2575, 0
        %v2637 = vsel %vm782, %v2600, 0
        %2639 = vmatpush.xpose.msra.mxu0 0.0
        %2640 = vmatpush.xpose.msra.mxu0 0.0
        %2641 = vmatpush.xpose.msra.mxu0 0.0
        %2642 = vmatpush.xpose.msra.mxu0 0.0
        %2643 = vmatpush.xpose.msra.mxu0 0.0
        %2644 = vmatpush.xpose.msra.mxu0 0.0
        %2645 = vmatpush.xpose.msra.mxu0 0.0
        %2646 = vmatpush.xpose.msra.mxu0 0.0
        %2647 = vmatpush.xpose.msra.mxu0 0.0
        %2648 = vmatpush.xpose.msra.mxu0 0.0
        %2649 = vmatpush.xpose.msra.mxu0 0.0
        %2650 = vmatpush.xpose.msra.mxu0 0.0
        %2651 = vmatpush.xpose.msra.mxu0 0.0
        %2652 = vmatpush.xpose.msra.mxu0 0.0
        %2653 = vmatpush.xpose.msra.mxu0 0.0
        %2654 = vmatpush.xpose.msra.mxu0 %v2637
        %2655 = vmatmul.f32.gmra.mxu0 %v2634
        %v2656 = vpop.f32.mrf.mxu0
        %v2657 = vadd.f32 %v2632, %v2656
        %2658 = vdwg.mxu0
        %v2659 = vsel %vm782, %v2657, -inf
        %2660 = vmax.xlane.f32.xlu0 %v2659
        %v2661 = vpop.xlane.xlu0 %2660
        %v2662 = vsub.f32 %v2657, %v2661
        %v2663 = vmul.f32 %v2662, 1.442695
        %v2664 = vpow.pop %v2663
        %v2665 = vsel %vm782, %v2664, 0.0
        %2666 = vadd.xlane.f32.xlu0 %v2665
        %v2667 = vpop.xlane.xlu0 %2666
        %v2668 = vrcp.pop %v2667
        %v2669 = vmul.f32 %v2664, %v2668
        %v2671 = vsel %vm782, %v2669, 0
        %2673 = vmatpush.msra.mxu0 0.0
        %2674 = vmatpush.msra.mxu0 0.0
        %2675 = vmatpush.msra.mxu0 0.0
        %2676 = vmatpush.msra.mxu0 0.0
        %2677 = vmatpush.msra.mxu0 0.0
        %2678 = vmatpush.msra.mxu0 0.0
        %2679 = vmatpush.msra.mxu0 0.0
        %2680 = vmatpush.msra.mxu0 0.0
        %2681 = vmatpush.msra.mxu0 0.0
        %2682 = vmatpush.msra.mxu0 0.0
        %2683 = vmatpush.msra.mxu0 0.0
        %2684 = vmatpush.msra.mxu0 0.0
        %2685 = vmatpush.msra.mxu0 0.0
        %2686 = vmatpush.msra.mxu0 0.0
        %2687 = vmatpush.msra.mxu0 0.0
        %2688 = vmatpush.msra.mxu0 %v2625
        %2689 = vmatmul.f32.gmra.mxu0 %v2671
        %v2690 = vpop.f32.mrf.mxu0
        %v2691 = vadd.f32 0.0, %v2690
        %2692 = vdwg.mxu0
        %s2693 = scalar_lea.vmem %s11, 16
        %v2694 = vld [vmem:[%s2693] sm:$0xff]
        %v2696 = vsel %vm782, %v2691, 0
        %2698 = vmatpush.msra.mxu0 0.0
        %2699 = vmatpush.msra.mxu0 0.0
        %2700 = vmatpush.msra.mxu0 0.0
        %2701 = vmatpush.msra.mxu0 0.0
        %2702 = vmatpush.msra.mxu0 0.0
        %2703 = vmatpush.msra.mxu0 0.0
        %2704 = vmatpush.msra.mxu0 0.0
        %2705 = vmatpush.msra.mxu0 0.0
        %2706 = vmatpush.msra.mxu0 0.0
        %2707 = vmatpush.msra.mxu0 0.0
        %2708 = vmatpush.msra.mxu0 0.0
        %2709 = vmatpush.msra.mxu0 0.0
        %2710 = vmatpush.msra.mxu0 0.0
        %2711 = vmatpush.msra.mxu0 0.0
        %2712 = vmatpush.msra.mxu0 0.0
        %2713 = vmatpush.msra.mxu0 %v2694
        %2714 = vmatmul.f32.gmra.mxu0 %v2696
        %v2715 = vpop.f32.mrf.mxu0
        %v2716 = vadd.f32 0.0, %v2715
        %2717 = vdwg.mxu0
        %v2718 = vadd.f32 %v2550, %v2716
        %s2719 = scalar_lea.vmem %s10, 96
        %v2720 = vld [vmem:[%s2719] sm:$0xff]
        %v2721 = vld [vmem:[%s2719 + $0x8] sm:$0xff]
        %v2722 = vld [vmem:[%s2719 + $0x10] sm:$0xff]
        %v2723 = vld [vmem:[%s2719 + $0x18] sm:$0xff]
        %2724 = vmatpush.msra.mxu0 0.0
        %2725 = vmatpush.msra.mxu0 0.0
        %2726 = vmatpush.msra.mxu0 0.0
        %2727 = vmatpush.msra.mxu0 0.0
        %2728 = vmatpush.msra.mxu0 0.0
        %2729 = vmatpush.msra.mxu0 0.0
        %2730 = vmatpush.msra.mxu0 0.0
        %2731 = vmatpush.msra.mxu0 0.0
        %2732 = vmatpush.msra.mxu0 0.0
        %2733 = vmatpush.msra.mxu0 0.0
        %2734 = vmatpush.msra.mxu0 0.0
        %2735 = vmatpush.msra.mxu0 0.0
        %2736 = vmatpush.msra.mxu0 %v2723
        %2737 = vmatpush.msra.mxu0 %v2722
        %2738 = vmatpush.msra.mxu0 %v2721
        %2739 = vmatpush.msra.mxu0 %v2720
        %2740 = vmatmul.f32.gmra.mxu0 %v2227
        %v2741 = vpop.f32.mrf.mxu0
        %v2742 = vadd.f32 0.0, %v2741
        %2743 = vdwg.mxu0
        %s2744 = scalar_lea.vmem %s10, 224
        %v2745 = vld [vmem:[%s2744] sm:$0xff]
        %v2746 = vld [vmem:[%s2744 + $0x8] sm:$0xff]
        %v2747 = vld [vmem:[%s2744 + $0x10] sm:$0xff]
        %v2748 = vld [vmem:[%s2744 + $0x18] sm:$0xff]
        %2749 = vmatpush.msra.mxu0 0.0
        %2750 = vmatpush.msra.mxu0 0.0
        %2751 = vmatpush.msra.mxu0 0.0
        %2752 = vmatpush.msra.mxu0 0.0
        %2753 = vmatpush.msra.mxu0 0.0
        %2754 = vmatpush.msra.mxu0 0.0
        %2755 = vmatpush.msra.mxu0 0.0
        %2756 = vmatpush.msra.mxu0 0.0
        %2757 = vmatpush.msra.mxu0 0.0
        %2758 = vmatpush.msra.mxu0 0.0
        %2759 = vmatpush.msra.mxu0 0.0
        %2760 = vmatpush.msra.mxu0 0.0
        %2761 = vmatpush.msra.mxu0 %v2748
        %2762 = vmatpush.msra.mxu0 %v2747
        %2763 = vmatpush.msra.mxu0 %v2746
        %2764 = vmatpush.msra.mxu0 %v2745
        %2765 = vmatmul.f32.gmra.mxu0 %v2227
        %v2766 = vpop.f32.mrf.mxu0
        %v2767 = vadd.f32 0.0, %v2766
        %2768 = vdwg.mxu0
        %s2769 = scalar_lea.vmem %s10, 352
        %v2770 = vld [vmem:[%s2769] sm:$0xff]
        %v2771 = vld [vmem:[%s2769 + $0x8] sm:$0xff]
        %v2772 = vld [vmem:[%s2769 + $0x10] sm:$0xff]
        %v2773 = vld [vmem:[%s2769 + $0x18] sm:$0xff]
        %2774 = vmatpush.msra.mxu0 0.0
        %2775 = vmatpush.msra.mxu0 0.0
        %2776 = vmatpush.msra.mxu0 0.0
        %2777 = vmatpush.msra.mxu0 0.0
        %2778 = vmatpush.msra.mxu0 0.0
        %2779 = vmatpush.msra.mxu0 0.0
        %2780 = vmatpush.msra.mxu0 0.0
        %2781 = vmatpush.msra.mxu0 0.0
        %2782 = vmatpush.msra.mxu0 0.0
        %2783 = vmatpush.msra.mxu0 0.0
        %2784 = vmatpush.msra.mxu0 0.0
        %2785 = vmatpush.msra.mxu0 0.0
        %2786 = vmatpush.msra.mxu0 %v2773
        %2787 = vmatpush.msra.mxu0 %v2772
        %2788 = vmatpush.msra.mxu0 %v2771
        %2789 = vmatpush.msra.mxu0 %v2770
        %2790 = vmatmul.f32.gmra.mxu0 %v2227
        %v2791 = vpop.f32.mrf.mxu0
        %v2792 = vadd.f32 0.0, %v2791
        %2793 = vdwg.mxu0
        %s2794 = scalar_lea.vmem %s650, 24 [#allocation3]
        %2795 = vst.msk [vmem:[%s2794] sm:$0xff] %vm782, %v2767
        %s2796 = scalar_lea.vmem %s656, 24 [#allocation4]
        %2797 = vst.msk [vmem:[%s2796] sm:$0xff] %vm782, %v2792
        %s2798 = scalar_lea.vmem %s2, 24
        %v2799 = vld [vmem:[%s2798] sm:$0xff]
        %v2801 = vsel %vm782, %v2742, 0
        %v2804 = vsel %vm782, %v2767, 0
        %2806 = vmatpush.xpose.msra.mxu0 0.0
        %2807 = vmatpush.xpose.msra.mxu0 0.0
        %2808 = vmatpush.xpose.msra.mxu0 0.0
        %2809 = vmatpush.xpose.msra.mxu0 0.0
        %2810 = vmatpush.xpose.msra.mxu0 0.0
        %2811 = vmatpush.xpose.msra.mxu0 0.0
        %2812 = vmatpush.xpose.msra.mxu0 0.0
        %2813 = vmatpush.xpose.msra.mxu0 0.0
        %2814 = vmatpush.xpose.msra.mxu0 0.0
        %2815 = vmatpush.xpose.msra.mxu0 0.0
        %2816 = vmatpush.xpose.msra.mxu0 0.0
        %2817 = vmatpush.xpose.msra.mxu0 0.0
        %2818 = vmatpush.xpose.msra.mxu0 0.0
        %2819 = vmatpush.xpose.msra.mxu0 0.0
        %2820 = vmatpush.xpose.msra.mxu0 0.0
        %2821 = vmatpush.xpose.msra.mxu0 %v2804
        %2822 = vmatmul.f32.gmra.mxu0 %v2801
        %v2823 = vpop.f32.mrf.mxu0
        %v2824 = vadd.f32 %v2799, %v2823
        %2825 = vdwg.mxu0
        %v2826 = vsel %vm782, %v2824, -inf
        %2827 = vmax.xlane.f32.xlu0 %v2826
        %v2828 = vpop.xlane.xlu0 %2827
        %v2829 = vsub.f32 %v2824, %v2828
        %v2830 = vmul.f32 %v2829, 1.442695
        %v2831 = vpow.pop %v2830
        %v2832 = vsel %vm782, %v2831, 0.0
        %2833 = vadd.xlane.f32.xlu0 %v2832
        %v2834 = vpop.xlane.xlu0 %2833
        %v2835 = vrcp.pop %v2834
        %v2836 = vmul.f32 %v2831, %v2835
        %v2838 = vsel %vm782, %v2836, 0
        %2840 = vmatpush.msra.mxu0 0.0
        %2841 = vmatpush.msra.mxu0 0.0
        %2842 = vmatpush.msra.mxu0 0.0
        %2843 = vmatpush.msra.mxu0 0.0
        %2844 = vmatpush.msra.mxu0 0.0
        %2845 = vmatpush.msra.mxu0 0.0
        %2846 = vmatpush.msra.mxu0 0.0
        %2847 = vmatpush.msra.mxu0 0.0
        %2848 = vmatpush.msra.mxu0 0.0
        %2849 = vmatpush.msra.mxu0 0.0
        %2850 = vmatpush.msra.mxu0 0.0
        %2851 = vmatpush.msra.mxu0 0.0
        %2852 = vmatpush.msra.mxu0 0.0
        %2853 = vmatpush.msra.mxu0 0.0
        %2854 = vmatpush.msra.mxu0 0.0
        %2855 = vmatpush.msra.mxu0 %v2792
        %2856 = vmatmul.f32.gmra.mxu0 %v2838
        %v2857 = vpop.f32.mrf.mxu0
        %v2858 = vadd.f32 0.0, %v2857
        %2859 = vdwg.mxu0
        %s2860 = scalar_lea.vmem %s11, 24
        %v2861 = vld [vmem:[%s2860] sm:$0xff]
        %v2863 = vsel %vm782, %v2858, 0
        %2865 = vmatpush.msra.mxu0 0.0
        %2866 = vmatpush.msra.mxu0 0.0
        %2867 = vmatpush.msra.mxu0 0.0
        %2868 = vmatpush.msra.mxu0 0.0
        %2869 = vmatpush.msra.mxu0 0.0
        %2870 = vmatpush.msra.mxu0 0.0
        %2871 = vmatpush.msra.mxu0 0.0
        %2872 = vmatpush.msra.mxu0 0.0
        %2873 = vmatpush.msra.mxu0 0.0
        %2874 = vmatpush.msra.mxu0 0.0
        %2875 = vmatpush.msra.mxu0 0.0
        %2876 = vmatpush.msra.mxu0 0.0
        %2877 = vmatpush.msra.mxu0 0.0
        %2878 = vmatpush.msra.mxu0 0.0
        %2879 = vmatpush.msra.mxu0 0.0
        %2880 = vmatpush.msra.mxu0 %v2861
        %2881 = vmatmul.f32.gmra.mxu0 %v2863
        %v2882 = vpop.f32.mrf.mxu0
        %v2883 = vadd.f32 0.0, %v2882
        %2884 = vdwg.mxu0
        %v2885 = vadd.f32 %v2718, %v2883
        %v2886 = vadd.f32 %v673, %v2885
        %s2887 = scalar_lea.vmem %s9, 1
        %v2888 = vld [vmem:[%s2887] sm:$0x1]
        %v2889 = vmul.f32 %v2886, %v2886
        %v2890 = vsel %vm676, %v2889, 0.0
        %2891 = vadd.xlane.f32.xlu0 %v2890
        %v2892 = vpop.xlane.xlu0 %2891
        %v2893 = vmul.f32 %v2892, %v686
        %v2894 = vadd.f32 %v2893, 1e-06
        %v2895 = vrsqrt.pop %v2894
        %v2896 = vmul.f32 %v2895, %v2894
        %v2897 = vmul.f32 %v2896, %v2895
        %v2898 = vmul.f32 0.5, %v2897
        %v2899 = vsub.f32 1.5, %v2898
        %v2900 = vmul.f32 %v2895, %v2899
        %vm2901 = vweird.f32 %v2894
        %vm2902 = vweird.f32 %v2895
        %vm2903 = vmor %vm2901, %vm2902
        %v2904 = vsel %vm2903, %v2895, %v2900
        %v2905 = vmul.f32 %v2886, %v2904
        %v2907 = vperm.slane %v2888, 0
        %v2909 = vmul.f32 %v2905, %v2907
        %v2910 = vld [vmem:[%s12] sm:$0xff]
        %v2911 = vld [vmem:[%s12 + $0x8] sm:$0xff]
        %v2912 = vld [vmem:[%s12 + $0x10] sm:$0xff]
        %v2913 = vld [vmem:[%s12 + $0x18] sm:$0xff]
        %v2915 = vsel %vm676, %v2909, 0
        %2917 = vmatpush.msra.mxu0 0.0
        %2918 = vmatpush.msra.mxu0 0.0
        %2919 = vmatpush.msra.mxu0 0.0
        %2920 = vmatpush.msra.mxu0 0.0
        %2921 = vmatpush.msra.mxu0 0.0
        %2922 = vmatpush.msra.mxu0 0.0
        %2923 = vmatpush.msra.mxu0 0.0
        %2924 = vmatpush.msra.mxu0 0.0
        %2925 = vmatpush.msra.mxu0 0.0
        %2926 = vmatpush.msra.mxu0 0.0
        %2927 = vmatpush.msra.mxu0 0.0
        %2928 = vmatpush.msra.mxu0 0.0
        %2929 = vmatpush.msra.mxu0 %v2913
        %2930 = vmatpush.msra.mxu0 %v2912
        %2931 = vmatpush.msra.mxu0 %v2911
        %2932 = vmatpush.msra.mxu0 %v2910
        %2933 = vmatmul.f32.gmra.mxu0 %v2915
        %v2934 = vpop.f32.mrf.mxu0
        %v2935 = vadd.f32 0.0, %v2934
        %2936 = vdwg.mxu0
        %s2937 = scalar_lea.vmem %s12, 128
        %v2938 = vld [vmem:[%s2937] sm:$0xff]
        %v2939 = vld [vmem:[%s2937 + $0x8] sm:$0xff]
        %v2940 = vld [vmem:[%s2937 + $0x10] sm:$0xff]
        %v2941 = vld [vmem:[%s2937 + $0x18] sm:$0xff]
        %v2943 = vsel %vm676, %v2215, 0
        %2945 = vmatpush.msra.mxu0 0.0
        %2946 = vmatpush.msra.mxu0 0.0
        %2947 = vmatpush.msra.mxu0 0.0
        %2948 = vmatpush.msra.mxu0 0.0
        %2949 = vmatpush.msra.mxu0 0.0
        %2950 = vmatpush.msra.mxu0 0.0
        %2951 = vmatpush.msra.mxu0 0.0
        %2952 = vmatpush.msra.mxu0 0.0
        %2953 = vmatpush.msra.mxu0 0.0
        %2954 = vmatpush.msra.mxu0 0.0
        %2955 = vmatpush.msra.mxu0 0.0
        %2956 = vmatpush.msra.mxu0 0.0
        %2957 = vmatpush.msra.mxu0 %v2941
        %2958 = vmatpush.msra.mxu0 %v2940
        %2959 = vmatpush.msra.mxu0 %v2939
        %2960 = vmatpush.msra.mxu0 %v2938
        %2961 = vmatmul.f32.gmra.mxu0 %v2943
        %v2962 = vpop.f32.mrf.mxu0
        %v2963 = vadd.f32 0.0, %v2962
        %2964 = vdwg.mxu0
        %s2965 = scalar_lea.vmem %s12, 256
        %v2966 = vld [vmem:[%s2965] sm:$0xff]
        %v2967 = vld [vmem:[%s2965 + $0x8] sm:$0xff]
        %v2968 = vld [vmem:[%s2965 + $0x10] sm:$0xff]
        %v2969 = vld [vmem:[%s2965 + $0x18] sm:$0xff]
        %2970 = vmatpush.msra.mxu0 0.0
        %2971 = vmatpush.msra.mxu0 0.0
        %2972 = vmatpush.msra.mxu0 0.0
        %2973 = vmatpush.msra.mxu0 0.0
        %2974 = vmatpush.msra.mxu0 0.0
        %2975 = vmatpush.msra.mxu0 0.0
        %2976 = vmatpush.msra.mxu0 0.0
        %2977 = vmatpush.msra.mxu0 0.0
        %2978 = vmatpush.msra.mxu0 0.0
        %2979 = vmatpush.msra.mxu0 0.0
        %2980 = vmatpush.msra.mxu0 0.0
        %2981 = vmatpush.msra.mxu0 0.0
        %2982 = vmatpush.msra.mxu0 %v2969
        %2983 = vmatpush.msra.mxu0 %v2968
        %2984 = vmatpush.msra.mxu0 %v2967
        %2985 = vmatpush.msra.mxu0 %v2966
        %2986 = vmatmul.f32.gmra.mxu0 %v2943
        %v2987 = vpop.f32.mrf.mxu0
        %v2988 = vadd.f32 0.0, %v2987
        %2989 = vdwg.mxu0
        %2990 = vst.msk [vmem:[%s662] sm:$0xff] %vm782, %v2963
        %2991 = vst.msk [vmem:[%s668] sm:$0xff] %vm782, %v2988
        %v2993 = vsel %vm782, %v2935, 0
        %v2996 = vsel %vm782, %v2963, 0
        %2998 = vmatpush.xpose.msra.mxu0 0.0
        %2999 = vmatpush.xpose.msra.mxu0 0.0
        %3000 = vmatpush.xpose.msra.mxu0 0.0
        %3001 = vmatpush.xpose.msra.mxu0 0.0
        %3002 = vmatpush.xpose.msra.mxu0 0.0
        %3003 = vmatpush.xpose.msra.mxu0 0.0
        %3004 = vmatpush.xpose.msra.mxu0 0.0
        %3005 = vmatpush.xpose.msra.mxu0 0.0
        %3006 = vmatpush.xpose.msra.mxu0 0.0
        %3007 = vmatpush.xpose.msra.mxu0 0.0
        %3008 = vmatpush.xpose.msra.mxu0 0.0
        %3009 = vmatpush.xpose.msra.mxu0 0.0
        %3010 = vmatpush.xpose.msra.mxu0 0.0
        %3011 = vmatpush.xpose.msra.mxu0 0.0
        %3012 = vmatpush.xpose.msra.mxu0 0.0
        %3013 = vmatpush.xpose.msra.mxu0 %v2996
        %3014 = vmatmul.f32.gmra.mxu0 %v2993
        %v3015 = vpop.f32.mrf.mxu0
        %v3016 = vadd.f32 0.0, %v3015
        %3017 = vdwg.mxu0
        %v3018 = vsel %vm782, %v3016, -inf
        %3019 = vmax.xlane.f32.xlu0 %v3018
        %v3020 = vpop.xlane.xlu0 %3019
        %v3021 = vsub.f32 %v3016, %v3020
        %v3022 = vmul.f32 %v3021, 1.442695
        %v3023 = vpow.pop %v3022
        %v3024 = vsel %vm782, %v3023, 0.0
        %3025 = vadd.xlane.f32.xlu0 %v3024
        %v3026 = vpop.xlane.xlu0 %3025
        %v3027 = vrcp.pop %v3026
        %v3028 = vmul.f32 %v3023, %v3027
        %v3030 = vsel %vm782, %v3028, 0
        %3032 = vmatpush.msra.mxu0 0.0
        %3033 = vmatpush.msra.mxu0 0.0
        %3034 = vmatpush.msra.mxu0 0.0
        %3035 = vmatpush.msra.mxu0 0.0
        %3036 = vmatpush.msra.mxu0 0.0
        %3037 = vmatpush.msra.mxu0 0.0
        %3038 = vmatpush.msra.mxu0 0.0
        %3039 = vmatpush.msra.mxu0 0.0
        %3040 = vmatpush.msra.mxu0 0.0
        %3041 = vmatpush.msra.mxu0 0.0
        %3042 = vmatpush.msra.mxu0 0.0
        %3043 = vmatpush.msra.mxu0 0.0
        %3044 = vmatpush.msra.mxu0 0.0
        %3045 = vmatpush.msra.mxu0 0.0
        %3046 = vmatpush.msra.mxu0 0.0
        %3047 = vmatpush.msra.mxu0 %v2988
        %3048 = vmatmul.f32.gmra.mxu0 %v3030
        %v3049 = vpop.f32.mrf.mxu0
        %v3050 = vadd.f32 0.0, %v3049
        %3051 = vdwg.mxu0
        %v3052 = vld [vmem:[%s13] sm:$0xff]
        %s3053 = scalar_lea.vmem %s12, 32
        %v3054 = vld [vmem:[%s3053] sm:$0xff]
        %v3055 = vld [vmem:[%s3053 + $0x8] sm:$0xff]
        %v3056 = vld [vmem:[%s3053 + $0x10] sm:$0xff]
        %v3057 = vld [vmem:[%s3053 + $0x18] sm:$0xff]
        %3058 = vmatpush.msra.mxu0 0.0
        %3059 = vmatpush.msra.mxu0 0.0
        %3060 = vmatpush.msra.mxu0 0.0
        %3061 = vmatpush.msra.mxu0 0.0
        %3062 = vmatpush.msra.mxu0 0.0
        %3063 = vmatpush.msra.mxu0 0.0
        %3064 = vmatpush.msra.mxu0 0.0
        %3065 = vmatpush.msra.mxu0 0.0
        %3066 = vmatpush.msra.mxu0 0.0
        %3067 = vmatpush.msra.mxu0 0.0
        %3068 = vmatpush.msra.mxu0 0.0
        %3069 = vmatpush.msra.mxu0 0.0
        %3070 = vmatpush.msra.mxu0 %v3057
        %3071 = vmatpush.msra.mxu0 %v3056
        %3072 = vmatpush.msra.mxu0 %v3055
        %3073 = vmatpush.msra.mxu0 %v3054
        %3074 = vmatmul.f32.gmra.mxu0 %v2915
        %v3075 = vpop.f32.mrf.mxu0
        %v3076 = vadd.f32 0.0, %v3075
        %3077 = vdwg.mxu0
        %s3078 = scalar_lea.vmem %s12, 160
        %v3079 = vld [vmem:[%s3078] sm:$0xff]
        %v3080 = vld [vmem:[%s3078 + $0x8] sm:$0xff]
        %v3081 = vld [vmem:[%s3078 + $0x10] sm:$0xff]
        %v3082 = vld [vmem:[%s3078 + $0x18] sm:$0xff]
        %3083 = vmatpush.msra.mxu0 0.0
        %3084 = vmatpush.msra.mxu0 0.0
        %3085 = vmatpush.msra.mxu0 0.0
        %3086 = vmatpush.msra.mxu0 0.0
        %3087 = vmatpush.msra.mxu0 0.0
        %3088 = vmatpush.msra.mxu0 0.0
        %3089 = vmatpush.msra.mxu0 0.0
        %3090 = vmatpush.msra.mxu0 0.0
        %3091 = vmatpush.msra.mxu0 0.0
        %3092 = vmatpush.msra.mxu0 0.0
        %3093 = vmatpush.msra.mxu0 0.0
        %3094 = vmatpush.msra.mxu0 0.0
        %3095 = vmatpush.msra.mxu0 %v3082
        %3096 = vmatpush.msra.mxu0 %v3081
        %3097 = vmatpush.msra.mxu0 %v3080
        %3098 = vmatpush.msra.mxu0 %v3079
        %3099 = vmatmul.f32.gmra.mxu0 %v2943
        %v3100 = vpop.f32.mrf.mxu0
        %v3101 = vadd.f32 0.0, %v3100
        %3102 = vdwg.mxu0
        %s3103 = scalar_lea.vmem %s12, 288
        %v3104 = vld [vmem:[%s3103] sm:$0xff]
        %v3105 = vld [vmem:[%s3103 + $0x8] sm:$0xff]
        %v3106 = vld [vmem:[%s3103 + $0x10] sm:$0xff]
        %v3107 = vld [vmem:[%s3103 + $0x18] sm:$0xff]
        %3108 = vmatpush.msra.mxu0 0.0
        %3109 = vmatpush.msra.mxu0 0.0
        %3110 = vmatpush.msra.mxu0 0.0
        %3111 = vmatpush.msra.mxu0 0.0
        %3112 = vmatpush.msra.mxu0 0.0
        %3113 = vmatpush.msra.mxu0 0.0
        %3114 = vmatpush.msra.mxu0 0.0
        %3115 = vmatpush.msra.mxu0 0.0
        %3116 = vmatpush.msra.mxu0 0.0
        %3117 = vmatpush.msra.mxu0 0.0
        %3118 = vmatpush.msra.mxu0 0.0
        %3119 = vmatpush.msra.mxu0 0.0
        %3120 = vmatpush.msra.mxu0 %v3107
        %3121 = vmatpush.msra.mxu0 %v3106
        %3122 = vmatpush.msra.mxu0 %v3105
        %3123 = vmatpush.msra.mxu0 %v3104
        %3124 = vmatmul.f32.gmra.mxu0 %v2943
        %v3125 = vpop.f32.mrf.mxu0
        %v3126 = vadd.f32 0.0, %v3125
        %3127 = vdwg.mxu0
        %s3128 = scalar_lea.vmem %s662, 8 [#allocation5]
        %3129 = vst.msk [vmem:[%s3128] sm:$0xff] %vm782, %v3101
        %s3130 = scalar_lea.vmem %s668, 8 [#allocation6]
        %3131 = vst.msk [vmem:[%s3130] sm:$0xff] %vm782, %v3126
        %v3133 = vsel %vm782, %v3076, 0
        %v3136 = vsel %vm782, %v3101, 0
        %3138 = vmatpush.xpose.msra.mxu0 0.0
        %3139 = vmatpush.xpose.msra.mxu0 0.0
        %3140 = vmatpush.xpose.msra.mxu0 0.0
        %3141 = vmatpush.xpose.msra.mxu0 0.0
        %3142 = vmatpush.xpose.msra.mxu0 0.0
        %3143 = vmatpush.xpose.msra.mxu0 0.0
        %3144 = vmatpush.xpose.msra.mxu0 0.0
        %3145 = vmatpush.xpose.msra.mxu0 0.0
        %3146 = vmatpush.xpose.msra.mxu0 0.0
        %3147 = vmatpush.xpose.msra.mxu0 0.0
        %3148 = vmatpush.xpose.msra.mxu0 0.0
        %3149 = vmatpush.xpose.msra.mxu0 0.0
        %3150 = vmatpush.xpose.msra.mxu0 0.0
        %3151 = vmatpush.xpose.msra.mxu0 0.0
        %3152 = vmatpush.xpose.msra.mxu0 0.0
        %3153 = vmatpush.xpose.msra.mxu0 %v3136
        %3154 = vmatmul.f32.gmra.mxu0 %v3133
        %v3155 = vpop.f32.mrf.mxu0
        %v3156 = vadd.f32 0.0, %v3155
        %3157 = vdwg.mxu0
        %v3158 = vsel %vm782, %v3156, -inf
        %3159 = vmax.xlane.f32.xlu0 %v3158
        %v3160 = vpop.xlane.xlu0 %3159
        %v3161 = vsub.f32 %v3156, %v3160
        %v3162 = vmul.f32 %v3161, 1.442695
        %v3163 = vpow.pop %v3162
        %v3164 = vsel %vm782, %v3163, 0.0
        %3165 = vadd.xlane.f32.xlu0 %v3164
        %v3166 = vpop.xlane.xlu0 %3165
        %v3167 = vrcp.pop %v3166
        %v3168 = vmul.f32 %v3163, %v3167
        %v3170 = vsel %vm782, %v3168, 0
        %3172 = vmatpush.msra.mxu0 0.0
        %3173 = vmatpush.msra.mxu0 0.0
        %3174 = vmatpush.msra.mxu0 0.0
        %3175 = vmatpush.msra.mxu0 0.0
        %3176 = vmatpush.msra.mxu0 0.0
        %3177 = vmatpush.msra.mxu0 0.0
        %3178 = vmatpush.msra.mxu0 0.0
        %3179 = vmatpush.msra.mxu0 0.0
        %3180 = vmatpush.msra.mxu0 0.0
        %3181 = vmatpush.msra.mxu0 0.0
        %3182 = vmatpush.msra.mxu0 0.0
        %3183 = vmatpush.msra.mxu0 0.0
        %3184 = vmatpush.msra.mxu0 0.0
        %3185 = vmatpush.msra.mxu0 0.0
        %3186 = vmatpush.msra.mxu0 0.0
        %3187 = vmatpush.msra.mxu0 %v3126
        %3188 = vmatmul.f32.gmra.mxu0 %v3170
        %v3189 = vpop.f32.mrf.mxu0
        %v3190 = vadd.f32 0.0, %v3189
        %3191 = vdwg.mxu0
        %s3192 = scalar_lea.vmem %s13, 8
        %v3193 = vld [vmem:[%s3192] sm:$0xff]
        %v3195 = vsel %vm782, %v3190, 0
        %3197 = vmatpush.msra.mxu0 0.0
        %3198 = vmatpush.msra.mxu0 0.0
        %3199 = vmatpush.msra.mxu0 0.0
        %3200 = vmatpush.msra.mxu0 0.0
        %3201 = vmatpush.msra.mxu0 0.0
        %3202 = vmatpush.msra.mxu0 0.0
        %3203 = vmatpush.msra.mxu0 0.0
        %3204 = vmatpush.msra.mxu0 0.0
        %3205 = vmatpush.msra.mxu0 0.0
        %3206 = vmatpush.msra.mxu0 0.0
        %3207 = vmatpush.msra.mxu0 0.0
        %3208 = vmatpush.msra.mxu0 0.0
        %3209 = vmatpush.msra.mxu0 0.0
        %3210 = vmatpush.msra.mxu0 0.0
        %3211 = vmatpush.msra.mxu0 0.0
        %3212 = vmatpush.msra.mxu0 %v3193
        %3213 = vmatmul.f32.gmra.mxu0 %v3195
        %v3214 = vpop.f32.mrf.mxu0
        %v3215 = vadd.f32 0.0, %v3214
        %3216 = vdwg.mxu0
        %v3218 = vsel %vm782, %v3050, 0
        %3220 = vmatpush.msra.mxu0 0.0
        %3221 = vmatpush.msra.mxu0 0.0
        %3222 = vmatpush.msra.mxu0 0.0
        %3223 = vmatpush.msra.mxu0 0.0
        %3224 = vmatpush.msra.mxu0 0.0
        %3225 = vmatpush.msra.mxu0 0.0
        %3226 = vmatpush.msra.mxu0 0.0
        %3227 = vmatpush.msra.mxu0 0.0
        %3228 = vmatpush.msra.mxu0 0.0
        %3229 = vmatpush.msra.mxu0 0.0
        %3230 = vmatpush.msra.mxu0 0.0
        %3231 = vmatpush.msra.mxu0 0.0
        %3232 = vmatpush.msra.mxu0 0.0
        %3233 = vmatpush.msra.mxu0 0.0
        %3234 = vmatpush.msra.mxu0 0.0
        %3235 = vmatpush.msra.mxu0 %v3052
        %3236 = vmatmul.f32.gmra.mxu0 %v3218
        %v3237 = vpop.f32.mrf.mxu0
        %v3238 = vadd.f32 %v3215, %v3237
        %3239 = vdwg.mxu0
        %s3240 = scalar_lea.vmem %s12, 64
        %v3241 = vld [vmem:[%s3240] sm:$0xff]
        %v3242 = vld [vmem:[%s3240 + $0x8] sm:$0xff]
        %v3243 = vld [vmem:[%s3240 + $0x10] sm:$0xff]
        %v3244 = vld [vmem:[%s3240 + $0x18] sm:$0xff]
        %3245 = vmatpush.msra.mxu0 0.0
        %3246 = vmatpush.msra.mxu0 0.0
        %3247 = vmatpush.msra.mxu0 0.0
        %3248 = vmatpush.msra.mxu0 0.0
        %3249 = vmatpush.msra.mxu0 0.0
        %3250 = vmatpush.msra.mxu0 0.0
        %3251 = vmatpush.msra.mxu0 0.0
        %3252 = vmatpush.msra.mxu0 0.0
        %3253 = vmatpush.msra.mxu0 0.0
        %3254 = vmatpush.msra.mxu0 0.0
        %3255 = vmatpush.msra.mxu0 0.0
        %3256 = vmatpush.msra.mxu0 0.0
        %3257 = vmatpush.msra.mxu0 %v3244
        %3258 = vmatpush.msra.mxu0 %v3243
        %3259 = vmatpush.msra.mxu0 %v3242
        %3260 = vmatpush.msra.mxu0 %v3241
        %3261 = vmatmul.f32.gmra.mxu0 %v2915
        %v3262 = vpop.f32.mrf.mxu0
        %v3263 = vadd.f32 0.0, %v3262
        %3264 = vdwg.mxu0
        %s3265 = scalar_lea.vmem %s12, 192
        %v3266 = vld [vmem:[%s3265] sm:$0xff]
        %v3267 = vld [vmem:[%s3265 + $0x8] sm:$0xff]
        %v3268 = vld [vmem:[%s3265 + $0x10] sm:$0xff]
        %v3269 = vld [vmem:[%s3265 + $0x18] sm:$0xff]
        %3270 = vmatpush.msra.mxu0 0.0
        %3271 = vmatpush.msra.mxu0 0.0
        %3272 = vmatpush.msra.mxu0 0.0
        %3273 = vmatpush.msra.mxu0 0.0
        %3274 = vmatpush.msra.mxu0 0.0
        %3275 = vmatpush.msra.mxu0 0.0
        %3276 = vmatpush.msra.mxu0 0.0
        %3277 = vmatpush.msra.mxu0 0.0
        %3278 = vmatpush.msra.mxu0 0.0
        %3279 = vmatpush.msra.mxu0 0.0
        %3280 = vmatpush.msra.mxu0 0.0
        %3281 = vmatpush.msra.mxu0 0.0
        %3282 = vmatpush.msra.mxu0 %v3269
        %3283 = vmatpush.msra.mxu0 %v3268
        %3284 = vmatpush.msra.mxu0 %v3267
        %3285 = vmatpush.msra.mxu0 %v3266
        %3286 = vmatmul.f32.gmra.mxu0 %v2943
        %v3287 = vpop.f32.mrf.mxu0
        %v3288 = vadd.f32 0.0, %v3287
        %3289 = vdwg.mxu0
        %s3290 = scalar_lea.vmem %s12, 320
        %v3291 = vld [vmem:[%s3290] sm:$0xff]
        %v3292 = vld [vmem:[%s3290 + $0x8] sm:$0xff]
        %v3293 = vld [vmem:[%s3290 + $0x10] sm:$0xff]
        %v3294 = vld [vmem:[%s3290 + $0x18] sm:$0xff]
        %3295 = vmatpush.msra.mxu0 0.0
        %3296 = vmatpush.msra.mxu0 0.0
        %3297 = vmatpush.msra.mxu0 0.0
        %3298 = vmatpush.msra.mxu0 0.0
        %3299 = vmatpush.msra.mxu0 0.0
        %3300 = vmatpush.msra.mxu0 0.0
        %3301 = vmatpush.msra.mxu0 0.0
        %3302 = vmatpush.msra.mxu0 0.0
        %3303 = vmatpush.msra.mxu0 0.0
        %3304 = vmatpush.msra.mxu0 0.0
        %3305 = vmatpush.msra.mxu0 0.0
        %3306 = vmatpush.msra.mxu0 0.0
        %3307 = vmatpush.msra.mxu0 %v3294
        %3308 = vmatpush.msra.mxu0 %v3293
        %3309 = vmatpush.msra.mxu0 %v3292
        %3310 = vmatpush.msra.mxu0 %v3291
        %3311 = vmatmul.f32.gmra.mxu0 %v2943
        %v3312 = vpop.f32.mrf.mxu0
        %v3313 = vadd.f32 0.0, %v3312
        %3314 = vdwg.mxu0
        %s3315 = scalar_lea.vmem %s662, 16 [#allocation5]
        %3316 = vst.msk [vmem:[%s3315] sm:$0xff] %vm782, %v3288
        %s3317 = scalar_lea.vmem %s668, 16 [#allocation6]
        %3318 = vst.msk [vmem:[%s3317] sm:$0xff] %vm782, %v3313
        %v3320 = vsel %vm782, %v3263, 0
        %v3323 = vsel %vm782, %v3288, 0
        %3325 = vmatpush.xpose.msra.mxu0 0.0
        %3326 = vmatpush.xpose.msra.mxu0 0.0
        %3327 = vmatpush.xpose.msra.mxu0 0.0
        %3328 = vmatpush.xpose.msra.mxu0 0.0
        %3329 = vmatpush.xpose.msra.mxu0 0.0
        %3330 = vmatpush.xpose.msra.mxu0 0.0
        %3331 = vmatpush.xpose.msra.mxu0 0.0
        %3332 = vmatpush.xpose.msra.mxu0 0.0
        %3333 = vmatpush.xpose.msra.mxu0 0.0
        %3334 = vmatpush.xpose.msra.mxu0 0.0
        %3335 = vmatpush.xpose.msra.mxu0 0.0
        %3336 = vmatpush.xpose.msra.mxu0 0.0
        %3337 = vmatpush.xpose.msra.mxu0 0.0
        %3338 = vmatpush.xpose.msra.mxu0 0.0
        %3339 = vmatpush.xpose.msra.mxu0 0.0
        %3340 = vmatpush.xpose.msra.mxu0 %v3323
        %3341 = vmatmul.f32.gmra.mxu0 %v3320
        %v3342 = vpop.f32.mrf.mxu0
        %v3343 = vadd.f32 0.0, %v3342
        %3344 = vdwg.mxu0
        %v3345 = vsel %vm782, %v3343, -inf
        %3346 = vmax.xlane.f32.xlu0 %v3345
        %v3347 = vpop.xlane.xlu0 %3346
        %v3348 = vsub.f32 %v3343, %v3347
        %v3349 = vmul.f32 %v3348, 1.442695
        %v3350 = vpow.pop %v3349
        %v3351 = vsel %vm782, %v3350, 0.0
        %3352 = vadd.xlane.f32.xlu0 %v3351
        %v3353 = vpop.xlane.xlu0 %3352
        %v3354 = vrcp.pop %v3353
        %v3355 = vmul.f32 %v3350, %v3354
        %v3357 = vsel %vm782, %v3355, 0
        %3359 = vmatpush.msra.mxu0 0.0
        %3360 = vmatpush.msra.mxu0 0.0
        %3361 = vmatpush.msra.mxu0 0.0
        %3362 = vmatpush.msra.mxu0 0.0
        %3363 = vmatpush.msra.mxu0 0.0
        %3364 = vmatpush.msra.mxu0 0.0
        %3365 = vmatpush.msra.mxu0 0.0
        %3366 = vmatpush.msra.mxu0 0.0
        %3367 = vmatpush.msra.mxu0 0.0
        %3368 = vmatpush.msra.mxu0 0.0
        %3369 = vmatpush.msra.mxu0 0.0
        %3370 = vmatpush.msra.mxu0 0.0
        %3371 = vmatpush.msra.mxu0 0.0
        %3372 = vmatpush.msra.mxu0 0.0
        %3373 = vmatpush.msra.mxu0 0.0
        %3374 = vmatpush.msra.mxu0 %v3313
        %3375 = vmatmul.f32.gmra.mxu0 %v3357
        %v3376 = vpop.f32.mrf.mxu0
        %v3377 = vadd.f32 0.0, %v3376
        %3378 = vdwg.mxu0
        %s3379 = scalar_lea.vmem %s13, 16
        %v3380 = vld [vmem:[%s3379] sm:$0xff]
        %v3382 = vsel %vm782, %v3377, 0
        %3384 = vmatpush.msra.mxu0 0.0
        %3385 = vmatpush.msra.mxu0 0.0
        %3386 = vmatpush.msra.mxu0 0.0
        %3387 = vmatpush.msra.mxu0 0.0
        %3388 = vmatpush.msra.mxu0 0.0
        %3389 = vmatpush.msra.mxu0 0.0
        %3390 = vmatpush.msra.mxu0 0.0
        %3391 = vmatpush.msra.mxu0 0.0
        %3392 = vmatpush.msra.mxu0 0.0
        %3393 = vmatpush.msra.mxu0 0.0
        %3394 = vmatpush.msra.mxu0 0.0
        %3395 = vmatpush.msra.mxu0 0.0
        %3396 = vmatpush.msra.mxu0 0.0
        %3397 = vmatpush.msra.mxu0 0.0
        %3398 = vmatpush.msra.mxu0 0.0
        %3399 = vmatpush.msra.mxu0 %v3380
        %3400 = vmatmul.f32.gmra.mxu0 %v3382
        %v3401 = vpop.f32.mrf.mxu0
        %v3402 = vadd.f32 0.0, %v3401
        %3403 = vdwg.mxu0
        %v3404 = vadd.f32 %v3238, %v3402
        %s3405 = scalar_lea.vmem %s12, 96
        %v3406 = vld [vmem:[%s3405] sm:$0xff]
        %v3407 = vld [vmem:[%s3405 + $0x8] sm:$0xff]
        %v3408 = vld [vmem:[%s3405 + $0x10] sm:$0xff]
        %v3409 = vld [vmem:[%s3405 + $0x18] sm:$0xff]
        %3410 = vmatpush.msra.mxu0 0.0
        %3411 = vmatpush.msra.mxu0 0.0
        %3412 = vmatpush.msra.mxu0 0.0
        %3413 = vmatpush.msra.mxu0 0.0
        %3414 = vmatpush.msra.mxu0 0.0
        %3415 = vmatpush.msra.mxu0 0.0
        %3416 = vmatpush.msra.mxu0 0.0
        %3417 = vmatpush.msra.mxu0 0.0
        %3418 = vmatpush.msra.mxu0 0.0
        %3419 = vmatpush.msra.mxu0 0.0
        %3420 = vmatpush.msra.mxu0 0.0
        %3421 = vmatpush.msra.mxu0 0.0
        %3422 = vmatpush.msra.mxu0 %v3409
        %3423 = vmatpush.msra.mxu0 %v3408
        %3424 = vmatpush.msra.mxu0 %v3407
        %3425 = vmatpush.msra.mxu0 %v3406
        %3426 = vmatmul.f32.gmra.mxu0 %v2915
        %v3427 = vpop.f32.mrf.mxu0
        %v3428 = vadd.f32 0.0, %v3427
        %3429 = vdwg.mxu0
        %s3430 = scalar_lea.vmem %s12, 224
        %v3431 = vld [vmem:[%s3430] sm:$0xff]
        %v3432 = vld [vmem:[%s3430 + $0x8] sm:$0xff]
        %v3433 = vld [vmem:[%s3430 + $0x10] sm:$0xff]
        %v3434 = vld [vmem:[%s3430 + $0x18] sm:$0xff]
        %3435 = vmatpush.msra.mxu0 0.0
        %3436 = vmatpush.msra.mxu0 0.0
        %3437 = vmatpush.msra.mxu0 0.0
        %3438 = vmatpush.msra.mxu0 0.0
        %3439 = vmatpush.msra.mxu0 0.0
        %3440 = vmatpush.msra.mxu0 0.0
        %3441 = vmatpush.msra.mxu0 0.0
        %3442 = vmatpush.msra.mxu0 0.0
        %3443 = vmatpush.msra.mxu0 0.0
        %3444 = vmatpush.msra.mxu0 0.0
        %3445 = vmatpush.msra.mxu0 0.0
        %3446 = vmatpush.msra.mxu0 0.0
        %3447 = vmatpush.msra.mxu0 %v3434
        %3448 = vmatpush.msra.mxu0 %v3433
        %3449 = vmatpush.msra.mxu0 %v3432
        %3450 = vmatpush.msra.mxu0 %v3431
        %3451 = vmatmul.f32.gmra.mxu0 %v2943
        %v3452 = vpop.f32.mrf.mxu0
        %v3453 = vadd.f32 0.0, %v3452
        %3454 = vdwg.mxu0
        %s3455 = scalar_lea.vmem %s12, 352
        %v3456 = vld [vmem:[%s3455] sm:$0xff]
        %v3457 = vld [vmem:[%s3455 + $0x8] sm:$0xff]
        %v3458 = vld [vmem:[%s3455 + $0x10] sm:$0xff]
        %v3459 = vld [vmem:[%s3455 + $0x18] sm:$0xff]
        %3460 = vmatpush.msra.mxu0 0.0
        %3461 = vmatpush.msra.mxu0 0.0
        %3462 = vmatpush.msra.mxu0 0.0
        %3463 = vmatpush.msra.mxu0 0.0
        %3464 = vmatpush.msra.mxu0 0.0
        %3465 = vmatpush.msra.mxu0 0.0
        %3466 = vmatpush.msra.mxu0 0.0
        %3467 = vmatpush.msra.mxu0 0.0
        %3468 = vmatpush.msra.mxu0 0.0
        %3469 = vmatpush.msra.mxu0 0.0
        %3470 = vmatpush.msra.mxu0 0.0
        %3471 = vmatpush.msra.mxu0 0.0
        %3472 = vmatpush.msra.mxu0 %v3459
        %3473 = vmatpush.msra.mxu0 %v3458
        %3474 = vmatpush.msra.mxu0 %v3457
        %3475 = vmatpush.msra.mxu0 %v3456
        %3476 = vmatmul.f32.gmra.mxu0 %v2943
        %v3477 = vpop.f32.mrf.mxu0
        %v3478 = vadd.f32 0.0, %v3477
        %3479 = vdwg.mxu0
        %s3480 = scalar_lea.vmem %s662, 24 [#allocation5]
        %3481 = vst.msk [vmem:[%s3480] sm:$0xff] %vm782, %v3453
        %s3482 = scalar_lea.vmem %s668, 24 [#allocation6]
        %3483 = vst.msk [vmem:[%s3482] sm:$0xff] %vm782, %v3478
        %v3485 = vsel %vm782, %v3428, 0
        %v3488 = vsel %vm782, %v3453, 0
        %3490 = vmatpush.xpose.msra.mxu0 0.0
        %3491 = vmatpush.xpose.msra.mxu0 0.0
        %3492 = vmatpush.xpose.msra.mxu0 0.0
        %3493 = vmatpush.xpose.msra.mxu0 0.0
        %3494 = vmatpush.xpose.msra.mxu0 0.0
        %3495 = vmatpush.xpose.msra.mxu0 0.0
        %3496 = vmatpush.xpose.msra.mxu0 0.0
        %3497 = vmatpush.xpose.msra.mxu0 0.0
        %3498 = vmatpush.xpose.msra.mxu0 0.0
        %3499 = vmatpush.xpose.msra.mxu0 0.0
        %3500 = vmatpush.xpose.msra.mxu0 0.0
        %3501 = vmatpush.xpose.msra.mxu0 0.0
        %3502 = vmatpush.xpose.msra.mxu0 0.0
        %3503 = vmatpush.xpose.msra.mxu0 0.0
        %3504 = vmatpush.xpose.msra.mxu0 0.0
        %3505 = vmatpush.xpose.msra.mxu0 %v3488
        %3506 = vmatmul.f32.gmra.mxu0 %v3485
        %v3507 = vpop.f32.mrf.mxu0
        %v3508 = vadd.f32 0.0, %v3507
        %3509 = vdwg.mxu0
        %v3510 = vsel %vm782, %v3508, -inf
        %3511 = vmax.xlane.f32.xlu0 %v3510
        %v3512 = vpop.xlane.xlu0 %3511
        %v3513 = vsub.f32 %v3508, %v3512
        %v3514 = vmul.f32 %v3513, 1.442695
        %v3515 = vpow.pop %v3514
        %v3516 = vsel %vm782, %v3515, 0.0
        %3517 = vadd.xlane.f32.xlu0 %v3516
        %v3518 = vpop.xlane.xlu0 %3517
        %v3519 = vrcp.pop %v3518
        %v3520 = vmul.f32 %v3515, %v3519
        %v3522 = vsel %vm782, %v3520, 0
        %3524 = vmatpush.msra.mxu0 0.0
        %3525 = vmatpush.msra.mxu0 0.0
        %3526 = vmatpush.msra.mxu0 0.0
        %3527 = vmatpush.msra.mxu0 0.0
        %3528 = vmatpush.msra.mxu0 0.0
        %3529 = vmatpush.msra.mxu0 0.0
        %3530 = vmatpush.msra.mxu0 0.0
        %3531 = vmatpush.msra.mxu0 0.0
        %3532 = vmatpush.msra.mxu0 0.0
        %3533 = vmatpush.msra.mxu0 0.0
        %3534 = vmatpush.msra.mxu0 0.0
        %3535 = vmatpush.msra.mxu0 0.0
        %3536 = vmatpush.msra.mxu0 0.0
        %3537 = vmatpush.msra.mxu0 0.0
        %3538 = vmatpush.msra.mxu0 0.0
        %3539 = vmatpush.msra.mxu0 %v3478
        %3540 = vmatmul.f32.gmra.mxu0 %v3522
        %v3541 = vpop.f32.mrf.mxu0
        %v3542 = vadd.f32 0.0, %v3541
        %3543 = vdwg.mxu0
        %s3544 = scalar_lea.vmem %s13, 24
        %v3545 = vld [vmem:[%s3544] sm:$0xff]
        %v3547 = vsel %vm782, %v3542, 0
        %3549 = vmatpush.msra.mxu0 0.0
        %3550 = vmatpush.msra.mxu0 0.0
        %3551 = vmatpush.msra.mxu0 0.0
        %3552 = vmatpush.msra.mxu0 0.0
        %3553 = vmatpush.msra.mxu0 0.0
        %3554 = vmatpush.msra.mxu0 0.0
        %3555 = vmatpush.msra.mxu0 0.0
        %3556 = vmatpush.msra.mxu0 0.0
        %3557 = vmatpush.msra.mxu0 0.0
        %3558 = vmatpush.msra.mxu0 0.0
        %3559 = vmatpush.msra.mxu0 0.0
        %3560 = vmatpush.msra.mxu0 0.0
        %3561 = vmatpush.msra.mxu0 0.0
        %3562 = vmatpush.msra.mxu0 0.0
        %3563 = vmatpush.msra.mxu0 0.0
        %3564 = vmatpush.msra.mxu0 %v3545
        %3565 = vmatmul.f32.gmra.mxu0 %v3547
        %v3566 = vpop.f32.mrf.mxu0
        %v3567 = vadd.f32 0.0, %v3566
        %3568 = vdwg.mxu0
        %v3569 = vadd.f32 %v3404, %v3567
        %v3570 = vadd.f32 %v2886, %v3569
        %s3571 = scalar_lea.vmem %s9, 2
        %v3572 = vld [vmem:[%s3571] sm:$0x1]
        %v3573 = vmul.f32 %v3570, %v3570
        %v3574 = vsel %vm676, %v3573, 0.0
        %3575 = vadd.xlane.f32.xlu0 %v3574
        %v3576 = vpop.xlane.xlu0 %3575
        %v3577 = vmul.f32 %v3576, %v686
        %v3578 = vadd.f32 %v3577, 1e-06
        %v3579 = vrsqrt.pop %v3578
        %v3580 = vmul.f32 %v3579, %v3578
        %v3581 = vmul.f32 %v3580, %v3579
        %v3582 = vmul.f32 0.5, %v3581
        %v3583 = vsub.f32 1.5, %v3582
        %v3584 = vmul.f32 %v3579, %v3583
        %vm3585 = vweird.f32 %v3578
        %vm3586 = vweird.f32 %v3579
        %vm3587 = vmor %vm3585, %vm3586
        %v3588 = vsel %vm3587, %v3579, %v3584
        %v3589 = vmul.f32 %v3570, %v3588
        %v3591 = vperm.slane %v3572, 0
        %v3593 = vmul.f32 %v3589, %v3591
        %v3594 = vld [vmem:[%s14] sm:$0xff]
        %v3595 = vld [vmem:[%s14 + $0x8] sm:$0xff]
        %v3596 = vld [vmem:[%s14 + $0x10] sm:$0xff]
        %v3597 = vld [vmem:[%s14 + $0x18] sm:$0xff]
        %v3598 = vld [vmem:[%s15] sm:$0xff]
        %v3599 = vld [vmem:[%s15 + $0x8] sm:$0xff]
        %v3600 = vld [vmem:[%s15 + $0x10] sm:$0xff]
        %v3601 = vld [vmem:[%s15 + $0x18] sm:$0xff]
        %v3602 = vld [vmem:[%s15 + $0x20] sm:$0xff]
        %v3603 = vld [vmem:[%s15 + $0x28] sm:$0xff]
        %v3604 = vld [vmem:[%s15 + $0x30] sm:$0xff]
        %v3605 = vld [vmem:[%s15 + $0x38] sm:$0xff]
        %v3607 = vsel %vm676, %v3593, 0
        %3609 = vmatpush.msra.mxu0 0.0
        %3610 = vmatpush.msra.mxu0 0.0
        %3611 = vmatpush.msra.mxu0 0.0
        %3612 = vmatpush.msra.mxu0 0.0
        %3613 = vmatpush.msra.mxu0 0.0
        %3614 = vmatpush.msra.mxu0 0.0
        %3615 = vmatpush.msra.mxu0 0.0
        %3616 = vmatpush.msra.mxu0 0.0
        %3617 = vmatpush.msra.mxu0 0.0
        %3618 = vmatpush.msra.mxu0 0.0
        %3619 = vmatpush.msra.mxu0 0.0
        %3620 = vmatpush.msra.mxu0 0.0
        %3621 = vmatpush.msra.mxu0 %v3597
        %3622 = vmatpush.msra.mxu0 %v3596
        %3623 = vmatpush.msra.mxu0 %v3595
        %3624 = vmatpush.msra.mxu0 %v3594
        %3625 = vmatmul.f32.gmra.mxu0 %v3607
        %v3626 = vpop.f32.mrf.mxu0
        %v3627 = vadd.f32 0.0, %v3626
        %3628 = vdwg.mxu0
        %v3629 = vmax.f32 %v3627, 0.0
        %v3631 = vsel %vm1415, %v3629, 0
        %3633 = vmatpush.msra.mxu0 0.0
        %3634 = vmatpush.msra.mxu0 0.0
        %3635 = vmatpush.msra.mxu0 0.0
        %3636 = vmatpush.msra.mxu0 0.0
        %3637 = vmatpush.msra.mxu0 0.0
        %3638 = vmatpush.msra.mxu0 0.0
        %3639 = vmatpush.msra.mxu0 0.0
        %3640 = vmatpush.msra.mxu0 0.0
        %3641 = vmatpush.msra.mxu0 %v3605
        %3642 = vmatpush.msra.mxu0 %v3604
        %3643 = vmatpush.msra.mxu0 %v3603
        %3644 = vmatpush.msra.mxu0 %v3602
        %3645 = vmatpush.msra.mxu0 %v3601
        %3646 = vmatpush.msra.mxu0 %v3600
        %3647 = vmatpush.msra.mxu0 %v3599
        %3648 = vmatpush.msra.mxu0 %v3598
        %3649 = vmatmul.f32.gmra.mxu0 %v3631
        %v3650 = vpop.f32.mrf.mxu0
        %v3651 = vadd.f32 0.0, %v3650
        %3652 = vdwg.mxu0
        %v3653 = vadd.f32 %v3570, %v3651
        %s3654 = scalar_lea.vmem %s644, 8 [#allocation2]
        %3655 = vst.msk [vmem:[%s3654] sm:$0xff] %vm676, %v3653
        %s3656 = scalar_lea.vmem %s9, 3
        %v3657 = vld [vmem:[%s3656] sm:$0x1]
        %v3658 = vmul.f32 %v3653, %v3653
        %v3659 = vsel %vm676, %v3658, 0.0
        %3660 = vadd.xlane.f32.xlu0 %v3659
        %v3661 = vpop.xlane.xlu0 %3660
        %v3662 = vmul.f32 %v3661, %v686
        %v3663 = vadd.f32 %v3662, 1e-06
        %v3664 = vrsqrt.pop %v3663
        %v3665 = vmul.f32 %v3664, %v3663
        %v3666 = vmul.f32 %v3665, %v3664
        %v3667 = vmul.f32 0.5, %v3666
        %v3668 = vsub.f32 1.5, %v3667
        %v3669 = vmul.f32 %v3664, %v3668
        %vm3670 = vweird.f32 %v3663
        %vm3671 = vweird.f32 %v3664
        %vm3672 = vmor %vm3670, %vm3671
        %v3673 = vsel %vm3672, %v3664, %v3669
        %v3674 = vmul.f32 %v3653, %v3673
        %v3676 = vperm.slane %v3657, 0
        %v3678 = vmul.f32 %v3674, %v3676
        %s3679 = scalar_lea.vmem %s10, 384
        %v3680 = vld [vmem:[%s3679] sm:$0xff]
        %v3681 = vld [vmem:[%s3679 + $0x8] sm:$0xff]
        %v3682 = vld [vmem:[%s3679 + $0x10] sm:$0xff]
        %v3683 = vld [vmem:[%s3679 + $0x18] sm:$0xff]
        %v3685 = vsel %vm676, %v3678, 0
        %3687 = vmatpush.msra.mxu0 0.0
        %3688 = vmatpush.msra.mxu0 0.0
        %3689 = vmatpush.msra.mxu0 0.0
        %3690 = vmatpush.msra.mxu0 0.0
        %3691 = vmatpush.msra.mxu0 0.0
        %3692 = vmatpush.msra.mxu0 0.0
        %3693 = vmatpush.msra.mxu0 0.0
        %3694 = vmatpush.msra.mxu0 0.0
        %3695 = vmatpush.msra.mxu0 0.0
        %3696 = vmatpush.msra.mxu0 0.0
        %3697 = vmatpush.msra.mxu0 0.0
        %3698 = vmatpush.msra.mxu0 0.0
        %3699 = vmatpush.msra.mxu0 %v3683
        %3700 = vmatpush.msra.mxu0 %v3682
        %3701 = vmatpush.msra.mxu0 %v3681
        %3702 = vmatpush.msra.mxu0 %v3680
        %3703 = vmatmul.f32.gmra.mxu0 %v3685
        %v3704 = vpop.f32.mrf.mxu0
        %v3705 = vadd.f32 0.0, %v3704
        %3706 = vdwg.mxu0
        %s3707 = scalar_lea.vmem %s10, 512
        %v3708 = vld [vmem:[%s3707] sm:$0xff]
        %v3709 = vld [vmem:[%s3707 + $0x8] sm:$0xff]
        %v3710 = vld [vmem:[%s3707 + $0x10] sm:$0xff]
        %v3711 = vld [vmem:[%s3707 + $0x18] sm:$0xff]
        %3712 = vmatpush.msra.mxu0 0.0
        %3713 = vmatpush.msra.mxu0 0.0
        %3714 = vmatpush.msra.mxu0 0.0
        %3715 = vmatpush.msra.mxu0 0.0
        %3716 = vmatpush.msra.mxu0 0.0
        %3717 = vmatpush.msra.mxu0 0.0
        %3718 = vmatpush.msra.mxu0 0.0
        %3719 = vmatpush.msra.mxu0 0.0
        %3720 = vmatpush.msra.mxu0 0.0
        %3721 = vmatpush.msra.mxu0 0.0
        %3722 = vmatpush.msra.mxu0 0.0
        %3723 = vmatpush.msra.mxu0 0.0
        %3724 = vmatpush.msra.mxu0 %v3711
        %3725 = vmatpush.msra.mxu0 %v3710
        %3726 = vmatpush.msra.mxu0 %v3709
        %3727 = vmatpush.msra.mxu0 %v3708
        %3728 = vmatmul.f32.gmra.mxu0 %v3685
        %v3729 = vpop.f32.mrf.mxu0
        %v3730 = vadd.f32 0.0, %v3729
        %3731 = vdwg.mxu0
        %s3732 = scalar_lea.vmem %s10, 640
        %v3733 = vld [vmem:[%s3732] sm:$0xff]
        %v3734 = vld [vmem:[%s3732 + $0x8] sm:$0xff]
        %v3735 = vld [vmem:[%s3732 + $0x10] sm:$0xff]
        %v3736 = vld [vmem:[%s3732 + $0x18] sm:$0xff]
        %3737 = vmatpush.msra.mxu0 0.0
        %3738 = vmatpush.msra.mxu0 0.0
        %3739 = vmatpush.msra.mxu0 0.0
        %3740 = vmatpush.msra.mxu0 0.0
        %3741 = vmatpush.msra.mxu0 0.0
        %3742 = vmatpush.msra.mxu0 0.0
        %3743 = vmatpush.msra.mxu0 0.0
        %3744 = vmatpush.msra.mxu0 0.0
        %3745 = vmatpush.msra.mxu0 0.0
        %3746 = vmatpush.msra.mxu0 0.0
        %3747 = vmatpush.msra.mxu0 0.0
        %3748 = vmatpush.msra.mxu0 0.0
        %3749 = vmatpush.msra.mxu0 %v3736
        %3750 = vmatpush.msra.mxu0 %v3735
        %3751 = vmatpush.msra.mxu0 %v3734
        %3752 = vmatpush.msra.mxu0 %v3733
        %3753 = vmatmul.f32.gmra.mxu0 %v3685
        %v3754 = vpop.f32.mrf.mxu0
        %v3755 = vadd.f32 0.0, %v3754
        %3756 = vdwg.mxu0
        %s3757 = scalar_lea.vmem %s650, 32 [#allocation3]
        %3758 = vst.msk [vmem:[%s3757] sm:$0xff] %vm782, %v3730
        %s3759 = scalar_lea.vmem %s656, 32 [#allocation4]
        %3760 = vst.msk [vmem:[%s3759] sm:$0xff] %vm782, %v3755
        %v3761 = vld [vmem:[%s2] sm:$0xff]
        %v3763 = vsel %vm782, %v3705, 0
        %v3766 = vsel %vm782, %v3730, 0
        %3768 = vmatpush.xpose.msra.mxu0 0.0
        %3769 = vmatpush.xpose.msra.mxu0 0.0
        %3770 = vmatpush.xpose.msra.mxu0 0.0
        %3771 = vmatpush.xpose.msra.mxu0 0.0
        %3772 = vmatpush.xpose.msra.mxu0 0.0
        %3773 = vmatpush.xpose.msra.mxu0 0.0
        %3774 = vmatpush.xpose.msra.mxu0 0.0
        %3775 = vmatpush.xpose.msra.mxu0 0.0
        %3776 = vmatpush.xpose.msra.mxu0 0.0
        %3777 = vmatpush.xpose.msra.mxu0 0.0
        %3778 = vmatpush.xpose.msra.mxu0 0.0
        %3779 = vmatpush.xpose.msra.mxu0 0.0
        %3780 = vmatpush.xpose.msra.mxu0 0.0
        %3781 = vmatpush.xpose.msra.mxu0 0.0
        %3782 = vmatpush.xpose.msra.mxu0 0.0
        %3783 = vmatpush.xpose.msra.mxu0 %v3766
        %3784 = vmatmul.f32.gmra.mxu0 %v3763
        %v3785 = vpop.f32.mrf.mxu0
        %v3786 = vadd.f32 %v3761, %v3785
        %3787 = vdwg.mxu0
        %v3788 = vsel %vm782, %v3786, -inf
        %3789 = vmax.xlane.f32.xlu0 %v3788
        %v3790 = vpop.xlane.xlu0 %3789
        %v3791 = vsub.f32 %v3786, %v3790
        %v3792 = vmul.f32 %v3791, 1.442695
        %v3793 = vpow.pop %v3792
        %v3794 = vsel %vm782, %v3793, 0.0
        %3795 = vadd.xlane.f32.xlu0 %v3794
        %v3796 = vpop.xlane.xlu0 %3795
        %v3797 = vrcp.pop %v3796
        %v3798 = vmul.f32 %v3793, %v3797
        %v3800 = vsel %vm782, %v3798, 0
        %3802 = vmatpush.msra.mxu0 0.0
        %3803 = vmatpush.msra.mxu0 0.0
        %3804 = vmatpush.msra.mxu0 0.0
        %3805 = vmatpush.msra.mxu0 0.0
        %3806 = vmatpush.msra.mxu0 0.0
        %3807 = vmatpush.msra.mxu0 0.0
        %3808 = vmatpush.msra.mxu0 0.0
        %3809 = vmatpush.msra.mxu0 0.0
        %3810 = vmatpush.msra.mxu0 0.0
        %3811 = vmatpush.msra.mxu0 0.0
        %3812 = vmatpush.msra.mxu0 0.0
        %3813 = vmatpush.msra.mxu0 0.0
        %3814 = vmatpush.msra.mxu0 0.0
        %3815 = vmatpush.msra.mxu0 0.0
        %3816 = vmatpush.msra.mxu0 0.0
        %3817 = vmatpush.msra.mxu0 %v3755
        %3818 = vmatmul.f32.gmra.mxu0 %v3800
        %v3819 = vpop.f32.mrf.mxu0
        %v3820 = vadd.f32 0.0, %v3819
        %3821 = vdwg.mxu0
        %s3822 = scalar_lea.vmem %s11, 32
        %v3823 = vld [vmem:[%s3822] sm:$0xff]
        %s3824 = scalar_lea.vmem %s10, 416
        %v3825 = vld [vmem:[%s3824] sm:$0xff]
        %v3826 = vld [vmem:[%s3824 + $0x8] sm:$0xff]
        %v3827 = vld [vmem:[%s3824 + $0x10] sm:$0xff]
        %v3828 = vld [vmem:[%s3824 + $0x18] sm:$0xff]
        %3829 = vmatpush.msra.mxu0 0.0
        %3830 = vmatpush.msra.mxu0 0.0
        %3831 = vmatpush.msra.mxu0 0.0
        %3832 = vmatpush.msra.mxu0 0.0
        %3833 = vmatpush.msra.mxu0 0.0
        %3834 = vmatpush.msra.mxu0 0.0
        %3835 = vmatpush.msra.mxu0 0.0
        %3836 = vmatpush.msra.mxu0 0.0
        %3837 = vmatpush.msra.mxu0 0.0
        %3838 = vmatpush.msra.mxu0 0.0
        %3839 = vmatpush.msra.mxu0 0.0
        %3840 = vmatpush.msra.mxu0 0.0
        %3841 = vmatpush.msra.mxu0 %v3828
        %3842 = vmatpush.msra.mxu0 %v3827
        %3843 = vmatpush.msra.mxu0 %v3826
        %3844 = vmatpush.msra.mxu0 %v3825
        %3845 = vmatmul.f32.gmra.mxu0 %v3685
        %v3846 = vpop.f32.mrf.mxu0
        %v3847 = vadd.f32 0.0, %v3846
        %3848 = vdwg.mxu0
        %s3849 = scalar_lea.vmem %s10, 544
        %v3850 = vld [vmem:[%s3849] sm:$0xff]
        %v3851 = vld [vmem:[%s3849 + $0x8] sm:$0xff]
        %v3852 = vld [vmem:[%s3849 + $0x10] sm:$0xff]
        %v3853 = vld [vmem:[%s3849 + $0x18] sm:$0xff]
        %3854 = vmatpush.msra.mxu0 0.0
        %3855 = vmatpush.msra.mxu0 0.0
        %3856 = vmatpush.msra.mxu0 0.0
        %3857 = vmatpush.msra.mxu0 0.0
        %3858 = vmatpush.msra.mxu0 0.0
        %3859 = vmatpush.msra.mxu0 0.0
        %3860 = vmatpush.msra.mxu0 0.0
        %3861 = vmatpush.msra.mxu0 0.0
        %3862 = vmatpush.msra.mxu0 0.0
        %3863 = vmatpush.msra.mxu0 0.0
        %3864 = vmatpush.msra.mxu0 0.0
        %3865 = vmatpush.msra.mxu0 0.0
        %3866 = vmatpush.msra.mxu0 %v3853
        %3867 = vmatpush.msra.mxu0 %v3852
        %3868 = vmatpush.msra.mxu0 %v3851
        %3869 = vmatpush.msra.mxu0 %v3850
        %3870 = vmatmul.f32.gmra.mxu0 %v3685
        %v3871 = vpop.f32.mrf.mxu0
        %v3872 = vadd.f32 0.0, %v3871
        %3873 = vdwg.mxu0
        %s3874 = scalar_lea.vmem %s10, 672
        %v3875 = vld [vmem:[%s3874] sm:$0xff]
        %v3876 = vld [vmem:[%s3874 + $0x8] sm:$0xff]
        %v3877 = vld [vmem:[%s3874 + $0x10] sm:$0xff]
        %v3878 = vld [vmem:[%s3874 + $0x18] sm:$0xff]
        %3879 = vmatpush.msra.mxu0 0.0
        %3880 = vmatpush.msra.mxu0 0.0
        %3881 = vmatpush.msra.mxu0 0.0
        %3882 = vmatpush.msra.mxu0 0.0
        %3883 = vmatpush.msra.mxu0 0.0
        %3884 = vmatpush.msra.mxu0 0.0
        %3885 = vmatpush.msra.mxu0 0.0
        %3886 = vmatpush.msra.mxu0 0.0
        %3887 = vmatpush.msra.mxu0 0.0
        %3888 = vmatpush.msra.mxu0 0.0
        %3889 = vmatpush.msra.mxu0 0.0
        %3890 = vmatpush.msra.mxu0 0.0
        %3891 = vmatpush.msra.mxu0 %v3878
        %3892 = vmatpush.msra.mxu0 %v3877
        %3893 = vmatpush.msra.mxu0 %v3876
        %3894 = vmatpush.msra.mxu0 %v3875
        %3895 = vmatmul.f32.gmra.mxu0 %v3685
        %v3896 = vpop.f32.mrf.mxu0
        %v3897 = vadd.f32 0.0, %v3896
        %3898 = vdwg.mxu0
        %s3899 = scalar_lea.vmem %s650, 40 [#allocation3]
        %3900 = vst.msk [vmem:[%s3899] sm:$0xff] %vm782, %v3872
        %s3901 = scalar_lea.vmem %s656, 40 [#allocation4]
        %3902 = vst.msk [vmem:[%s3901] sm:$0xff] %vm782, %v3897
        %v3903 = vld [vmem:[%s2442] sm:$0xff]
        %v3905 = vsel %vm782, %v3847, 0
        %v3908 = vsel %vm782, %v3872, 0
        %3910 = vmatpush.xpose.msra.mxu0 0.0
        %3911 = vmatpush.xpose.msra.mxu0 0.0
        %3912 = vmatpush.xpose.msra.mxu0 0.0
        %3913 = vmatpush.xpose.msra.mxu0 0.0
        %3914 = vmatpush.xpose.msra.mxu0 0.0
        %3915 = vmatpush.xpose.msra.mxu0 0.0
        %3916 = vmatpush.xpose.msra.mxu0 0.0
        %3917 = vmatpush.xpose.msra.mxu0 0.0
        %3918 = vmatpush.xpose.msra.mxu0 0.0
        %3919 = vmatpush.xpose.msra.mxu0 0.0
        %3920 = vmatpush.xpose.msra.mxu0 0.0
        %3921 = vmatpush.xpose.msra.mxu0 0.0
        %3922 = vmatpush.xpose.msra.mxu0 0.0
        %3923 = vmatpush.xpose.msra.mxu0 0.0
        %3924 = vmatpush.xpose.msra.mxu0 0.0
        %3925 = vmatpush.xpose.msra.mxu0 %v3908
        %3926 = vmatmul.f32.gmra.mxu0 %v3905
        %v3927 = vpop.f32.mrf.mxu0
        %v3928 = vadd.f32 %v3903, %v3927
        %3929 = vdwg.mxu0
        %v3930 = vsel %vm782, %v3928, -inf
        %3931 = vmax.xlane.f32.xlu0 %v3930
        %v3932 = vpop.xlane.xlu0 %3931
        %v3933 = vsub.f32 %v3928, %v3932
        %v3934 = vmul.f32 %v3933, 1.442695
        %v3935 = vpow.pop %v3934
        %v3936 = vsel %vm782, %v3935, 0.0
        %3937 = vadd.xlane.f32.xlu0 %v3936
        %v3938 = vpop.xlane.xlu0 %3937
        %v3939 = vrcp.pop %v3938
        %v3940 = vmul.f32 %v3935, %v3939
        %v3942 = vsel %vm782, %v3940, 0
        %3944 = vmatpush.msra.mxu0 0.0
        %3945 = vmatpush.msra.mxu0 0.0
        %3946 = vmatpush.msra.mxu0 0.0
        %3947 = vmatpush.msra.mxu0 0.0
        %3948 = vmatpush.msra.mxu0 0.0
        %3949 = vmatpush.msra.mxu0 0.0
        %3950 = vmatpush.msra.mxu0 0.0
        %3951 = vmatpush.msra.mxu0 0.0
        %3952 = vmatpush.msra.mxu0 0.0
        %3953 = vmatpush.msra.mxu0 0.0
        %3954 = vmatpush.msra.mxu0 0.0
        %3955 = vmatpush.msra.mxu0 0.0
        %3956 = vmatpush.msra.mxu0 0.0
        %3957 = vmatpush.msra.mxu0 0.0
        %3958 = vmatpush.msra.mxu0 0.0
        %3959 = vmatpush.msra.mxu0 %v3897
        %3960 = vmatmul.f32.gmra.mxu0 %v3942
        %v3961 = vpop.f32.mrf.mxu0
        %v3962 = vadd.f32 0.0, %v3961
        %3963 = vdwg.mxu0
        %s3964 = scalar_lea.vmem %s11, 40
        %v3965 = vld [vmem:[%s3964] sm:$0xff]
        %v3967 = vsel %vm782, %v3962, 0
        %3969 = vmatpush.msra.mxu0 0.0
        %3970 = vmatpush.msra.mxu0 0.0
        %3971 = vmatpush.msra.mxu0 0.0
        %3972 = vmatpush.msra.mxu0 0.0
        %3973 = vmatpush.msra.mxu0 0.0
        %3974 = vmatpush.msra.mxu0 0.0
        %3975 = vmatpush.msra.mxu0 0.0
        %3976 = vmatpush.msra.mxu0 0.0
        %3977 = vmatpush.msra.mxu0 0.0
        %3978 = vmatpush.msra.mxu0 0.0
        %3979 = vmatpush.msra.mxu0 0.0
        %3980 = vmatpush.msra.mxu0 0.0
        %3981 = vmatpush.msra.mxu0 0.0
        %3982 = vmatpush.msra.mxu0 0.0
        %3983 = vmatpush.msra.mxu0 0.0
        %3984 = vmatpush.msra.mxu0 %v3965
        %3985 = vmatmul.f32.gmra.mxu0 %v3967
        %v3986 = vpop.f32.mrf.mxu0
        %v3987 = vadd.f32 0.0, %v3986
        %3988 = vdwg.mxu0
        %v3990 = vsel %vm782, %v3820, 0
        %3992 = vmatpush.msra.mxu0 0.0
        %3993 = vmatpush.msra.mxu0 0.0
        %3994 = vmatpush.msra.mxu0 0.0
        %3995 = vmatpush.msra.mxu0 0.0
        %3996 = vmatpush.msra.mxu0 0.0
        %3997 = vmatpush.msra.mxu0 0.0
        %3998 = vmatpush.msra.mxu0 0.0
        %3999 = vmatpush.msra.mxu0 0.0
        %4000 = vmatpush.msra.mxu0 0.0
        %4001 = vmatpush.msra.mxu0 0.0
        %4002 = vmatpush.msra.mxu0 0.0
        %4003 = vmatpush.msra.mxu0 0.0
        %4004 = vmatpush.msra.mxu0 0.0
        %4005 = vmatpush.msra.mxu0 0.0
        %4006 = vmatpush.msra.mxu0 0.0
        %4007 = vmatpush.msra.mxu0 %v3823
        %4008 = vmatmul.f32.gmra.mxu0 %v3990
        %v4009 = vpop.f32.mrf.mxu0
        %v4010 = vadd.f32 %v3987, %v4009
        %4011 = vdwg.mxu0
        %s4012 = scalar_lea.vmem %s10, 448
        %v4013 = vld [vmem:[%s4012] sm:$0xff]
        %v4014 = vld [vmem:[%s4012 + $0x8] sm:$0xff]
        %v4015 = vld [vmem:[%s4012 + $0x10] sm:$0xff]
        %v4016 = vld [vmem:[%s4012 + $0x18] sm:$0xff]
        %4017 = vmatpush.msra.mxu0 0.0
        %4018 = vmatpush.msra.mxu0 0.0
        %4019 = vmatpush.msra.mxu0 0.0
        %4020 = vmatpush.msra.mxu0 0.0
        %4021 = vmatpush.msra.mxu0 0.0
        %4022 = vmatpush.msra.mxu0 0.0
        %4023 = vmatpush.msra.mxu0 0.0
        %4024 = vmatpush.msra.mxu0 0.0
        %4025 = vmatpush.msra.mxu0 0.0
        %4026 = vmatpush.msra.mxu0 0.0
        %4027 = vmatpush.msra.mxu0 0.0
        %4028 = vmatpush.msra.mxu0 0.0
        %4029 = vmatpush.msra.mxu0 %v4016
        %4030 = vmatpush.msra.mxu0 %v4015
        %4031 = vmatpush.msra.mxu0 %v4014
        %4032 = vmatpush.msra.mxu0 %v4013
        %4033 = vmatmul.f32.gmra.mxu0 %v3685
        %v4034 = vpop.f32.mrf.mxu0
        %v4035 = vadd.f32 0.0, %v4034
        %4036 = vdwg.mxu0
        %s4037 = scalar_lea.vmem %s10, 576
        %v4038 = vld [vmem:[%s4037] sm:$0xff]
        %v4039 = vld [vmem:[%s4037 + $0x8] sm:$0xff]
        %v4040 = vld [vmem:[%s4037 + $0x10] sm:$0xff]
        %v4041 = vld [vmem:[%s4037 + $0x18] sm:$0xff]
        %4042 = vmatpush.msra.mxu0 0.0
        %4043 = vmatpush.msra.mxu0 0.0
        %4044 = vmatpush.msra.mxu0 0.0
        %4045 = vmatpush.msra.mxu0 0.0
        %4046 = vmatpush.msra.mxu0 0.0
        %4047 = vmatpush.msra.mxu0 0.0
        %4048 = vmatpush.msra.mxu0 0.0
        %4049 = vmatpush.msra.mxu0 0.0
        %4050 = vmatpush.msra.mxu0 0.0
        %4051 = vmatpush.msra.mxu0 0.0
        %4052 = vmatpush.msra.mxu0 0.0
        %4053 = vmatpush.msra.mxu0 0.0
        %4054 = vmatpush.msra.mxu0 %v4041
        %4055 = vmatpush.msra.mxu0 %v4040
        %4056 = vmatpush.msra.mxu0 %v4039
        %4057 = vmatpush.msra.mxu0 %v4038
        %4058 = vmatmul.f32.gmra.mxu0 %v3685
        %v4059 = vpop.f32.mrf.mxu0
        %v4060 = vadd.f32 0.0, %v4059
        %4061 = vdwg.mxu0
        %s4062 = scalar_lea.vmem %s10, 704
        %v4063 = vld [vmem:[%s4062] sm:$0xff]
        %v4064 = vld [vmem:[%s4062 + $0x8] sm:$0xff]
        %v4065 = vld [vmem:[%s4062 + $0x10] sm:$0xff]
        %v4066 = vld [vmem:[%s4062 + $0x18] sm:$0xff]
        %4067 = vmatpush.msra.mxu0 0.0
        %4068 = vmatpush.msra.mxu0 0.0
        %4069 = vmatpush.msra.mxu0 0.0
        %4070 = vmatpush.msra.mxu0 0.0
        %4071 = vmatpush.msra.mxu0 0.0
        %4072 = vmatpush.msra.mxu0 0.0
        %4073 = vmatpush.msra.mxu0 0.0
        %4074 = vmatpush.msra.mxu0 0.0
        %4075 = vmatpush.msra.mxu0 0.0
        %4076 = vmatpush.msra.mxu0 0.0
        %4077 = vmatpush.msra.mxu0 0.0
        %4078 = vmatpush.msra.mxu0 0.0
        %4079 = vmatpush.msra.mxu0 %v4066
        %4080 = vmatpush.msra.mxu0 %v4065
        %4081 = vmatpush.msra.mxu0 %v4064
        %4082 = vmatpush.msra.mxu0 %v4063
        %4083 = vmatmul.f32.gmra.mxu0 %v3685
        %v4084 = vpop.f32.mrf.mxu0
        %v4085 = vadd.f32 0.0, %v4084
        %4086 = vdwg.mxu0
        %s4087 = scalar_lea.vmem %s650, 48 [#allocation3]
        %4088 = vst.msk [vmem:[%s4087] sm:$0xff] %vm782, %v4060
        %s4089 = scalar_lea.vmem %s656, 48 [#allocation4]
        %4090 = vst.msk [vmem:[%s4089] sm:$0xff] %vm782, %v4085
        %v4091 = vld [vmem:[%s2631] sm:$0xff]
        %v4093 = vsel %vm782, %v4035, 0
        %v4096 = vsel %vm782, %v4060, 0
        %4098 = vmatpush.xpose.msra.mxu0 0.0
        %4099 = vmatpush.xpose.msra.mxu0 0.0
        %4100 = vmatpush.xpose.msra.mxu0 0.0
        %4101 = vmatpush.xpose.msra.mxu0 0.0
        %4102 = vmatpush.xpose.msra.mxu0 0.0
        %4103 = vmatpush.xpose.msra.mxu0 0.0
        %4104 = vmatpush.xpose.msra.mxu0 0.0
        %4105 = vmatpush.xpose.msra.mxu0 0.0
        %4106 = vmatpush.xpose.msra.mxu0 0.0
        %4107 = vmatpush.xpose.msra.mxu0 0.0
        %4108 = vmatpush.xpose.msra.mxu0 0.0
        %4109 = vmatpush.xpose.msra.mxu0 0.0
        %4110 = vmatpush.xpose.msra.mxu0 0.0
        %4111 = vmatpush.xpose.msra.mxu0 0.0
        %4112 = vmatpush.xpose.msra.mxu0 0.0
        %4113 = vmatpush.xpose.msra.mxu0 %v4096
        %4114 = vmatmul.f32.gmra.mxu0 %v4093
        %v4115 = vpop.f32.mrf.mxu0
        %v4116 = vadd.f32 %v4091, %v4115
        %4117 = vdwg.mxu0
        %v4118 = vsel %vm782, %v4116, -inf
        %4119 = vmax.xlane.f32.xlu0 %v4118
        %v4120 = vpop.xlane.xlu0 %4119
        %v4121 = vsub.f32 %v4116, %v4120
        %v4122 = vmul.f32 %v4121, 1.442695
        %v4123 = vpow.pop %v4122
        %v4124 = vsel %vm782, %v4123, 0.0
        %4125 = vadd.xlane.f32.xlu0 %v4124
        %v4126 = vpop.xlane.xlu0 %4125
        %v4127 = vrcp.pop %v4126
        %v4128 = vmul.f32 %v4123, %v4127
        %v4130 = vsel %vm782, %v4128, 0
        %4132 = vmatpush.msra.mxu0 0.0
        %4133 = vmatpush.msra.mxu0 0.0
        %4134 = vmatpush.msra.mxu0 0.0
        %4135 = vmatpush.msra.mxu0 0.0
        %4136 = vmatpush.msra.mxu0 0.0
        %4137 = vmatpush.msra.mxu0 0.0
        %4138 = vmatpush.msra.mxu0 0.0
        %4139 = vmatpush.msra.mxu0 0.0
        %4140 = vmatpush.msra.mxu0 0.0
        %4141 = vmatpush.msra.mxu0 0.0
        %4142 = vmatpush.msra.mxu0 0.0
        %4143 = vmatpush.msra.mxu0 0.0
        %4144 = vmatpush.msra.mxu0 0.0
        %4145 = vmatpush.msra.mxu0 0.0
        %4146 = vmatpush.msra.mxu0 0.0
        %4147 = vmatpush.msra.mxu0 %v4085
        %4148 = vmatmul.f32.gmra.mxu0 %v4130
        %v4149 = vpop.f32.mrf.mxu0
        %v4150 = vadd.f32 0.0, %v4149
        %4151 = vdwg.mxu0
        %s4152 = scalar_lea.vmem %s11, 48
        %v4153 = vld [vmem:[%s4152] sm:$0xff]
        %v4155 = vsel %vm782, %v4150, 0
        %4157 = vmatpush.msra.mxu0 0.0
        %4158 = vmatpush.msra.mxu0 0.0
        %4159 = vmatpush.msra.mxu0 0.0
        %4160 = vmatpush.msra.mxu0 0.0
        %4161 = vmatpush.msra.mxu0 0.0
        %4162 = vmatpush.msra.mxu0 0.0
        %4163 = vmatpush.msra.mxu0 0.0
        %4164 = vmatpush.msra.mxu0 0.0
        %4165 = vmatpush.msra.mxu0 0.0
        %4166 = vmatpush.msra.mxu0 0.0
        %4167 = vmatpush.msra.mxu0 0.0
        %4168 = vmatpush.msra.mxu0 0.0
        %4169 = vmatpush.msra.mxu0 0.0
        %4170 = vmatpush.msra.mxu0 0.0
        %4171 = vmatpush.msra.mxu0 0.0
        %4172 = vmatpush.msra.mxu0 %v4153
        %4173 = vmatmul.f32.gmra.mxu0 %v4155
        %v4174 = vpop.f32.mrf.mxu0
        %v4175 = vadd.f32 0.0, %v4174
        %4176 = vdwg.mxu0
        %v4177 = vadd.f32 %v4010, %v4175
        %s4178 = scalar_lea.vmem %s10, 480
        %v4179 = vld [vmem:[%s4178] sm:$0xff]
        %v4180 = vld [vmem:[%s4178 + $0x8] sm:$0xff]
        %v4181 = vld [vmem:[%s4178 + $0x10] sm:$0xff]
        %v4182 = vld [vmem:[%s4178 + $0x18] sm:$0xff]
        %4183 = vmatpush.msra.mxu0 0.0
        %4184 = vmatpush.msra.mxu0 0.0
        %4185 = vmatpush.msra.mxu0 0.0
        %4186 = vmatpush.msra.mxu0 0.0
        %4187 = vmatpush.msra.mxu0 0.0
        %4188 = vmatpush.msra.mxu0 0.0
        %4189 = vmatpush.msra.mxu0 0.0
        %4190 = vmatpush.msra.mxu0 0.0
        %4191 = vmatpush.msra.mxu0 0.0
        %4192 = vmatpush.msra.mxu0 0.0
        %4193 = vmatpush.msra.mxu0 0.0
        %4194 = vmatpush.msra.mxu0 0.0
        %4195 = vmatpush.msra.mxu0 %v4182
        %4196 = vmatpush.msra.mxu0 %v4181
        %4197 = vmatpush.msra.mxu0 %v4180
        %4198 = vmatpush.msra.mxu0 %v4179
        %4199 = vmatmul.f32.gmra.mxu0 %v3685
        %v4200 = vpop.f32.mrf.mxu0
        %v4201 = vadd.f32 0.0, %v4200
        %4202 = vdwg.mxu0
        %s4203 = scalar_lea.vmem %s10, 608
        %v4204 = vld [vmem:[%s4203] sm:$0xff]
        %v4205 = vld [vmem:[%s4203 + $0x8] sm:$0xff]
        %v4206 = vld [vmem:[%s4203 + $0x10] sm:$0xff]
        %v4207 = vld [vmem:[%s4203 + $0x18] sm:$0xff]
        %4208 = vmatpush.msra.mxu0 0.0
        %4209 = vmatpush.msra.mxu0 0.0
        %4210 = vmatpush.msra.mxu0 0.0
        %4211 = vmatpush.msra.mxu0 0.0
        %4212 = vmatpush.msra.mxu0 0.0
        %4213 = vmatpush.msra.mxu0 0.0
        %4214 = vmatpush.msra.mxu0 0.0
        %4215 = vmatpush.msra.mxu0 0.0
        %4216 = vmatpush.msra.mxu0 0.0
        %4217 = vmatpush.msra.mxu0 0.0
        %4218 = vmatpush.msra.mxu0 0.0
        %4219 = vmatpush.msra.mxu0 0.0
        %4220 = vmatpush.msra.mxu0 %v4207
        %4221 = vmatpush.msra.mxu0 %v4206
        %4222 = vmatpush.msra.mxu0 %v4205
        %4223 = vmatpush.msra.mxu0 %v4204
        %4224 = vmatmul.f32.gmra.mxu0 %v3685
        %v4225 = vpop.f32.mrf.mxu0
        %v4226 = vadd.f32 0.0, %v4225
        %4227 = vdwg.mxu0
        %s4228 = scalar_lea.vmem %s10, 736
        %v4229 = vld [vmem:[%s4228] sm:$0xff]
        %v4230 = vld [vmem:[%s4228 + $0x8] sm:$0xff]
        %v4231 = vld [vmem:[%s4228 + $0x10] sm:$0xff]
        %v4232 = vld [vmem:[%s4228 + $0x18] sm:$0xff]
        %4233 = vmatpush.msra.mxu0 0.0
        %4234 = vmatpush.msra.mxu0 0.0
        %4235 = vmatpush.msra.mxu0 0.0
        %4236 = vmatpush.msra.mxu0 0.0
        %4237 = vmatpush.msra.mxu0 0.0
        %4238 = vmatpush.msra.mxu0 0.0
        %4239 = vmatpush.msra.mxu0 0.0
        %4240 = vmatpush.msra.mxu0 0.0
        %4241 = vmatpush.msra.mxu0 0.0
        %4242 = vmatpush.msra.mxu0 0.0
        %4243 = vmatpush.msra.mxu0 0.0
        %4244 = vmatpush.msra.mxu0 0.0
        %4245 = vmatpush.msra.mxu0 %v4232
        %4246 = vmatpush.msra.mxu0 %v4231
        %4247 = vmatpush.msra.mxu0 %v4230
        %4248 = vmatpush.msra.mxu0 %v4229
        %4249 = vmatmul.f32.gmra.mxu0 %v3685
        %v4250 = vpop.f32.mrf.mxu0
        %v4251 = vadd.f32 0.0, %v4250
        %4252 = vdwg.mxu0
        %s4253 = scalar_lea.vmem %s650, 56 [#allocation3]
        %4254 = vst.msk [vmem:[%s4253] sm:$0xff] %vm782, %v4226
        %s4255 = scalar_lea.vmem %s656, 56 [#allocation4]
        %4256 = vst.msk [vmem:[%s4255] sm:$0xff] %vm782, %v4251
        %v4257 = vld [vmem:[%s2798] sm:$0xff]
        %v4259 = vsel %vm782, %v4201, 0
        %v4262 = vsel %vm782, %v4226, 0
        %4264 = vmatpush.xpose.msra.mxu0 0.0
        %4265 = vmatpush.xpose.msra.mxu0 0.0
        %4266 = vmatpush.xpose.msra.mxu0 0.0
        %4267 = vmatpush.xpose.msra.mxu0 0.0
        %4268 = vmatpush.xpose.msra.mxu0 0.0
        %4269 = vmatpush.xpose.msra.mxu0 0.0
        %4270 = vmatpush.xpose.msra.mxu0 0.0
        %4271 = vmatpush.xpose.msra.mxu0 0.0
        %4272 = vmatpush.xpose.msra.mxu0 0.0
        %4273 = vmatpush.xpose.msra.mxu0 0.0
        %4274 = vmatpush.xpose.msra.mxu0 0.0
        %4275 = vmatpush.xpose.msra.mxu0 0.0
        %4276 = vmatpush.xpose.msra.mxu0 0.0
        %4277 = vmatpush.xpose.msra.mxu0 0.0
        %4278 = vmatpush.xpose.msra.mxu0 0.0
        %4279 = vmatpush.xpose.msra.mxu0 %v4262
        %4280 = vmatmul.f32.gmra.mxu0 %v4259
        %v4281 = vpop.f32.mrf.mxu0
        %v4282 = vadd.f32 %v4257, %v4281
        %4283 = vdwg.mxu0
        %v4284 = vsel %vm782, %v4282, -inf
        %4285 = vmax.xlane.f32.xlu0 %v4284
        %v4286 = vpop.xlane.xlu0 %4285
        %v4287 = vsub.f32 %v4282, %v4286
        %v4288 = vmul.f32 %v4287, 1.442695
        %v4289 = vpow.pop %v4288
        %v4290 = vsel %vm782, %v4289, 0.0
        %4291 = vadd.xlane.f32.xlu0 %v4290
        %v4292 = vpop.xlane.xlu0 %4291
        %v4293 = vrcp.pop %v4292
        %v4294 = vmul.f32 %v4289, %v4293
        %v4296 = vsel %vm782, %v4294, 0
        %4298 = vmatpush.msra.mxu0 0.0
        %4299 = vmatpush.msra.mxu0 0.0
        %4300 = vmatpush.msra.mxu0 0.0
        %4301 = vmatpush.msra.mxu0 0.0
        %4302 = vmatpush.msra.mxu0 0.0
        %4303 = vmatpush.msra.mxu0 0.0
        %4304 = vmatpush.msra.mxu0 0.0
        %4305 = vmatpush.msra.mxu0 0.0
        %4306 = vmatpush.msra.mxu0 0.0
        %4307 = vmatpush.msra.mxu0 0.0
        %4308 = vmatpush.msra.mxu0 0.0
        %4309 = vmatpush.msra.mxu0 0.0
        %4310 = vmatpush.msra.mxu0 0.0
        %4311 = vmatpush.msra.mxu0 0.0
        %4312 = vmatpush.msra.mxu0 0.0
        %4313 = vmatpush.msra.mxu0 %v4251
        %4314 = vmatmul.f32.gmra.mxu0 %v4296
        %v4315 = vpop.f32.mrf.mxu0
        %v4316 = vadd.f32 0.0, %v4315
        %4317 = vdwg.mxu0
        %s4318 = scalar_lea.vmem %s11, 56
        %v4319 = vld [vmem:[%s4318] sm:$0xff]
        %v4321 = vsel %vm782, %v4316, 0
        %4323 = vmatpush.msra.mxu0 0.0
        %4324 = vmatpush.msra.mxu0 0.0
        %4325 = vmatpush.msra.mxu0 0.0
        %4326 = vmatpush.msra.mxu0 0.0
        %4327 = vmatpush.msra.mxu0 0.0
        %4328 = vmatpush.msra.mxu0 0.0
        %4329 = vmatpush.msra.mxu0 0.0
        %4330 = vmatpush.msra.mxu0 0.0
        %4331 = vmatpush.msra.mxu0 0.0
        %4332 = vmatpush.msra.mxu0 0.0
        %4333 = vmatpush.msra.mxu0 0.0
        %4334 = vmatpush.msra.mxu0 0.0
        %4335 = vmatpush.msra.mxu0 0.0
        %4336 = vmatpush.msra.mxu0 0.0
        %4337 = vmatpush.msra.mxu0 0.0
        %4338 = vmatpush.msra.mxu0 %v4319
        %4339 = vmatmul.f32.gmra.mxu0 %v4321
        %v4340 = vpop.f32.mrf.mxu0
        %v4341 = vadd.f32 0.0, %v4340
        %4342 = vdwg.mxu0
        %v4343 = vadd.f32 %v4177, %v4341
        %v4344 = vadd.f32 %v3653, %v4343
        %s4345 = scalar_lea.vmem %s9, 4
        %v4346 = vld [vmem:[%s4345] sm:$0x1]
        %v4347 = vmul.f32 %v4344, %v4344
        %v4348 = vsel %vm676, %v4347, 0.0
        %4349 = vadd.xlane.f32.xlu0 %v4348
        %v4350 = vpop.xlane.xlu0 %4349
        %v4351 = vmul.f32 %v4350, %v686
        %v4352 = vadd.f32 %v4351, 1e-06
        %v4353 = vrsqrt.pop %v4352
        %v4354 = vmul.f32 %v4353, %v4352
        %v4355 = vmul.f32 %v4354, %v4353
        %v4356 = vmul.f32 0.5, %v4355
        %v4357 = vsub.f32 1.5, %v4356
        %v4358 = vmul.f32 %v4353, %v4357
        %vm4359 = vweird.f32 %v4352
        %vm4360 = vweird.f32 %v4353
        %vm4361 = vmor %vm4359, %vm4360
        %v4362 = vsel %vm4361, %v4353, %v4358
        %v4363 = vmul.f32 %v4344, %v4362
        %v4365 = vperm.slane %v4346, 0
        %v4367 = vmul.f32 %v4363, %v4365
        %s4368 = scalar_lea.vmem %s12, 384
        %v4369 = vld [vmem:[%s4368] sm:$0xff]
        %v4370 = vld [vmem:[%s4368 + $0x8] sm:$0xff]
        %v4371 = vld [vmem:[%s4368 + $0x10] sm:$0xff]
        %v4372 = vld [vmem:[%s4368 + $0x18] sm:$0xff]
        %v4374 = vsel %vm676, %v4367, 0
        %4376 = vmatpush.msra.mxu0 0.0
        %4377 = vmatpush.msra.mxu0 0.0
        %4378 = vmatpush.msra.mxu0 0.0
        %4379 = vmatpush.msra.mxu0 0.0
        %4380 = vmatpush.msra.mxu0 0.0
        %4381 = vmatpush.msra.mxu0 0.0
        %4382 = vmatpush.msra.mxu0 0.0
        %4383 = vmatpush.msra.mxu0 0.0
        %4384 = vmatpush.msra.mxu0 0.0
        %4385 = vmatpush.msra.mxu0 0.0
        %4386 = vmatpush.msra.mxu0 0.0
        %4387 = vmatpush.msra.mxu0 0.0
        %4388 = vmatpush.msra.mxu0 %v4372
        %4389 = vmatpush.msra.mxu0 %v4371
        %4390 = vmatpush.msra.mxu0 %v4370
        %4391 = vmatpush.msra.mxu0 %v4369
        %4392 = vmatmul.f32.gmra.mxu0 %v4374
        %v4393 = vpop.f32.mrf.mxu0
        %v4394 = vadd.f32 0.0, %v4393
        %4395 = vdwg.mxu0
        %s4396 = scalar_lea.vmem %s12, 512
        %v4397 = vld [vmem:[%s4396] sm:$0xff]
        %v4398 = vld [vmem:[%s4396 + $0x8] sm:$0xff]
        %v4399 = vld [vmem:[%s4396 + $0x10] sm:$0xff]
        %v4400 = vld [vmem:[%s4396 + $0x18] sm:$0xff]
        %4401 = vmatpush.msra.mxu0 0.0
        %4402 = vmatpush.msra.mxu0 0.0
        %4403 = vmatpush.msra.mxu0 0.0
        %4404 = vmatpush.msra.mxu0 0.0
        %4405 = vmatpush.msra.mxu0 0.0
        %4406 = vmatpush.msra.mxu0 0.0
        %4407 = vmatpush.msra.mxu0 0.0
        %4408 = vmatpush.msra.mxu0 0.0
        %4409 = vmatpush.msra.mxu0 0.0
        %4410 = vmatpush.msra.mxu0 0.0
        %4411 = vmatpush.msra.mxu0 0.0
        %4412 = vmatpush.msra.mxu0 0.0
        %4413 = vmatpush.msra.mxu0 %v4400
        %4414 = vmatpush.msra.mxu0 %v4399
        %4415 = vmatpush.msra.mxu0 %v4398
        %4416 = vmatpush.msra.mxu0 %v4397
        %4417 = vmatmul.f32.gmra.mxu0 %v2943
        %v4418 = vpop.f32.mrf.mxu0
        %v4419 = vadd.f32 0.0, %v4418
        %4420 = vdwg.mxu0
        %s4421 = scalar_lea.vmem %s12, 640
        %v4422 = vld [vmem:[%s4421] sm:$0xff]
        %v4423 = vld [vmem:[%s4421 + $0x8] sm:$0xff]
        %v4424 = vld [vmem:[%s4421 + $0x10] sm:$0xff]
        %v4425 = vld [vmem:[%s4421 + $0x18] sm:$0xff]
        %4426 = vmatpush.msra.mxu0 0.0
        %4427 = vmatpush.msra.mxu0 0.0
        %4428 = vmatpush.msra.mxu0 0.0
        %4429 = vmatpush.msra.mxu0 0.0
        %4430 = vmatpush.msra.mxu0 0.0
        %4431 = vmatpush.msra.mxu0 0.0
        %4432 = vmatpush.msra.mxu0 0.0
        %4433 = vmatpush.msra.mxu0 0.0
        %4434 = vmatpush.msra.mxu0 0.0
        %4435 = vmatpush.msra.mxu0 0.0
        %4436 = vmatpush.msra.mxu0 0.0
        %4437 = vmatpush.msra.mxu0 0.0
        %4438 = vmatpush.msra.mxu0 %v4425
        %4439 = vmatpush.msra.mxu0 %v4424
        %4440 = vmatpush.msra.mxu0 %v4423
        %4441 = vmatpush.msra.mxu0 %v4422
        %4442 = vmatmul.f32.gmra.mxu0 %v2943
        %v4443 = vpop.f32.mrf.mxu0
        %v4444 = vadd.f32 0.0, %v4443
        %4445 = vdwg.mxu0
        %s4446 = scalar_lea.vmem %s662, 32 [#allocation5]
        %4447 = vst.msk [vmem:[%s4446] sm:$0xff] %vm782, %v4419
        %s4448 = scalar_lea.vmem %s668, 32 [#allocation6]
        %4449 = vst.msk [vmem:[%s4448] sm:$0xff] %vm782, %v4444
        %v4451 = vsel %vm782, %v4394, 0
        %v4454 = vsel %vm782, %v4419, 0
        %4456 = vmatpush.xpose.msra.mxu0 0.0
        %4457 = vmatpush.xpose.msra.mxu0 0.0
        %4458 = vmatpush.xpose.msra.mxu0 0.0
        %4459 = vmatpush.xpose.msra.mxu0 0.0
        %4460 = vmatpush.xpose.msra.mxu0 0.0
        %4461 = vmatpush.xpose.msra.mxu0 0.0
        %4462 = vmatpush.xpose.msra.mxu0 0.0
        %4463 = vmatpush.xpose.msra.mxu0 0.0
        %4464 = vmatpush.xpose.msra.mxu0 0.0
        %4465 = vmatpush.xpose.msra.mxu0 0.0
        %4466 = vmatpush.xpose.msra.mxu0 0.0
        %4467 = vmatpush.xpose.msra.mxu0 0.0
        %4468 = vmatpush.xpose.msra.mxu0 0.0
        %4469 = vmatpush.xpose.msra.mxu0 0.0
        %4470 = vmatpush.xpose.msra.mxu0 0.0
        %4471 = vmatpush.xpose.msra.mxu0 %v4454
        %4472 = vmatmul.f32.gmra.mxu0 %v4451
        %v4473 = vpop.f32.mrf.mxu0
        %v4474 = vadd.f32 0.0, %v4473
        %4475 = vdwg.mxu0
        %v4476 = vsel %vm782, %v4474, -inf
        %4477 = vmax.xlane.f32.xlu0 %v4476
        %v4478 = vpop.xlane.xlu0 %4477
        %v4479 = vsub.f32 %v4474, %v4478
        %v4480 = vmul.f32 %v4479, 1.442695
        %v4481 = vpow.pop %v4480
        %v4482 = vsel %vm782, %v4481, 0.0
        %4483 = vadd.xlane.f32.xlu0 %v4482
        %v4484 = vpop.xlane.xlu0 %4483
        %v4485 = vrcp.pop %v4484
        %v4486 = vmul.f32 %v4481, %v4485
        %v4488 = vsel %vm782, %v4486, 0
        %4490 = vmatpush.msra.mxu0 0.0
        %4491 = vmatpush.msra.mxu0 0.0
        %4492 = vmatpush.msra.mxu0 0.0
        %4493 = vmatpush.msra.mxu0 0.0
        %4494 = vmatpush.msra.mxu0 0.0
        %4495 = vmatpush.msra.mxu0 0.0
        %4496 = vmatpush.msra.mxu0 0.0
        %4497 = vmatpush.msra.mxu0 0.0
        %4498 = vmatpush.msra.mxu0 0.0
        %4499 = vmatpush.msra.mxu0 0.0
        %4500 = vmatpush.msra.mxu0 0.0
        %4501 = vmatpush.msra.mxu0 0.0
        %4502 = vmatpush.msra.mxu0 0.0
        %4503 = vmatpush.msra.mxu0 0.0
        %4504 = vmatpush.msra.mxu0 0.0
        %4505 = vmatpush.msra.mxu0 %v4444
        %4506 = vmatmul.f32.gmra.mxu0 %v4488
        %v4507 = vpop.f32.mrf.mxu0
        %v4508 = vadd.f32 0.0, %v4507
        %4509 = vdwg.mxu0
        %s4510 = scalar_lea.vmem %s13, 32
        %v4511 = vld [vmem:[%s4510] sm:$0xff]
        %s4512 = scalar_lea.vmem %s12, 416
        %v4513 = vld [vmem:[%s4512] sm:$0xff]
        %v4514 = vld [vmem:[%s4512 + $0x8] sm:$0xff]
        %v4515 = vld [vmem:[%s4512 + $0x10] sm:$0xff]
        %v4516 = vld [vmem:[%s4512 + $0x18] sm:$0xff]
        %4517 = vmatpush.msra.mxu0 0.0
        %4518 = vmatpush.msra.mxu0 0.0
        %4519 = vmatpush.msra.mxu0 0.0
        %4520 = vmatpush.msra.mxu0 0.0
        %4521 = vmatpush.msra.mxu0 0.0
        %4522 = vmatpush.msra.mxu0 0.0
        %4523 = vmatpush.msra.mxu0 0.0
        %4524 = vmatpush.msra.mxu0 0.0
        %4525 = vmatpush.msra.mxu0 0.0
        %4526 = vmatpush.msra.mxu0 0.0
        %4527 = vmatpush.msra.mxu0 0.0
        %4528 = vmatpush.msra.mxu0 0.0
        %4529 = vmatpush.msra.mxu0 %v4516
        %4530 = vmatpush.msra.mxu0 %v4515
        %4531 = vmatpush.msra.mxu0 %v4514
        %4532 = vmatpush.msra.mxu0 %v4513
        %4533 = vmatmul.f32.gmra.mxu0 %v4374
        %v4534 = vpop.f32.mrf.mxu0
        %v4535 = vadd.f32 0.0, %v4534
        %4536 = vdwg.mxu0
        %s4537 = scalar_lea.vmem %s12, 544
        %v4538 = vld [vmem:[%s4537] sm:$0xff]
        %v4539 = vld [vmem:[%s4537 + $0x8] sm:$0xff]
        %v4540 = vld [vmem:[%s4537 + $0x10] sm:$0xff]
        %v4541 = vld [vmem:[%s4537 + $0x18] sm:$0xff]
        %4542 = vmatpush.msra.mxu0 0.0
        %4543 = vmatpush.msra.mxu0 0.0
        %4544 = vmatpush.msra.mxu0 0.0
        %4545 = vmatpush.msra.mxu0 0.0
        %4546 = vmatpush.msra.mxu0 0.0
        %4547 = vmatpush.msra.mxu0 0.0
        %4548 = vmatpush.msra.mxu0 0.0
        %4549 = vmatpush.msra.mxu0 0.0
        %4550 = vmatpush.msra.mxu0 0.0
        %4551 = vmatpush.msra.mxu0 0.0
        %4552 = vmatpush.msra.mxu0 0.0
        %4553 = vmatpush.msra.mxu0 0.0
        %4554 = vmatpush.msra.mxu0 %v4541
        %4555 = vmatpush.msra.mxu0 %v4540
        %4556 = vmatpush.msra.mxu0 %v4539
        %4557 = vmatpush.msra.mxu0 %v4538
        %4558 = vmatmul.f32.gmra.mxu0 %v2943
        %v4559 = vpop.f32.mrf.mxu0
        %v4560 = vadd.f32 0.0, %v4559
        %4561 = vdwg.mxu0
        %s4562 = scalar_lea.vmem %s12, 672
        %v4563 = vld [vmem:[%s4562] sm:$0xff]
        %v4564 = vld [vmem:[%s4562 + $0x8] sm:$0xff]
        %v4565 = vld [vmem:[%s4562 + $0x10] sm:$0xff]
        %v4566 = vld [vmem:[%s4562 + $0x18] sm:$0xff]
        %4567 = vmatpush.msra.mxu0 0.0
        %4568 = vmatpush.msra.mxu0 0.0
        %4569 = vmatpush.msra.mxu0 0.0
        %4570 = vmatpush.msra.mxu0 0.0
        %4571 = vmatpush.msra.mxu0 0.0
        %4572 = vmatpush.msra.mxu0 0.0
        %4573 = vmatpush.msra.mxu0 0.0
        %4574 = vmatpush.msra.mxu0 0.0
        %4575 = vmatpush.msra.mxu0 0.0
        %4576 = vmatpush.msra.mxu0 0.0
        %4577 = vmatpush.msra.mxu0 0.0
        %4578 = vmatpush.msra.mxu0 0.0
        %4579 = vmatpush.msra.mxu0 %v4566
        %4580 = vmatpush.msra.mxu0 %v4565
        %4581 = vmatpush.msra.mxu0 %v4564
        %4582 = vmatpush.msra.mxu0 %v4563
        %4583 = vmatmul.f32.gmra.mxu0 %v2943
        %v4584 = vpop.f32.mrf.mxu0
        %v4585 = vadd.f32 0.0, %v4584
        %4586 = vdwg.mxu0
        %s4587 = scalar_lea.vmem %s662, 40 [#allocation5]
        %4588 = vst.msk [vmem:[%s4587] sm:$0xff] %vm782, %v4560
        %s4589 = scalar_lea.vmem %s668, 40 [#allocation6]
        %4590 = vst.msk [vmem:[%s4589] sm:$0xff] %vm782, %v4585
        %v4592 = vsel %vm782, %v4535, 0
        %v4595 = vsel %vm782, %v4560, 0
        %4597 = vmatpush.xpose.msra.mxu0 0.0
        %4598 = vmatpush.xpose.msra.mxu0 0.0
        %4599 = vmatpush.xpose.msra.mxu0 0.0
        %4600 = vmatpush.xpose.msra.mxu0 0.0
        %4601 = vmatpush.xpose.msra.mxu0 0.0
        %4602 = vmatpush.xpose.msra.mxu0 0.0
        %4603 = vmatpush.xpose.msra.mxu0 0.0
        %4604 = vmatpush.xpose.msra.mxu0 0.0
        %4605 = vmatpush.xpose.msra.mxu0 0.0
        %4606 = vmatpush.xpose.msra.mxu0 0.0
        %4607 = vmatpush.xpose.msra.mxu0 0.0
        %4608 = vmatpush.xpose.msra.mxu0 0.0
        %4609 = vmatpush.xpose.msra.mxu0 0.0
        %4610 = vmatpush.xpose.msra.mxu0 0.0
        %4611 = vmatpush.xpose.msra.mxu0 0.0
        %4612 = vmatpush.xpose.msra.mxu0 %v4595
        %4613 = vmatmul.f32.gmra.mxu0 %v4592
        %v4614 = vpop.f32.mrf.mxu0
        %v4615 = vadd.f32 0.0, %v4614
        %4616 = vdwg.mxu0
        %v4617 = vsel %vm782, %v4615, -inf
        %4618 = vmax.xlane.f32.xlu0 %v4617
        %v4619 = vpop.xlane.xlu0 %4618
        %v4620 = vsub.f32 %v4615, %v4619
        %v4621 = vmul.f32 %v4620, 1.442695
        %v4622 = vpow.pop %v4621
        %v4623 = vsel %vm782, %v4622, 0.0
        %4624 = vadd.xlane.f32.xlu0 %v4623
        %v4625 = vpop.xlane.xlu0 %4624
        %v4626 = vrcp.pop %v4625
        %v4627 = vmul.f32 %v4622, %v4626
        %v4629 = vsel %vm782, %v4627, 0
        %4631 = vmatpush.msra.mxu0 0.0
        %4632 = vmatpush.msra.mxu0 0.0
        %4633 = vmatpush.msra.mxu0 0.0
        %4634 = vmatpush.msra.mxu0 0.0
        %4635 = vmatpush.msra.mxu0 0.0
        %4636 = vmatpush.msra.mxu0 0.0
        %4637 = vmatpush.msra.mxu0 0.0
        %4638 = vmatpush.msra.mxu0 0.0
        %4639 = vmatpush.msra.mxu0 0.0
        %4640 = vmatpush.msra.mxu0 0.0
        %4641 = vmatpush.msra.mxu0 0.0
        %4642 = vmatpush.msra.mxu0 0.0
        %4643 = vmatpush.msra.mxu0 0.0
        %4644 = vmatpush.msra.mxu0 0.0
        %4645 = vmatpush.msra.mxu0 0.0
        %4646 = vmatpush.msra.mxu0 %v4585
        %4647 = vmatmul.f32.gmra.mxu0 %v4629
        %v4648 = vpop.f32.mrf.mxu0
        %v4649 = vadd.f32 0.0, %v4648
        %4650 = vdwg.mxu0
        %s4651 = scalar_lea.vmem %s13, 40
        %v4652 = vld [vmem:[%s4651] sm:$0xff]
        %v4654 = vsel %vm782, %v4649, 0
        %4656 = vmatpush.msra.mxu0 0.0
        %4657 = vmatpush.msra.mxu0 0.0
        %4658 = vmatpush.msra.mxu0 0.0
        %4659 = vmatpush.msra.mxu0 0.0
        %4660 = vmatpush.msra.mxu0 0.0
        %4661 = vmatpush.msra.mxu0 0.0
        %4662 = vmatpush.msra.mxu0 0.0
        %4663 = vmatpush.msra.mxu0 0.0
        %4664 = vmatpush.msra.mxu0 0.0
        %4665 = vmatpush.msra.mxu0 0.0
        %4666 = vmatpush.msra.mxu0 0.0
        %4667 = vmatpush.msra.mxu0 0.0
        %4668 = vmatpush.msra.mxu0 0.0
        %4669 = vmatpush.msra.mxu0 0.0
        %4670 = vmatpush.msra.mxu0 0.0
        %4671 = vmatpush.msra.mxu0 %v4652
        %4672 = vmatmul.f32.gmra.mxu0 %v4654
        %v4673 = vpop.f32.mrf.mxu0
        %v4674 = vadd.f32 0.0, %v4673
        %4675 = vdwg.mxu0
        %v4677 = vsel %vm782, %v4508, 0
        %4679 = vmatpush.msra.mxu0 0.0
        %4680 = vmatpush.msra.mxu0 0.0
        %4681 = vmatpush.msra.mxu0 0.0
        %4682 = vmatpush.msra.mxu0 0.0
        %4683 = vmatpush.msra.mxu0 0.0
        %4684 = vmatpush.msra.mxu0 0.0
        %4685 = vmatpush.msra.mxu0 0.0
        %4686 = vmatpush.msra.mxu0 0.0
        %4687 = vmatpush.msra.mxu0 0.0
        %4688 = vmatpush.msra.mxu0 0.0
        %4689 = vmatpush.msra.mxu0 0.0
        %4690 = vmatpush.msra.mxu0 0.0
        %4691 = vmatpush.msra.mxu0 0.0
        %4692 = vmatpush.msra.mxu0 0.0
        %4693 = vmatpush.msra.mxu0 0.0
        %4694 = vmatpush.msra.mxu0 %v4511
        %4695 = vmatmul.f32.gmra.mxu0 %v4677
        %v4696 = vpop.f32.mrf.mxu0
        %v4697 = vadd.f32 %v4674, %v4696
        %4698 = vdwg.mxu0
        %s4699 = scalar_lea.vmem %s12, 448
        %v4700 = vld [vmem:[%s4699] sm:$0xff]
        %v4701 = vld [vmem:[%s4699 + $0x8] sm:$0xff]
        %v4702 = vld [vmem:[%s4699 + $0x10] sm:$0xff]
        %v4703 = vld [vmem:[%s4699 + $0x18] sm:$0xff]
        %4704 = vmatpush.msra.mxu0 0.0
        %4705 = vmatpush.msra.mxu0 0.0
        %4706 = vmatpush.msra.mxu0 0.0
        %4707 = vmatpush.msra.mxu0 0.0
        %4708 = vmatpush.msra.mxu0 0.0
        %4709 = vmatpush.msra.mxu0 0.0
        %4710 = vmatpush.msra.mxu0 0.0
        %4711 = vmatpush.msra.mxu0 0.0
        %4712 = vmatpush.msra.mxu0 0.0
        %4713 = vmatpush.msra.mxu0 0.0
        %4714 = vmatpush.msra.mxu0 0.0
        %4715 = vmatpush.msra.mxu0 0.0
        %4716 = vmatpush.msra.mxu0 %v4703
        %4717 = vmatpush.msra.mxu0 %v4702
        %4718 = vmatpush.msra.mxu0 %v4701
        %4719 = vmatpush.msra.mxu0 %v4700
        %4720 = vmatmul.f32.gmra.mxu0 %v4374
        %v4721 = vpop.f32.mrf.mxu0
        %v4722 = vadd.f32 0.0, %v4721
        %4723 = vdwg.mxu0
        %s4724 = scalar_lea.vmem %s12, 576
        %v4725 = vld [vmem:[%s4724] sm:$0xff]
        %v4726 = vld [vmem:[%s4724 + $0x8] sm:$0xff]
        %v4727 = vld [vmem:[%s4724 + $0x10] sm:$0xff]
        %v4728 = vld [vmem:[%s4724 + $0x18] sm:$0xff]
        %4729 = vmatpush.msra.mxu0 0.0
        %4730 = vmatpush.msra.mxu0 0.0
        %4731 = vmatpush.msra.mxu0 0.0
        %4732 = vmatpush.msra.mxu0 0.0
        %4733 = vmatpush.msra.mxu0 0.0
        %4734 = vmatpush.msra.mxu0 0.0
        %4735 = vmatpush.msra.mxu0 0.0
        %4736 = vmatpush.msra.mxu0 0.0
        %4737 = vmatpush.msra.mxu0 0.0
        %4738 = vmatpush.msra.mxu0 0.0
        %4739 = vmatpush.msra.mxu0 0.0
        %4740 = vmatpush.msra.mxu0 0.0
        %4741 = vmatpush.msra.mxu0 %v4728
        %4742 = vmatpush.msra.mxu0 %v4727
        %4743 = vmatpush.msra.mxu0 %v4726
        %4744 = vmatpush.msra.mxu0 %v4725
        %4745 = vmatmul.f32.gmra.mxu0 %v2943
        %v4746 = vpop.f32.mrf.mxu0
        %v4747 = vadd.f32 0.0, %v4746
        %4748 = vdwg.mxu0
        %s4749 = scalar_lea.vmem %s12, 704
        %v4750 = vld [vmem:[%s4749] sm:$0xff]
        %v4751 = vld [vmem:[%s4749 + $0x8] sm:$0xff]
        %v4752 = vld [vmem:[%s4749 + $0x10] sm:$0xff]
        %v4753 = vld [vmem:[%s4749 + $0x18] sm:$0xff]
        %4754 = vmatpush.msra.mxu0 0.0
        %4755 = vmatpush.msra.mxu0 0.0
        %4756 = vmatpush.msra.mxu0 0.0
        %4757 = vmatpush.msra.mxu0 0.0
        %4758 = vmatpush.msra.mxu0 0.0
        %4759 = vmatpush.msra.mxu0 0.0
        %4760 = vmatpush.msra.mxu0 0.0
        %4761 = vmatpush.msra.mxu0 0.0
        %4762 = vmatpush.msra.mxu0 0.0
        %4763 = vmatpush.msra.mxu0 0.0
        %4764 = vmatpush.msra.mxu0 0.0
        %4765 = vmatpush.msra.mxu0 0.0
        %4766 = vmatpush.msra.mxu0 %v4753
        %4767 = vmatpush.msra.mxu0 %v4752
        %4768 = vmatpush.msra.mxu0 %v4751
        %4769 = vmatpush.msra.mxu0 %v4750
        %4770 = vmatmul.f32.gmra.mxu0 %v2943
        %v4771 = vpop.f32.mrf.mxu0
        %v4772 = vadd.f32 0.0, %v4771
        %4773 = vdwg.mxu0
        %s4774 = scalar_lea.vmem %s662, 48 [#allocation5]
        %4775 = vst.msk [vmem:[%s4774] sm:$0xff] %vm782, %v4747
        %s4776 = scalar_lea.vmem %s668, 48 [#allocation6]
        %4777 = vst.msk [vmem:[%s4776] sm:$0xff] %vm782, %v4772
        %v4779 = vsel %vm782, %v4722, 0
        %v4782 = vsel %vm782, %v4747, 0
        %4784 = vmatpush.xpose.msra.mxu0 0.0
        %4785 = vmatpush.xpose.msra.mxu0 0.0
        %4786 = vmatpush.xpose.msra.mxu0 0.0
        %4787 = vmatpush.xpose.msra.mxu0 0.0
        %4788 = vmatpush.xpose.msra.mxu0 0.0
        %4789 = vmatpush.xpose.msra.mxu0 0.0
        %4790 = vmatpush.xpose.msra.mxu0 0.0
        %4791 = vmatpush.xpose.msra.mxu0 0.0
        %4792 = vmatpush.xpose.msra.mxu0 0.0
        %4793 = vmatpush.xpose.msra.mxu0 0.0
        %4794 = vmatpush.xpose.msra.mxu0 0.0
        %4795 = vmatpush.xpose.msra.mxu0 0.0
        %4796 = vmatpush.xpose.msra.mxu0 0.0
        %4797 = vmatpush.xpose.msra.mxu0 0.0
        %4798 = vmatpush.xpose.msra.mxu0 0.0
        %4799 = vmatpush.xpose.msra.mxu0 %v4782
        %4800 = vmatmul.f32.gmra.mxu0 %v4779
        %v4801 = vpop.f32.mrf.mxu0
        %v4802 = vadd.f32 0.0, %v4801
        %4803 = vdwg.mxu0
        %v4804 = vsel %vm782, %v4802, -inf
        %4805 = vmax.xlane.f32.xlu0 %v4804
        %v4806 = vpop.xlane.xlu0 %4805
        %v4807 = vsub.f32 %v4802, %v4806
        %v4808 = vmul.f32 %v4807, 1.442695
        %v4809 = vpow.pop %v4808
        %v4810 = vsel %vm782, %v4809, 0.0
        %4811 = vadd.xlane.f32.xlu0 %v4810
        %v4812 = vpop.xlane.xlu0 %4811
        %v4813 = vrcp.pop %v4812
        %v4814 = vmul.f32 %v4809, %v4813
        %v4816 = vsel %vm782, %v4814, 0
        %4818 = vmatpush.msra.mxu0 0.0
        %4819 = vmatpush.msra.mxu0 0.0
        %4820 = vmatpush.msra.mxu0 0.0
        %4821 = vmatpush.msra.mxu0 0.0
        %4822 = vmatpush.msra.mxu0 0.0
        %4823 = vmatpush.msra.mxu0 0.0
        %4824 = vmatpush.msra.mxu0 0.0
        %4825 = vmatpush.msra.mxu0 0.0
        %4826 = vmatpush.msra.mxu0 0.0
        %4827 = vmatpush.msra.mxu0 0.0
        %4828 = vmatpush.msra.mxu0 0.0
        %4829 = vmatpush.msra.mxu0 0.0
        %4830 = vmatpush.msra.mxu0 0.0
        %4831 = vmatpush.msra.mxu0 0.0
        %4832 = vmatpush.msra.mxu0 0.0
        %4833 = vmatpush.msra.mxu0 %v4772
        %4834 = vmatmul.f32.gmra.mxu0 %v4816
        %v4835 = vpop.f32.mrf.mxu0
        %v4836 = vadd.f32 0.0, %v4835
        %4837 = vdwg.mxu0
        %s4838 = scalar_lea.vmem %s13, 48
        %v4839 = vld [vmem:[%s4838] sm:$0xff]
        %v4841 = vsel %vm782, %v4836, 0
        %4843 = vmatpush.msra.mxu0 0.0
        %4844 = vmatpush.msra.mxu0 0.0
        %4845 = vmatpush.msra.mxu0 0.0
        %4846 = vmatpush.msra.mxu0 0.0
        %4847 = vmatpush.msra.mxu0 0.0
        %4848 = vmatpush.msra.mxu0 0.0
        %4849 = vmatpush.msra.mxu0 0.0
        %4850 = vmatpush.msra.mxu0 0.0
        %4851 = vmatpush.msra.mxu0 0.0
        %4852 = vmatpush.msra.mxu0 0.0
        %4853 = vmatpush.msra.mxu0 0.0
        %4854 = vmatpush.msra.mxu0 0.0
        %4855 = vmatpush.msra.mxu0 0.0
        %4856 = vmatpush.msra.mxu0 0.0
        %4857 = vmatpush.msra.mxu0 0.0
        %4858 = vmatpush.msra.mxu0 %v4839
        %4859 = vmatmul.f32.gmra.mxu0 %v4841
        %v4860 = vpop.f32.mrf.mxu0
        %v4861 = vadd.f32 0.0, %v4860
        %4862 = vdwg.mxu0
        %v4863 = vadd.f32 %v4697, %v4861
        %s4864 = scalar_lea.vmem %s12, 480
        %v4865 = vld [vmem:[%s4864] sm:$0xff]
        %v4866 = vld [vmem:[%s4864 + $0x8] sm:$0xff]
        %v4867 = vld [vmem:[%s4864 + $0x10] sm:$0xff]
        %v4868 = vld [vmem:[%s4864 + $0x18] sm:$0xff]
        %4869 = vmatpush.msra.mxu0 0.0
        %4870 = vmatpush.msra.mxu0 0.0
        %4871 = vmatpush.msra.mxu0 0.0
        %4872 = vmatpush.msra.mxu0 0.0
        %4873 = vmatpush.msra.mxu0 0.0
        %4874 = vmatpush.msra.mxu0 0.0
        %4875 = vmatpush.msra.mxu0 0.0
        %4876 = vmatpush.msra.mxu0 0.0
        %4877 = vmatpush.msra.mxu0 0.0
        %4878 = vmatpush.msra.mxu0 0.0
        %4879 = vmatpush.msra.mxu0 0.0
        %4880 = vmatpush.msra.mxu0 0.0
        %4881 = vmatpush.msra.mxu0 %v4868
        %4882 = vmatpush.msra.mxu0 %v4867
        %4883 = vmatpush.msra.mxu0 %v4866
        %4884 = vmatpush.msra.mxu0 %v4865
        %4885 = vmatmul.f32.gmra.mxu0 %v4374
        %v4886 = vpop.f32.mrf.mxu0
        %v4887 = vadd.f32 0.0, %v4886
        %4888 = vdwg.mxu0
        %s4889 = scalar_lea.vmem %s12, 608
        %v4890 = vld [vmem:[%s4889] sm:$0xff]
        %v4891 = vld [vmem:[%s4889 + $0x8] sm:$0xff]
        %v4892 = vld [vmem:[%s4889 + $0x10] sm:$0xff]
        %v4893 = vld [vmem:[%s4889 + $0x18] sm:$0xff]
        %4894 = vmatpush.msra.mxu0 0.0
        %4895 = vmatpush.msra.mxu0 0.0
        %4896 = vmatpush.msra.mxu0 0.0
        %4897 = vmatpush.msra.mxu0 0.0
        %4898 = vmatpush.msra.mxu0 0.0
        %4899 = vmatpush.msra.mxu0 0.0
        %4900 = vmatpush.msra.mxu0 0.0
        %4901 = vmatpush.msra.mxu0 0.0
        %4902 = vmatpush.msra.mxu0 0.0
        %4903 = vmatpush.msra.mxu0 0.0
        %4904 = vmatpush.msra.mxu0 0.0
        %4905 = vmatpush.msra.mxu0 0.0
        %4906 = vmatpush.msra.mxu0 %v4893
        %4907 = vmatpush.msra.mxu0 %v4892
        %4908 = vmatpush.msra.mxu0 %v4891
        %4909 = vmatpush.msra.mxu0 %v4890
        %4910 = vmatmul.f32.gmra.mxu0 %v2943
        %v4911 = vpop.f32.mrf.mxu0
        %v4912 = vadd.f32 0.0, %v4911
        %4913 = vdwg.mxu0
        %s4914 = scalar_lea.vmem %s12, 736
        %v4915 = vld [vmem:[%s4914] sm:$0xff]
        %v4916 = vld [vmem:[%s4914 + $0x8] sm:$0xff]
        %v4917 = vld [vmem:[%s4914 + $0x10] sm:$0xff]
        %v4918 = vld [vmem:[%s4914 + $0x18] sm:$0xff]
        %4919 = vmatpush.msra.mxu0 0.0
        %4920 = vmatpush.msra.mxu0 0.0
        %4921 = vmatpush.msra.mxu0 0.0
        %4922 = vmatpush.msra.mxu0 0.0
        %4923 = vmatpush.msra.mxu0 0.0
        %4924 = vmatpush.msra.mxu0 0.0
        %4925 = vmatpush.msra.mxu0 0.0
        %4926 = vmatpush.msra.mxu0 0.0
        %4927 = vmatpush.msra.mxu0 0.0
        %4928 = vmatpush.msra.mxu0 0.0
        %4929 = vmatpush.msra.mxu0 0.0
        %4930 = vmatpush.msra.mxu0 0.0
        %4931 = vmatpush.msra.mxu0 %v4918
        %4932 = vmatpush.msra.mxu0 %v4917
        %4933 = vmatpush.msra.mxu0 %v4916
        %4934 = vmatpush.msra.mxu0 %v4915
        %4935 = vmatmul.f32.gmra.mxu0 %v2943
        %v4936 = vpop.f32.mrf.mxu0
        %v4937 = vadd.f32 0.0, %v4936
        %4938 = vdwg.mxu0
        %s4939 = scalar_lea.vmem %s662, 56 [#allocation5]
        %4940 = vst.msk [vmem:[%s4939] sm:$0xff] %vm782, %v4912
        %s4941 = scalar_lea.vmem %s668, 56 [#allocation6]
        %4942 = vst.msk [vmem:[%s4941] sm:$0xff] %vm782, %v4937
        %v4944 = vsel %vm782, %v4887, 0
        %v4947 = vsel %vm782, %v4912, 0
        %4949 = vmatpush.xpose.msra.mxu0 0.0
        %4950 = vmatpush.xpose.msra.mxu0 0.0
        %4951 = vmatpush.xpose.msra.mxu0 0.0
        %4952 = vmatpush.xpose.msra.mxu0 0.0
        %4953 = vmatpush.xpose.msra.mxu0 0.0
        %4954 = vmatpush.xpose.msra.mxu0 0.0
        %4955 = vmatpush.xpose.msra.mxu0 0.0
        %4956 = vmatpush.xpose.msra.mxu0 0.0
        %4957 = vmatpush.xpose.msra.mxu0 0.0
        %4958 = vmatpush.xpose.msra.mxu0 0.0
        %4959 = vmatpush.xpose.msra.mxu0 0.0
        %4960 = vmatpush.xpose.msra.mxu0 0.0
        %4961 = vmatpush.xpose.msra.mxu0 0.0
        %4962 = vmatpush.xpose.msra.mxu0 0.0
        %4963 = vmatpush.xpose.msra.mxu0 0.0
        %4964 = vmatpush.xpose.msra.mxu0 %v4947
        %4965 = vmatmul.f32.gmra.mxu0 %v4944
        %v4966 = vpop.f32.mrf.mxu0
        %v4967 = vadd.f32 0.0, %v4966
        %4968 = vdwg.mxu0
        %v4969 = vsel %vm782, %v4967, -inf
        %4970 = vmax.xlane.f32.xlu0 %v4969
        %v4971 = vpop.xlane.xlu0 %4970
        %v4972 = vsub.f32 %v4967, %v4971
        %v4973 = vmul.f32 %v4972, 1.442695
        %v4974 = vpow.pop %v4973
        %v4975 = vsel %vm782, %v4974, 0.0
        %4976 = vadd.xlane.f32.xlu0 %v4975
        %v4977 = vpop.xlane.xlu0 %4976
        %v4978 = vrcp.pop %v4977
        %v4979 = vmul.f32 %v4974, %v4978
        %v4981 = vsel %vm782, %v4979, 0
        %4983 = vmatpush.msra.mxu0 0.0
        %4984 = vmatpush.msra.mxu0 0.0
        %4985 = vmatpush.msra.mxu0 0.0
        %4986 = vmatpush.msra.mxu0 0.0
        %4987 = vmatpush.msra.mxu0 0.0
        %4988 = vmatpush.msra.mxu0 0.0
        %4989 = vmatpush.msra.mxu0 0.0
        %4990 = vmatpush.msra.mxu0 0.0
        %4991 = vmatpush.msra.mxu0 0.0
        %4992 = vmatpush.msra.mxu0 0.0
        %4993 = vmatpush.msra.mxu0 0.0
        %4994 = vmatpush.msra.mxu0 0.0
        %4995 = vmatpush.msra.mxu0 0.0
        %4996 = vmatpush.msra.mxu0 0.0
        %4997 = vmatpush.msra.mxu0 0.0
        %4998 = vmatpush.msra.mxu0 %v4937
        %4999 = vmatmul.f32.gmra.mxu0 %v4981
        %v5000 = vpop.f32.mrf.mxu0
        %v5001 = vadd.f32 0.0, %v5000
        %5002 = vdwg.mxu0
        %s5003 = scalar_lea.vmem %s13, 56
        %v5004 = vld [vmem:[%s5003] sm:$0xff]
        %v5006 = vsel %vm782, %v5001, 0
        %5008 = vmatpush.msra.mxu0 0.0
        %5009 = vmatpush.msra.mxu0 0.0
        %5010 = vmatpush.msra.mxu0 0.0
        %5011 = vmatpush.msra.mxu0 0.0
        %5012 = vmatpush.msra.mxu0 0.0
        %5013 = vmatpush.msra.mxu0 0.0
        %5014 = vmatpush.msra.mxu0 0.0
        %5015 = vmatpush.msra.mxu0 0.0
        %5016 = vmatpush.msra.mxu0 0.0
        %5017 = vmatpush.msra.mxu0 0.0
        %5018 = vmatpush.msra.mxu0 0.0
        %5019 = vmatpush.msra.mxu0 0.0
        %5020 = vmatpush.msra.mxu0 0.0
        %5021 = vmatpush.msra.mxu0 0.0
        %5022 = vmatpush.msra.mxu0 0.0
        %5023 = vmatpush.msra.mxu0 %v5004
        %5024 = vmatmul.f32.gmra.mxu0 %v5006
        %v5025 = vpop.f32.mrf.mxu0
        %v5026 = vadd.f32 0.0, %v5025
        %5027 = vdwg.mxu0
        %v5028 = vadd.f32 %v4863, %v5026
        %v5029 = vadd.f32 %v4344, %v5028
        %s5030 = scalar_lea.vmem %s9, 5
        %v5031 = vld [vmem:[%s5030] sm:$0x1]
        %v5032 = vmul.f32 %v5029, %v5029
        %v5033 = vsel %vm676, %v5032, 0.0
        %5034 = vadd.xlane.f32.xlu0 %v5033
        %v5035 = vpop.xlane.xlu0 %5034
        %v5036 = vmul.f32 %v5035, %v686
        %v5037 = vadd.f32 %v5036, 1e-06
        %v5038 = vrsqrt.pop %v5037
        %v5039 = vmul.f32 %v5038, %v5037
        %v5040 = vmul.f32 %v5039, %v5038
        %v5041 = vmul.f32 0.5, %v5040
        %v5042 = vsub.f32 1.5, %v5041
        %v5043 = vmul.f32 %v5038, %v5042
        %vm5044 = vweird.f32 %v5037
        %vm5045 = vweird.f32 %v5038
        %vm5046 = vmor %vm5044, %vm5045
        %v5047 = vsel %vm5046, %v5038, %v5043
        %v5048 = vmul.f32 %v5029, %v5047
        %v5050 = vperm.slane %v5031, 0
        %v5052 = vmul.f32 %v5048, %v5050
        %s5053 = scalar_lea.vmem %s14, 32
        %v5054 = vld [vmem:[%s5053] sm:$0xff]
        %v5055 = vld [vmem:[%s5053 + $0x8] sm:$0xff]
        %v5056 = vld [vmem:[%s5053 + $0x10] sm:$0xff]
        %v5057 = vld [vmem:[%s5053 + $0x18] sm:$0xff]
        %s5058 = scalar_lea.vmem %s15, 64
        %v5059 = vld [vmem:[%s5058] sm:$0xff]
        %v5060 = vld [vmem:[%s5058 + $0x8] sm:$0xff]
        %v5061 = vld [vmem:[%s5058 + $0x10] sm:$0xff]
        %v5062 = vld [vmem:[%s5058 + $0x18] sm:$0xff]
        %v5063 = vld [vmem:[%s5058 + $0x20] sm:$0xff]
        %v5064 = vld [vmem:[%s5058 + $0x28] sm:$0xff]
        %v5065 = vld [vmem:[%s5058 + $0x30] sm:$0xff]
        %v5066 = vld [vmem:[%s5058 + $0x38] sm:$0xff]
        %v5068 = vsel %vm676, %v5052, 0
        %5070 = vmatpush.msra.mxu0 0.0
        %5071 = vmatpush.msra.mxu0 0.0
        %5072 = vmatpush.msra.mxu0 0.0
        %5073 = vmatpush.msra.mxu0 0.0
        %5074 = vmatpush.msra.mxu0 0.0
        %5075 = vmatpush.msra.mxu0 0.0
        %5076 = vmatpush.msra.mxu0 0.0
        %5077 = vmatpush.msra.mxu0 0.0
        %5078 = vmatpush.msra.mxu0 0.0
        %5079 = vmatpush.msra.mxu0 0.0
        %5080 = vmatpush.msra.mxu0 0.0
        %5081 = vmatpush.msra.mxu0 0.0
        %5082 = vmatpush.msra.mxu0 %v5057
        %5083 = vmatpush.msra.mxu0 %v5056
        %5084 = vmatpush.msra.mxu0 %v5055
        %5085 = vmatpush.msra.mxu0 %v5054
        %5086 = vmatmul.f32.gmra.mxu0 %v5068
        %v5087 = vpop.f32.mrf.mxu0
        %v5088 = vadd.f32 0.0, %v5087
        %5089 = vdwg.mxu0
        %v5090 = vmax.f32 %v5088, 0.0
        %v5092 = vsel %vm1415, %v5090, 0
        %5094 = vmatpush.msra.mxu0 0.0
        %5095 = vmatpush.msra.mxu0 0.0
        %5096 = vmatpush.msra.mxu0 0.0
        %5097 = vmatpush.msra.mxu0 0.0
        %5098 = vmatpush.msra.mxu0 0.0
        %5099 = vmatpush.msra.mxu0 0.0
        %5100 = vmatpush.msra.mxu0 0.0
        %5101 = vmatpush.msra.mxu0 0.0
        %5102 = vmatpush.msra.mxu0 %v5066
        %5103 = vmatpush.msra.mxu0 %v5065
        %5104 = vmatpush.msra.mxu0 %v5064
        %5105 = vmatpush.msra.mxu0 %v5063
        %5106 = vmatpush.msra.mxu0 %v5062
        %5107 = vmatpush.msra.mxu0 %v5061
        %5108 = vmatpush.msra.mxu0 %v5060
        %5109 = vmatpush.msra.mxu0 %v5059
        %5110 = vmatmul.f32.gmra.mxu0 %v5092
        %v5111 = vpop.f32.mrf.mxu0
        %v5112 = vadd.f32 0.0, %v5111
        %5113 = vdwg.mxu0
        %v5114 = vadd.f32 %v5029, %v5112
        %v5115 = vld [vmem:[%s16] sm:$0x1]
        %v5116 = vmul.f32 %v5114, %v5114
        %v5117 = vsel %vm676, %v5116, 0.0
        %5118 = vadd.xlane.f32.xlu0 %v5117
        %v5119 = vpop.xlane.xlu0 %5118
        %v5120 = vmul.f32 %v5119, %v686
        %v5121 = vadd.f32 %v5120, 1e-06
        %v5122 = vrsqrt.pop %v5121
        %v5123 = vmul.f32 %v5122, %v5121
        %v5124 = vmul.f32 %v5123, %v5122
        %v5125 = vmul.f32 0.5, %v5124
        %v5126 = vsub.f32 1.5, %v5125
        %v5127 = vmul.f32 %v5122, %v5126
        %vm5128 = vweird.f32 %v5121
        %vm5129 = vweird.f32 %v5122
        %vm5130 = vmor %vm5128, %vm5129
        %v5131 = vsel %vm5130, %v5122, %v5127
        %v5132 = vmul.f32 %v5114, %v5131
        %v5134 = vperm.slane %v5115, 0
        %v5136 = vmul.f32 %v5132, %v5134
        %s5137 = scalar_lea.vmem %s644, 16 [#allocation2]
        %5138 = vst.msk [vmem:[%s5137] sm:$0xff] %vm676, %v5136
        %s5139 = sand.u32 %s403, 1
        %s5140 = sand.u32 %s403, 1
        %s5141 = smul.addr %s5140, 24
        %s5142 = scalar_lea.vmem [#allocation2], %s5141
        %s5143 = sand.u32 %s429, 1
        %s5144 = sand.u32 %s429, 1
        %s5145 = smul.addr %s5144, 64
        %s5146 = scalar_lea.vmem [#allocation3], %s5145
        %s5147 = sand.u32 %s455, 1
        %s5148 = sand.u32 %s455, 1
        %s5149 = smul.addr %s5148, 64
        %s5150 = scalar_lea.vmem [#allocation4], %s5149
        %s5151 = sand.u32 %s481, 1
        %s5152 = sand.u32 %s481, 1
        %s5153 = smul.addr %s5152, 64
        %s5154 = scalar_lea.vmem [#allocation5], %s5153
        %s5155 = sand.u32 %s507, 1
        %s5156 = sand.u32 %s507, 1
        %s5157 = smul.addr %s5156, 64
        %s5158 = scalar_lea.vmem [#allocation6], %s5157
        // Predicated region
        $region89: #{wrap_t5_forward.1} parent=87 // pred_check
          %p5159 = pneg %p413
        $region90: #{wrap_t5_forward.1} parent=87 // pred_check_branch
          %5161 = sbr.rel (%p5159) target = $region92
        $region91: #{wrap_t5_forward.1} parent=87 // pred_region
          %s5162 = smul.addr %s33, 8
          %s5163 = scalar_lea.vmem %s17, %s5162
          // Predicated region
          $region93: #{wrap_t5_forward.1} parent=91 // pred_check
            _
          $region94: #{wrap_t5_forward.1} parent=91 // pred_check_branch
            %5165 = sbr.rel (0) target = $region96
          $region95: #{wrap_t5_forward.1} parent=91 // pred_region
            // Predicated region
            $region97: #{wrap_t5_forward.1} parent=95 // pred_check
              _
            $region98: #{wrap_t5_forward.1} parent=95 // pred_check_branch
              %5167 = sbr.rel (0) target = $region100
            $region99: #{wrap_t5_forward.1} parent=95 // pred_region
              // Predicated region
              $region112: #{wrap_t5_forward.1} parent=99 // pred_check
                _
              $region113: #{wrap_t5_forward.1} parent=99 // pred_check_branch
                %5187 = sbr.rel (0) target = $region115
              $region114: #{wrap_t5_forward.1} parent=99 // pred_region
                loop: start=0, step=1, limit=1
                $region116: #{wrap_t5_forward.1} parent=114 // loop_pre_header
                  _
                $region117: #{wrap_t5_forward.1} parent=114 // loop_header
                  %s5189 = sphi 0, %s5193
                  %p5190 = scmp.ge.s32.totalorder %s5189, 1
                  %s5194 = sphi %s5142, %s5142
                  %s5195 = sphi %s5163, %s5163
                $region118: #{wrap_t5_forward.1} parent=114 // loop_header_branch
                  %5192 = sbr.rel (%p5190) target = $region122
                $region119: #{wrap_t5_forward.1} parent=114 // loop_body
                  %v5196 = vld [vmem:[%s5194] sm:$0xff]
                  %5197 = vst [vmem:[%s5195] sm:$0xff] %v5196
                  %v5198 = vld [vmem:[%s5194 + $0x8] sm:$0xff]
                  %5199 = vst [vmem:[%s5195 + $0x10] sm:$0xff] %v5198
                  %v5200 = vld [vmem:[%s5194 + $0x10] sm:$0xff]
                  %5201 = vst [vmem:[%s5195 + $0x20] sm:$0xff] %v5200
                $region120: #{wrap_t5_forward.1} parent=114 // loop_footer
                  %s5193 = sadd.s32 1, %s5189
                $region121: #{wrap_t5_forward.1} parent=114 // loop_footer_branch
                  %5188 = sbr.rel target = $region117
                $region122: #{wrap_t5_forward.1} parent=114 // loop_exit
                  _
              $region115: #{wrap_t5_forward.1} parent=99 // pred_fallthru
                _
              // Predicated region
              $region123: #{wrap_t5_forward.1} parent=99 // pred_check
                _
              $region124: #{wrap_t5_forward.1} parent=99 // pred_check_branch
                %5203 = sbr.rel target = $region126
              $region125: #{wrap_t5_forward.1} parent=99 // pred_region
                _
              $region126: #{wrap_t5_forward.1} parent=99 // pred_fallthru
                _
            $region100: #{wrap_t5_forward.1} parent=95 // pred_fallthru
              _
            // Predicated region
            $region101: #{wrap_t5_forward.1} parent=95 // pred_check
              _
            $region102: #{wrap_t5_forward.1} parent=95 // pred_check_branch
              %5169 = sbr.rel target = $region104
            $region103: #{wrap_t5_forward.1} parent=95 // pred_region
              %s5171 = ssub.s32 256, 1
              loop: start=0, step=1, limit=1
              $region105: #{wrap_t5_forward.1} parent=103 // loop_pre_header
                _
              $region106: #{wrap_t5_forward.1} parent=103 // loop_header
                %s5173 = sphi 0, %s5177
                %p5174 = scmp.ge.s32.totalorder %s5173, 1
                %s5178 = sphi %s5142, %s5142
                %s5179 = sphi %s5163, %s5163
              $region107: #{wrap_t5_forward.1} parent=103 // loop_header_branch
                %5176 = sbr.rel (%p5174) target = $region111
              $region108: #{wrap_t5_forward.1} parent=103 // loop_body
                %v5180 = vld [vmem:[%s5178] sm:%s5171]
                %5181 = vst [vmem:[%s5179] sm:%s5171] %v5180
                %v5182 = vld [vmem:[%s5178 + $0x8] sm:%s5171]
                %5183 = vst [vmem:[%s5179 + $0x10] sm:%s5171] %v5182
                %v5184 = vld [vmem:[%s5178 + $0x10] sm:%s5171]
                %5185 = vst [vmem:[%s5179 + $0x20] sm:%s5171] %v5184
              $region109: #{wrap_t5_forward.1} parent=103 // loop_footer
                %s5177 = sadd.s32 1, %s5173
              $region110: #{wrap_t5_forward.1} parent=103 // loop_footer_branch
                %5172 = sbr.rel target = $region106
              $region111: #{wrap_t5_forward.1} parent=103 // loop_exit
                _
            $region104: #{wrap_t5_forward.1} parent=95 // pred_fallthru
              _
          $region96: #{wrap_t5_forward.1} parent=91 // pred_fallthru
            _
          %5204 = vnop
        $region92: #{wrap_t5_forward.1} parent=87 // pred_fallthru
          _
        // Predicated region
        $region127: #{wrap_t5_forward.1} parent=87 // pred_check
          %p5205 = pneg %p439
        $region128: #{wrap_t5_forward.1} parent=87 // pred_check_branch
          %5207 = sbr.rel (%p5205) target = $region130
        $region129: #{wrap_t5_forward.1} parent=87 // pred_region
          %s5208 = smul.addr %s33, 8
          %s5209 = scalar_lea.vmem %s18, %s5208
          // Predicated region
          $region131: #{wrap_t5_forward.1} parent=129 // pred_check
            _
          $region132: #{wrap_t5_forward.1} parent=129 // pred_check_branch
            %5211 = sbr.rel (0) target = $region134
          $region133: #{wrap_t5_forward.1} parent=129 // pred_region
            // Predicated region
            $region135: #{wrap_t5_forward.1} parent=133 // pred_check
              _
            $region136: #{wrap_t5_forward.1} parent=133 // pred_check_branch
              %5213 = sbr.rel (0) target = $region138
            $region137: #{wrap_t5_forward.1} parent=133 // pred_region
              // Predicated region
              $region150: #{wrap_t5_forward.1} parent=137 // pred_check
                _
              $region151: #{wrap_t5_forward.1} parent=137 // pred_check_branch
                %5243 = sbr.rel (0) target = $region153
              $region152: #{wrap_t5_forward.1} parent=137 // pred_region
                loop: start=0, step=1, limit=1
                $region154: #{wrap_t5_forward.1} parent=152 // loop_pre_header
                  _
                $region155: #{wrap_t5_forward.1} parent=152 // loop_header
                  %s5245 = sphi 0, %s5249
                  %p5246 = scmp.ge.s32.totalorder %s5245, 1
                  %s5250 = sphi %s5146, %s5146
                  %s5251 = sphi %s5209, %s5209
                $region156: #{wrap_t5_forward.1} parent=152 // loop_header_branch
                  %5248 = sbr.rel (%p5246) target = $region160
                $region157: #{wrap_t5_forward.1} parent=152 // loop_body
                  %v5252 = vld [vmem:[%s5250] sm:$0xff]
                  %5253 = vst [vmem:[%s5251] sm:$0xff] %v5252
                  %v5254 = vld [vmem:[%s5250 + $0x8] sm:$0xff]
                  %5255 = vst [vmem:[%s5251 + $0x10] sm:$0xff] %v5254
                  %v5256 = vld [vmem:[%s5250 + $0x10] sm:$0xff]
                  %5257 = vst [vmem:[%s5251 + $0x20] sm:$0xff] %v5256
                  %v5258 = vld [vmem:[%s5250 + $0x18] sm:$0xff]
                  %5259 = vst [vmem:[%s5251 + $0x30] sm:$0xff] %v5258
                  %v5260 = vld [vmem:[%s5250 + $0x20] sm:$0xff]
                  %5261 = vst [vmem:[%s5251 + $0x40] sm:$0xff] %v5260
                  %v5262 = vld [vmem:[%s5250 + $0x28] sm:$0xff]
                  %5263 = vst [vmem:[%s5251 + $0x50] sm:$0xff] %v5262
                  %v5264 = vld [vmem:[%s5250 + $0x30] sm:$0xff]
                  %5265 = vst [vmem:[%s5251 + $0x60] sm:$0xff] %v5264
                  %v5266 = vld [vmem:[%s5250 + $0x38] sm:$0xff]
                  %5267 = vst [vmem:[%s5251 + $0x70] sm:$0xff] %v5266
                $region158: #{wrap_t5_forward.1} parent=152 // loop_footer
                  %s5249 = sadd.s32 1, %s5245
                $region159: #{wrap_t5_forward.1} parent=152 // loop_footer_branch
                  %5244 = sbr.rel target = $region155
                $region160: #{wrap_t5_forward.1} parent=152 // loop_exit
                  _
              $region153: #{wrap_t5_forward.1} parent=137 // pred_fallthru
                _
              // Predicated region
              $region161: #{wrap_t5_forward.1} parent=137 // pred_check
                _
              $region162: #{wrap_t5_forward.1} parent=137 // pred_check_branch
                %5269 = sbr.rel target = $region164
              $region163: #{wrap_t5_forward.1} parent=137 // pred_region
                _
              $region164: #{wrap_t5_forward.1} parent=137 // pred_fallthru
                _
            $region138: #{wrap_t5_forward.1} parent=133 // pred_fallthru
              _
            // Predicated region
            $region139: #{wrap_t5_forward.1} parent=133 // pred_check
              _
            $region140: #{wrap_t5_forward.1} parent=133 // pred_check_branch
              %5215 = sbr.rel target = $region142
            $region141: #{wrap_t5_forward.1} parent=133 // pred_region
              %s5217 = ssub.s32 256, 1
              loop: start=0, step=1, limit=1
              $region143: #{wrap_t5_forward.1} parent=141 // loop_pre_header
                _
              $region144: #{wrap_t5_forward.1} parent=141 // loop_header
                %s5219 = sphi 0, %s5223
                %p5220 = scmp.ge.s32.totalorder %s5219, 1
                %s5224 = sphi %s5146, %s5146
                %s5225 = sphi %s5209, %s5209
              $region145: #{wrap_t5_forward.1} parent=141 // loop_header_branch
                %5222 = sbr.rel (%p5220) target = $region149
              $region146: #{wrap_t5_forward.1} parent=141 // loop_body
                %v5226 = vld [vmem:[%s5224] sm:%s5217]
                %5227 = vst [vmem:[%s5225] sm:%s5217] %v5226
                %v5228 = vld [vmem:[%s5224 + $0x8] sm:%s5217]
                %5229 = vst [vmem:[%s5225 + $0x10] sm:%s5217] %v5228
                %v5230 = vld [vmem:[%s5224 + $0x10] sm:%s5217]
                %5231 = vst [vmem:[%s5225 + $0x20] sm:%s5217] %v5230
                %v5232 = vld [vmem:[%s5224 + $0x18] sm:%s5217]
                %5233 = vst [vmem:[%s5225 + $0x30] sm:%s5217] %v5232
                %v5234 = vld [vmem:[%s5224 + $0x20] sm:%s5217]
                %5235 = vst [vmem:[%s5225 + $0x40] sm:%s5217] %v5234
                %v5236 = vld [vmem:[%s5224 + $0x28] sm:%s5217]
                %5237 = vst [vmem:[%s5225 + $0x50] sm:%s5217] %v5236
                %v5238 = vld [vmem:[%s5224 + $0x30] sm:%s5217]
                %5239 = vst [vmem:[%s5225 + $0x60] sm:%s5217] %v5238
                %v5240 = vld [vmem:[%s5224 + $0x38] sm:%s5217]
                %5241 = vst [vmem:[%s5225 + $0x70] sm:%s5217] %v5240
              $region147: #{wrap_t5_forward.1} parent=141 // loop_footer
                %s5223 = sadd.s32 1, %s5219
              $region148: #{wrap_t5_forward.1} parent=141 // loop_footer_branch
                %5218 = sbr.rel target = $region144
              $region149: #{wrap_t5_forward.1} parent=141 // loop_exit
                _
            $region142: #{wrap_t5_forward.1} parent=133 // pred_fallthru
              _
          $region134: #{wrap_t5_forward.1} parent=129 // pred_fallthru
            _
          %5270 = vnop
        $region130: #{wrap_t5_forward.1} parent=87 // pred_fallthru
          _
        // Predicated region
        $region165: #{wrap_t5_forward.1} parent=87 // pred_check
          %p5271 = pneg %p465
        $region166: #{wrap_t5_forward.1} parent=87 // pred_check_branch
          %5273 = sbr.rel (%p5271) target = $region168
        $region167: #{wrap_t5_forward.1} parent=87 // pred_region
          %s5274 = smul.addr %s33, 8
          %s5275 = scalar_lea.vmem %s19, %s5274
          // Predicated region
          $region169: #{wrap_t5_forward.1} parent=167 // pred_check
            _
          $region170: #{wrap_t5_forward.1} parent=167 // pred_check_branch
            %5277 = sbr.rel (0) target = $region172
          $region171: #{wrap_t5_forward.1} parent=167 // pred_region
            // Predicated region
            $region173: #{wrap_t5_forward.1} parent=171 // pred_check
              _
            $region174: #{wrap_t5_forward.1} parent=171 // pred_check_branch
              %5279 = sbr.rel (0) target = $region176
            $region175: #{wrap_t5_forward.1} parent=171 // pred_region
              // Predicated region
              $region188: #{wrap_t5_forward.1} parent=175 // pred_check
                _
              $region189: #{wrap_t5_forward.1} parent=175 // pred_check_branch
                %5309 = sbr.rel (0) target = $region191
              $region190: #{wrap_t5_forward.1} parent=175 // pred_region
                loop: start=0, step=1, limit=1
                $region192: #{wrap_t5_forward.1} parent=190 // loop_pre_header
                  _
                $region193: #{wrap_t5_forward.1} parent=190 // loop_header
                  %s5311 = sphi 0, %s5315
                  %p5312 = scmp.ge.s32.totalorder %s5311, 1
                  %s5316 = sphi %s5150, %s5150
                  %s5317 = sphi %s5275, %s5275
                $region194: #{wrap_t5_forward.1} parent=190 // loop_header_branch
                  %5314 = sbr.rel (%p5312) target = $region198
                $region195: #{wrap_t5_forward.1} parent=190 // loop_body
                  %v5318 = vld [vmem:[%s5316] sm:$0xff]
                  %5319 = vst [vmem:[%s5317] sm:$0xff] %v5318
                  %v5320 = vld [vmem:[%s5316 + $0x8] sm:$0xff]
                  %5321 = vst [vmem:[%s5317 + $0x10] sm:$0xff] %v5320
                  %v5322 = vld [vmem:[%s5316 + $0x10] sm:$0xff]
                  %5323 = vst [vmem:[%s5317 + $0x20] sm:$0xff] %v5322
                  %v5324 = vld [vmem:[%s5316 + $0x18] sm:$0xff]
                  %5325 = vst [vmem:[%s5317 + $0x30] sm:$0xff] %v5324
                  %v5326 = vld [vmem:[%s5316 + $0x20] sm:$0xff]
                  %5327 = vst [vmem:[%s5317 + $0x40] sm:$0xff] %v5326
                  %v5328 = vld [vmem:[%s5316 + $0x28] sm:$0xff]
                  %5329 = vst [vmem:[%s5317 + $0x50] sm:$0xff] %v5328
                  %v5330 = vld [vmem:[%s5316 + $0x30] sm:$0xff]
                  %5331 = vst [vmem:[%s5317 + $0x60] sm:$0xff] %v5330
                  %v5332 = vld [vmem:[%s5316 + $0x38] sm:$0xff]
                  %5333 = vst [vmem:[%s5317 + $0x70] sm:$0xff] %v5332
                $region196: #{wrap_t5_forward.1} parent=190 // loop_footer
                  %s5315 = sadd.s32 1, %s5311
                $region197: #{wrap_t5_forward.1} parent=190 // loop_footer_branch
                  %5310 = sbr.rel target = $region193
                $region198: #{wrap_t5_forward.1} parent=190 // loop_exit
                  _
              $region191: #{wrap_t5_forward.1} parent=175 // pred_fallthru
                _
              // Predicated region
              $region199: #{wrap_t5_forward.1} parent=175 // pred_check
                _
              $region200: #{wrap_t5_forward.1} parent=175 // pred_check_branch
                %5335 = sbr.rel target = $region202
              $region201: #{wrap_t5_forward.1} parent=175 // pred_region
                _
              $region202: #{wrap_t5_forward.1} parent=175 // pred_fallthru
                _
            $region176: #{wrap_t5_forward.1} parent=171 // pred_fallthru
              _
            // Predicated region
            $region177: #{wrap_t5_forward.1} parent=171 // pred_check
              _
            $region178: #{wrap_t5_forward.1} parent=171 // pred_check_branch
              %5281 = sbr.rel target = $region180
            $region179: #{wrap_t5_forward.1} parent=171 // pred_region
              %s5283 = ssub.s32 256, 1
              loop: start=0, step=1, limit=1
              $region181: #{wrap_t5_forward.1} parent=179 // loop_pre_header
                _
              $region182: #{wrap_t5_forward.1} parent=179 // loop_header
                %s5285 = sphi 0, %s5289
                %p5286 = scmp.ge.s32.totalorder %s5285, 1
                %s5290 = sphi %s5150, %s5150
                %s5291 = sphi %s5275, %s5275
              $region183: #{wrap_t5_forward.1} parent=179 // loop_header_branch
                %5288 = sbr.rel (%p5286) target = $region187
              $region184: #{wrap_t5_forward.1} parent=179 // loop_body
                %v5292 = vld [vmem:[%s5290] sm:%s5283]
                %5293 = vst [vmem:[%s5291] sm:%s5283] %v5292
                %v5294 = vld [vmem:[%s5290 + $0x8] sm:%s5283]
                %5295 = vst [vmem:[%s5291 + $0x10] sm:%s5283] %v5294
                %v5296 = vld [vmem:[%s5290 + $0x10] sm:%s5283]
                %5297 = vst [vmem:[%s5291 + $0x20] sm:%s5283] %v5296
                %v5298 = vld [vmem:[%s5290 + $0x18] sm:%s5283]
                %5299 = vst [vmem:[%s5291 + $0x30] sm:%s5283] %v5298
                %v5300 = vld [vmem:[%s5290 + $0x20] sm:%s5283]
                %5301 = vst [vmem:[%s5291 + $0x40] sm:%s5283] %v5300
                %v5302 = vld [vmem:[%s5290 + $0x28] sm:%s5283]
                %5303 = vst [vmem:[%s5291 + $0x50] sm:%s5283] %v5302
                %v5304 = vld [vmem:[%s5290 + $0x30] sm:%s5283]
                %5305 = vst [vmem:[%s5291 + $0x60] sm:%s5283] %v5304
                %v5306 = vld [vmem:[%s5290 + $0x38] sm:%s5283]
                %5307 = vst [vmem:[%s5291 + $0x70] sm:%s5283] %v5306
              $region185: #{wrap_t5_forward.1} parent=179 // loop_footer
                %s5289 = sadd.s32 1, %s5285
              $region186: #{wrap_t5_forward.1} parent=179 // loop_footer_branch
                %5284 = sbr.rel target = $region182
              $region187: #{wrap_t5_forward.1} parent=179 // loop_exit
                _
            $region180: #{wrap_t5_forward.1} parent=171 // pred_fallthru
              _
          $region172: #{wrap_t5_forward.1} parent=167 // pred_fallthru
            _
          %5336 = vnop
        $region168: #{wrap_t5_forward.1} parent=87 // pred_fallthru
          _
        // Predicated region
        $region203: #{wrap_t5_forward.1} parent=87 // pred_check
          %p5337 = pneg %p491
        $region204: #{wrap_t5_forward.1} parent=87 // pred_check_branch
          %5339 = sbr.rel (%p5337) target = $region206
        $region205: #{wrap_t5_forward.1} parent=87 // pred_region
          %s5340 = smul.addr %s33, 8
          %s5341 = scalar_lea.vmem %s20, %s5340
          // Predicated region
          $region207: #{wrap_t5_forward.1} parent=205 // pred_check
            _
          $region208: #{wrap_t5_forward.1} parent=205 // pred_check_branch
            %5343 = sbr.rel (0) target = $region210
          $region209: #{wrap_t5_forward.1} parent=205 // pred_region
            // Predicated region
            $region211: #{wrap_t5_forward.1} parent=209 // pred_check
              _
            $region212: #{wrap_t5_forward.1} parent=209 // pred_check_branch
              %5345 = sbr.rel (0) target = $region214
            $region213: #{wrap_t5_forward.1} parent=209 // pred_region
              // Predicated region
              $region226: #{wrap_t5_forward.1} parent=213 // pred_check
                _
              $region227: #{wrap_t5_forward.1} parent=213 // pred_check_branch
                %5375 = sbr.rel (0) target = $region229
              $region228: #{wrap_t5_forward.1} parent=213 // pred_region
                loop: start=0, step=1, limit=1
                $region230: #{wrap_t5_forward.1} parent=228 // loop_pre_header
                  _
                $region231: #{wrap_t5_forward.1} parent=228 // loop_header
                  %s5377 = sphi 0, %s5381
                  %p5378 = scmp.ge.s32.totalorder %s5377, 1
                  %s5382 = sphi %s5154, %s5154
                  %s5383 = sphi %s5341, %s5341
                $region232: #{wrap_t5_forward.1} parent=228 // loop_header_branch
                  %5380 = sbr.rel (%p5378) target = $region236
                $region233: #{wrap_t5_forward.1} parent=228 // loop_body
                  %v5384 = vld [vmem:[%s5382] sm:$0xff]
                  %5385 = vst [vmem:[%s5383] sm:$0xff] %v5384
                  %v5386 = vld [vmem:[%s5382 + $0x8] sm:$0xff]
                  %5387 = vst [vmem:[%s5383 + $0x10] sm:$0xff] %v5386
                  %v5388 = vld [vmem:[%s5382 + $0x10] sm:$0xff]
                  %5389 = vst [vmem:[%s5383 + $0x20] sm:$0xff] %v5388
                  %v5390 = vld [vmem:[%s5382 + $0x18] sm:$0xff]
                  %5391 = vst [vmem:[%s5383 + $0x30] sm:$0xff] %v5390
                  %v5392 = vld [vmem:[%s5382 + $0x20] sm:$0xff]
                  %5393 = vst [vmem:[%s5383 + $0x40] sm:$0xff] %v5392
                  %v5394 = vld [vmem:[%s5382 + $0x28] sm:$0xff]
                  %5395 = vst [vmem:[%s5383 + $0x50] sm:$0xff] %v5394
                  %v5396 = vld [vmem:[%s5382 + $0x30] sm:$0xff]
                  %5397 = vst [vmem:[%s5383 + $0x60] sm:$0xff] %v5396
                  %v5398 = vld [vmem:[%s5382 + $0x38] sm:$0xff]
                  %5399 = vst [vmem:[%s5383 + $0x70] sm:$0xff] %v5398
                $region234: #{wrap_t5_forward.1} parent=228 // loop_footer
                  %s5381 = sadd.s32 1, %s5377
                $region235: #{wrap_t5_forward.1} parent=228 // loop_footer_branch
                  %5376 = sbr.rel target = $region231
                $region236: #{wrap_t5_forward.1} parent=228 // loop_exit
                  _
              $region229: #{wrap_t5_forward.1} parent=213 // pred_fallthru
                _
              // Predicated region
              $region237: #{wrap_t5_forward.1} parent=213 // pred_check
                _
              $region238: #{wrap_t5_forward.1} parent=213 // pred_check_branch
                %5401 = sbr.rel target = $region240
              $region239: #{wrap_t5_forward.1} parent=213 // pred_region
                _
              $region240: #{wrap_t5_forward.1} parent=213 // pred_fallthru
                _
            $region214: #{wrap_t5_forward.1} parent=209 // pred_fallthru
              _
            // Predicated region
            $region215: #{wrap_t5_forward.1} parent=209 // pred_check
              _
            $region216: #{wrap_t5_forward.1} parent=209 // pred_check_branch
              %5347 = sbr.rel target = $region218
            $region217: #{wrap_t5_forward.1} parent=209 // pred_region
              %s5349 = ssub.s32 256, 1
              loop: start=0, step=1, limit=1
              $region219: #{wrap_t5_forward.1} parent=217 // loop_pre_header
                _
              $region220: #{wrap_t5_forward.1} parent=217 // loop_header
                %s5351 = sphi 0, %s5355
                %p5352 = scmp.ge.s32.totalorder %s5351, 1
                %s5356 = sphi %s5154, %s5154
                %s5357 = sphi %s5341, %s5341
              $region221: #{wrap_t5_forward.1} parent=217 // loop_header_branch
                %5354 = sbr.rel (%p5352) target = $region225
              $region222: #{wrap_t5_forward.1} parent=217 // loop_body
                %v5358 = vld [vmem:[%s5356] sm:%s5349]
                %5359 = vst [vmem:[%s5357] sm:%s5349] %v5358
                %v5360 = vld [vmem:[%s5356 + $0x8] sm:%s5349]
                %5361 = vst [vmem:[%s5357 + $0x10] sm:%s5349] %v5360
                %v5362 = vld [vmem:[%s5356 + $0x10] sm:%s5349]
                %5363 = vst [vmem:[%s5357 + $0x20] sm:%s5349] %v5362
                %v5364 = vld [vmem:[%s5356 + $0x18] sm:%s5349]
                %5365 = vst [vmem:[%s5357 + $0x30] sm:%s5349] %v5364
                %v5366 = vld [vmem:[%s5356 + $0x20] sm:%s5349]
                %5367 = vst [vmem:[%s5357 + $0x40] sm:%s5349] %v5366
                %v5368 = vld [vmem:[%s5356 + $0x28] sm:%s5349]
                %5369 = vst [vmem:[%s5357 + $0x50] sm:%s5349] %v5368
                %v5370 = vld [vmem:[%s5356 + $0x30] sm:%s5349]
                %5371 = vst [vmem:[%s5357 + $0x60] sm:%s5349] %v5370
                %v5372 = vld [vmem:[%s5356 + $0x38] sm:%s5349]
                %5373 = vst [vmem:[%s5357 + $0x70] sm:%s5349] %v5372
              $region223: #{wrap_t5_forward.1} parent=217 // loop_footer
                %s5355 = sadd.s32 1, %s5351
              $region224: #{wrap_t5_forward.1} parent=217 // loop_footer_branch
                %5350 = sbr.rel target = $region220
              $region225: #{wrap_t5_forward.1} parent=217 // loop_exit
                _
            $region218: #{wrap_t5_forward.1} parent=209 // pred_fallthru
              _
          $region210: #{wrap_t5_forward.1} parent=205 // pred_fallthru
            _
          %5402 = vnop
        $region206: #{wrap_t5_forward.1} parent=87 // pred_fallthru
          _
        // Predicated region
        $region241: #{wrap_t5_forward.1} parent=87 // pred_check
          %p5403 = pneg %p517
        $region242: #{wrap_t5_forward.1} parent=87 // pred_check_branch
          %5405 = sbr.rel (%p5403) target = $region244
        $region243: #{wrap_t5_forward.1} parent=87 // pred_region
          %s5406 = smul.addr %s33, 8
          %s5407 = scalar_lea.vmem %s21, %s5406
          // Predicated region
          $region245: #{wrap_t5_forward.1} parent=243 // pred_check
            _
          $region246: #{wrap_t5_forward.1} parent=243 // pred_check_branch
            %5409 = sbr.rel (0) target = $region248
          $region247: #{wrap_t5_forward.1} parent=243 // pred_region
            // Predicated region
            $region249: #{wrap_t5_forward.1} parent=247 // pred_check
              _
            $region250: #{wrap_t5_forward.1} parent=247 // pred_check_branch
              %5411 = sbr.rel (0) target = $region252
            $region251: #{wrap_t5_forward.1} parent=247 // pred_region
              // Predicated region
              $region264: #{wrap_t5_forward.1} parent=251 // pred_check
                _
              $region265: #{wrap_t5_forward.1} parent=251 // pred_check_branch
                %5441 = sbr.rel (0) target = $region267
              $region266: #{wrap_t5_forward.1} parent=251 // pred_region
                loop: start=0, step=1, limit=1
                $region268: #{wrap_t5_forward.1} parent=266 // loop_pre_header
                  _
                $region269: #{wrap_t5_forward.1} parent=266 // loop_header
                  %s5443 = sphi 0, %s5447
                  %p5444 = scmp.ge.s32.totalorder %s5443, 1
                  %s5448 = sphi %s5158, %s5158
                  %s5449 = sphi %s5407, %s5407
                $region270: #{wrap_t5_forward.1} parent=266 // loop_header_branch
                  %5446 = sbr.rel (%p5444) target = $region274
                $region271: #{wrap_t5_forward.1} parent=266 // loop_body
                  %v5450 = vld [vmem:[%s5448] sm:$0xff]
                  %5451 = vst [vmem:[%s5449] sm:$0xff] %v5450
                  %v5452 = vld [vmem:[%s5448 + $0x8] sm:$0xff]
                  %5453 = vst [vmem:[%s5449 + $0x10] sm:$0xff] %v5452
                  %v5454 = vld [vmem:[%s5448 + $0x10] sm:$0xff]
                  %5455 = vst [vmem:[%s5449 + $0x20] sm:$0xff] %v5454
                  %v5456 = vld [vmem:[%s5448 + $0x18] sm:$0xff]
                  %5457 = vst [vmem:[%s5449 + $0x30] sm:$0xff] %v5456
                  %v5458 = vld [vmem:[%s5448 + $0x20] sm:$0xff]
                  %5459 = vst [vmem:[%s5449 + $0x40] sm:$0xff] %v5458
                  %v5460 = vld [vmem:[%s5448 + $0x28] sm:$0xff]
                  %5461 = vst [vmem:[%s5449 + $0x50] sm:$0xff] %v5460
                  %v5462 = vld [vmem:[%s5448 + $0x30] sm:$0xff]
                  %5463 = vst [vmem:[%s5449 + $0x60] sm:$0xff] %v5462
                  %v5464 = vld [vmem:[%s5448 + $0x38] sm:$0xff]
                  %5465 = vst [vmem:[%s5449 + $0x70] sm:$0xff] %v5464
                $region272: #{wrap_t5_forward.1} parent=266 // loop_footer
                  %s5447 = sadd.s32 1, %s5443
                $region273: #{wrap_t5_forward.1} parent=266 // loop_footer_branch
                  %5442 = sbr.rel target = $region269
                $region274: #{wrap_t5_forward.1} parent=266 // loop_exit
                  _
              $region267: #{wrap_t5_forward.1} parent=251 // pred_fallthru
                _
              // Predicated region
              $region275: #{wrap_t5_forward.1} parent=251 // pred_check
                _
              $region276: #{wrap_t5_forward.1} parent=251 // pred_check_branch
                %5467 = sbr.rel target = $region278
              $region277: #{wrap_t5_forward.1} parent=251 // pred_region
                _
              $region278: #{wrap_t5_forward.1} parent=251 // pred_fallthru
                _
            $region252: #{wrap_t5_forward.1} parent=247 // pred_fallthru
              _
            // Predicated region
            $region253: #{wrap_t5_forward.1} parent=247 // pred_check
              _
            $region254: #{wrap_t5_forward.1} parent=247 // pred_check_branch
              %5413 = sbr.rel target = $region256
            $region255: #{wrap_t5_forward.1} parent=247 // pred_region
              %s5415 = ssub.s32 256, 1
              loop: start=0, step=1, limit=1
              $region257: #{wrap_t5_forward.1} parent=255 // loop_pre_header
                _
              $region258: #{wrap_t5_forward.1} parent=255 // loop_header
                %s5417 = sphi 0, %s5421
                %p5418 = scmp.ge.s32.totalorder %s5417, 1
                %s5422 = sphi %s5158, %s5158
                %s5423 = sphi %s5407, %s5407
              $region259: #{wrap_t5_forward.1} parent=255 // loop_header_branch
                %5420 = sbr.rel (%p5418) target = $region263
              $region260: #{wrap_t5_forward.1} parent=255 // loop_body
                %v5424 = vld [vmem:[%s5422] sm:%s5415]
                %5425 = vst [vmem:[%s5423] sm:%s5415] %v5424
                %v5426 = vld [vmem:[%s5422 + $0x8] sm:%s5415]
                %5427 = vst [vmem:[%s5423 + $0x10] sm:%s5415] %v5426
                %v5428 = vld [vmem:[%s5422 + $0x10] sm:%s5415]
                %5429 = vst [vmem:[%s5423 + $0x20] sm:%s5415] %v5428
                %v5430 = vld [vmem:[%s5422 + $0x18] sm:%s5415]
                %5431 = vst [vmem:[%s5423 + $0x30] sm:%s5415] %v5430
                %v5432 = vld [vmem:[%s5422 + $0x20] sm:%s5415]
                %5433 = vst [vmem:[%s5423 + $0x40] sm:%s5415] %v5432
                %v5434 = vld [vmem:[%s5422 + $0x28] sm:%s5415]
                %5435 = vst [vmem:[%s5423 + $0x50] sm:%s5415] %v5434
                %v5436 = vld [vmem:[%s5422 + $0x30] sm:%s5415]
                %5437 = vst [vmem:[%s5423 + $0x60] sm:%s5415] %v5436
                %v5438 = vld [vmem:[%s5422 + $0x38] sm:%s5415]
                %5439 = vst [vmem:[%s5423 + $0x70] sm:%s5415] %v5438
              $region261: #{wrap_t5_forward.1} parent=255 // loop_footer
                %s5421 = sadd.s32 1, %s5417
              $region262: #{wrap_t5_forward.1} parent=255 // loop_footer_branch
                %5416 = sbr.rel target = $region258
              $region263: #{wrap_t5_forward.1} parent=255 // loop_exit
                _
            $region256: #{wrap_t5_forward.1} parent=247 // pred_fallthru
              _
          $region248: #{wrap_t5_forward.1} parent=243 // pred_fallthru
            _
          %5468 = vnop
        $region244: #{wrap_t5_forward.1} parent=87 // pred_fallthru
          _
      $region88: #{wrap_t5_forward.1} parent=5 // pred_fallthru
        _
      %p5469 = scmp.le.s32.totalorder 2, %s28
      // Predicated region
      $region279: #{wrap_t5_forward.1} parent=5 // pred_check
        %p5470 = pneg %p5469
      $region280: #{wrap_t5_forward.1} parent=5 // pred_check_branch
        %5472 = sbr.rel (%p5470) target = $region282
      $region281: #{wrap_t5_forward.1} parent=5 // pred_region
        %s5473 = ssub.s32 %s28, 2
        // Predicated region
        $region283: #{wrap_t5_forward.1} parent=281 // pred_check
          %p5474 = pneg %p419
        $region284: #{wrap_t5_forward.1} parent=281 // pred_check_branch
          %5476 = sbr.rel (%p5474) target = $region286
        $region285: #{wrap_t5_forward.1} parent=281 // pred_region
          %s5477 = sand.u32 %s404, 1
          %s5478 = sand.u32 %s404, 1
          %s5479 = smul.addr %s5478, 24
          %s5480 = scalar_lea.vmem [#allocation2], %s5479
        $region286: #{wrap_t5_forward.1} parent=281 // pred_fallthru
          _
        // Predicated region
        $region287: #{wrap_t5_forward.1} parent=281 // pred_check
          %p5481 = pneg %p445
        $region288: #{wrap_t5_forward.1} parent=281 // pred_check_branch
          %5483 = sbr.rel (%p5481) target = $region290
        $region289: #{wrap_t5_forward.1} parent=281 // pred_region
          %s5484 = sand.u32 %s430, 1
          %s5485 = sand.u32 %s430, 1
          %s5486 = smul.addr %s5485, 64
          %s5487 = scalar_lea.vmem [#allocation3], %s5486
        $region290: #{wrap_t5_forward.1} parent=281 // pred_fallthru
          _
        // Predicated region
        $region291: #{wrap_t5_forward.1} parent=281 // pred_check
          %p5488 = pneg %p471
        $region292: #{wrap_t5_forward.1} parent=281 // pred_check_branch
          %5490 = sbr.rel (%p5488) target = $region294
        $region293: #{wrap_t5_forward.1} parent=281 // pred_region
          %s5491 = sand.u32 %s456, 1
          %s5492 = sand.u32 %s456, 1
          %s5493 = smul.addr %s5492, 64
          %s5494 = scalar_lea.vmem [#allocation4], %s5493
        $region294: #{wrap_t5_forward.1} parent=281 // pred_fallthru
          _
        // Predicated region
        $region295: #{wrap_t5_forward.1} parent=281 // pred_check
          %p5495 = pneg %p497
        $region296: #{wrap_t5_forward.1} parent=281 // pred_check_branch
          %5497 = sbr.rel (%p5495) target = $region298
        $region297: #{wrap_t5_forward.1} parent=281 // pred_region
          %s5498 = sand.u32 %s482, 1
          %s5499 = sand.u32 %s482, 1
          %s5500 = smul.addr %s5499, 64
          %s5501 = scalar_lea.vmem [#allocation5], %s5500
        $region298: #{wrap_t5_forward.1} parent=281 // pred_fallthru
          _
        // Predicated region
        $region299: #{wrap_t5_forward.1} parent=281 // pred_check
          %p5502 = pneg %p523
        $region300: #{wrap_t5_forward.1} parent=281 // pred_check_branch
          %5504 = sbr.rel (%p5502) target = $region302
        $region301: #{wrap_t5_forward.1} parent=281 // pred_region
          %s5505 = sand.u32 %s508, 1
          %s5506 = sand.u32 %s508, 1
          %s5507 = smul.addr %s5506, 64
          %s5508 = scalar_lea.vmem [#allocation6], %s5507
        $region302: #{wrap_t5_forward.1} parent=281 // pred_fallthru
          _
      $region282: #{wrap_t5_forward.1} parent=5 // pred_fallthru
        _
    $region6: #{wrap_t5_forward.1} parent=1 // loop_footer
      %s32 = sadd.s32 1, %s28
    $region7: #{wrap_t5_forward.1} parent=1 // loop_footer_branch
      %27 = sbr.rel target = $region3
    $region8: #{wrap_t5_forward.1} parent=1 // loop_exit
      _

</llo_original>
